<compile_context>
chip_gen: v7x
topology: tpu7x:2x2x1
jax: 0.10.0
libtpu: 0.0.40
codegen_flags: <defaults>
</compile_context>

<pallas_src>
import math
import functools

import jax
import jax.numpy as jnp
from jax import lax
from jax.experimental import pallas as pl
from jax.experimental.pallas import tpu as pltpu

LANE = 128                 # TPU lane width: every feature dim is padded to a multiple of this
_BF16_INPUT_PROJ = True    # bf16 inputs (f32 accumulation) for the big non-recurrent matmuls


def _rup(x, m):
    return ((int(x) + m - 1) // m) * m


# ----------------------------------------------------------------------------
# Fused BiGRU-stack + attention (+ classifier) kernel factory
# ----------------------------------------------------------------------------
def _make_level_kernel(*, T, Nt, Hp, num_layers, with_classifier, use_bf16, unroll):
    """Kernel ref order:
       inputs : x (T,Nt,Din0), lengths (Nt,1) i32,
                per layer: w_i (Din_l,6Hp), b_i (1,6Hp), w_hf (Hp,3Hp), w_hb (Hp,3Hp),
                           b_hf (1,3Hp), b_hb (1,3Hp),
                att_w (2Hp,Ap), att_b (1,Ap), att_u (1,Ap), [cls_w (2Hp,Cp), cls_b (1,Cp)]
       outputs: pooled (Nt,2Hp), alpha (T,Nt,1), [logits (Nt,Cp)]
       scratch: gx (T,Nt,6Hp), seq_f (T,Nt,Hp), seq_b (T,Nt,Hp), h_f (Nt,Hp), h_b (Nt,Hp)
    """
    H3 = 3 * Hp

    def kernel(*refs):
        pos = 0
        x_ref = refs[pos]; pos += 1
        len_ref = refs[pos]; pos += 1
        layer_refs = []
        for _ in range(num_layers):
            layer_refs.append(refs[pos:pos + 6])
            pos += 6
        attw_ref, attb_ref, attu_ref = refs[pos], refs[pos + 1], refs[pos + 2]
        pos += 3
        if with_classifier:
            clsw_ref, clsb_ref = refs[pos], refs[pos + 1]
            pos += 2
        pooled_ref = refs[pos]; alpha_ref = refs[pos + 1]; pos += 2
        if with_classifier:
            logits_ref = refs[pos]; pos += 1
        gx_scr, sf_scr, sb_scr, hf_scr, hb_scr = refs[pos:pos + 5]

        lengths = len_ref[...]                                  # (Nt, 1) int32

        def mm(a, b):
            if use_bf16:
                return jnp.dot(a.astype(jnp.bfloat16), b.astype(jnp.bfloat16),
                               preferred_element_type=jnp.float32)
            return jnp.dot(a, b, preferred_element_type=jnp.float32)

        for l in range(num_layers):
            wi_ref, bi_ref, whf_ref, whb_ref, bhf_ref, bhb_ref = layer_refs[l]

            # ---- hoisted input projection: all T steps, both directions, one matmul,
            #      b_ih folded in ----
            wi = wi_ref[...]
            if l == 0:
                xin = x_ref[...].reshape(T * Nt, x_ref.shape[2])
                gx = mm(xin, wi)
            else:
                sf2d = sf_scr[...].reshape(T * Nt, Hp)
                sb2d = sb_scr[...].reshape(T * Nt, Hp)
                gx = mm(sf2d, wi[:Hp]) + mm(sb2d, wi[Hp:])
            gx = gx + bi_ref[...]
            gx_scr[...] = gx.reshape(T, Nt, 6 * Hp)

            whf = whf_ref[...]; whb = whb_ref[...]
            bhf = bhf_ref[...]; bhb = bhb_ref[...]

            hf_scr[...] = jnp.zeros_like(hf_scr)
            hb_scr[...] = jnp.zeros_like(hb_scr)

            def cell(g3, gh, h):
                # PyTorch GRU gate order r, z, n ; b_hh stays inside the r-scaled term.
                r = jax.nn.sigmoid(g3[:, :Hp] + gh[:, :Hp])
                z = jax.nn.sigmoid(g3[:, Hp:2 * Hp] + gh[:, Hp:2 * Hp])
                n = jnp.tanh(g3[:, 2 * Hp:] + r * gh[:, 2 * Hp:])
                return (1.0 - z) * n + z * h

            def step(i, carry):
                # forward direction, t = i
                g = gx_scr[i]                                   # (Nt, 6Hp)
                h_f = hf_scr[...]
                gh_f = jnp.dot(h_f, whf, preferred_element_type=jnp.float32) + bhf
                hf_new = cell(g[:, :H3], gh_f, h_f)
                ok_f = lengths > i
                hf_scr[...] = jnp.where(ok_f, hf_new, h_f)
                sf_scr[i] = jnp.where(ok_f, hf_new, 0.0)
                # backward direction, t = T - 1 - i
                tb = T - 1 - i
                gb = gx_scr[tb]
                h_b = hb_scr[...]
                gh_b = jnp.dot(h_b, whb, preferred_element_type=jnp.float32) + bhb
                hb_new = cell(gb[:, H3:], gh_b, h_b)
                ok_b = lengths > tb
                hb_scr[...] = jnp.where(ok_b, hb_new, h_b)
                sb_scr[tb] = jnp.where(ok_b, hb_new, 0.0)
                return carry

            lax.fori_loop(0, T, step, 0, unroll=unroll)
            # inter-layer dropout: identity (eval mode)

        # ---- attention pooling over the last layer's outputs (still in VMEM) ----
        sf = sf_scr[...]                                        # (T, Nt, Hp)
        sb = sb_scr[...]
        aw = attw_ref[...]                                      # (2Hp, Ap)
        proj = jnp.tanh(mm(sf.reshape(T * Nt, Hp), aw[:Hp])
                        + mm(sb.reshape(T * Nt, Hp), aw[Hp:])
                        + attb_ref[...])                        # (T*Nt, Ap)
        # context score on VPU/XLU instead of a 1-wide MXU matmul
        scores = jnp.sum(proj * attu_ref[...], axis=-1, keepdims=True)   # (T*Nt, 1)
        scores = scores.reshape(T, Nt, 1)
        t_ids = lax.broadcasted_iota(jnp.int32, (T, Nt, 1), 0)
        mask = t_ids < lengths.reshape(1, Nt, 1)
        scores = jnp.where(mask, scores, -1e30)
        m = jnp.max(scores, axis=0, keepdims=True)
        e = jnp.where(mask, jnp.exp(scores - m), 0.0)
        s = jnp.sum(e, axis=0, keepdims=True)
        alpha = e * pl.reciprocal(jnp.maximum(s, 1e-20), approx=True)    # zero-length rows -> 0
        alpha_ref[...] = alpha                                  # (T, Nt, 1)

        pooled_f = jnp.sum(sf * alpha, axis=0)                  # (Nt, Hp)
        pooled_b = jnp.sum(sb * alpha, axis=0)
        pooled_ref[:, :Hp] = pooled_f                           # lane-aligned fwd|bwd halves
        pooled_ref[:, Hp:] = pooled_b

        if with_classifier:
            cw = clsw_ref[...]                                  # (2Hp, Cp)
            logits_ref[...] = (
                jnp.dot(pooled_f, cw[:Hp], preferred_element_type=jnp.float32)
                + jnp.dot(pooled_b, cw[Hp:], preferred_element_type=jnp.float32)
                + clsb_ref[...])

    return kernel


# ----------------------------------------------------------------------------
# Host-side wrapper: N-tiling, padding, BlockSpecs
# ----------------------------------------------------------------------------
def _full_spec(a):
    nd = a.ndim
    return pl.BlockSpec(a.shape, lambda i: (0,) * nd)


def _pick_tile(n, t, din_p, Hp, budget_bytes=14 << 20):
    """Largest N-tile (multiple of 8) whose VMEM footprint fits the budget."""
    n8 = _rup(max(int(n), 1), 8)
    # double-buffered input block + gx scratch + fwd/bwd sequence scratch (+ misc)
    per_row = 4 * t * (2 * din_p + 8 * Hp) + 64 * Hp
    tile = 8
    for cand in (16, 32, 64, 128, 256):
        if cand <= n8 and cand * per_row <= budget_bytes:
            tile = cand
    return min(tile, n8)


def han_level(x_tm, lengths, lp, *, with_classifier=False):
    """One HAN level (BiGRU stack + attention [+ classifier]) as a single fused
    Pallas kernel, tiled over the flattened sequence axis N.

    x_tm: (T, N, Din_p) f32 time-major; lengths: (N,) int32 (0 -> all-zero outputs).
    Returns pooled (N, 2Hp), alpha (T, N) [, logits (N, Cp)]."""
    T, N, Din = x_tm.shape
    Hp = lp['Hp']
    layers = lp['layers']
    att = lp['att']

    tile = _pick_tile(N, T, Din, Hp)
    Npad = _rup(N, tile)
    if Npad != N:
        x_tm = jnp.pad(x_tm, ((0, 0), (0, Npad - N), (0, 0)))
        lengths = jnp.pad(lengths, (0, Npad - N))      # padded rows: length 0 -> zero outputs
    len2d = lengths.astype(jnp.int32).reshape(Npad, 1)

    in_specs = [pl.BlockSpec((T, tile, Din), lambda i: (0, i, 0)),
                pl.BlockSpec((tile, 1), lambda i: (i, 0))]
    args = [x_tm, len2d]
    for lyr in layers:
        for name in ('w_i', 'b_i', 'w_hf', 'w_hb', 'b_hf', 'b_hb'):
            a = lyr[name]
            in_specs.append(_full_spec(a))
            args.append(a)
    for name in ('w', 'b', 'u'):
        a = att[name]
        in_specs.append(_full_spec(a))
        args.append(a)

    out_shape = [jax.ShapeDtypeStruct((Npad, 2 * Hp), jnp.float32),
                 jax.ShapeDtypeStruct((T, Npad, 1), jnp.float32)]
    out_specs = [pl.BlockSpec((tile, 2 * Hp), lambda i: (i, 0)),
                 pl.BlockSpec((T, tile, 1), lambda i: (0, i, 0))]
    if with_classifier:
        cls = lp['cls']
        for name in ('w', 'b'):
            a = cls[name]
            in_specs.append(_full_spec(a))
            args.append(a)
        Cp = cls['w'].shape[1]
        out_shape.append(jax.ShapeDtypeStruct((Npad, Cp), jnp.float32))
        out_specs.append(pl.BlockSpec((tile, Cp), lambda i: (i, 0)))

    kernel = _make_level_kernel(
        T=T, Nt=tile, Hp=Hp, num_layers=len(layers),
        with_classifier=with_classifier, use_bf16=_BF16_INPUT_PROJ,
        unroll=(T if T <= 16 else 4))

    scratch = [pltpu.VMEM((T, tile, 6 * Hp), jnp.float32),   # hoisted input projections
               pltpu.VMEM((T, tile, Hp), jnp.float32),       # fwd sequence outputs
               pltpu.VMEM((T, tile, Hp), jnp.float32),       # bwd sequence outputs
               pltpu.VMEM((tile, Hp), jnp.float32),          # fwd hidden state
               pltpu.VMEM((tile, Hp), jnp.float32)]          # bwd hidden state

    outs = pl.pallas_call(
        kernel,
        grid=(Npad // tile,),
        in_specs=in_specs,
        out_specs=tuple(out_specs),
        out_shape=tuple(out_shape),
        scratch_shapes=scratch,
        compiler_params=pltpu.CompilerParams(
            dimension_semantics=("parallel",),
            vmem_limit_bytes=32 * 1024 * 1024),
    )(*args)

    pooled = outs[0][:N]
    alpha = outs[1][:, :N, 0]
    if with_classifier:
        return pooled, alpha, outs[2][:N]
    return pooled, alpha


# ----------------------------------------------------------------------------
# Parameter construction: xavier-uniform matrices, zero biases, N(0,1) embedding
# with padding row 0 zeroed (mirrors the PyTorch _init_weights), then zero-padded
# into lane-aligned, fwd|bwd-concatenated kernel layouts.
# ----------------------------------------------------------------------------
def _xavier(key, fan_in, fan_out):
    limit = math.sqrt(6.0 / (fan_in + fan_out))
    return jax.random.uniform(key, (fan_in, fan_out), jnp.float32, -limit, limit)


def _pad_gate_cols(w, H, Hp):
    # (din, 3H) -> (din, 3Hp): gate g columns land at [g*Hp : g*Hp + H]
    out = jnp.zeros((w.shape[0], 3 * Hp), jnp.float32)
    for g in range(3):
        out = out.at[:, g * Hp:g * Hp + H].set(w[:, g * H:(g + 1) * H])
    return out


def _pad_rows_dense(w, rows_p):
    out = jnp.zeros((rows_p, w.shape[1]), jnp.float32)
    return out.at[:w.shape[0]].set(w)


def _pad_rows_bidir(w, H_in, Hp_in):
    # logical rows [fwd H_in | bwd H_in] -> padded rows [0:H_in] and [Hp_in:Hp_in+H_in]
    out = jnp.zeros((2 * Hp_in, w.shape[1]), jnp.float32)
    out = out.at[:H_in].set(w[:H_in])
    return out.at[Hp_in:Hp_in + H_in].set(w[H_in:2 * H_in])


def _make_gru_layer(key, d_in, H, Hp, row_padder):
    kf1, kf2, kb1, kb2 = jax.random.split(key, 4)

    def one_dir(ki, kh):
        w_ih = row_padder(_pad_gate_cols(_xavier(ki, d_in, 3 * H), H, Hp))
        w_hh = _pad_rows_dense(_pad_gate_cols(_xavier(kh, H, 3 * H), H, Hp), Hp)
        return w_ih, w_hh

    wif, whf = one_dir(kf1, kf2)
    wib, whb = one_dir(kb1, kb2)
    return {'w_i': jnp.concatenate([wif, wib], axis=1),          # (d_in_p, 6Hp)
            'b_i': jnp.zeros((1, 6 * Hp), jnp.float32),
            'w_hf': whf, 'w_hb': whb,
            'b_hf': jnp.zeros((1, 3 * Hp), jnp.float32),
            'b_hb': jnp.zeros((1, 3 * Hp), jnp.float32)}


def _make_attention(key, H, Hp, A, Ap):
    k1, k2 = jax.random.split(key)
    w = _xavier(k1, 2 * H, A)
    u = _xavier(k2, A, 1)
    w_p = jnp.zeros((2 * Hp, Ap), jnp.float32)
    w_p = w_p.at[:H, :A].set(w[:H]).at[Hp:Hp + H, :A].set(w[H:])
    u_p = jnp.zeros((1, Ap), jnp.float32).at[0, :A].set(u[:, 0])
    return {'w': w_p, 'b': jnp.zeros((1, Ap), jnp.float32), 'u': u_p}


def _make_classifier(key, H, Hp, C, Cp):
    w = _xavier(key, 2 * H, C)
    w_p = jnp.zeros((2 * Hp, Cp), jnp.float32)
    w_p = w_p.at[:H, :C].set(w[:H]).at[Hp:Hp + H, :C].set(w[H:])
    return {'w': w_p, 'b': jnp.zeros((1, Cp), jnp.float32)}


def init_params(key, V, E, Hw, Lw, Aw, Hs, Ls, As, C):
    Ep, Hwp, Awp = _rup(E, LANE), _rup(Hw, LANE), _rup(Aw, LANE)
    Hsp, Asp, Cp = _rup(Hs, LANE), _rup(As, LANE), _rup(C, LANE)
    k_emb, k_wgru, k_watt, k_sgru, k_satt, k_cls = jax.random.split(key, 6)

    emb = jnp.zeros((V, Ep), jnp.float32).at[:, :E].set(
        jax.random.normal(k_emb, (V, E), jnp.float32))
    emb = emb.at[0].set(0.0)                                    # padding_idx = 0

    def gru_stack(k, L, d_in0, H, Hp, first_row_padder):
        layers = []
        for l in range(L):
            k, kl = jax.random.split(k)
            if l == 0:
                layers.append(_make_gru_layer(kl, d_in0, H, Hp, first_row_padder))
            else:
                layers.append(_make_gru_layer(
                    kl, 2 * H, H, Hp, lambda w: _pad_rows_bidir(w, H, Hp)))
        return layers

    word_layers = gru_stack(k_wgru, Lw, E, Hw, Hwp,
                            lambda w: _pad_rows_dense(w, Ep))
    sent_layers = gru_stack(k_sgru, Ls, 2 * Hw, Hs, Hsp,
                            lambda w: _pad_rows_bidir(w, Hw, Hwp))

    return {
        'embedding': emb,
        'word': {'Hp': Hwp, 'layers': word_layers,
                 'att': _make_attention(k_watt, Hw, Hwp, Aw, Awp)},
        'sent': {'Hp': Hsp, 'layers': sent_layers,
                 'att': _make_attention(k_satt, Hs, Hsp, As, Asp),
                 'cls': _make_classifier(k_cls, Hs, Hsp, C, Cp)},
        'num_classes': C,
    }


# ----------------------------------------------------------------------------
# Full HAN forward
# ----------------------------------------------------------------------------
def han_forward(params, documents, word_lengths, sentence_lengths):
    B, S, Tw = documents.shape
    Nw = B * S
    docs_flat = documents.reshape(Nw, Tw).astype(jnp.int32)
    wl = word_lengths.reshape(Nw).astype(jnp.int32)
    sl = sentence_lengths.astype(jnp.int32)

    # TODO(synk): the embedding gather stays in XLA (jnp.take) — an in-kernel TPU
    # gather over a large vocab has no efficient Pallas equivalent.  The gather is
    # issued directly in time-major order so no separate transpose pass is needed.
    emb_tm = jnp.take(params['embedding'], docs_flat.T, axis=0)          # (Tw, Nw, Ep)

    # ---- word level: fused BiGRU stack + attention pooling ----
    sent_vec, w_alpha_tm = han_level(emb_tm, wl, params['word'], with_classifier=False)
    word_alpha = jnp.transpose(w_alpha_tm, (1, 0)).reshape(B, S, Tw)

    # ---- sentence level: fused BiGRU stack + attention + classifier ----
    sent_tm = jnp.transpose(sent_vec.reshape(B, S, -1), (1, 0, 2))       # (S, B, 2Hwp)
    _doc_vec, s_alpha_tm, logits_p = han_level(
        sent_tm, sl, params['sent'], with_classifier=True)
    sent_alpha = jnp.transpose(s_alpha_tm, (1, 0))                       # (B, S)
    logits = logits_p[:, :params['num_classes']]
    return logits, word_alpha, sent_alpha


# ----------------------------------------------------------------------------
if __name__ == "__main__":
    # model hyperparameters (small, consistent with the module's __init__)
    V, E = 50, 16            # vocabulary, embedding dim
    Hw, Lw, Aw = 16, 1, 16   # word GRU hidden, layers, word attention dim
    Hs, Ls, As = 16, 1, 16   # sentence GRU hidden, layers, sentence attention dim
    C = 5                    # number of classes
    B, S, Tw = 2, 3, 8       # batch, max sentences per doc, max words per sentence

    params = init_params(jax.random.PRNGKey(0), V, E, Hw, Lw, Aw, Hs, Ls, As, C)

    kd = jax.random.PRNGKey(0)
    documents = jax.random.randint(kd, (B, S, Tw), 1, V, dtype=jnp.int32)
    word_lengths = jnp.array([[8, 5, 3], [6, 8, 0]], dtype=jnp.int32)
    sentence_lengths = jnp.array([3, 2], dtype=jnp.int32)
    # zero out padded token positions (padding_idx = 0)
    t_ids = jnp.arange(Tw)[None, None, :]
    documents = jnp.where(t_ids < word_lengths[:, :, None], documents, 0)

    fwd = jax.jit(functools.partial(han_forward, params))
    logits, w_alpha, s_alpha = fwd(documents, word_lengths, sentence_lengths)
    jax.block_until_ready((logits, w_alpha, s_alpha))

    assert logits.shape == (B, C)
    assert w_alpha.shape == (B, S, Tw)
    assert s_alpha.shape == (B, S)
    assert bool(jnp.all(jnp.isfinite(logits)))
    assert bool(jnp.all(jnp.isfinite(w_alpha)))
    assert bool(jnp.all(jnp.isfinite(s_alpha)))
    # attention weights: valid rows sum to ~1, zero-length sentence row is all zero
    w_sums = jnp.sum(w_alpha, axis=-1)
    valid = word_lengths > 0
    assert bool(jnp.all(jnp.abs(jnp.where(valid, w_sums - 1.0, 0.0)) < 2e-2))
    assert bool(jnp.all(w_alpha[1, 2] == 0.0))
    assert bool(jnp.all(jnp.abs(jnp.sum(s_alpha, axis=-1) - 1.0) < 2e-2))
    print("KERNEL_OK")
</pallas_src>

<mosaic_0001>
module attributes {stable_mosaic.version = 11 : i64} {
  func.func @kernel(%arg0: i32, %arg1: memref<8x8x128xf32, #tpu.memory_space<vmem>>, %arg2: memref<8x1xi32, #tpu.memory_space<vmem>>, %arg3: memref<128x768xf32, #tpu.memory_space<vmem>>, %arg4: memref<1x768xf32, #tpu.memory_space<vmem>>, %arg5: memref<128x384xf32, #tpu.memory_space<vmem>>, %arg6: memref<128x384xf32, #tpu.memory_space<vmem>>, %arg7: memref<1x384xf32, #tpu.memory_space<vmem>>, %arg8: memref<1x384xf32, #tpu.memory_space<vmem>>, %arg9: memref<256x128xf32, #tpu.memory_space<vmem>>, %arg10: memref<1x128xf32, #tpu.memory_space<vmem>>, %arg11: memref<1x128xf32, #tpu.memory_space<vmem>>, %arg12: memref<8x256xf32, #tpu.memory_space<vmem>>, %arg13: memref<8x8x1xf32, #tpu.memory_space<vmem>>, %arg14: memref<8x8x768xf32, #tpu.memory_space<vmem>>, %arg15: memref<8x8x128xf32, #tpu.memory_space<vmem>>, %arg16: memref<8x8x128xf32, #tpu.memory_space<vmem>>, %arg17: memref<8x128xf32, #tpu.memory_space<vmem>>, %arg18: memref<8x128xf32, #tpu.memory_space<vmem>>) attributes {dimension_semantics = [#tpu.dimension_semantics<parallel>], iteration_bounds = array<i64: 1>, scalar_prefetch = 0 : i64, scratch_operands = 5 : i64, tpu.core_type = #tpu.core_type<tc>, window_params = [{transform_indices = @transform_0, window_bounds = array<i64: 8, 8, 128>}, {transform_indices = @transform_1, window_bounds = array<i64: 8, 1>}, {pipeline_mode = #tpu.pipeline_mode<synchronous>, transform_indices = @transform_2, window_bounds = array<i64: 128, 768>}, {pipeline_mode = #tpu.pipeline_mode<synchronous>, transform_indices = @transform_3, window_bounds = array<i64: 1, 768>}, {pipeline_mode = #tpu.pipeline_mode<synchronous>, transform_indices = @transform_4, window_bounds = array<i64: 128, 384>}, {pipeline_mode = #tpu.pipeline_mode<synchronous>, transform_indices = @transform_5, window_bounds = array<i64: 128, 384>}, {pipeline_mode = #tpu.pipeline_mode<synchronous>, transform_indices = @transform_6, window_bounds = array<i64: 1, 384>}, {pipeline_mode = #tpu.pipeline_mode<synchronous>, transform_indices = @transform_7, window_bounds = array<i64: 1, 384>}, {pipeline_mode = #tpu.pipeline_mode<synchronous>, transform_indices = @transform_8, window_bounds = array<i64: 256, 128>}, {pipeline_mode = #tpu.pipeline_mode<synchronous>, transform_indices = @transform_9, window_bounds = array<i64: 1, 128>}, {pipeline_mode = #tpu.pipeline_mode<synchronous>, transform_indices = @transform_10, window_bounds = array<i64: 1, 128>}, {transform_indices = @transform_11, window_bounds = array<i64: 8, 256>}, {transform_indices = @transform_12, window_bounds = array<i64: 8, 8, 1>}]} {
    %c0 = arith.constant 0 : index
    %c0_0 = arith.constant 0 : index
    %0 = vector.load %arg2[%c0, %c0_0] : memref<8x1xi32, #tpu.memory_space<vmem>>, vector<8x1xi32>
    %c0_1 = arith.constant 0 : index
    %c0_2 = arith.constant 0 : index
    %1 = vector.load %arg3[%c0_1, %c0_2] : memref<128x768xf32, #tpu.memory_space<vmem>>, vector<128x768xf32>
    %c0_3 = arith.constant 0 : index
    %c0_4 = arith.constant 0 : index
    %c0_5 = arith.constant 0 : index
    %2 = vector.load %arg1[%c0_3, %c0_4, %c0_5] : memref<8x8x128xf32, #tpu.memory_space<vmem>>, vector<8x8x128xf32>
    %3 = vector.shape_cast %2 : vector<8x8x128xf32> to vector<64x128xf32>
    %4 = arith.truncf %3 : vector<64x128xf32> to vector<64x128xbf16>
    %5 = arith.truncf %1 : vector<128x768xf32> to vector<128x768xbf16>
    %cst = arith.constant dense<0.000000e+00> : vector<64x768xf32>
    %6 = tpu.matmul %4, %5, %cst {dimension_numbers = #tpu.dot_dimension_numbers<[1], [0], [0], [1], [0, 0, 1, 1], [], []>} : vector<64x128xbf16>, vector<128x768xbf16>, vector<64x768xf32> -> vector<64x768xf32>
    %c0_6 = arith.constant 0 : index
    %c0_7 = arith.constant 0 : index
    %7 = vector.load %arg4[%c0_6, %c0_7] : memref<1x768xf32, #tpu.memory_space<vmem>>, vector<1x768xf32>
    %8 = vector.broadcast %7 : vector<1x768xf32> to vector<64x768xf32>
    %9 = arith.addf %6, %8 : vector<64x768xf32>
    %10 = vector.shape_cast %9 : vector<64x768xf32> to vector<8x8x768xf32>
    %c0_8 = arith.constant 0 : index
    %c0_9 = arith.constant 0 : index
    %c0_10 = arith.constant 0 : index
    %11 = vector.load %arg14[%c0_8, %c0_9, %c0_10] : memref<8x8x768xf32, #tpu.memory_space<vmem>>, vector<8x8x768xf32>
    tpu.vector_store %arg14[%c0_8, %c0_9, %c0_10], %10 {strides = array<i32>} : memref<8x8x768xf32, #tpu.memory_space<vmem>>, vector<8x8x768xf32>,
    %c0_11 = arith.constant 0 : index
    %c0_12 = arith.constant 0 : index
    %12 = vector.load %arg5[%c0_11, %c0_12] : memref<128x384xf32, #tpu.memory_space<vmem>>, vector<128x384xf32>
    %c0_13 = arith.constant 0 : index
    %c0_14 = arith.constant 0 : index
    %13 = vector.load %arg6[%c0_13, %c0_14] : memref<128x384xf32, #tpu.memory_space<vmem>>, vector<128x384xf32>
    %c0_15 = arith.constant 0 : index
    %c0_16 = arith.constant 0 : index
    %14 = vector.load %arg7[%c0_15, %c0_16] : memref<1x384xf32, #tpu.memory_space<vmem>>, vector<1x384xf32>
    %c0_17 = arith.constant 0 : index
    %c0_18 = arith.constant 0 : index
    %15 = vector.load %arg8[%c0_17, %c0_18] : memref<1x384xf32, #tpu.memory_space<vmem>>, vector<1x384xf32>
    %cst_19 = arith.constant 0.000000e+00 : f32
    %16 = vector.broadcast %cst_19 : f32 to vector<8x128xf32>
    %c0_20 = arith.constant 0 : index
    %c0_21 = arith.constant 0 : index
    %17 = vector.load %arg17[%c0_20, %c0_21] : memref<8x128xf32, #tpu.memory_space<vmem>>, vector<8x128xf32>
    tpu.vector_store %arg17[%c0_20, %c0_21], %16 {strides = array<i32>} : memref<8x128xf32, #tpu.memory_space<vmem>>, vector<8x128xf32>,
    %cst_22 = arith.constant 0.000000e+00 : f32
    %18 = vector.broadcast %cst_22 : f32 to vector<8x128xf32>
    %c0_23 = arith.constant 0 : index
    %c0_24 = arith.constant 0 : index
    %19 = vector.load %arg18[%c0_23, %c0_24] : memref<8x128xf32, #tpu.memory_space<vmem>>, vector<8x128xf32>
    tpu.vector_store %arg18[%c0_23, %c0_24], %18 {strides = array<i32>} : memref<8x128xf32, #tpu.memory_space<vmem>>, vector<8x128xf32>,
    %c0_i32 = arith.constant 0 : i32
    %20 = arith.index_cast %c0_i32 : i32 to index
    %c0_25 = arith.constant 0 : index
    %c0_26 = arith.constant 0 : index
    %21 = vector.load %arg14[%20, %c0_25, %c0_26] : memref<8x8x768xf32, #tpu.memory_space<vmem>>, vector<1x8x768xf32>
    %22 = vector.shape_cast %21 : vector<1x8x768xf32> to vector<8x768xf32>
    %c0_27 = arith.constant 0 : index
    %c0_28 = arith.constant 0 : index
    %23 = vector.load %arg17[%c0_27, %c0_28] : memref<8x128xf32, #tpu.memory_space<vmem>>, vector<8x128xf32>
    %cst_29 = arith.constant dense<0.000000e+00> : vector<8x384xf32>
    %24 = tpu.matmul %23, %12, %cst_29 {dimension_numbers = #tpu.dot_dimension_numbers<[1], [0], [0], [1], [0, 0, 1, 1], [], []>} : vector<8x128xf32>, vector<128x384xf32>, vector<8x384xf32> -> vector<8x384xf32>
    %25 = vector.broadcast %14 : vector<1x384xf32> to vector<8x384xf32>
    %26 = arith.addf %24, %25 : vector<8x384xf32>
    %27 = vector.extract_strided_slice %22 {offsets = [0, 0], sizes = [8, 384], strides = [1, 1]} : vector<8x768xf32> to vector<8x384xf32>
    %28 = vector.extract_strided_slice %27 {offsets = [0, 0], sizes = [8, 128], strides = [1, 1]} : vector<8x384xf32> to vector<8x128xf32>
    %29 = vector.extract_strided_slice %26 {offsets = [0, 0], sizes = [8, 128], strides = [1, 1]} : vector<8x384xf32> to vector<8x128xf32>
    %30 = arith.addf %28, %29 : vector<8x128xf32>
    %31 = arith.negf %30 : vector<8x128xf32>
    %32 = math.exp %31 : vector<8x128xf32>
    %cst_30 = arith.constant 1.000000e+00 : f32
    %33 = vector.broadcast %cst_30 : f32 to vector<8x128xf32>
    %34 = arith.addf %33, %32 : vector<8x128xf32>
    %35 = arith.divf %33, %34 : vector<8x128xf32>
    %36 = vector.extract_strided_slice %27 {offsets = [0, 128], sizes = [8, 128], strides = [1, 1]} : vector<8x384xf32> to vector<8x128xf32>
    %37 = vector.extract_strided_slice %26 {offsets = [0, 128], sizes = [8, 128], strides = [1, 1]} : vector<8x384xf32> to vector<8x128xf32>
    %38 = arith.addf %36, %37 : vector<8x128xf32>
    %39 = arith.negf %38 : vector<8x128xf32>
    %40 = math.exp %39 : vector<8x128xf32>
    %cst_31 = arith.constant 1.000000e+00 : f32
    %41 = vector.broadcast %cst_31 : f32 to vector<8x128xf32>
    %42 = arith.addf %41, %40 : vector<8x128xf32>
    %43 = arith.divf %41, %42 : vector<8x128xf32>
    %44 = vector.extract_strided_slice %27 {offsets = [0, 256], sizes = [8, 128], strides = [1, 1]} : vector<8x384xf32> to vector<8x128xf32>
    %45 = vector.extract_strided_slice %26 {offsets = [0, 256], sizes = [8, 128], strides = [1, 1]} : vector<8x384xf32> to vector<8x128xf32>
    %46 = arith.mulf %35, %45 : vector<8x128xf32>
    %47 = arith.addf %44, %46 : vector<8x128xf32>
    %48 = math.tanh %47 : vector<8x128xf32>
    %cst_32 = arith.constant 1.000000e+00 : f32
    %49 = vector.broadcast %cst_32 : f32 to vector<8x128xf32>
    %50 = arith.subf %49, %43 : vector<8x128xf32>
    %51 = arith.mulf %50, %48 : vector<8x128xf32>
    %52 = arith.mulf %43, %23 : vector<8x128xf32>
    %53 = arith.addf %51, %52 : vector<8x128xf32>
    %54 = vector.broadcast %c0_i32 : i32 to vector<8x1xi32>
    %55 = arith.cmpi sgt, %0, %54 : vector<8x1xi32>
    %56 = vector.shape_cast %55 : vector<8x1xi1> to vector<8x1xi1>
    %57 = vector.broadcast %56 : vector<8x1xi1> to vector<8x128xi1>
    %58 = arith.select %57, %53, %23 : vector<8x128xi1>, vector<8x128xf32>
    %c0_33 = arith.constant 0 : index
    %c0_34 = arith.constant 0 : index
    %59 = vector.load %arg17[%c0_33, %c0_34] : memref<8x128xf32, #tpu.memory_space<vmem>>, vector<8x128xf32>
    tpu.vector_store %arg17[%c0_33, %c0_34], %58 {strides = array<i32>} : memref<8x128xf32, #tpu.memory_space<vmem>>, vector<8x128xf32>,
    %cst_35 = arith.constant 0.000000e+00 : f32
    %60 = vector.shape_cast %55 : vector<8x1xi1> to vector<8x1xi1>
    %61 = vector.broadcast %60 : vector<8x1xi1> to vector<8x128xi1>
    %62 = vector.broadcast %cst_35 : f32 to vector<8x128xf32>
    %63 = arith.select %61, %53, %62 : vector<8x128xi1>, vector<8x128xf32>
    %64 = arith.index_cast %c0_i32 : i32 to index
    %c0_36 = arith.constant 0 : index
    %c0_37 = arith.constant 0 : index
    %65 = vector.load %arg15[%64, %c0_36, %c0_37] : memref<8x8x128xf32, #tpu.memory_space<vmem>>, vector<1x8x128xf32>
    %66 = vector.shape_cast %65 : vector<1x8x128xf32> to vector<8x128xf32>
    %67 = vector.shape_cast %63 : vector<8x128xf32> to vector<1x8x128xf32>
    tpu.vector_store %arg15[%64, %c0_36, %c0_37], %67 {strides = array<i32>} : memref<8x8x128xf32, #tpu.memory_space<vmem>>, vector<1x8x128xf32>,
    %c7_i32 = arith.constant 7 : i32
    %68 = arith.subi %c7_i32, %c0_i32 : i32
    %69 = arith.index_cast %68 : i32 to index
    %c0_38 = arith.constant 0 : index
    %c0_39 = arith.constant 0 : index
    %70 = vector.load %arg14[%69, %c0_38, %c0_39] : memref<8x8x768xf32, #tpu.memory_space<vmem>>, vector<1x8x768xf32>
    %71 = vector.shape_cast %70 : vector<1x8x768xf32> to vector<8x768xf32>
    %c0_40 = arith.constant 0 : index
    %c0_41 = arith.constant 0 : index
    %72 = vector.load %arg18[%c0_40, %c0_41] : memref<8x128xf32, #tpu.memory_space<vmem>>, vector<8x128xf32>
    %cst_42 = arith.constant dense<0.000000e+00> : vector<8x384xf32>
    %73 = tpu.matmul %72, %13, %cst_42 {dimension_numbers = #tpu.dot_dimension_numbers<[1], [0], [0], [1], [0, 0, 1, 1], [], []>} : vector<8x128xf32>, vector<128x384xf32>, vector<8x384xf32> -> vector<8x384xf32>
    %74 = vector.broadcast %15 : vector<1x384xf32> to vector<8x384xf32>
    %75 = arith.addf %73, %74 : vector<8x384xf32>
    %76 = vector.extract_strided_slice %71 {offsets = [0, 384], sizes = [8, 384], strides = [1, 1]} : vector<8x768xf32> to vector<8x384xf32>
    %77 = vector.extract_strided_slice %76 {offsets = [0, 0], sizes = [8, 128], strides = [1, 1]} : vector<8x384xf32> to vector<8x128xf32>
    %78 = vector.extract_strided_slice %75 {offsets = [0, 0], sizes = [8, 128], strides = [1, 1]} : vector<8x384xf32> to vector<8x128xf32>
    %79 = arith.addf %77, %78 : vector<8x128xf32>
    %80 = arith.negf %79 : vector<8x128xf32>
    %81 = math.exp %80 : vector<8x128xf32>
    %cst_43 = arith.constant 1.000000e+00 : f32
    %82 = vector.broadcast %cst_43 : f32 to vector<8x128xf32>
    %83 = arith.addf %82, %81 : vector<8x128xf32>
    %84 = arith.divf %82, %83 : vector<8x128xf32>
    %85 = vector.extract_strided_slice %76 {offsets = [0, 128], sizes = [8, 128], strides = [1, 1]} : vector<8x384xf32> to vector<8x128xf32>
    %86 = vector.extract_strided_slice %75 {offsets = [0, 128], sizes = [8, 128], strides = [1, 1]} : vector<8x384xf32> to vector<8x128xf32>
    %87 = arith.addf %85, %86 : vector<8x128xf32>
    %88 = arith.negf %87 : vector<8x128xf32>
    %89 = math.exp %88 : vector<8x128xf32>
    %cst_44 = arith.constant 1.000000e+00 : f32
    %90 = vector.broadcast %cst_44 : f32 to vector<8x128xf32>
    %91 = arith.addf %90, %89 : vector<8x128xf32>
    %92 = arith.divf %90, %91 : vector<8x128xf32>
    %93 = vector.extract_strided_slice %76 {offsets = [0, 256], sizes = [8, 128], strides = [1, 1]} : vector<8x384xf32> to vector<8x128xf32>
    %94 = vector.extract_strided_slice %75 {offsets = [0, 256], sizes = [8, 128], strides = [1, 1]} : vector<8x384xf32> to vector<8x128xf32>
    %95 = arith.mulf %84, %94 : vector<8x128xf32>
    %96 = arith.addf %93, %95 : vector<8x128xf32>
    %97 = math.tanh %96 : vector<8x128xf32>
    %cst_45 = arith.constant 1.000000e+00 : f32
    %98 = vector.broadcast %cst_45 : f32 to vector<8x128xf32>
    %99 = arith.subf %98, %92 : vector<8x128xf32>
    %100 = arith.mulf %99, %97 : vector<8x128xf32>
    %101 = arith.mulf %92, %72 : vector<8x128xf32>
    %102 = arith.addf %100, %101 : vector<8x128xf32>
    %103 = vector.broadcast %68 : i32 to vector<8x1xi32>
    %104 = arith.cmpi sgt, %0, %103 : vector<8x1xi32>
    %105 = vector.shape_cast %104 : vector<8x1xi1> to vector<8x1xi1>
    %106 = vector.broadcast %105 : vector<8x1xi1> to vector<8x128xi1>
    %107 = arith.select %106, %102, %72 : vector<8x128xi1>, vector<8x128xf32>
    %c0_46 = arith.constant 0 : index
    %c0_47 = arith.constant 0 : index
    %108 = vector.load %arg18[%c0_46, %c0_47] : memref<8x128xf32, #tpu.memory_space<vmem>>, vector<8x128xf32>
    tpu.vector_store %arg18[%c0_46, %c0_47], %107 {strides = array<i32>} : memref<8x128xf32, #tpu.memory_space<vmem>>, vector<8x128xf32>,
    %cst_48 = arith.constant 0.000000e+00 : f32
    %109 = vector.shape_cast %104 : vector<8x1xi1> to vector<8x1xi1>
    %110 = vector.broadcast %109 : vector<8x1xi1> to vector<8x128xi1>
    %111 = vector.broadcast %cst_48 : f32 to vector<8x128xf32>
    %112 = arith.select %110, %102, %111 : vector<8x128xi1>, vector<8x128xf32>
    %113 = arith.index_cast %68 : i32 to index
    %c0_49 = arith.constant 0 : index
    %c0_50 = arith.constant 0 : index
    %114 = vector.load %arg16[%113, %c0_49, %c0_50] : memref<8x8x128xf32, #tpu.memory_space<vmem>>, vector<1x8x128xf32>
    %115 = vector.shape_cast %114 : vector<1x8x128xf32> to vector<8x128xf32>
    %116 = vector.shape_cast %112 : vector<8x128xf32> to vector<1x8x128xf32>
    tpu.vector_store %arg16[%113, %c0_49, %c0_50], %116 {strides = array<i32>} : memref<8x8x128xf32, #tpu.memory_space<vmem>>, vector<1x8x128xf32>,
    %c1_i32 = arith.constant 1 : i32
    %117 = arith.index_cast %c1_i32 : i32 to index
    %c0_51 = arith.constant 0 : index
    %c0_52 = arith.constant 0 : index
    %118 = vector.load %arg14[%117, %c0_51, %c0_52] : memref<8x8x768xf32, #tpu.memory_space<vmem>>, vector<1x8x768xf32>
    %119 = vector.shape_cast %118 : vector<1x8x768xf32> to vector<8x768xf32>
    %c0_53 = arith.constant 0 : index
    %c0_54 = arith.constant 0 : index
    %120 = vector.load %arg17[%c0_53, %c0_54] : memref<8x128xf32, #tpu.memory_space<vmem>>, vector<8x128xf32>
    %cst_55 = arith.constant dense<0.000000e+00> : vector<8x384xf32>
    %121 = tpu.matmul %120, %12, %cst_55 {dimension_numbers = #tpu.dot_dimension_numbers<[1], [0], [0], [1], [0, 0, 1, 1], [], []>} : vector<8x128xf32>, vector<128x384xf32>, vector<8x384xf32> -> vector<8x384xf32>
    %122 = vector.broadcast %14 : vector<1x384xf32> to vector<8x384xf32>
    %123 = arith.addf %121, %122 : vector<8x384xf32>
    %124 = vector.extract_strided_slice %119 {offsets = [0, 0], sizes = [8, 384], strides = [1, 1]} : vector<8x768xf32> to vector<8x384xf32>
    %125 = vector.extract_strided_slice %124 {offsets = [0, 0], sizes = [8, 128], strides = [1, 1]} : vector<8x384xf32> to vector<8x128xf32>
    %126 = vector.extract_strided_slice %123 {offsets = [0, 0], sizes = [8, 128], strides = [1, 1]} : vector<8x384xf32> to vector<8x128xf32>
    %127 = arith.addf %125, %126 : vector<8x128xf32>
    %128 = arith.negf %127 : vector<8x128xf32>
    %129 = math.exp %128 : vector<8x128xf32>
    %cst_56 = arith.constant 1.000000e+00 : f32
    %130 = vector.broadcast %cst_56 : f32 to vector<8x128xf32>
    %131 = arith.addf %130, %129 : vector<8x128xf32>
    %132 = arith.divf %130, %131 : vector<8x128xf32>
    %133 = vector.extract_strided_slice %124 {offsets = [0, 128], sizes = [8, 128], strides = [1, 1]} : vector<8x384xf32> to vector<8x128xf32>
    %134 = vector.extract_strided_slice %123 {offsets = [0, 128], sizes = [8, 128], strides = [1, 1]} : vector<8x384xf32> to vector<8x128xf32>
    %135 = arith.addf %133, %134 : vector<8x128xf32>
    %136 = arith.negf %135 : vector<8x128xf32>
    %137 = math.exp %136 : vector<8x128xf32>
    %cst_57 = arith.constant 1.000000e+00 : f32
    %138 = vector.broadcast %cst_57 : f32 to vector<8x128xf32>
    %139 = arith.addf %138, %137 : vector<8x128xf32>
    %140 = arith.divf %138, %139 : vector<8x128xf32>
    %141 = vector.extract_strided_slice %124 {offsets = [0, 256], sizes = [8, 128], strides = [1, 1]} : vector<8x384xf32> to vector<8x128xf32>
    %142 = vector.extract_strided_slice %123 {offsets = [0, 256], sizes = [8, 128], strides = [1, 1]} : vector<8x384xf32> to vector<8x128xf32>
    %143 = arith.mulf %132, %142 : vector<8x128xf32>
    %144 = arith.addf %141, %143 : vector<8x128xf32>
    %145 = math.tanh %144 : vector<8x128xf32>
    %cst_58 = arith.constant 1.000000e+00 : f32
    %146 = vector.broadcast %cst_58 : f32 to vector<8x128xf32>
    %147 = arith.subf %146, %140 : vector<8x128xf32>
    %148 = arith.mulf %147, %145 : vector<8x128xf32>
    %149 = arith.mulf %140, %120 : vector<8x128xf32>
    %150 = arith.addf %148, %149 : vector<8x128xf32>
    %151 = vector.broadcast %c1_i32 : i32 to vector<8x1xi32>
    %152 = arith.cmpi sgt, %0, %151 : vector<8x1xi32>
    %153 = vector.shape_cast %152 : vector<8x1xi1> to vector<8x1xi1>
    %154 = vector.broadcast %153 : vector<8x1xi1> to vector<8x128xi1>
    %155 = arith.select %154, %150, %120 : vector<8x128xi1>, vector<8x128xf32>
    %c0_59 = arith.constant 0 : index
    %c0_60 = arith.constant 0 : index
    %156 = vector.load %arg17[%c0_59, %c0_60] : memref<8x128xf32, #tpu.memory_space<vmem>>, vector<8x128xf32>
    tpu.vector_store %arg17[%c0_59, %c0_60], %155 {strides = array<i32>} : memref<8x128xf32, #tpu.memory_space<vmem>>, vector<8x128xf32>,
    %cst_61 = arith.constant 0.000000e+00 : f32
    %157 = vector.shape_cast %152 : vector<8x1xi1> to vector<8x1xi1>
    %158 = vector.broadcast %157 : vector<8x1xi1> to vector<8x128xi1>
    %159 = vector.broadcast %cst_61 : f32 to vector<8x128xf32>
    %160 = arith.select %158, %150, %159 : vector<8x128xi1>, vector<8x128xf32>
    %161 = arith.index_cast %c1_i32 : i32 to index
    %c0_62 = arith.constant 0 : index
    %c0_63 = arith.constant 0 : index
    %162 = vector.load %arg15[%161, %c0_62, %c0_63] : memref<8x8x128xf32, #tpu.memory_space<vmem>>, vector<1x8x128xf32>
    %163 = vector.shape_cast %162 : vector<1x8x128xf32> to vector<8x128xf32>
    %164 = vector.shape_cast %160 : vector<8x128xf32> to vector<1x8x128xf32>
    tpu.vector_store %arg15[%161, %c0_62, %c0_63], %164 {strides = array<i32>} : memref<8x8x128xf32, #tpu.memory_space<vmem>>, vector<1x8x128xf32>,
    %c7_i32_64 = arith.constant 7 : i32
    %165 = arith.subi %c7_i32_64, %c1_i32 : i32
    %166 = arith.index_cast %165 : i32 to index
    %c0_65 = arith.constant 0 : index
    %c0_66 = arith.constant 0 : index
    %167 = vector.load %arg14[%166, %c0_65, %c0_66] : memref<8x8x768xf32, #tpu.memory_space<vmem>>, vector<1x8x768xf32>
    %168 = vector.shape_cast %167 : vector<1x8x768xf32> to vector<8x768xf32>
    %c0_67 = arith.constant 0 : index
    %c0_68 = arith.constant 0 : index
    %169 = vector.load %arg18[%c0_67, %c0_68] : memref<8x128xf32, #tpu.memory_space<vmem>>, vector<8x128xf32>
    %cst_69 = arith.constant dense<0.000000e+00> : vector<8x384xf32>
    %170 = tpu.matmul %169, %13, %cst_69 {dimension_numbers = #tpu.dot_dimension_numbers<[1], [0], [0], [1], [0, 0, 1, 1], [], []>} : vector<8x128xf32>, vector<128x384xf32>, vector<8x384xf32> -> vector<8x384xf32>
    %171 = vector.broadcast %15 : vector<1x384xf32> to vector<8x384xf32>
    %172 = arith.addf %170, %171 : vector<8x384xf32>
    %173 = vector.extract_strided_slice %168 {offsets = [0, 384], sizes = [8, 384], strides = [1, 1]} : vector<8x768xf32> to vector<8x384xf32>
    %174 = vector.extract_strided_slice %173 {offsets = [0, 0], sizes = [8, 128], strides = [1, 1]} : vector<8x384xf32> to vector<8x128xf32>
    %175 = vector.extract_strided_slice %172 {offsets = [0, 0], sizes = [8, 128], strides = [1, 1]} : vector<8x384xf32> to vector<8x128xf32>
    %176 = arith.addf %174, %175 : vector<8x128xf32>
    %177 = arith.negf %176 : vector<8x128xf32>
    %178 = math.exp %177 : vector<8x128xf32>
    %cst_70 = arith.constant 1.000000e+00 : f32
    %179 = vector.broadcast %cst_70 : f32 to vector<8x128xf32>
    %180 = arith.addf %179, %178 : vector<8x128xf32>
    %181 = arith.divf %179, %180 : vector<8x128xf32>
    %182 = vector.extract_strided_slice %173 {offsets = [0, 128], sizes = [8, 128], strides = [1, 1]} : vector<8x384xf32> to vector<8x128xf32>
    %183 = vector.extract_strided_slice %172 {offsets = [0, 128], sizes = [8, 128], strides = [1, 1]} : vector<8x384xf32> to vector<8x128xf32>
    %184 = arith.addf %182, %183 : vector<8x128xf32>
    %185 = arith.negf %184 : vector<8x128xf32>
    %186 = math.exp %185 : vector<8x128xf32>
    %cst_71 = arith.constant 1.000000e+00 : f32
    %187 = vector.broadcast %cst_71 : f32 to vector<8x128xf32>
    %188 = arith.addf %187, %186 : vector<8x128xf32>
    %189 = arith.divf %187, %188 : vector<8x128xf32>
    %190 = vector.extract_strided_slice %173 {offsets = [0, 256], sizes = [8, 128], strides = [1, 1]} : vector<8x384xf32> to vector<8x128xf32>
    %191 = vector.extract_strided_slice %172 {offsets = [0, 256], sizes = [8, 128], strides = [1, 1]} : vector<8x384xf32> to vector<8x128xf32>
    %192 = arith.mulf %181, %191 : vector<8x128xf32>
    %193 = arith.addf %190, %192 : vector<8x128xf32>
    %194 = math.tanh %193 : vector<8x128xf32>
    %cst_72 = arith.constant 1.000000e+00 : f32
    %195 = vector.broadcast %cst_72 : f32 to vector<8x128xf32>
    %196 = arith.subf %195, %189 : vector<8x128xf32>
    %197 = arith.mulf %196, %194 : vector<8x128xf32>
    %198 = arith.mulf %189, %169 : vector<8x128xf32>
    %199 = arith.addf %197, %198 : vector<8x128xf32>
    %200 = vector.broadcast %165 : i32 to vector<8x1xi32>
    %201 = arith.cmpi sgt, %0, %200 : vector<8x1xi32>
    %202 = vector.shape_cast %201 : vector<8x1xi1> to vector<8x1xi1>
    %203 = vector.broadcast %202 : vector<8x1xi1> to vector<8x128xi1>
    %204 = arith.select %203, %199, %169 : vector<8x128xi1>, vector<8x128xf32>
    %c0_73 = arith.constant 0 : index
    %c0_74 = arith.constant 0 : index
    %205 = vector.load %arg18[%c0_73, %c0_74] : memref<8x128xf32, #tpu.memory_space<vmem>>, vector<8x128xf32>
    tpu.vector_store %arg18[%c0_73, %c0_74], %204 {strides = array<i32>} : memref<8x128xf32, #tpu.memory_space<vmem>>, vector<8x128xf32>,
    %cst_75 = arith.constant 0.000000e+00 : f32
    %206 = vector.shape_cast %201 : vector<8x1xi1> to vector<8x1xi1>
    %207 = vector.broadcast %206 : vector<8x1xi1> to vector<8x128xi1>
    %208 = vector.broadcast %cst_75 : f32 to vector<8x128xf32>
    %209 = arith.select %207, %199, %208 : vector<8x128xi1>, vector<8x128xf32>
    %210 = arith.index_cast %165 : i32 to index
    %c0_76 = arith.constant 0 : index
    %c0_77 = arith.constant 0 : index
    %211 = vector.load %arg16[%210, %c0_76, %c0_77] : memref<8x8x128xf32, #tpu.memory_space<vmem>>, vector<1x8x128xf32>
    %212 = vector.shape_cast %211 : vector<1x8x128xf32> to vector<8x128xf32>
    %213 = vector.shape_cast %209 : vector<8x128xf32> to vector<1x8x128xf32>
    tpu.vector_store %arg16[%210, %c0_76, %c0_77], %213 {strides = array<i32>} : memref<8x8x128xf32, #tpu.memory_space<vmem>>, vector<1x8x128xf32>,
    %c2_i32 = arith.constant 2 : i32
    %214 = arith.index_cast %c2_i32 : i32 to index
    %c0_78 = arith.constant 0 : index
    %c0_79 = arith.constant 0 : index
    %215 = vector.load %arg14[%214, %c0_78, %c0_79] : memref<8x8x768xf32, #tpu.memory_space<vmem>>, vector<1x8x768xf32>
    %216 = vector.shape_cast %215 : vector<1x8x768xf32> to vector<8x768xf32>
    %c0_80 = arith.constant 0 : index
    %c0_81 = arith.constant 0 : index
    %217 = vector.load %arg17[%c0_80, %c0_81] : memref<8x128xf32, #tpu.memory_space<vmem>>, vector<8x128xf32>
    %cst_82 = arith.constant dense<0.000000e+00> : vector<8x384xf32>
    %218 = tpu.matmul %217, %12, %cst_82 {dimension_numbers = #tpu.dot_dimension_numbers<[1], [0], [0], [1], [0, 0, 1, 1], [], []>} : vector<8x128xf32>, vector<128x384xf32>, vector<8x384xf32> -> vector<8x384xf32>
    %219 = vector.broadcast %14 : vector<1x384xf32> to vector<8x384xf32>
    %220 = arith.addf %218, %219 : vector<8x384xf32>
    %221 = vector.extract_strided_slice %216 {offsets = [0, 0], sizes = [8, 384], strides = [1, 1]} : vector<8x768xf32> to vector<8x384xf32>
    %222 = vector.extract_strided_slice %221 {offsets = [0, 0], sizes = [8, 128], strides = [1, 1]} : vector<8x384xf32> to vector<8x128xf32>
    %223 = vector.extract_strided_slice %220 {offsets = [0, 0], sizes = [8, 128], strides = [1, 1]} : vector<8x384xf32> to vector<8x128xf32>
    %224 = arith.addf %222, %223 : vector<8x128xf32>
    %225 = arith.negf %224 : vector<8x128xf32>
    %226 = math.exp %225 : vector<8x128xf32>
    %cst_83 = arith.constant 1.000000e+00 : f32
    %227 = vector.broadcast %cst_83 : f32 to vector<8x128xf32>
    %228 = arith.addf %227, %226 : vector<8x128xf32>
    %229 = arith.divf %227, %228 : vector<8x128xf32>
    %230 = vector.extract_strided_slice %221 {offsets = [0, 128], sizes = [8, 128], strides = [1, 1]} : vector<8x384xf32> to vector<8x128xf32>
    %231 = vector.extract_strided_slice %220 {offsets = [0, 128], sizes = [8, 128], strides = [1, 1]} : vector<8x384xf32> to vector<8x128xf32>
    %232 = arith.addf %230, %231 : vector<8x128xf32>
    %233 = arith.negf %232 : vector<8x128xf32>
    %234 = math.exp %233 : vector<8x128xf32>
    %cst_84 = arith.constant 1.000000e+00 : f32
    %235 = vector.broadcast %cst_84 : f32 to vector<8x128xf32>
    %236 = arith.addf %235, %234 : vector<8x128xf32>
    %237 = arith.divf %235, %236 : vector<8x128xf32>
    %238 = vector.extract_strided_slice %221 {offsets = [0, 256], sizes = [8, 128], strides = [1, 1]} : vector<8x384xf32> to vector<8x128xf32>
    %239 = vector.extract_strided_slice %220 {offsets = [0, 256], sizes = [8, 128], strides = [1, 1]} : vector<8x384xf32> to vector<8x128xf32>
    %240 = arith.mulf %229, %239 : vector<8x128xf32>
    %241 = arith.addf %238, %240 : vector<8x128xf32>
    %242 = math.tanh %241 : vector<8x128xf32>
    %cst_85 = arith.constant 1.000000e+00 : f32
    %243 = vector.broadcast %cst_85 : f32 to vector<8x128xf32>
    %244 = arith.subf %243, %237 : vector<8x128xf32>
    %245 = arith.mulf %244, %242 : vector<8x128xf32>
    %246 = arith.mulf %237, %217 : vector<8x128xf32>
    %247 = arith.addf %245, %246 : vector<8x128xf32>
    %248 = vector.broadcast %c2_i32 : i32 to vector<8x1xi32>
    %249 = arith.cmpi sgt, %0, %248 : vector<8x1xi32>
    %250 = vector.shape_cast %249 : vector<8x1xi1> to vector<8x1xi1>
    %251 = vector.broadcast %250 : vector<8x1xi1> to vector<8x128xi1>
    %252 = arith.select %251, %247, %217 : vector<8x128xi1>, vector<8x128xf32>
    %c0_86 = arith.constant 0 : index
    %c0_87 = arith.constant 0 : index
    %253 = vector.load %arg17[%c0_86, %c0_87] : memref<8x128xf32, #tpu.memory_space<vmem>>, vector<8x128xf32>
    tpu.vector_store %arg17[%c0_86, %c0_87], %252 {strides = array<i32>} : memref<8x128xf32, #tpu.memory_space<vmem>>, vector<8x128xf32>,
    %cst_88 = arith.constant 0.000000e+00 : f32
    %254 = vector.shape_cast %249 : vector<8x1xi1> to vector<8x1xi1>
    %255 = vector.broadcast %254 : vector<8x1xi1> to vector<8x128xi1>
    %256 = vector.broadcast %cst_88 : f32 to vector<8x128xf32>
    %257 = arith.select %255, %247, %256 : vector<8x128xi1>, vector<8x128xf32>
    %258 = arith.index_cast %c2_i32 : i32 to index
    %c0_89 = arith.constant 0 : index
    %c0_90 = arith.constant 0 : index
    %259 = vector.load %arg15[%258, %c0_89, %c0_90] : memref<8x8x128xf32, #tpu.memory_space<vmem>>, vector<1x8x128xf32>
    %260 = vector.shape_cast %259 : vector<1x8x128xf32> to vector<8x128xf32>
    %261 = vector.shape_cast %257 : vector<8x128xf32> to vector<1x8x128xf32>
    tpu.vector_store %arg15[%258, %c0_89, %c0_90], %261 {strides = array<i32>} : memref<8x8x128xf32, #tpu.memory_space<vmem>>, vector<1x8x128xf32>,
    %c7_i32_91 = arith.constant 7 : i32
    %262 = arith.subi %c7_i32_91, %c2_i32 : i32
    %263 = arith.index_cast %262 : i32 to index
    %c0_92 = arith.constant 0 : index
    %c0_93 = arith.constant 0 : index
    %264 = vector.load %arg14[%263, %c0_92, %c0_93] : memref<8x8x768xf32, #tpu.memory_space<vmem>>, vector<1x8x768xf32>
    %265 = vector.shape_cast %264 : vector<1x8x768xf32> to vector<8x768xf32>
    %c0_94 = arith.constant 0 : index
    %c0_95 = arith.constant 0 : index
    %266 = vector.load %arg18[%c0_94, %c0_95] : memref<8x128xf32, #tpu.memory_space<vmem>>, vector<8x128xf32>
    %cst_96 = arith.constant dense<0.000000e+00> : vector<8x384xf32>
    %267 = tpu.matmul %266, %13, %cst_96 {dimension_numbers = #tpu.dot_dimension_numbers<[1], [0], [0], [1], [0, 0, 1, 1], [], []>} : vector<8x128xf32>, vector<128x384xf32>, vector<8x384xf32> -> vector<8x384xf32>
    %268 = vector.broadcast %15 : vector<1x384xf32> to vector<8x384xf32>
    %269 = arith.addf %267, %268 : vector<8x384xf32>
    %270 = vector.extract_strided_slice %265 {offsets = [0, 384], sizes = [8, 384], strides = [1, 1]} : vector<8x768xf32> to vector<8x384xf32>
    %271 = vector.extract_strided_slice %270 {offsets = [0, 0], sizes = [8, 128], strides = [1, 1]} : vector<8x384xf32> to vector<8x128xf32>
    %272 = vector.extract_strided_slice %269 {offsets = [0, 0], sizes = [8, 128], strides = [1, 1]} : vector<8x384xf32> to vector<8x128xf32>
    %273 = arith.addf %271, %272 : vector<8x128xf32>
    %274 = arith.negf %273 : vector<8x128xf32>
    %275 = math.exp %274 : vector<8x128xf32>
    %cst_97 = arith.constant 1.000000e+00 : f32
    %276 = vector.broadcast %cst_97 : f32 to vector<8x128xf32>
    %277 = arith.addf %276, %275 : vector<8x128xf32>
    %278 = arith.divf %276, %277 : vector<8x128xf32>
    %279 = vector.extract_strided_slice %270 {offsets = [0, 128], sizes = [8, 128], strides = [1, 1]} : vector<8x384xf32> to vector<8x128xf32>
    %280 = vector.extract_strided_slice %269 {offsets = [0, 128], sizes = [8, 128], strides = [1, 1]} : vector<8x384xf32> to vector<8x128xf32>
    %281 = arith.addf %279, %280 : vector<8x128xf32>
    %282 = arith.negf %281 : vector<8x128xf32>
    %283 = math.exp %282 : vector<8x128xf32>
    %cst_98 = arith.constant 1.000000e+00 : f32
    %284 = vector.broadcast %cst_98 : f32 to vector<8x128xf32>
    %285 = arith.addf %284, %283 : vector<8x128xf32>
    %286 = arith.divf %284, %285 : vector<8x128xf32>
    %287 = vector.extract_strided_slice %270 {offsets = [0, 256], sizes = [8, 128], strides = [1, 1]} : vector<8x384xf32> to vector<8x128xf32>
    %288 = vector.extract_strided_slice %269 {offsets = [0, 256], sizes = [8, 128], strides = [1, 1]} : vector<8x384xf32> to vector<8x128xf32>
    %289 = arith.mulf %278, %288 : vector<8x128xf32>
    %290 = arith.addf %287, %289 : vector<8x128xf32>
    %291 = math.tanh %290 : vector<8x128xf32>
    %cst_99 = arith.constant 1.000000e+00 : f32
    %292 = vector.broadcast %cst_99 : f32 to vector<8x128xf32>
    %293 = arith.subf %292, %286 : vector<8x128xf32>
    %294 = arith.mulf %293, %291 : vector<8x128xf32>
    %295 = arith.mulf %286, %266 : vector<8x128xf32>
    %296 = arith.addf %294, %295 : vector<8x128xf32>
    %297 = vector.broadcast %262 : i32 to vector<8x1xi32>
    %298 = arith.cmpi sgt, %0, %297 : vector<8x1xi32>
    %299 = vector.shape_cast %298 : vector<8x1xi1> to vector<8x1xi1>
    %300 = vector.broadcast %299 : vector<8x1xi1> to vector<8x128xi1>
    %301 = arith.select %300, %296, %266 : vector<8x128xi1>, vector<8x128xf32>
    %c0_100 = arith.constant 0 : index
    %c0_101 = arith.constant 0 : index
    %302 = vector.load %arg18[%c0_100, %c0_101] : memref<8x128xf32, #tpu.memory_space<vmem>>, vector<8x128xf32>
    tpu.vector_store %arg18[%c0_100, %c0_101], %301 {strides = array<i32>} : memref<8x128xf32, #tpu.memory_space<vmem>>, vector<8x128xf32>,
    %cst_102 = arith.constant 0.000000e+00 : f32
    %303 = vector.shape_cast %298 : vector<8x1xi1> to vector<8x1xi1>
    %304 = vector.broadcast %303 : vector<8x1xi1> to vector<8x128xi1>
    %305 = vector.broadcast %cst_102 : f32 to vector<8x128xf32>
    %306 = arith.select %304, %296, %305 : vector<8x128xi1>, vector<8x128xf32>
    %307 = arith.index_cast %262 : i32 to index
    %c0_103 = arith.constant 0 : index
    %c0_104 = arith.constant 0 : index
    %308 = vector.load %arg16[%307, %c0_103, %c0_104] : memref<8x8x128xf32, #tpu.memory_space<vmem>>, vector<1x8x128xf32>
    %309 = vector.shape_cast %308 : vector<1x8x128xf32> to vector<8x128xf32>
    %310 = vector.shape_cast %306 : vector<8x128xf32> to vector<1x8x128xf32>
    tpu.vector_store %arg16[%307, %c0_103, %c0_104], %310 {strides = array<i32>} : memref<8x8x128xf32, #tpu.memory_space<vmem>>, vector<1x8x128xf32>,
    %c3_i32 = arith.constant 3 : i32
    %311 = arith.index_cast %c3_i32 : i32 to index
    %c0_105 = arith.constant 0 : index
    %c0_106 = arith.constant 0 : index
    %312 = vector.load %arg14[%311, %c0_105, %c0_106] : memref<8x8x768xf32, #tpu.memory_space<vmem>>, vector<1x8x768xf32>
    %313 = vector.shape_cast %312 : vector<1x8x768xf32> to vector<8x768xf32>
    %c0_107 = arith.constant 0 : index
    %c0_108 = arith.constant 0 : index
    %314 = vector.load %arg17[%c0_107, %c0_108] : memref<8x128xf32, #tpu.memory_space<vmem>>, vector<8x128xf32>
    %cst_109 = arith.constant dense<0.000000e+00> : vector<8x384xf32>
    %315 = tpu.matmul %314, %12, %cst_109 {dimension_numbers = #tpu.dot_dimension_numbers<[1], [0], [0], [1], [0, 0, 1, 1], [], []>} : vector<8x128xf32>, vector<128x384xf32>, vector<8x384xf32> -> vector<8x384xf32>
    %316 = vector.broadcast %14 : vector<1x384xf32> to vector<8x384xf32>
    %317 = arith.addf %315, %316 : vector<8x384xf32>
    %318 = vector.extract_strided_slice %313 {offsets = [0, 0], sizes = [8, 384], strides = [1, 1]} : vector<8x768xf32> to vector<8x384xf32>
    %319 = vector.extract_strided_slice %318 {offsets = [0, 0], sizes = [8, 128], strides = [1, 1]} : vector<8x384xf32> to vector<8x128xf32>
    %320 = vector.extract_strided_slice %317 {offsets = [0, 0], sizes = [8, 128], strides = [1, 1]} : vector<8x384xf32> to vector<8x128xf32>
    %321 = arith.addf %319, %320 : vector<8x128xf32>
    %322 = arith.negf %321 : vector<8x128xf32>
    %323 = math.exp %322 : vector<8x128xf32>
    %cst_110 = arith.constant 1.000000e+00 : f32
    %324 = vector.broadcast %cst_110 : f32 to vector<8x128xf32>
    %325 = arith.addf %324, %323 : vector<8x128xf32>
    %326 = arith.divf %324, %325 : vector<8x128xf32>
    %327 = vector.extract_strided_slice %318 {offsets = [0, 128], sizes = [8, 128], strides = [1, 1]} : vector<8x384xf32> to vector<8x128xf32>
    %328 = vector.extract_strided_slice %317 {offsets = [0, 128], sizes = [8, 128], strides = [1, 1]} : vector<8x384xf32> to vector<8x128xf32>
    %329 = arith.addf %327, %328 : vector<8x128xf32>
    %330 = arith.negf %329 : vector<8x128xf32>
    %331 = math.exp %330 : vector<8x128xf32>
    %cst_111 = arith.constant 1.000000e+00 : f32
    %332 = vector.broadcast %cst_111 : f32 to vector<8x128xf32>
    %333 = arith.addf %332, %331 : vector<8x128xf32>
    %334 = arith.divf %332, %333 : vector<8x128xf32>
    %335 = vector.extract_strided_slice %318 {offsets = [0, 256], sizes = [8, 128], strides = [1, 1]} : vector<8x384xf32> to vector<8x128xf32>
    %336 = vector.extract_strided_slice %317 {offsets = [0, 256], sizes = [8, 128], strides = [1, 1]} : vector<8x384xf32> to vector<8x128xf32>
    %337 = arith.mulf %326, %336 : vector<8x128xf32>
    %338 = arith.addf %335, %337 : vector<8x128xf32>
    %339 = math.tanh %338 : vector<8x128xf32>
    %cst_112 = arith.constant 1.000000e+00 : f32
    %340 = vector.broadcast %cst_112 : f32 to vector<8x128xf32>
    %341 = arith.subf %340, %334 : vector<8x128xf32>
    %342 = arith.mulf %341, %339 : vector<8x128xf32>
    %343 = arith.mulf %334, %314 : vector<8x128xf32>
    %344 = arith.addf %342, %343 : vector<8x128xf32>
    %345 = vector.broadcast %c3_i32 : i32 to vector<8x1xi32>
    %346 = arith.cmpi sgt, %0, %345 : vector<8x1xi32>
    %347 = vector.shape_cast %346 : vector<8x1xi1> to vector<8x1xi1>
    %348 = vector.broadcast %347 : vector<8x1xi1> to vector<8x128xi1>
    %349 = arith.select %348, %344, %314 : vector<8x128xi1>, vector<8x128xf32>
    %c0_113 = arith.constant 0 : index
    %c0_114 = arith.constant 0 : index
    %350 = vector.load %arg17[%c0_113, %c0_114] : memref<8x128xf32, #tpu.memory_space<vmem>>, vector<8x128xf32>
    tpu.vector_store %arg17[%c0_113, %c0_114], %349 {strides = array<i32>} : memref<8x128xf32, #tpu.memory_space<vmem>>, vector<8x128xf32>,
    %cst_115 = arith.constant 0.000000e+00 : f32
    %351 = vector.shape_cast %346 : vector<8x1xi1> to vector<8x1xi1>
    %352 = vector.broadcast %351 : vector<8x1xi1> to vector<8x128xi1>
    %353 = vector.broadcast %cst_115 : f32 to vector<8x128xf32>
    %354 = arith.select %352, %344, %353 : vector<8x128xi1>, vector<8x128xf32>
    %355 = arith.index_cast %c3_i32 : i32 to index
    %c0_116 = arith.constant 0 : index
    %c0_117 = arith.constant 0 : index
    %356 = vector.load %arg15[%355, %c0_116, %c0_117] : memref<8x8x128xf32, #tpu.memory_space<vmem>>, vector<1x8x128xf32>
    %357 = vector.shape_cast %356 : vector<1x8x128xf32> to vector<8x128xf32>
    %358 = vector.shape_cast %354 : vector<8x128xf32> to vector<1x8x128xf32>
    tpu.vector_store %arg15[%355, %c0_116, %c0_117], %358 {strides = array<i32>} : memref<8x8x128xf32, #tpu.memory_space<vmem>>, vector<1x8x128xf32>,
    %c7_i32_118 = arith.constant 7 : i32
    %359 = arith.subi %c7_i32_118, %c3_i32 : i32
    %360 = arith.index_cast %359 : i32 to index
    %c0_119 = arith.constant 0 : index
    %c0_120 = arith.constant 0 : index
    %361 = vector.load %arg14[%360, %c0_119, %c0_120] : memref<8x8x768xf32, #tpu.memory_space<vmem>>, vector<1x8x768xf32>
    %362 = vector.shape_cast %361 : vector<1x8x768xf32> to vector<8x768xf32>
    %c0_121 = arith.constant 0 : index
    %c0_122 = arith.constant 0 : index
    %363 = vector.load %arg18[%c0_121, %c0_122] : memref<8x128xf32, #tpu.memory_space<vmem>>, vector<8x128xf32>
    %cst_123 = arith.constant dense<0.000000e+00> : vector<8x384xf32>
    %364 = tpu.matmul %363, %13, %cst_123 {dimension_numbers = #tpu.dot_dimension_numbers<[1], [0], [0], [1], [0, 0, 1, 1], [], []>} : vector<8x128xf32>, vector<128x384xf32>, vector<8x384xf32> -> vector<8x384xf32>
    %365 = vector.broadcast %15 : vector<1x384xf32> to vector<8x384xf32>
    %366 = arith.addf %364, %365 : vector<8x384xf32>
    %367 = vector.extract_strided_slice %362 {offsets = [0, 384], sizes = [8, 384], strides = [1, 1]} : vector<8x768xf32> to vector<8x384xf32>
    %368 = vector.extract_strided_slice %367 {offsets = [0, 0], sizes = [8, 128], strides = [1, 1]} : vector<8x384xf32> to vector<8x128xf32>
    %369 = vector.extract_strided_slice %366 {offsets = [0, 0], sizes = [8, 128], strides = [1, 1]} : vector<8x384xf32> to vector<8x128xf32>
    %370 = arith.addf %368, %369 : vector<8x128xf32>
    %371 = arith.negf %370 : vector<8x128xf32>
    %372 = math.exp %371 : vector<8x128xf32>
    %cst_124 = arith.constant 1.000000e+00 : f32
    %373 = vector.broadcast %cst_124 : f32 to vector<8x128xf32>
    %374 = arith.addf %373, %372 : vector<8x128xf32>
    %375 = arith.divf %373, %374 : vector<8x128xf32>
    %376 = vector.extract_strided_slice %367 {offsets = [0, 128], sizes = [8, 128], strides = [1, 1]} : vector<8x384xf32> to vector<8x128xf32>
    %377 = vector.extract_strided_slice %366 {offsets = [0, 128], sizes = [8, 128], strides = [1, 1]} : vector<8x384xf32> to vector<8x128xf32>
    %378 = arith.addf %376, %377 : vector<8x128xf32>
    %379 = arith.negf %378 : vector<8x128xf32>
    %380 = math.exp %379 : vector<8x128xf32>
    %cst_125 = arith.constant 1.000000e+00 : f32
    %381 = vector.broadcast %cst_125 : f32 to vector<8x128xf32>
    %382 = arith.addf %381, %380 : vector<8x128xf32>
    %383 = arith.divf %381, %382 : vector<8x128xf32>
    %384 = vector.extract_strided_slice %367 {offsets = [0, 256], sizes = [8, 128], strides = [1, 1]} : vector<8x384xf32> to vector<8x128xf32>
    %385 = vector.extract_strided_slice %366 {offsets = [0, 256], sizes = [8, 128], strides = [1, 1]} : vector<8x384xf32> to vector<8x128xf32>
    %386 = arith.mulf %375, %385 : vector<8x128xf32>
    %387 = arith.addf %384, %386 : vector<8x128xf32>
    %388 = math.tanh %387 : vector<8x128xf32>
    %cst_126 = arith.constant 1.000000e+00 : f32
    %389 = vector.broadcast %cst_126 : f32 to vector<8x128xf32>
    %390 = arith.subf %389, %383 : vector<8x128xf32>
    %391 = arith.mulf %390, %388 : vector<8x128xf32>
    %392 = arith.mulf %383, %363 : vector<8x128xf32>
    %393 = arith.addf %391, %392 : vector<8x128xf32>
    %394 = vector.broadcast %359 : i32 to vector<8x1xi32>
    %395 = arith.cmpi sgt, %0, %394 : vector<8x1xi32>
    %396 = vector.shape_cast %395 : vector<8x1xi1> to vector<8x1xi1>
    %397 = vector.broadcast %396 : vector<8x1xi1> to vector<8x128xi1>
    %398 = arith.select %397, %393, %363 : vector<8x128xi1>, vector<8x128xf32>
    %c0_127 = arith.constant 0 : index
    %c0_128 = arith.constant 0 : index
    %399 = vector.load %arg18[%c0_127, %c0_128] : memref<8x128xf32, #tpu.memory_space<vmem>>, vector<8x128xf32>
    tpu.vector_store %arg18[%c0_127, %c0_128], %398 {strides = array<i32>} : memref<8x128xf32, #tpu.memory_space<vmem>>, vector<8x128xf32>,
    %cst_129 = arith.constant 0.000000e+00 : f32
    %400 = vector.shape_cast %395 : vector<8x1xi1> to vector<8x1xi1>
    %401 = vector.broadcast %400 : vector<8x1xi1> to vector<8x128xi1>
    %402 = vector.broadcast %cst_129 : f32 to vector<8x128xf32>
    %403 = arith.select %401, %393, %402 : vector<8x128xi1>, vector<8x128xf32>
    %404 = arith.index_cast %359 : i32 to index
    %c0_130 = arith.constant 0 : index
    %c0_131 = arith.constant 0 : index
    %405 = vector.load %arg16[%404, %c0_130, %c0_131] : memref<8x8x128xf32, #tpu.memory_space<vmem>>, vector<1x8x128xf32>
    %406 = vector.shape_cast %405 : vector<1x8x128xf32> to vector<8x128xf32>
    %407 = vector.shape_cast %403 : vector<8x128xf32> to vector<1x8x128xf32>
    tpu.vector_store %arg16[%404, %c0_130, %c0_131], %407 {strides = array<i32>} : memref<8x8x128xf32, #tpu.memory_space<vmem>>, vector<1x8x128xf32>,
    %c4_i32 = arith.constant 4 : i32
    %408 = arith.index_cast %c4_i32 : i32 to index
    %c0_132 = arith.constant 0 : index
    %c0_133 = arith.constant 0 : index
    %409 = vector.load %arg14[%408, %c0_132, %c0_133] : memref<8x8x768xf32, #tpu.memory_space<vmem>>, vector<1x8x768xf32>
    %410 = vector.shape_cast %409 : vector<1x8x768xf32> to vector<8x768xf32>
    %c0_134 = arith.constant 0 : index
    %c0_135 = arith.constant 0 : index
    %411 = vector.load %arg17[%c0_134, %c0_135] : memref<8x128xf32, #tpu.memory_space<vmem>>, vector<8x128xf32>
    %cst_136 = arith.constant dense<0.000000e+00> : vector<8x384xf32>
    %412 = tpu.matmul %411, %12, %cst_136 {dimension_numbers = #tpu.dot_dimension_numbers<[1], [0], [0], [1], [0, 0, 1, 1], [], []>} : vector<8x128xf32>, vector<128x384xf32>, vector<8x384xf32> -> vector<8x384xf32>
    %413 = vector.broadcast %14 : vector<1x384xf32> to vector<8x384xf32>
    %414 = arith.addf %412, %413 : vector<8x384xf32>
    %415 = vector.extract_strided_slice %410 {offsets = [0, 0], sizes = [8, 384], strides = [1, 1]} : vector<8x768xf32> to vector<8x384xf32>
    %416 = vector.extract_strided_slice %415 {offsets = [0, 0], sizes = [8, 128], strides = [1, 1]} : vector<8x384xf32> to vector<8x128xf32>
    %417 = vector.extract_strided_slice %414 {offsets = [0, 0], sizes = [8, 128], strides = [1, 1]} : vector<8x384xf32> to vector<8x128xf32>
    %418 = arith.addf %416, %417 : vector<8x128xf32>
    %419 = arith.negf %418 : vector<8x128xf32>
    %420 = math.exp %419 : vector<8x128xf32>
    %cst_137 = arith.constant 1.000000e+00 : f32
    %421 = vector.broadcast %cst_137 : f32 to vector<8x128xf32>
    %422 = arith.addf %421, %420 : vector<8x128xf32>
    %423 = arith.divf %421, %422 : vector<8x128xf32>
    %424 = vector.extract_strided_slice %415 {offsets = [0, 128], sizes = [8, 128], strides = [1, 1]} : vector<8x384xf32> to vector<8x128xf32>
    %425 = vector.extract_strided_slice %414 {offsets = [0, 128], sizes = [8, 128], strides = [1, 1]} : vector<8x384xf32> to vector<8x128xf32>
    %426 = arith.addf %424, %425 : vector<8x128xf32>
    %427 = arith.negf %426 : vector<8x128xf32>
    %428 = math.exp %427 : vector<8x128xf32>
    %cst_138 = arith.constant 1.000000e+00 : f32
    %429 = vector.broadcast %cst_138 : f32 to vector<8x128xf32>
    %430 = arith.addf %429, %428 : vector<8x128xf32>
    %431 = arith.divf %429, %430 : vector<8x128xf32>
    %432 = vector.extract_strided_slice %415 {offsets = [0, 256], sizes = [8, 128], strides = [1, 1]} : vector<8x384xf32> to vector<8x128xf32>
    %433 = vector.extract_strided_slice %414 {offsets = [0, 256], sizes = [8, 128], strides = [1, 1]} : vector<8x384xf32> to vector<8x128xf32>
    %434 = arith.mulf %423, %433 : vector<8x128xf32>
    %435 = arith.addf %432, %434 : vector<8x128xf32>
    %436 = math.tanh %435 : vector<8x128xf32>
    %cst_139 = arith.constant 1.000000e+00 : f32
    %437 = vector.broadcast %cst_139 : f32 to vector<8x128xf32>
    %438 = arith.subf %437, %431 : vector<8x128xf32>
    %439 = arith.mulf %438, %436 : vector<8x128xf32>
    %440 = arith.mulf %431, %411 : vector<8x128xf32>
    %441 = arith.addf %439, %440 : vector<8x128xf32>
    %442 = vector.broadcast %c4_i32 : i32 to vector<8x1xi32>
    %443 = arith.cmpi sgt, %0, %442 : vector<8x1xi32>
    %444 = vector.shape_cast %443 : vector<8x1xi1> to vector<8x1xi1>
    %445 = vector.broadcast %444 : vector<8x1xi1> to vector<8x128xi1>
    %446 = arith.select %445, %441, %411 : vector<8x128xi1>, vector<8x128xf32>
    %c0_140 = arith.constant 0 : index
    %c0_141 = arith.constant 0 : index
    %447 = vector.load %arg17[%c0_140, %c0_141] : memref<8x128xf32, #tpu.memory_space<vmem>>, vector<8x128xf32>
    tpu.vector_store %arg17[%c0_140, %c0_141], %446 {strides = array<i32>} : memref<8x128xf32, #tpu.memory_space<vmem>>, vector<8x128xf32>,
    %cst_142 = arith.constant 0.000000e+00 : f32
    %448 = vector.shape_cast %443 : vector<8x1xi1> to vector<8x1xi1>
    %449 = vector.broadcast %448 : vector<8x1xi1> to vector<8x128xi1>
    %450 = vector.broadcast %cst_142 : f32 to vector<8x128xf32>
    %451 = arith.select %449, %441, %450 : vector<8x128xi1>, vector<8x128xf32>
    %452 = arith.index_cast %c4_i32 : i32 to index
    %c0_143 = arith.constant 0 : index
    %c0_144 = arith.constant 0 : index
    %453 = vector.load %arg15[%452, %c0_143, %c0_144] : memref<8x8x128xf32, #tpu.memory_space<vmem>>, vector<1x8x128xf32>
    %454 = vector.shape_cast %453 : vector<1x8x128xf32> to vector<8x128xf32>
    %455 = vector.shape_cast %451 : vector<8x128xf32> to vector<1x8x128xf32>
    tpu.vector_store %arg15[%452, %c0_143, %c0_144], %455 {strides = array<i32>} : memref<8x8x128xf32, #tpu.memory_space<vmem>>, vector<1x8x128xf32>,
    %c7_i32_145 = arith.constant 7 : i32
    %456 = arith.subi %c7_i32_145, %c4_i32 : i32
    %457 = arith.index_cast %456 : i32 to index
    %c0_146 = arith.constant 0 : index
    %c0_147 = arith.constant 0 : index
    %458 = vector.load %arg14[%457, %c0_146, %c0_147] : memref<8x8x768xf32, #tpu.memory_space<vmem>>, vector<1x8x768xf32>
    %459 = vector.shape_cast %458 : vector<1x8x768xf32> to vector<8x768xf32>
    %c0_148 = arith.constant 0 : index
    %c0_149 = arith.constant 0 : index
    %460 = vector.load %arg18[%c0_148, %c0_149] : memref<8x128xf32, #tpu.memory_space<vmem>>, vector<8x128xf32>
    %cst_150 = arith.constant dense<0.000000e+00> : vector<8x384xf32>
    %461 = tpu.matmul %460, %13, %cst_150 {dimension_numbers = #tpu.dot_dimension_numbers<[1], [0], [0], [1], [0, 0, 1, 1], [], []>} : vector<8x128xf32>, vector<128x384xf32>, vector<8x384xf32> -> vector<8x384xf32>
    %462 = vector.broadcast %15 : vector<1x384xf32> to vector<8x384xf32>
    %463 = arith.addf %461, %462 : vector<8x384xf32>
    %464 = vector.extract_strided_slice %459 {offsets = [0, 384], sizes = [8, 384], strides = [1, 1]} : vector<8x768xf32> to vector<8x384xf32>
    %465 = vector.extract_strided_slice %464 {offsets = [0, 0], sizes = [8, 128], strides = [1, 1]} : vector<8x384xf32> to vector<8x128xf32>
    %466 = vector.extract_strided_slice %463 {offsets = [0, 0], sizes = [8, 128], strides = [1, 1]} : vector<8x384xf32> to vector<8x128xf32>
    %467 = arith.addf %465, %466 : vector<8x128xf32>
    %468 = arith.negf %467 : vector<8x128xf32>
    %469 = math.exp %468 : vector<8x128xf32>
    %cst_151 = arith.constant 1.000000e+00 : f32
    %470 = vector.broadcast %cst_151 : f32 to vector<8x128xf32>
    %471 = arith.addf %470, %469 : vector<8x128xf32>
    %472 = arith.divf %470, %471 : vector<8x128xf32>
    %473 = vector.extract_strided_slice %464 {offsets = [0, 128], sizes = [8, 128], strides = [1, 1]} : vector<8x384xf32> to vector<8x128xf32>
    %474 = vector.extract_strided_slice %463 {offsets = [0, 128], sizes = [8, 128], strides = [1, 1]} : vector<8x384xf32> to vector<8x128xf32>
    %475 = arith.addf %473, %474 : vector<8x128xf32>
    %476 = arith.negf %475 : vector<8x128xf32>
    %477 = math.exp %476 : vector<8x128xf32>
    %cst_152 = arith.constant 1.000000e+00 : f32
    %478 = vector.broadcast %cst_152 : f32 to vector<8x128xf32>
    %479 = arith.addf %478, %477 : vector<8x128xf32>
    %480 = arith.divf %478, %479 : vector<8x128xf32>
    %481 = vector.extract_strided_slice %464 {offsets = [0, 256], sizes = [8, 128], strides = [1, 1]} : vector<8x384xf32> to vector<8x128xf32>
    %482 = vector.extract_strided_slice %463 {offsets = [0, 256], sizes = [8, 128], strides = [1, 1]} : vector<8x384xf32> to vector<8x128xf32>
    %483 = arith.mulf %472, %482 : vector<8x128xf32>
    %484 = arith.addf %481, %483 : vector<8x128xf32>
    %485 = math.tanh %484 : vector<8x128xf32>
    %cst_153 = arith.constant 1.000000e+00 : f32
    %486 = vector.broadcast %cst_153 : f32 to vector<8x128xf32>
    %487 = arith.subf %486, %480 : vector<8x128xf32>
    %488 = arith.mulf %487, %485 : vector<8x128xf32>
    %489 = arith.mulf %480, %460 : vector<8x128xf32>
    %490 = arith.addf %488, %489 : vector<8x128xf32>
    %491 = vector.broadcast %456 : i32 to vector<8x1xi32>
    %492 = arith.cmpi sgt, %0, %491 : vector<8x1xi32>
    %493 = vector.shape_cast %492 : vector<8x1xi1> to vector<8x1xi1>
    %494 = vector.broadcast %493 : vector<8x1xi1> to vector<8x128xi1>
    %495 = arith.select %494, %490, %460 : vector<8x128xi1>, vector<8x128xf32>
    %c0_154 = arith.constant 0 : index
    %c0_155 = arith.constant 0 : index
    %496 = vector.load %arg18[%c0_154, %c0_155] : memref<8x128xf32, #tpu.memory_space<vmem>>, vector<8x128xf32>
    tpu.vector_store %arg18[%c0_154, %c0_155], %495 {strides = array<i32>} : memref<8x128xf32, #tpu.memory_space<vmem>>, vector<8x128xf32>,
    %cst_156 = arith.constant 0.000000e+00 : f32
    %497 = vector.shape_cast %492 : vector<8x1xi1> to vector<8x1xi1>
    %498 = vector.broadcast %497 : vector<8x1xi1> to vector<8x128xi1>
    %499 = vector.broadcast %cst_156 : f32 to vector<8x128xf32>
    %500 = arith.select %498, %490, %499 : vector<8x128xi1>, vector<8x128xf32>
    %501 = arith.index_cast %456 : i32 to index
    %c0_157 = arith.constant 0 : index
    %c0_158 = arith.constant 0 : index
    %502 = vector.load %arg16[%501, %c0_157, %c0_158] : memref<8x8x128xf32, #tpu.memory_space<vmem>>, vector<1x8x128xf32>
    %503 = vector.shape_cast %502 : vector<1x8x128xf32> to vector<8x128xf32>
    %504 = vector.shape_cast %500 : vector<8x128xf32> to vector<1x8x128xf32>
    tpu.vector_store %arg16[%501, %c0_157, %c0_158], %504 {strides = array<i32>} : memref<8x8x128xf32, #tpu.memory_space<vmem>>, vector<1x8x128xf32>,
    %c5_i32 = arith.constant 5 : i32
    %505 = arith.index_cast %c5_i32 : i32 to index
    %c0_159 = arith.constant 0 : index
    %c0_160 = arith.constant 0 : index
    %506 = vector.load %arg14[%505, %c0_159, %c0_160] : memref<8x8x768xf32, #tpu.memory_space<vmem>>, vector<1x8x768xf32>
    %507 = vector.shape_cast %506 : vector<1x8x768xf32> to vector<8x768xf32>
    %c0_161 = arith.constant 0 : index
    %c0_162 = arith.constant 0 : index
    %508 = vector.load %arg17[%c0_161, %c0_162] : memref<8x128xf32, #tpu.memory_space<vmem>>, vector<8x128xf32>
    %cst_163 = arith.constant dense<0.000000e+00> : vector<8x384xf32>
    %509 = tpu.matmul %508, %12, %cst_163 {dimension_numbers = #tpu.dot_dimension_numbers<[1], [0], [0], [1], [0, 0, 1, 1], [], []>} : vector<8x128xf32>, vector<128x384xf32>, vector<8x384xf32> -> vector<8x384xf32>
    %510 = vector.broadcast %14 : vector<1x384xf32> to vector<8x384xf32>
    %511 = arith.addf %509, %510 : vector<8x384xf32>
    %512 = vector.extract_strided_slice %507 {offsets = [0, 0], sizes = [8, 384], strides = [1, 1]} : vector<8x768xf32> to vector<8x384xf32>
    %513 = vector.extract_strided_slice %512 {offsets = [0, 0], sizes = [8, 128], strides = [1, 1]} : vector<8x384xf32> to vector<8x128xf32>
    %514 = vector.extract_strided_slice %511 {offsets = [0, 0], sizes = [8, 128], strides = [1, 1]} : vector<8x384xf32> to vector<8x128xf32>
    %515 = arith.addf %513, %514 : vector<8x128xf32>
    %516 = arith.negf %515 : vector<8x128xf32>
    %517 = math.exp %516 : vector<8x128xf32>
    %cst_164 = arith.constant 1.000000e+00 : f32
    %518 = vector.broadcast %cst_164 : f32 to vector<8x128xf32>
    %519 = arith.addf %518, %517 : vector<8x128xf32>
    %520 = arith.divf %518, %519 : vector<8x128xf32>
    %521 = vector.extract_strided_slice %512 {offsets = [0, 128], sizes = [8, 128], strides = [1, 1]} : vector<8x384xf32> to vector<8x128xf32>
    %522 = vector.extract_strided_slice %511 {offsets = [0, 128], sizes = [8, 128], strides = [1, 1]} : vector<8x384xf32> to vector<8x128xf32>
    %523 = arith.addf %521, %522 : vector<8x128xf32>
    %524 = arith.negf %523 : vector<8x128xf32>
    %525 = math.exp %524 : vector<8x128xf32>
    %cst_165 = arith.constant 1.000000e+00 : f32
    %526 = vector.broadcast %cst_165 : f32 to vector<8x128xf32>
    %527 = arith.addf %526, %525 : vector<8x128xf32>
    %528 = arith.divf %526, %527 : vector<8x128xf32>
    %529 = vector.extract_strided_slice %512 {offsets = [0, 256], sizes = [8, 128], strides = [1, 1]} : vector<8x384xf32> to vector<8x128xf32>
    %530 = vector.extract_strided_slice %511 {offsets = [0, 256], sizes = [8, 128], strides = [1, 1]} : vector<8x384xf32> to vector<8x128xf32>
    %531 = arith.mulf %520, %530 : vector<8x128xf32>
    %532 = arith.addf %529, %531 : vector<8x128xf32>
    %533 = math.tanh %532 : vector<8x128xf32>
    %cst_166 = arith.constant 1.000000e+00 : f32
    %534 = vector.broadcast %cst_166 : f32 to vector<8x128xf32>
    %535 = arith.subf %534, %528 : vector<8x128xf32>
    %536 = arith.mulf %535, %533 : vector<8x128xf32>
    %537 = arith.mulf %528, %508 : vector<8x128xf32>
    %538 = arith.addf %536, %537 : vector<8x128xf32>
    %539 = vector.broadcast %c5_i32 : i32 to vector<8x1xi32>
    %540 = arith.cmpi sgt, %0, %539 : vector<8x1xi32>
    %541 = vector.shape_cast %540 : vector<8x1xi1> to vector<8x1xi1>
    %542 = vector.broadcast %541 : vector<8x1xi1> to vector<8x128xi1>
    %543 = arith.select %542, %538, %508 : vector<8x128xi1>, vector<8x128xf32>
    %c0_167 = arith.constant 0 : index
    %c0_168 = arith.constant 0 : index
    %544 = vector.load %arg17[%c0_167, %c0_168] : memref<8x128xf32, #tpu.memory_space<vmem>>, vector<8x128xf32>
    tpu.vector_store %arg17[%c0_167, %c0_168], %543 {strides = array<i32>} : memref<8x128xf32, #tpu.memory_space<vmem>>, vector<8x128xf32>,
    %cst_169 = arith.constant 0.000000e+00 : f32
    %545 = vector.shape_cast %540 : vector<8x1xi1> to vector<8x1xi1>
    %546 = vector.broadcast %545 : vector<8x1xi1> to vector<8x128xi1>
    %547 = vector.broadcast %cst_169 : f32 to vector<8x128xf32>
    %548 = arith.select %546, %538, %547 : vector<8x128xi1>, vector<8x128xf32>
    %549 = arith.index_cast %c5_i32 : i32 to index
    %c0_170 = arith.constant 0 : index
    %c0_171 = arith.constant 0 : index
    %550 = vector.load %arg15[%549, %c0_170, %c0_171] : memref<8x8x128xf32, #tpu.memory_space<vmem>>, vector<1x8x128xf32>
    %551 = vector.shape_cast %550 : vector<1x8x128xf32> to vector<8x128xf32>
    %552 = vector.shape_cast %548 : vector<8x128xf32> to vector<1x8x128xf32>
    tpu.vector_store %arg15[%549, %c0_170, %c0_171], %552 {strides = array<i32>} : memref<8x8x128xf32, #tpu.memory_space<vmem>>, vector<1x8x128xf32>,
    %c7_i32_172 = arith.constant 7 : i32
    %553 = arith.subi %c7_i32_172, %c5_i32 : i32
    %554 = arith.index_cast %553 : i32 to index
    %c0_173 = arith.constant 0 : index
    %c0_174 = arith.constant 0 : index
    %555 = vector.load %arg14[%554, %c0_173, %c0_174] : memref<8x8x768xf32, #tpu.memory_space<vmem>>, vector<1x8x768xf32>
    %556 = vector.shape_cast %555 : vector<1x8x768xf32> to vector<8x768xf32>
    %c0_175 = arith.constant 0 : index
    %c0_176 = arith.constant 0 : index
    %557 = vector.load %arg18[%c0_175, %c0_176] : memref<8x128xf32, #tpu.memory_space<vmem>>, vector<8x128xf32>
    %cst_177 = arith.constant dense<0.000000e+00> : vector<8x384xf32>
    %558 = tpu.matmul %557, %13, %cst_177 {dimension_numbers = #tpu.dot_dimension_numbers<[1], [0], [0], [1], [0, 0, 1, 1], [], []>} : vector<8x128xf32>, vector<128x384xf32>, vector<8x384xf32> -> vector<8x384xf32>
    %559 = vector.broadcast %15 : vector<1x384xf32> to vector<8x384xf32>
    %560 = arith.addf %558, %559 : vector<8x384xf32>
    %561 = vector.extract_strided_slice %556 {offsets = [0, 384], sizes = [8, 384], strides = [1, 1]} : vector<8x768xf32> to vector<8x384xf32>
    %562 = vector.extract_strided_slice %561 {offsets = [0, 0], sizes = [8, 128], strides = [1, 1]} : vector<8x384xf32> to vector<8x128xf32>
    %563 = vector.extract_strided_slice %560 {offsets = [0, 0], sizes = [8, 128], strides = [1, 1]} : vector<8x384xf32> to vector<8x128xf32>
    %564 = arith.addf %562, %563 : vector<8x128xf32>
    %565 = arith.negf %564 : vector<8x128xf32>
    %566 = math.exp %565 : vector<8x128xf32>
    %cst_178 = arith.constant 1.000000e+00 : f32
    %567 = vector.broadcast %cst_178 : f32 to vector<8x128xf32>
    %568 = arith.addf %567, %566 : vector<8x128xf32>
    %569 = arith.divf %567, %568 : vector<8x128xf32>
    %570 = vector.extract_strided_slice %561 {offsets = [0, 128], sizes = [8, 128], strides = [1, 1]} : vector<8x384xf32> to vector<8x128xf32>
    %571 = vector.extract_strided_slice %560 {offsets = [0, 128], sizes = [8, 128], strides = [1, 1]} : vector<8x384xf32> to vector<8x128xf32>
    %572 = arith.addf %570, %571 : vector<8x128xf32>
    %573 = arith.negf %572 : vector<8x128xf32>
    %574 = math.exp %573 : vector<8x128xf32>
    %cst_179 = arith.constant 1.000000e+00 : f32
    %575 = vector.broadcast %cst_179 : f32 to vector<8x128xf32>
    %576 = arith.addf %575, %574 : vector<8x128xf32>
    %577 = arith.divf %575, %576 : vector<8x128xf32>
    %578 = vector.extract_strided_slice %561 {offsets = [0, 256], sizes = [8, 128], strides = [1, 1]} : vector<8x384xf32> to vector<8x128xf32>
    %579 = vector.extract_strided_slice %560 {offsets = [0, 256], sizes = [8, 128], strides = [1, 1]} : vector<8x384xf32> to vector<8x128xf32>
    %580 = arith.mulf %569, %579 : vector<8x128xf32>
    %581 = arith.addf %578, %580 : vector<8x128xf32>
    %582 = math.tanh %581 : vector<8x128xf32>
    %cst_180 = arith.constant 1.000000e+00 : f32
    %583 = vector.broadcast %cst_180 : f32 to vector<8x128xf32>
    %584 = arith.subf %583, %577 : vector<8x128xf32>
    %585 = arith.mulf %584, %582 : vector<8x128xf32>
    %586 = arith.mulf %577, %557 : vector<8x128xf32>
    %587 = arith.addf %585, %586 : vector<8x128xf32>
    %588 = vector.broadcast %553 : i32 to vector<8x1xi32>
    %589 = arith.cmpi sgt, %0, %588 : vector<8x1xi32>
    %590 = vector.shape_cast %589 : vector<8x1xi1> to vector<8x1xi1>
    %591 = vector.broadcast %590 : vector<8x1xi1> to vector<8x128xi1>
    %592 = arith.select %591, %587, %557 : vector<8x128xi1>, vector<8x128xf32>
    %c0_181 = arith.constant 0 : index
    %c0_182 = arith.constant 0 : index
    %593 = vector.load %arg18[%c0_181, %c0_182] : memref<8x128xf32, #tpu.memory_space<vmem>>, vector<8x128xf32>
    tpu.vector_store %arg18[%c0_181, %c0_182], %592 {strides = array<i32>} : memref<8x128xf32, #tpu.memory_space<vmem>>, vector<8x128xf32>,
    %cst_183 = arith.constant 0.000000e+00 : f32
    %594 = vector.shape_cast %589 : vector<8x1xi1> to vector<8x1xi1>
    %595 = vector.broadcast %594 : vector<8x1xi1> to vector<8x128xi1>
    %596 = vector.broadcast %cst_183 : f32 to vector<8x128xf32>
    %597 = arith.select %595, %587, %596 : vector<8x128xi1>, vector<8x128xf32>
    %598 = arith.index_cast %553 : i32 to index
    %c0_184 = arith.constant 0 : index
    %c0_185 = arith.constant 0 : index
    %599 = vector.load %arg16[%598, %c0_184, %c0_185] : memref<8x8x128xf32, #tpu.memory_space<vmem>>, vector<1x8x128xf32>
    %600 = vector.shape_cast %599 : vector<1x8x128xf32> to vector<8x128xf32>
    %601 = vector.shape_cast %597 : vector<8x128xf32> to vector<1x8x128xf32>
    tpu.vector_store %arg16[%598, %c0_184, %c0_185], %601 {strides = array<i32>} : memref<8x8x128xf32, #tpu.memory_space<vmem>>, vector<1x8x128xf32>,
    %c6_i32 = arith.constant 6 : i32
    %602 = arith.index_cast %c6_i32 : i32 to index
    %c0_186 = arith.constant 0 : index
    %c0_187 = arith.constant 0 : index
    %603 = vector.load %arg14[%602, %c0_186, %c0_187] : memref<8x8x768xf32, #tpu.memory_space<vmem>>, vector<1x8x768xf32>
    %604 = vector.shape_cast %603 : vector<1x8x768xf32> to vector<8x768xf32>
    %c0_188 = arith.constant 0 : index
    %c0_189 = arith.constant 0 : index
    %605 = vector.load %arg17[%c0_188, %c0_189] : memref<8x128xf32, #tpu.memory_space<vmem>>, vector<8x128xf32>
    %cst_190 = arith.constant dense<0.000000e+00> : vector<8x384xf32>
    %606 = tpu.matmul %605, %12, %cst_190 {dimension_numbers = #tpu.dot_dimension_numbers<[1], [0], [0], [1], [0, 0, 1, 1], [], []>} : vector<8x128xf32>, vector<128x384xf32>, vector<8x384xf32> -> vector<8x384xf32>
    %607 = vector.broadcast %14 : vector<1x384xf32> to vector<8x384xf32>
    %608 = arith.addf %606, %607 : vector<8x384xf32>
    %609 = vector.extract_strided_slice %604 {offsets = [0, 0], sizes = [8, 384], strides = [1, 1]} : vector<8x768xf32> to vector<8x384xf32>
    %610 = vector.extract_strided_slice %609 {offsets = [0, 0], sizes = [8, 128], strides = [1, 1]} : vector<8x384xf32> to vector<8x128xf32>
    %611 = vector.extract_strided_slice %608 {offsets = [0, 0], sizes = [8, 128], strides = [1, 1]} : vector<8x384xf32> to vector<8x128xf32>
    %612 = arith.addf %610, %611 : vector<8x128xf32>
    %613 = arith.negf %612 : vector<8x128xf32>
    %614 = math.exp %613 : vector<8x128xf32>
    %cst_191 = arith.constant 1.000000e+00 : f32
    %615 = vector.broadcast %cst_191 : f32 to vector<8x128xf32>
    %616 = arith.addf %615, %614 : vector<8x128xf32>
    %617 = arith.divf %615, %616 : vector<8x128xf32>
    %618 = vector.extract_strided_slice %609 {offsets = [0, 128], sizes = [8, 128], strides = [1, 1]} : vector<8x384xf32> to vector<8x128xf32>
    %619 = vector.extract_strided_slice %608 {offsets = [0, 128], sizes = [8, 128], strides = [1, 1]} : vector<8x384xf32> to vector<8x128xf32>
    %620 = arith.addf %618, %619 : vector<8x128xf32>
    %621 = arith.negf %620 : vector<8x128xf32>
    %622 = math.exp %621 : vector<8x128xf32>
    %cst_192 = arith.constant 1.000000e+00 : f32
    %623 = vector.broadcast %cst_192 : f32 to vector<8x128xf32>
    %624 = arith.addf %623, %622 : vector<8x128xf32>
    %625 = arith.divf %623, %624 : vector<8x128xf32>
    %626 = vector.extract_strided_slice %609 {offsets = [0, 256], sizes = [8, 128], strides = [1, 1]} : vector<8x384xf32> to vector<8x128xf32>
    %627 = vector.extract_strided_slice %608 {offsets = [0, 256], sizes = [8, 128], strides = [1, 1]} : vector<8x384xf32> to vector<8x128xf32>
    %628 = arith.mulf %617, %627 : vector<8x128xf32>
    %629 = arith.addf %626, %628 : vector<8x128xf32>
    %630 = math.tanh %629 : vector<8x128xf32>
    %cst_193 = arith.constant 1.000000e+00 : f32
    %631 = vector.broadcast %cst_193 : f32 to vector<8x128xf32>
    %632 = arith.subf %631, %625 : vector<8x128xf32>
    %633 = arith.mulf %632, %630 : vector<8x128xf32>
    %634 = arith.mulf %625, %605 : vector<8x128xf32>
    %635 = arith.addf %633, %634 : vector<8x128xf32>
    %636 = vector.broadcast %c6_i32 : i32 to vector<8x1xi32>
    %637 = arith.cmpi sgt, %0, %636 : vector<8x1xi32>
    %638 = vector.shape_cast %637 : vector<8x1xi1> to vector<8x1xi1>
    %639 = vector.broadcast %638 : vector<8x1xi1> to vector<8x128xi1>
    %640 = arith.select %639, %635, %605 : vector<8x128xi1>, vector<8x128xf32>
    %c0_194 = arith.constant 0 : index
    %c0_195 = arith.constant 0 : index
    %641 = vector.load %arg17[%c0_194, %c0_195] : memref<8x128xf32, #tpu.memory_space<vmem>>, vector<8x128xf32>
    tpu.vector_store %arg17[%c0_194, %c0_195], %640 {strides = array<i32>} : memref<8x128xf32, #tpu.memory_space<vmem>>, vector<8x128xf32>,
    %cst_196 = arith.constant 0.000000e+00 : f32
    %642 = vector.shape_cast %637 : vector<8x1xi1> to vector<8x1xi1>
    %643 = vector.broadcast %642 : vector<8x1xi1> to vector<8x128xi1>
    %644 = vector.broadcast %cst_196 : f32 to vector<8x128xf32>
    %645 = arith.select %643, %635, %644 : vector<8x128xi1>, vector<8x128xf32>
    %646 = arith.index_cast %c6_i32 : i32 to index
    %c0_197 = arith.constant 0 : index
    %c0_198 = arith.constant 0 : index
    %647 = vector.load %arg15[%646, %c0_197, %c0_198] : memref<8x8x128xf32, #tpu.memory_space<vmem>>, vector<1x8x128xf32>
    %648 = vector.shape_cast %647 : vector<1x8x128xf32> to vector<8x128xf32>
    %649 = vector.shape_cast %645 : vector<8x128xf32> to vector<1x8x128xf32>
    tpu.vector_store %arg15[%646, %c0_197, %c0_198], %649 {strides = array<i32>} : memref<8x8x128xf32, #tpu.memory_space<vmem>>, vector<1x8x128xf32>,
    %c7_i32_199 = arith.constant 7 : i32
    %650 = arith.subi %c7_i32_199, %c6_i32 : i32
    %651 = arith.index_cast %650 : i32 to index
    %c0_200 = arith.constant 0 : index
    %c0_201 = arith.constant 0 : index
    %652 = vector.load %arg14[%651, %c0_200, %c0_201] : memref<8x8x768xf32, #tpu.memory_space<vmem>>, vector<1x8x768xf32>
    %653 = vector.shape_cast %652 : vector<1x8x768xf32> to vector<8x768xf32>
    %c0_202 = arith.constant 0 : index
    %c0_203 = arith.constant 0 : index
    %654 = vector.load %arg18[%c0_202, %c0_203] : memref<8x128xf32, #tpu.memory_space<vmem>>, vector<8x128xf32>
    %cst_204 = arith.constant dense<0.000000e+00> : vector<8x384xf32>
    %655 = tpu.matmul %654, %13, %cst_204 {dimension_numbers = #tpu.dot_dimension_numbers<[1], [0], [0], [1], [0, 0, 1, 1], [], []>} : vector<8x128xf32>, vector<128x384xf32>, vector<8x384xf32> -> vector<8x384xf32>
    %656 = vector.broadcast %15 : vector<1x384xf32> to vector<8x384xf32>
    %657 = arith.addf %655, %656 : vector<8x384xf32>
    %658 = vector.extract_strided_slice %653 {offsets = [0, 384], sizes = [8, 384], strides = [1, 1]} : vector<8x768xf32> to vector<8x384xf32>
    %659 = vector.extract_strided_slice %658 {offsets = [0, 0], sizes = [8, 128], strides = [1, 1]} : vector<8x384xf32> to vector<8x128xf32>
    %660 = vector.extract_strided_slice %657 {offsets = [0, 0], sizes = [8, 128], strides = [1, 1]} : vector<8x384xf32> to vector<8x128xf32>
    %661 = arith.addf %659, %660 : vector<8x128xf32>
    %662 = arith.negf %661 : vector<8x128xf32>
    %663 = math.exp %662 : vector<8x128xf32>
    %cst_205 = arith.constant 1.000000e+00 : f32
    %664 = vector.broadcast %cst_205 : f32 to vector<8x128xf32>
    %665 = arith.addf %664, %663 : vector<8x128xf32>
    %666 = arith.divf %664, %665 : vector<8x128xf32>
    %667 = vector.extract_strided_slice %658 {offsets = [0, 128], sizes = [8, 128], strides = [1, 1]} : vector<8x384xf32> to vector<8x128xf32>
    %668 = vector.extract_strided_slice %657 {offsets = [0, 128], sizes = [8, 128], strides = [1, 1]} : vector<8x384xf32> to vector<8x128xf32>
    %669 = arith.addf %667, %668 : vector<8x128xf32>
    %670 = arith.negf %669 : vector<8x128xf32>
    %671 = math.exp %670 : vector<8x128xf32>
    %cst_206 = arith.constant 1.000000e+00 : f32
    %672 = vector.broadcast %cst_206 : f32 to vector<8x128xf32>
    %673 = arith.addf %672, %671 : vector<8x128xf32>
    %674 = arith.divf %672, %673 : vector<8x128xf32>
    %675 = vector.extract_strided_slice %658 {offsets = [0, 256], sizes = [8, 128], strides = [1, 1]} : vector<8x384xf32> to vector<8x128xf32>
    %676 = vector.extract_strided_slice %657 {offsets = [0, 256], sizes = [8, 128], strides = [1, 1]} : vector<8x384xf32> to vector<8x128xf32>
    %677 = arith.mulf %666, %676 : vector<8x128xf32>
    %678 = arith.addf %675, %677 : vector<8x128xf32>
    %679 = math.tanh %678 : vector<8x128xf32>
    %cst_207 = arith.constant 1.000000e+00 : f32
    %680 = vector.broadcast %cst_207 : f32 to vector<8x128xf32>
    %681 = arith.subf %680, %674 : vector<8x128xf32>
    %682 = arith.mulf %681, %679 : vector<8x128xf32>
    %683 = arith.mulf %674, %654 : vector<8x128xf32>
    %684 = arith.addf %682, %683 : vector<8x128xf32>
    %685 = vector.broadcast %650 : i32 to vector<8x1xi32>
    %686 = arith.cmpi sgt, %0, %685 : vector<8x1xi32>
    %687 = vector.shape_cast %686 : vector<8x1xi1> to vector<8x1xi1>
    %688 = vector.broadcast %687 : vector<8x1xi1> to vector<8x128xi1>
    %689 = arith.select %688, %684, %654 : vector<8x128xi1>, vector<8x128xf32>
    %c0_208 = arith.constant 0 : index
    %c0_209 = arith.constant 0 : index
    %690 = vector.load %arg18[%c0_208, %c0_209] : memref<8x128xf32, #tpu.memory_space<vmem>>, vector<8x128xf32>
    tpu.vector_store %arg18[%c0_208, %c0_209], %689 {strides = array<i32>} : memref<8x128xf32, #tpu.memory_space<vmem>>, vector<8x128xf32>,
    %cst_210 = arith.constant 0.000000e+00 : f32
    %691 = vector.shape_cast %686 : vector<8x1xi1> to vector<8x1xi1>
    %692 = vector.broadcast %691 : vector<8x1xi1> to vector<8x128xi1>
    %693 = vector.broadcast %cst_210 : f32 to vector<8x128xf32>
    %694 = arith.select %692, %684, %693 : vector<8x128xi1>, vector<8x128xf32>
    %695 = arith.index_cast %650 : i32 to index
    %c0_211 = arith.constant 0 : index
    %c0_212 = arith.constant 0 : index
    %696 = vector.load %arg16[%695, %c0_211, %c0_212] : memref<8x8x128xf32, #tpu.memory_space<vmem>>, vector<1x8x128xf32>
    %697 = vector.shape_cast %696 : vector<1x8x128xf32> to vector<8x128xf32>
    %698 = vector.shape_cast %694 : vector<8x128xf32> to vector<1x8x128xf32>
    tpu.vector_store %arg16[%695, %c0_211, %c0_212], %698 {strides = array<i32>} : memref<8x8x128xf32, #tpu.memory_space<vmem>>, vector<1x8x128xf32>,
    %c7_i32_213 = arith.constant 7 : i32
    %699 = arith.index_cast %c7_i32_213 : i32 to index
    %c0_214 = arith.constant 0 : index
    %c0_215 = arith.constant 0 : index
    %700 = vector.load %arg14[%699, %c0_214, %c0_215] : memref<8x8x768xf32, #tpu.memory_space<vmem>>, vector<1x8x768xf32>
    %701 = vector.shape_cast %700 : vector<1x8x768xf32> to vector<8x768xf32>
    %c0_216 = arith.constant 0 : index
    %c0_217 = arith.constant 0 : index
    %702 = vector.load %arg17[%c0_216, %c0_217] : memref<8x128xf32, #tpu.memory_space<vmem>>, vector<8x128xf32>
    %cst_218 = arith.constant dense<0.000000e+00> : vector<8x384xf32>
    %703 = tpu.matmul %702, %12, %cst_218 {dimension_numbers = #tpu.dot_dimension_numbers<[1], [0], [0], [1], [0, 0, 1, 1], [], []>} : vector<8x128xf32>, vector<128x384xf32>, vector<8x384xf32> -> vector<8x384xf32>
    %704 = vector.broadcast %14 : vector<1x384xf32> to vector<8x384xf32>
    %705 = arith.addf %703, %704 : vector<8x384xf32>
    %706 = vector.extract_strided_slice %701 {offsets = [0, 0], sizes = [8, 384], strides = [1, 1]} : vector<8x768xf32> to vector<8x384xf32>
    %707 = vector.extract_strided_slice %706 {offsets = [0, 0], sizes = [8, 128], strides = [1, 1]} : vector<8x384xf32> to vector<8x128xf32>
    %708 = vector.extract_strided_slice %705 {offsets = [0, 0], sizes = [8, 128], strides = [1, 1]} : vector<8x384xf32> to vector<8x128xf32>
    %709 = arith.addf %707, %708 : vector<8x128xf32>
    %710 = arith.negf %709 : vector<8x128xf32>
    %711 = math.exp %710 : vector<8x128xf32>
    %cst_219 = arith.constant 1.000000e+00 : f32
    %712 = vector.broadcast %cst_219 : f32 to vector<8x128xf32>
    %713 = arith.addf %712, %711 : vector<8x128xf32>
    %714 = arith.divf %712, %713 : vector<8x128xf32>
    %715 = vector.extract_strided_slice %706 {offsets = [0, 128], sizes = [8, 128], strides = [1, 1]} : vector<8x384xf32> to vector<8x128xf32>
    %716 = vector.extract_strided_slice %705 {offsets = [0, 128], sizes = [8, 128], strides = [1, 1]} : vector<8x384xf32> to vector<8x128xf32>
    %717 = arith.addf %715, %716 : vector<8x128xf32>
    %718 = arith.negf %717 : vector<8x128xf32>
    %719 = math.exp %718 : vector<8x128xf32>
    %cst_220 = arith.constant 1.000000e+00 : f32
    %720 = vector.broadcast %cst_220 : f32 to vector<8x128xf32>
    %721 = arith.addf %720, %719 : vector<8x128xf32>
    %722 = arith.divf %720, %721 : vector<8x128xf32>
    %723 = vector.extract_strided_slice %706 {offsets = [0, 256], sizes = [8, 128], strides = [1, 1]} : vector<8x384xf32> to vector<8x128xf32>
    %724 = vector.extract_strided_slice %705 {offsets = [0, 256], sizes = [8, 128], strides = [1, 1]} : vector<8x384xf32> to vector<8x128xf32>
    %725 = arith.mulf %714, %724 : vector<8x128xf32>
    %726 = arith.addf %723, %725 : vector<8x128xf32>
    %727 = math.tanh %726 : vector<8x128xf32>
    %cst_221 = arith.constant 1.000000e+00 : f32
    %728 = vector.broadcast %cst_221 : f32 to vector<8x128xf32>
    %729 = arith.subf %728, %722 : vector<8x128xf32>
    %730 = arith.mulf %729, %727 : vector<8x128xf32>
    %731 = arith.mulf %722, %702 : vector<8x128xf32>
    %732 = arith.addf %730, %731 : vector<8x128xf32>
    %733 = vector.broadcast %c7_i32_213 : i32 to vector<8x1xi32>
    %734 = arith.cmpi sgt, %0, %733 : vector<8x1xi32>
    %735 = vector.shape_cast %734 : vector<8x1xi1> to vector<8x1xi1>
    %736 = vector.broadcast %735 : vector<8x1xi1> to vector<8x128xi1>
    %737 = arith.select %736, %732, %702 : vector<8x128xi1>, vector<8x128xf32>
    %c0_222 = arith.constant 0 : index
    %c0_223 = arith.constant 0 : index
    %738 = vector.load %arg17[%c0_222, %c0_223] : memref<8x128xf32, #tpu.memory_space<vmem>>, vector<8x128xf32>
    tpu.vector_store %arg17[%c0_222, %c0_223], %737 {strides = array<i32>} : memref<8x128xf32, #tpu.memory_space<vmem>>, vector<8x128xf32>,
    %cst_224 = arith.constant 0.000000e+00 : f32
    %739 = vector.shape_cast %734 : vector<8x1xi1> to vector<8x1xi1>
    %740 = vector.broadcast %739 : vector<8x1xi1> to vector<8x128xi1>
    %741 = vector.broadcast %cst_224 : f32 to vector<8x128xf32>
    %742 = arith.select %740, %732, %741 : vector<8x128xi1>, vector<8x128xf32>
    %743 = arith.index_cast %c7_i32_213 : i32 to index
    %c0_225 = arith.constant 0 : index
    %c0_226 = arith.constant 0 : index
    %744 = vector.load %arg15[%743, %c0_225, %c0_226] : memref<8x8x128xf32, #tpu.memory_space<vmem>>, vector<1x8x128xf32>
    %745 = vector.shape_cast %744 : vector<1x8x128xf32> to vector<8x128xf32>
    %746 = vector.shape_cast %742 : vector<8x128xf32> to vector<1x8x128xf32>
    tpu.vector_store %arg15[%743, %c0_225, %c0_226], %746 {strides = array<i32>} : memref<8x8x128xf32, #tpu.memory_space<vmem>>, vector<1x8x128xf32>,
    %c7_i32_227 = arith.constant 7 : i32
    %747 = arith.subi %c7_i32_227, %c7_i32_213 : i32
    %748 = arith.index_cast %747 : i32 to index
    %c0_228 = arith.constant 0 : index
    %c0_229 = arith.constant 0 : index
    %749 = vector.load %arg14[%748, %c0_228, %c0_229] : memref<8x8x768xf32, #tpu.memory_space<vmem>>, vector<1x8x768xf32>
    %750 = vector.shape_cast %749 : vector<1x8x768xf32> to vector<8x768xf32>
    %c0_230 = arith.constant 0 : index
    %c0_231 = arith.constant 0 : index
    %751 = vector.load %arg18[%c0_230, %c0_231] : memref<8x128xf32, #tpu.memory_space<vmem>>, vector<8x128xf32>
    %cst_232 = arith.constant dense<0.000000e+00> : vector<8x384xf32>
    %752 = tpu.matmul %751, %13, %cst_232 {dimension_numbers = #tpu.dot_dimension_numbers<[1], [0], [0], [1], [0, 0, 1, 1], [], []>} : vector<8x128xf32>, vector<128x384xf32>, vector<8x384xf32> -> vector<8x384xf32>
    %753 = vector.broadcast %15 : vector<1x384xf32> to vector<8x384xf32>
    %754 = arith.addf %752, %753 : vector<8x384xf32>
    %755 = vector.extract_strided_slice %750 {offsets = [0, 384], sizes = [8, 384], strides = [1, 1]} : vector<8x768xf32> to vector<8x384xf32>
    %756 = vector.extract_strided_slice %755 {offsets = [0, 0], sizes = [8, 128], strides = [1, 1]} : vector<8x384xf32> to vector<8x128xf32>
    %757 = vector.extract_strided_slice %754 {offsets = [0, 0], sizes = [8, 128], strides = [1, 1]} : vector<8x384xf32> to vector<8x128xf32>
    %758 = arith.addf %756, %757 : vector<8x128xf32>
    %759 = arith.negf %758 : vector<8x128xf32>
    %760 = math.exp %759 : vector<8x128xf32>
    %cst_233 = arith.constant 1.000000e+00 : f32
    %761 = vector.broadcast %cst_233 : f32 to vector<8x128xf32>
    %762 = arith.addf %761, %760 : vector<8x128xf32>
    %763 = arith.divf %761, %762 : vector<8x128xf32>
    %764 = vector.extract_strided_slice %755 {offsets = [0, 128], sizes = [8, 128], strides = [1, 1]} : vector<8x384xf32> to vector<8x128xf32>
    %765 = vector.extract_strided_slice %754 {offsets = [0, 128], sizes = [8, 128], strides = [1, 1]} : vector<8x384xf32> to vector<8x128xf32>
    %766 = arith.addf %764, %765 : vector<8x128xf32>
    %767 = arith.negf %766 : vector<8x128xf32>
    %768 = math.exp %767 : vector<8x128xf32>
    %cst_234 = arith.constant 1.000000e+00 : f32
    %769 = vector.broadcast %cst_234 : f32 to vector<8x128xf32>
    %770 = arith.addf %769, %768 : vector<8x128xf32>
    %771 = arith.divf %769, %770 : vector<8x128xf32>
    %772 = vector.extract_strided_slice %755 {offsets = [0, 256], sizes = [8, 128], strides = [1, 1]} : vector<8x384xf32> to vector<8x128xf32>
    %773 = vector.extract_strided_slice %754 {offsets = [0, 256], sizes = [8, 128], strides = [1, 1]} : vector<8x384xf32> to vector<8x128xf32>
    %774 = arith.mulf %763, %773 : vector<8x128xf32>
    %775 = arith.addf %772, %774 : vector<8x128xf32>
    %776 = math.tanh %775 : vector<8x128xf32>
    %cst_235 = arith.constant 1.000000e+00 : f32
    %777 = vector.broadcast %cst_235 : f32 to vector<8x128xf32>
    %778 = arith.subf %777, %771 : vector<8x128xf32>
    %779 = arith.mulf %778, %776 : vector<8x128xf32>
    %780 = arith.mulf %771, %751 : vector<8x128xf32>
    %781 = arith.addf %779, %780 : vector<8x128xf32>
    %782 = vector.broadcast %747 : i32 to vector<8x1xi32>
    %783 = arith.cmpi sgt, %0, %782 : vector<8x1xi32>
    %784 = vector.shape_cast %783 : vector<8x1xi1> to vector<8x1xi1>
    %785 = vector.broadcast %784 : vector<8x1xi1> to vector<8x128xi1>
    %786 = arith.select %785, %781, %751 : vector<8x128xi1>, vector<8x128xf32>
    %c0_236 = arith.constant 0 : index
    %c0_237 = arith.constant 0 : index
    %787 = vector.load %arg18[%c0_236, %c0_237] : memref<8x128xf32, #tpu.memory_space<vmem>>, vector<8x128xf32>
    tpu.vector_store %arg18[%c0_236, %c0_237], %786 {strides = array<i32>} : memref<8x128xf32, #tpu.memory_space<vmem>>, vector<8x128xf32>,
    %cst_238 = arith.constant 0.000000e+00 : f32
    %788 = vector.shape_cast %783 : vector<8x1xi1> to vector<8x1xi1>
    %789 = vector.broadcast %788 : vector<8x1xi1> to vector<8x128xi1>
    %790 = vector.broadcast %cst_238 : f32 to vector<8x128xf32>
    %791 = arith.select %789, %781, %790 : vector<8x128xi1>, vector<8x128xf32>
    %792 = arith.index_cast %747 : i32 to index
    %c0_239 = arith.constant 0 : index
    %c0_240 = arith.constant 0 : index
    %793 = vector.load %arg16[%792, %c0_239, %c0_240] : memref<8x8x128xf32, #tpu.memory_space<vmem>>, vector<1x8x128xf32>
    %794 = vector.shape_cast %793 : vector<1x8x128xf32> to vector<8x128xf32>
    %795 = vector.shape_cast %791 : vector<8x128xf32> to vector<1x8x128xf32>
    tpu.vector_store %arg16[%792, %c0_239, %c0_240], %795 {strides = array<i32>} : memref<8x8x128xf32, #tpu.memory_space<vmem>>, vector<1x8x128xf32>,
    %c8_i32 = arith.constant 8 : i32
    %c0_241 = arith.constant 0 : index
    %c0_242 = arith.constant 0 : index
    %c0_243 = arith.constant 0 : index
    %796 = vector.load %arg15[%c0_241, %c0_242, %c0_243] : memref<8x8x128xf32, #tpu.memory_space<vmem>>, vector<8x8x128xf32>
    %c0_244 = arith.constant 0 : index
    %c0_245 = arith.constant 0 : index
    %c0_246 = arith.constant 0 : index
    %797 = vector.load %arg16[%c0_244, %c0_245, %c0_246] : memref<8x8x128xf32, #tpu.memory_space<vmem>>, vector<8x8x128xf32>
    %c0_247 = arith.constant 0 : index
    %c0_248 = arith.constant 0 : index
    %798 = vector.load %arg9[%c0_247, %c0_248] : memref<256x128xf32, #tpu.memory_space<vmem>>, vector<256x128xf32>
    %799 = vector.shape_cast %796 : vector<8x8x128xf32> to vector<64x128xf32>
    %800 = vector.extract_strided_slice %798 {offsets = [0, 0], sizes = [128, 128], strides = [1, 1]} : vector<256x128xf32> to vector<128x128xf32>
    %801 = arith.truncf %799 : vector<64x128xf32> to vector<64x128xbf16>
    %802 = arith.truncf %800 : vector<128x128xf32> to vector<128x128xbf16>
    %cst_249 = arith.constant dense<0.000000e+00> : vector<64x128xf32>
    %803 = tpu.matmul %801, %802, %cst_249 {dimension_numbers = #tpu.dot_dimension_numbers<[1], [0], [0], [1], [0, 0, 1, 1], [], []>} : vector<64x128xbf16>, vector<128x128xbf16>, vector<64x128xf32> -> vector<64x128xf32>
    %804 = vector.shape_cast %797 : vector<8x8x128xf32> to vector<64x128xf32>
    %805 = vector.extract_strided_slice %798 {offsets = [128, 0], sizes = [128, 128], strides = [1, 1]} : vector<256x128xf32> to vector<128x128xf32>
    %806 = arith.truncf %804 : vector<64x128xf32> to vector<64x128xbf16>
    %807 = arith.truncf %805 : vector<128x128xf32> to vector<128x128xbf16>
    %cst_250 = arith.constant dense<0.000000e+00> : vector<64x128xf32>
    %808 = tpu.matmul %806, %807, %cst_250 {dimension_numbers = #tpu.dot_dimension_numbers<[1], [0], [0], [1], [0, 0, 1, 1], [], []>} : vector<64x128xbf16>, vector<128x128xbf16>, vector<64x128xf32> -> vector<64x128xf32>
    %809 = arith.addf %803, %808 : vector<64x128xf32>
    %c0_251 = arith.constant 0 : index
    %c0_252 = arith.constant 0 : index
    %810 = vector.load %arg10[%c0_251, %c0_252] : memref<1x128xf32, #tpu.memory_space<vmem>>, vector<1x128xf32>
    %811 = vector.broadcast %810 : vector<1x128xf32> to vector<64x128xf32>
    %812 = arith.addf %809, %811 : vector<64x128xf32>
    %813 = math.tanh %812 : vector<64x128xf32>
    %c0_253 = arith.constant 0 : index
    %c0_254 = arith.constant 0 : index
    %814 = vector.load %arg11[%c0_253, %c0_254] : memref<1x128xf32, #tpu.memory_space<vmem>>, vector<1x128xf32>
    %815 = vector.broadcast %814 : vector<1x128xf32> to vector<64x128xf32>
    %816 = arith.mulf %813, %815 : vector<64x128xf32>
    %cst_255 = arith.constant dense<0.000000e+00> : vector<64xf32>
    %817 = vector.multi_reduction <add>, %816, %cst_255 [1] : vector<64x128xf32> to vector<64xf32>
    %818 = vector.shape_cast %817 : vector<64xf32> to vector<64x1xf32>
    %819 = vector.shape_cast %818 : vector<64x1xf32> to vector<8x8x1xf32>
    %820 = tpu.iota {dimensions = array<i32: 0>} : vector<8x8x1xi32>
    %821 = vector.shape_cast %0 : vector<8x1xi32> to vector<1x8x1xi32>
    %822 = vector.broadcast %821 : vector<1x8x1xi32> to vector<8x8x1xi32>
    %823 = arith.cmpi slt, %820, %822 : vector<8x8x1xi32>
    %cst_256 = arith.constant -1.000000e+30 : f32
    %824 = vector.broadcast %cst_256 : f32 to vector<8x8x1xf32>
    %825 = arith.select %823, %819, %824 : vector<8x8x1xi1>, vector<8x8x1xf32>
    %cst_257 = arith.constant dense<0xFF800000> : vector<8x1xf32>
    %826 = vector.multi_reduction <maximumf>, %825, %cst_257 [0] : vector<8x8x1xf32> to vector<8x1xf32>
    %827 = vector.shape_cast %826 : vector<8x1xf32> to vector<1x8x1xf32>
    %828 = vector.broadcast %827 : vector<1x8x1xf32> to vector<8x8x1xf32>
    %829 = arith.subf %825, %828 : vector<8x8x1xf32>
    %830 = math.exp %829 : vector<8x8x1xf32>
    %cst_258 = arith.constant 0.000000e+00 : f32
    %831 = vector.broadcast %cst_258 : f32 to vector<8x8x1xf32>
    %832 = arith.select %823, %830, %831 : vector<8x8x1xi1>, vector<8x8x1xf32>
    %cst_259 = arith.constant dense<0.000000e+00> : vector<8x1xf32>
    %833 = vector.multi_reduction <add>, %832, %cst_259 [0] : vector<8x8x1xf32> to vector<8x1xf32>
    %834 = vector.shape_cast %833 : vector<8x1xf32> to vector<1x8x1xf32>
    %cst_260 = arith.constant 9.99999968E-21 : f32
    %835 = vector.broadcast %cst_260 : f32 to vector<1x8x1xf32>
    %836 = arith.maximumf %834, %835 : vector<1x8x1xf32>
    %837 = tpu.reciprocal %836 {approx = true} : vector<1x8x1xf32> -> vector<1x8x1xf32>
    %838 = vector.broadcast %837 : vector<1x8x1xf32> to vector<8x8x1xf32>
    %839 = arith.mulf %832, %838 : vector<8x8x1xf32>
    %c0_261 = arith.constant 0 : index
    %c0_262 = arith.constant 0 : index
    %c0_263 = arith.constant 0 : index
    %840 = vector.load %arg13[%c0_261, %c0_262, %c0_263] : memref<8x8x1xf32, #tpu.memory_space<vmem>>, vector<8x8x1xf32>
    tpu.vector_store %arg13[%c0_261, %c0_262, %c0_263], %839 {strides = array<i32>} : memref<8x8x1xf32, #tpu.memory_space<vmem>>, vector<8x8x1xf32>,
    %841 = vector.broadcast %839 : vector<8x8x1xf32> to vector<8x8x128xf32>
    %842 = arith.mulf %796, %841 : vector<8x8x128xf32>
    %cst_264 = arith.constant dense<0.000000e+00> : vector<8x128xf32>
    %843 = vector.multi_reduction <add>, %842, %cst_264 [0] : vector<8x8x128xf32> to vector<8x128xf32>
    %844 = vector.broadcast %839 : vector<8x8x1xf32> to vector<8x8x128xf32>
    %845 = arith.mulf %797, %844 : vector<8x8x128xf32>
    %cst_265 = arith.constant dense<0.000000e+00> : vector<8x128xf32>
    %846 = vector.multi_reduction <add>, %845, %cst_265 [0] : vector<8x8x128xf32> to vector<8x128xf32>
    %c0_266 = arith.constant 0 : index
    %c0_267 = arith.constant 0 : index
    %847 = vector.load %arg12[%c0_266, %c0_267] : memref<8x256xf32, #tpu.memory_space<vmem>>, vector<8x128xf32>
    tpu.vector_store %arg12[%c0_266, %c0_267], %843 {strides = array<i32>} : memref<8x256xf32, #tpu.memory_space<vmem>>, vector<8x128xf32>,
    %c0_268 = arith.constant 0 : index
    %c128 = arith.constant 128 : index
    %848 = vector.load %arg12[%c0_268, %c128] : memref<8x256xf32, #tpu.memory_space<vmem>>, vector<8x128xf32>
    tpu.vector_store %arg12[%c0_268, %c128], %846 {strides = array<i32>} : memref<8x256xf32, #tpu.memory_space<vmem>>, vector<8x128xf32>,
    return
  }
  func.func @transform_0(%arg0: i32) -> (i32, i32, i32) {
    %c0_i32 = arith.constant 0 : i32
    %c0_i32_0 = arith.constant 0 : i32
    %c0_i32_1 = arith.constant 0 : i32
    return %c0_i32, %arg0, %c0_i32_0 : i32, i32, i32
  }
  func.func @transform_1(%arg0: i32) -> (i32, i32) {
    %c0_i32 = arith.constant 0 : i32
    %c0_i32_0 = arith.constant 0 : i32
    return %arg0, %c0_i32 : i32, i32
  }
  func.func @transform_2(%arg0: i32) -> (i32, i32) {
    %c0_i32 = arith.constant 0 : i32
    %c0_i32_0 = arith.constant 0 : i32
    %c0_i32_1 = arith.constant 0 : i32
    return %c0_i32, %c0_i32_0 : i32, i32
  }
  func.func @transform_3(%arg0: i32) -> (i32, i32) {
    %c0_i32 = arith.constant 0 : i32
    %c0_i32_0 = arith.constant 0 : i32
    %c0_i32_1 = arith.constant 0 : i32
    return %c0_i32, %c0_i32_0 : i32, i32
  }
  func.func @transform_4(%arg0: i32) -> (i32, i32) {
    %c0_i32 = arith.constant 0 : i32
    %c0_i32_0 = arith.constant 0 : i32
    %c0_i32_1 = arith.constant 0 : i32
    return %c0_i32, %c0_i32_0 : i32, i32
  }
  func.func @transform_5(%arg0: i32) -> (i32, i32) {
    %c0_i32 = arith.constant 0 : i32
    %c0_i32_0 = arith.constant 0 : i32
    %c0_i32_1 = arith.constant 0 : i32
    return %c0_i32, %c0_i32_0 : i32, i32
  }
  func.func @transform_6(%arg0: i32) -> (i32, i32) {
    %c0_i32 = arith.constant 0 : i32
    %c0_i32_0 = arith.constant 0 : i32
    %c0_i32_1 = arith.constant 0 : i32
    return %c0_i32, %c0_i32_0 : i32, i32
  }
  func.func @transform_7(%arg0: i32) -> (i32, i32) {
    %c0_i32 = arith.constant 0 : i32
    %c0_i32_0 = arith.constant 0 : i32
    %c0_i32_1 = arith.constant 0 : i32
    return %c0_i32, %c0_i32_0 : i32, i32
  }
  func.func @transform_8(%arg0: i32) -> (i32, i32) {
    %c0_i32 = arith.constant 0 : i32
    %c0_i32_0 = arith.constant 0 : i32
    %c0_i32_1 = arith.constant 0 : i32
    return %c0_i32, %c0_i32_0 : i32, i32
  }
  func.func @transform_9(%arg0: i32) -> (i32, i32) {
    %c0_i32 = arith.constant 0 : i32
    %c0_i32_0 = arith.constant 0 : i32
    %c0_i32_1 = arith.constant 0 : i32
    return %c0_i32, %c0_i32_0 : i32, i32
  }
  func.func @transform_10(%arg0: i32) -> (i32, i32) {
    %c0_i32 = arith.constant 0 : i32
    %c0_i32_0 = arith.constant 0 : i32
    %c0_i32_1 = arith.constant 0 : i32
    return %c0_i32, %c0_i32_0 : i32, i32
  }
  func.func @transform_11(%arg0: i32) -> (i32, i32) {
    %c0_i32 = arith.constant 0 : i32
    %c0_i32_0 = arith.constant 0 : i32
    return %arg0, %c0_i32 : i32, i32
  }
  func.func @transform_12(%arg0: i32) -> (i32, i32, i32) {
    %c0_i32 = arith.constant 0 : i32
    %c0_i32_0 = arith.constant 0 : i32
    %c0_i32_1 = arith.constant 0 : i32
    return %c0_i32, %arg0, %c0_i32_0 : i32, i32, i32
  }
}

module attributes {stable_mosaic.version = 11 : i64} {
  func.func @kernel(%arg0: i32, %arg1: memref<3x8x256xf32, #tpu.memory_space<vmem>>, %arg2: memref<8x1xi32, #tpu.memory_space<vmem>>, %arg3: memref<256x768xf32, #tpu.memory_space<vmem>>, %arg4: memref<1x768xf32, #tpu.memory_space<vmem>>, %arg5: memref<128x384xf32, #tpu.memory_space<vmem>>, %arg6: memref<128x384xf32, #tpu.memory_space<vmem>>, %arg7: memref<1x384xf32, #tpu.memory_space<vmem>>, %arg8: memref<1x384xf32, #tpu.memory_space<vmem>>, %arg9: memref<256x128xf32, #tpu.memory_space<vmem>>, %arg10: memref<1x128xf32, #tpu.memory_space<vmem>>, %arg11: memref<1x128xf32, #tpu.memory_space<vmem>>, %arg12: memref<256x128xf32, #tpu.memory_space<vmem>>, %arg13: memref<1x128xf32, #tpu.memory_space<vmem>>, %arg14: memref<8x256xf32, #tpu.memory_space<vmem>>, %arg15: memref<3x8x1xf32, #tpu.memory_space<vmem>>, %arg16: memref<8x128xf32, #tpu.memory_space<vmem>>, %arg17: memref<3x8x768xf32, #tpu.memory_space<vmem>>, %arg18: memref<3x8x128xf32, #tpu.memory_space<vmem>>, %arg19: memref<3x8x128xf32, #tpu.memory_space<vmem>>, %arg20: memref<8x128xf32, #tpu.memory_space<vmem>>, %arg21: memref<8x128xf32, #tpu.memory_space<vmem>>) attributes {dimension_semantics = [#tpu.dimension_semantics<parallel>], iteration_bounds = array<i64: 1>, scalar_prefetch = 0 : i64, scratch_operands = 5 : i64, tpu.core_type = #tpu.core_type<tc>, window_params = [{transform_indices = @transform_0, window_bounds = array<i64: 3, 8, 256>}, {transform_indices = @transform_1, window_bounds = array<i64: 8, 1>}, {pipeline_mode = #tpu.pipeline_mode<synchronous>, transform_indices = @transform_2, window_bounds = array<i64: 256, 768>}, {pipeline_mode = #tpu.pipeline_mode<synchronous>, transform_indices = @transform_3, window_bounds = array<i64: 1, 768>}, {pipeline_mode = #tpu.pipeline_mode<synchronous>, transform_indices = @transform_4, window_bounds = array<i64: 128, 384>}, {pipeline_mode = #tpu.pipeline_mode<synchronous>, transform_indices = @transform_5, window_bounds = array<i64: 128, 384>}, {pipeline_mode = #tpu.pipeline_mode<synchronous>, transform_indices = @transform_6, window_bounds = array<i64: 1, 384>}, {pipeline_mode = #tpu.pipeline_mode<synchronous>, transform_indices = @transform_7, window_bounds = array<i64: 1, 384>}, {pipeline_mode = #tpu.pipeline_mode<synchronous>, transform_indices = @transform_8, window_bounds = array<i64: 256, 128>}, {pipeline_mode = #tpu.pipeline_mode<synchronous>, transform_indices = @transform_9, window_bounds = array<i64: 1, 128>}, {pipeline_mode = #tpu.pipeline_mode<synchronous>, transform_indices = @transform_10, window_bounds = array<i64: 1, 128>}, {pipeline_mode = #tpu.pipeline_mode<synchronous>, transform_indices = @transform_11, window_bounds = array<i64: 256, 128>}, {pipeline_mode = #tpu.pipeline_mode<synchronous>, transform_indices = @transform_12, window_bounds = array<i64: 1, 128>}, {transform_indices = @transform_13, window_bounds = array<i64: 8, 256>}, {transform_indices = @transform_14, window_bounds = array<i64: 3, 8, 1>}, {transform_indices = @transform_15, window_bounds = array<i64: 8, 128>}]} {
    %c0 = arith.constant 0 : index
    %c0_0 = arith.constant 0 : index
    %0 = vector.load %arg2[%c0, %c0_0] : memref<8x1xi32, #tpu.memory_space<vmem>>, vector<8x1xi32>
    %c0_1 = arith.constant 0 : index
    %c0_2 = arith.constant 0 : index
    %1 = vector.load %arg3[%c0_1, %c0_2] : memref<256x768xf32, #tpu.memory_space<vmem>>, vector<256x768xf32>
    %c0_3 = arith.constant 0 : index
    %c0_4 = arith.constant 0 : index
    %c0_5 = arith.constant 0 : index
    %2 = vector.load %arg1[%c0_3, %c0_4, %c0_5] : memref<3x8x256xf32, #tpu.memory_space<vmem>>, vector<3x8x256xf32>
    %3 = vector.shape_cast %2 : vector<3x8x256xf32> to vector<24x256xf32>
    %4 = arith.truncf %3 : vector<24x256xf32> to vector<24x256xbf16>
    %5 = arith.truncf %1 : vector<256x768xf32> to vector<256x768xbf16>
    %cst = arith.constant dense<0.000000e+00> : vector<24x768xf32>
    %6 = tpu.matmul %4, %5, %cst {dimension_numbers = #tpu.dot_dimension_numbers<[1], [0], [0], [1], [0, 0, 1, 1], [], []>} : vector<24x256xbf16>, vector<256x768xbf16>, vector<24x768xf32> -> vector<24x768xf32>
    %c0_6 = arith.constant 0 : index
    %c0_7 = arith.constant 0 : index
    %7 = vector.load %arg4[%c0_6, %c0_7] : memref<1x768xf32, #tpu.memory_space<vmem>>, vector<1x768xf32>
    %8 = vector.broadcast %7 : vector<1x768xf32> to vector<24x768xf32>
    %9 = arith.addf %6, %8 : vector<24x768xf32>
    %10 = vector.shape_cast %9 : vector<24x768xf32> to vector<3x8x768xf32>
    %c0_8 = arith.constant 0 : index
    %c0_9 = arith.constant 0 : index
    %c0_10 = arith.constant 0 : index
    %11 = vector.load %arg17[%c0_8, %c0_9, %c0_10] : memref<3x8x768xf32, #tpu.memory_space<vmem>>, vector<3x8x768xf32>
    tpu.vector_store %arg17[%c0_8, %c0_9, %c0_10], %10 {strides = array<i32>} : memref<3x8x768xf32, #tpu.memory_space<vmem>>, vector<3x8x768xf32>,
    %c0_11 = arith.constant 0 : index
    %c0_12 = arith.constant 0 : index
    %12 = vector.load %arg5[%c0_11, %c0_12] : memref<128x384xf32, #tpu.memory_space<vmem>>, vector<128x384xf32>
    %c0_13 = arith.constant 0 : index
    %c0_14 = arith.constant 0 : index
    %13 = vector.load %arg6[%c0_13, %c0_14] : memref<128x384xf32, #tpu.memory_space<vmem>>, vector<128x384xf32>
    %c0_15 = arith.constant 0 : index
    %c0_16 = arith.constant 0 : index
    %14 = vector.load %arg7[%c0_15, %c0_16] : memref<1x384xf32, #tpu.memory_space<vmem>>, vector<1x384xf32>
    %c0_17 = arith.constant 0 : index
    %c0_18 = arith.constant 0 : index
    %15 = vector.load %arg8[%c0_17, %c0_18] : memref<1x384xf32, #tpu.memory_space<vmem>>, vector<1x384xf32>
    %cst_19 = arith.constant 0.000000e+00 : f32
    %16 = vector.broadcast %cst_19 : f32 to vector<8x128xf32>
    %c0_20 = arith.constant 0 : index
    %c0_21 = arith.constant 0 : index
    %17 = vector.load %arg20[%c0_20, %c0_21] : memref<8x128xf32, #tpu.memory_space<vmem>>, vector<8x128xf32>
    tpu.vector_store %arg20[%c0_20, %c0_21], %16 {strides = array<i32>} : memref<8x128xf32, #tpu.memory_space<vmem>>, vector<8x128xf32>,
    %cst_22 = arith.constant 0.000000e+00 : f32
    %18 = vector.broadcast %cst_22 : f32 to vector<8x128xf32>
    %c0_23 = arith.constant 0 : index
    %c0_24 = arith.constant 0 : index
    %19 = vector.load %arg21[%c0_23, %c0_24] : memref<8x128xf32, #tpu.memory_space<vmem>>, vector<8x128xf32>
    tpu.vector_store %arg21[%c0_23, %c0_24], %18 {strides = array<i32>} : memref<8x128xf32, #tpu.memory_space<vmem>>, vector<8x128xf32>,
    %c0_i32 = arith.constant 0 : i32
    %20 = arith.index_cast %c0_i32 : i32 to index
    %c0_25 = arith.constant 0 : index
    %c0_26 = arith.constant 0 : index
    %21 = vector.load %arg17[%20, %c0_25, %c0_26] : memref<3x8x768xf32, #tpu.memory_space<vmem>>, vector<1x8x768xf32>
    %22 = vector.shape_cast %21 : vector<1x8x768xf32> to vector<8x768xf32>
    %c0_27 = arith.constant 0 : index
    %c0_28 = arith.constant 0 : index
    %23 = vector.load %arg20[%c0_27, %c0_28] : memref<8x128xf32, #tpu.memory_space<vmem>>, vector<8x128xf32>
    %cst_29 = arith.constant dense<0.000000e+00> : vector<8x384xf32>
    %24 = tpu.matmul %23, %12, %cst_29 {dimension_numbers = #tpu.dot_dimension_numbers<[1], [0], [0], [1], [0, 0, 1, 1], [], []>} : vector<8x128xf32>, vector<128x384xf32>, vector<8x384xf32> -> vector<8x384xf32>
    %25 = vector.broadcast %14 : vector<1x384xf32> to vector<8x384xf32>
    %26 = arith.addf %24, %25 : vector<8x384xf32>
    %27 = vector.extract_strided_slice %22 {offsets = [0, 0], sizes = [8, 384], strides = [1, 1]} : vector<8x768xf32> to vector<8x384xf32>
    %28 = vector.extract_strided_slice %27 {offsets = [0, 0], sizes = [8, 128], strides = [1, 1]} : vector<8x384xf32> to vector<8x128xf32>
    %29 = vector.extract_strided_slice %26 {offsets = [0, 0], sizes = [8, 128], strides = [1, 1]} : vector<8x384xf32> to vector<8x128xf32>
    %30 = arith.addf %28, %29 : vector<8x128xf32>
    %31 = arith.negf %30 : vector<8x128xf32>
    %32 = math.exp %31 : vector<8x128xf32>
    %cst_30 = arith.constant 1.000000e+00 : f32
    %33 = vector.broadcast %cst_30 : f32 to vector<8x128xf32>
    %34 = arith.addf %33, %32 : vector<8x128xf32>
    %35 = arith.divf %33, %34 : vector<8x128xf32>
    %36 = vector.extract_strided_slice %27 {offsets = [0, 128], sizes = [8, 128], strides = [1, 1]} : vector<8x384xf32> to vector<8x128xf32>
    %37 = vector.extract_strided_slice %26 {offsets = [0, 128], sizes = [8, 128], strides = [1, 1]} : vector<8x384xf32> to vector<8x128xf32>
    %38 = arith.addf %36, %37 : vector<8x128xf32>
    %39 = arith.negf %38 : vector<8x128xf32>
    %40 = math.exp %39 : vector<8x128xf32>
    %cst_31 = arith.constant 1.000000e+00 : f32
    %41 = vector.broadcast %cst_31 : f32 to vector<8x128xf32>
    %42 = arith.addf %41, %40 : vector<8x128xf32>
    %43 = arith.divf %41, %42 : vector<8x128xf32>
    %44 = vector.extract_strided_slice %27 {offsets = [0, 256], sizes = [8, 128], strides = [1, 1]} : vector<8x384xf32> to vector<8x128xf32>
    %45 = vector.extract_strided_slice %26 {offsets = [0, 256], sizes = [8, 128], strides = [1, 1]} : vector<8x384xf32> to vector<8x128xf32>
    %46 = arith.mulf %35, %45 : vector<8x128xf32>
    %47 = arith.addf %44, %46 : vector<8x128xf32>
    %48 = math.tanh %47 : vector<8x128xf32>
    %cst_32 = arith.constant 1.000000e+00 : f32
    %49 = vector.broadcast %cst_32 : f32 to vector<8x128xf32>
    %50 = arith.subf %49, %43 : vector<8x128xf32>
    %51 = arith.mulf %50, %48 : vector<8x128xf32>
    %52 = arith.mulf %43, %23 : vector<8x128xf32>
    %53 = arith.addf %51, %52 : vector<8x128xf32>
    %54 = vector.broadcast %c0_i32 : i32 to vector<8x1xi32>
    %55 = arith.cmpi sgt, %0, %54 : vector<8x1xi32>
    %56 = vector.shape_cast %55 : vector<8x1xi1> to vector<8x1xi1>
    %57 = vector.broadcast %56 : vector<8x1xi1> to vector<8x128xi1>
    %58 = arith.select %57, %53, %23 : vector<8x128xi1>, vector<8x128xf32>
    %c0_33 = arith.constant 0 : index
    %c0_34 = arith.constant 0 : index
    %59 = vector.load %arg20[%c0_33, %c0_34] : memref<8x128xf32, #tpu.memory_space<vmem>>, vector<8x128xf32>
    tpu.vector_store %arg20[%c0_33, %c0_34], %58 {strides = array<i32>} : memref<8x128xf32, #tpu.memory_space<vmem>>, vector<8x128xf32>,
    %cst_35 = arith.constant 0.000000e+00 : f32
    %60 = vector.shape_cast %55 : vector<8x1xi1> to vector<8x1xi1>
    %61 = vector.broadcast %60 : vector<8x1xi1> to vector<8x128xi1>
    %62 = vector.broadcast %cst_35 : f32 to vector<8x128xf32>
    %63 = arith.select %61, %53, %62 : vector<8x128xi1>, vector<8x128xf32>
    %64 = arith.index_cast %c0_i32 : i32 to index
    %c0_36 = arith.constant 0 : index
    %c0_37 = arith.constant 0 : index
    %65 = vector.load %arg18[%64, %c0_36, %c0_37] : memref<3x8x128xf32, #tpu.memory_space<vmem>>, vector<1x8x128xf32>
    %66 = vector.shape_cast %65 : vector<1x8x128xf32> to vector<8x128xf32>
    %67 = vector.shape_cast %63 : vector<8x128xf32> to vector<1x8x128xf32>
    tpu.vector_store %arg18[%64, %c0_36, %c0_37], %67 {strides = array<i32>} : memref<3x8x128xf32, #tpu.memory_space<vmem>>, vector<1x8x128xf32>,
    %c2_i32 = arith.constant 2 : i32
    %68 = arith.subi %c2_i32, %c0_i32 : i32
    %69 = arith.index_cast %68 : i32 to index
    %c0_38 = arith.constant 0 : index
    %c0_39 = arith.constant 0 : index
    %70 = vector.load %arg17[%69, %c0_38, %c0_39] : memref<3x8x768xf32, #tpu.memory_space<vmem>>, vector<1x8x768xf32>
    %71 = vector.shape_cast %70 : vector<1x8x768xf32> to vector<8x768xf32>
    %c0_40 = arith.constant 0 : index
    %c0_41 = arith.constant 0 : index
    %72 = vector.load %arg21[%c0_40, %c0_41] : memref<8x128xf32, #tpu.memory_space<vmem>>, vector<8x128xf32>
    %cst_42 = arith.constant dense<0.000000e+00> : vector<8x384xf32>
    %73 = tpu.matmul %72, %13, %cst_42 {dimension_numbers = #tpu.dot_dimension_numbers<[1], [0], [0], [1], [0, 0, 1, 1], [], []>} : vector<8x128xf32>, vector<128x384xf32>, vector<8x384xf32> -> vector<8x384xf32>
    %74 = vector.broadcast %15 : vector<1x384xf32> to vector<8x384xf32>
    %75 = arith.addf %73, %74 : vector<8x384xf32>
    %76 = vector.extract_strided_slice %71 {offsets = [0, 384], sizes = [8, 384], strides = [1, 1]} : vector<8x768xf32> to vector<8x384xf32>
    %77 = vector.extract_strided_slice %76 {offsets = [0, 0], sizes = [8, 128], strides = [1, 1]} : vector<8x384xf32> to vector<8x128xf32>
    %78 = vector.extract_strided_slice %75 {offsets = [0, 0], sizes = [8, 128], strides = [1, 1]} : vector<8x384xf32> to vector<8x128xf32>
    %79 = arith.addf %77, %78 : vector<8x128xf32>
    %80 = arith.negf %79 : vector<8x128xf32>
    %81 = math.exp %80 : vector<8x128xf32>
    %cst_43 = arith.constant 1.000000e+00 : f32
    %82 = vector.broadcast %cst_43 : f32 to vector<8x128xf32>
    %83 = arith.addf %82, %81 : vector<8x128xf32>
    %84 = arith.divf %82, %83 : vector<8x128xf32>
    %85 = vector.extract_strided_slice %76 {offsets = [0, 128], sizes = [8, 128], strides = [1, 1]} : vector<8x384xf32> to vector<8x128xf32>
    %86 = vector.extract_strided_slice %75 {offsets = [0, 128], sizes = [8, 128], strides = [1, 1]} : vector<8x384xf32> to vector<8x128xf32>
    %87 = arith.addf %85, %86 : vector<8x128xf32>
    %88 = arith.negf %87 : vector<8x128xf32>
    %89 = math.exp %88 : vector<8x128xf32>
    %cst_44 = arith.constant 1.000000e+00 : f32
    %90 = vector.broadcast %cst_44 : f32 to vector<8x128xf32>
    %91 = arith.addf %90, %89 : vector<8x128xf32>
    %92 = arith.divf %90, %91 : vector<8x128xf32>
    %93 = vector.extract_strided_slice %76 {offsets = [0, 256], sizes = [8, 128], strides = [1, 1]} : vector<8x384xf32> to vector<8x128xf32>
    %94 = vector.extract_strided_slice %75 {offsets = [0, 256], sizes = [8, 128], strides = [1, 1]} : vector<8x384xf32> to vector<8x128xf32>
    %95 = arith.mulf %84, %94 : vector<8x128xf32>
    %96 = arith.addf %93, %95 : vector<8x128xf32>
    %97 = math.tanh %96 : vector<8x128xf32>
    %cst_45 = arith.constant 1.000000e+00 : f32
    %98 = vector.broadcast %cst_45 : f32 to vector<8x128xf32>
    %99 = arith.subf %98, %92 : vector<8x128xf32>
    %100 = arith.mulf %99, %97 : vector<8x128xf32>
    %101 = arith.mulf %92, %72 : vector<8x128xf32>
    %102 = arith.addf %100, %101 : vector<8x128xf32>
    %103 = vector.broadcast %68 : i32 to vector<8x1xi32>
    %104 = arith.cmpi sgt, %0, %103 : vector<8x1xi32>
    %105 = vector.shape_cast %104 : vector<8x1xi1> to vector<8x1xi1>
    %106 = vector.broadcast %105 : vector<8x1xi1> to vector<8x128xi1>
    %107 = arith.select %106, %102, %72 : vector<8x128xi1>, vector<8x128xf32>
    %c0_46 = arith.constant 0 : index
    %c0_47 = arith.constant 0 : index
    %108 = vector.load %arg21[%c0_46, %c0_47] : memref<8x128xf32, #tpu.memory_space<vmem>>, vector<8x128xf32>
    tpu.vector_store %arg21[%c0_46, %c0_47], %107 {strides = array<i32>} : memref<8x128xf32, #tpu.memory_space<vmem>>, vector<8x128xf32>,
    %cst_48 = arith.constant 0.000000e+00 : f32
    %109 = vector.shape_cast %104 : vector<8x1xi1> to vector<8x1xi1>
    %110 = vector.broadcast %109 : vector<8x1xi1> to vector<8x128xi1>
    %111 = vector.broadcast %cst_48 : f32 to vector<8x128xf32>
    %112 = arith.select %110, %102, %111 : vector<8x128xi1>, vector<8x128xf32>
    %113 = arith.index_cast %68 : i32 to index
    %c0_49 = arith.constant 0 : index
    %c0_50 = arith.constant 0 : index
    %114 = vector.load %arg19[%113, %c0_49, %c0_50] : memref<3x8x128xf32, #tpu.memory_space<vmem>>, vector<1x8x128xf32>
    %115 = vector.shape_cast %114 : vector<1x8x128xf32> to vector<8x128xf32>
    %116 = vector.shape_cast %112 : vector<8x128xf32> to vector<1x8x128xf32>
    tpu.vector_store %arg19[%113, %c0_49, %c0_50], %116 {strides = array<i32>} : memref<3x8x128xf32, #tpu.memory_space<vmem>>, vector<1x8x128xf32>,
    %c1_i32 = arith.constant 1 : i32
    %117 = arith.index_cast %c1_i32 : i32 to index
    %c0_51 = arith.constant 0 : index
    %c0_52 = arith.constant 0 : index
    %118 = vector.load %arg17[%117, %c0_51, %c0_52] : memref<3x8x768xf32, #tpu.memory_space<vmem>>, vector<1x8x768xf32>
    %119 = vector.shape_cast %118 : vector<1x8x768xf32> to vector<8x768xf32>
    %c0_53 = arith.constant 0 : index
    %c0_54 = arith.constant 0 : index
    %120 = vector.load %arg20[%c0_53, %c0_54] : memref<8x128xf32, #tpu.memory_space<vmem>>, vector<8x128xf32>
    %cst_55 = arith.constant dense<0.000000e+00> : vector<8x384xf32>
    %121 = tpu.matmul %120, %12, %cst_55 {dimension_numbers = #tpu.dot_dimension_numbers<[1], [0], [0], [1], [0, 0, 1, 1], [], []>} : vector<8x128xf32>, vector<128x384xf32>, vector<8x384xf32> -> vector<8x384xf32>
    %122 = vector.broadcast %14 : vector<1x384xf32> to vector<8x384xf32>
    %123 = arith.addf %121, %122 : vector<8x384xf32>
    %124 = vector.extract_strided_slice %119 {offsets = [0, 0], sizes = [8, 384], strides = [1, 1]} : vector<8x768xf32> to vector<8x384xf32>
    %125 = vector.extract_strided_slice %124 {offsets = [0, 0], sizes = [8, 128], strides = [1, 1]} : vector<8x384xf32> to vector<8x128xf32>
    %126 = vector.extract_strided_slice %123 {offsets = [0, 0], sizes = [8, 128], strides = [1, 1]} : vector<8x384xf32> to vector<8x128xf32>
    %127 = arith.addf %125, %126 : vector<8x128xf32>
    %128 = arith.negf %127 : vector<8x128xf32>
    %129 = math.exp %128 : vector<8x128xf32>
    %cst_56 = arith.constant 1.000000e+00 : f32
    %130 = vector.broadcast %cst_56 : f32 to vector<8x128xf32>
    %131 = arith.addf %130, %129 : vector<8x128xf32>
    %132 = arith.divf %130, %131 : vector<8x128xf32>
    %133 = vector.extract_strided_slice %124 {offsets = [0, 128], sizes = [8, 128], strides = [1, 1]} : vector<8x384xf32> to vector<8x128xf32>
    %134 = vector.extract_strided_slice %123 {offsets = [0, 128], sizes = [8, 128], strides = [1, 1]} : vector<8x384xf32> to vector<8x128xf32>
    %135 = arith.addf %133, %134 : vector<8x128xf32>
    %136 = arith.negf %135 : vector<8x128xf32>
    %137 = math.exp %136 : vector<8x128xf32>
    %cst_57 = arith.constant 1.000000e+00 : f32
    %138 = vector.broadcast %cst_57 : f32 to vector<8x128xf32>
    %139 = arith.addf %138, %137 : vector<8x128xf32>
    %140 = arith.divf %138, %139 : vector<8x128xf32>
    %141 = vector.extract_strided_slice %124 {offsets = [0, 256], sizes = [8, 128], strides = [1, 1]} : vector<8x384xf32> to vector<8x128xf32>
    %142 = vector.extract_strided_slice %123 {offsets = [0, 256], sizes = [8, 128], strides = [1, 1]} : vector<8x384xf32> to vector<8x128xf32>
    %143 = arith.mulf %132, %142 : vector<8x128xf32>
    %144 = arith.addf %141, %143 : vector<8x128xf32>
    %145 = math.tanh %144 : vector<8x128xf32>
    %cst_58 = arith.constant 1.000000e+00 : f32
    %146 = vector.broadcast %cst_58 : f32 to vector<8x128xf32>
    %147 = arith.subf %146, %140 : vector<8x128xf32>
    %148 = arith.mulf %147, %145 : vector<8x128xf32>
    %149 = arith.mulf %140, %120 : vector<8x128xf32>
    %150 = arith.addf %148, %149 : vector<8x128xf32>
    %151 = vector.broadcast %c1_i32 : i32 to vector<8x1xi32>
    %152 = arith.cmpi sgt, %0, %151 : vector<8x1xi32>
    %153 = vector.shape_cast %152 : vector<8x1xi1> to vector<8x1xi1>
    %154 = vector.broadcast %153 : vector<8x1xi1> to vector<8x128xi1>
    %155 = arith.select %154, %150, %120 : vector<8x128xi1>, vector<8x128xf32>
    %c0_59 = arith.constant 0 : index
    %c0_60 = arith.constant 0 : index
    %156 = vector.load %arg20[%c0_59, %c0_60] : memref<8x128xf32, #tpu.memory_space<vmem>>, vector<8x128xf32>
    tpu.vector_store %arg20[%c0_59, %c0_60], %155 {strides = array<i32>} : memref<8x128xf32, #tpu.memory_space<vmem>>, vector<8x128xf32>,
    %cst_61 = arith.constant 0.000000e+00 : f32
    %157 = vector.shape_cast %152 : vector<8x1xi1> to vector<8x1xi1>
    %158 = vector.broadcast %157 : vector<8x1xi1> to vector<8x128xi1>
    %159 = vector.broadcast %cst_61 : f32 to vector<8x128xf32>
    %160 = arith.select %158, %150, %159 : vector<8x128xi1>, vector<8x128xf32>
    %161 = arith.index_cast %c1_i32 : i32 to index
    %c0_62 = arith.constant 0 : index
    %c0_63 = arith.constant 0 : index
    %162 = vector.load %arg18[%161, %c0_62, %c0_63] : memref<3x8x128xf32, #tpu.memory_space<vmem>>, vector<1x8x128xf32>
    %163 = vector.shape_cast %162 : vector<1x8x128xf32> to vector<8x128xf32>
    %164 = vector.shape_cast %160 : vector<8x128xf32> to vector<1x8x128xf32>
    tpu.vector_store %arg18[%161, %c0_62, %c0_63], %164 {strides = array<i32>} : memref<3x8x128xf32, #tpu.memory_space<vmem>>, vector<1x8x128xf32>,
    %c2_i32_64 = arith.constant 2 : i32
    %165 = arith.subi %c2_i32_64, %c1_i32 : i32
    %166 = arith.index_cast %165 : i32 to index
    %c0_65 = arith.constant 0 : index
    %c0_66 = arith.constant 0 : index
    %167 = vector.load %arg17[%166, %c0_65, %c0_66] : memref<3x8x768xf32, #tpu.memory_space<vmem>>, vector<1x8x768xf32>
    %168 = vector.shape_cast %167 : vector<1x8x768xf32> to vector<8x768xf32>
    %c0_67 = arith.constant 0 : index
    %c0_68 = arith.constant 0 : index
    %169 = vector.load %arg21[%c0_67, %c0_68] : memref<8x128xf32, #tpu.memory_space<vmem>>, vector<8x128xf32>
    %cst_69 = arith.constant dense<0.000000e+00> : vector<8x384xf32>
    %170 = tpu.matmul %169, %13, %cst_69 {dimension_numbers = #tpu.dot_dimension_numbers<[1], [0], [0], [1], [0, 0, 1, 1], [], []>} : vector<8x128xf32>, vector<128x384xf32>, vector<8x384xf32> -> vector<8x384xf32>
    %171 = vector.broadcast %15 : vector<1x384xf32> to vector<8x384xf32>
    %172 = arith.addf %170, %171 : vector<8x384xf32>
    %173 = vector.extract_strided_slice %168 {offsets = [0, 384], sizes = [8, 384], strides = [1, 1]} : vector<8x768xf32> to vector<8x384xf32>
    %174 = vector.extract_strided_slice %173 {offsets = [0, 0], sizes = [8, 128], strides = [1, 1]} : vector<8x384xf32> to vector<8x128xf32>
    %175 = vector.extract_strided_slice %172 {offsets = [0, 0], sizes = [8, 128], strides = [1, 1]} : vector<8x384xf32> to vector<8x128xf32>
    %176 = arith.addf %174, %175 : vector<8x128xf32>
    %177 = arith.negf %176 : vector<8x128xf32>
    %178 = math.exp %177 : vector<8x128xf32>
    %cst_70 = arith.constant 1.000000e+00 : f32
    %179 = vector.broadcast %cst_70 : f32 to vector<8x128xf32>
    %180 = arith.addf %179, %178 : vector<8x128xf32>
    %181 = arith.divf %179, %180 : vector<8x128xf32>
    %182 = vector.extract_strided_slice %173 {offsets = [0, 128], sizes = [8, 128], strides = [1, 1]} : vector<8x384xf32> to vector<8x128xf32>
    %183 = vector.extract_strided_slice %172 {offsets = [0, 128], sizes = [8, 128], strides = [1, 1]} : vector<8x384xf32> to vector<8x128xf32>
    %184 = arith.addf %182, %183 : vector<8x128xf32>
    %185 = arith.negf %184 : vector<8x128xf32>
    %186 = math.exp %185 : vector<8x128xf32>
    %cst_71 = arith.constant 1.000000e+00 : f32
    %187 = vector.broadcast %cst_71 : f32 to vector<8x128xf32>
    %188 = arith.addf %187, %186 : vector<8x128xf32>
    %189 = arith.divf %187, %188 : vector<8x128xf32>
    %190 = vector.extract_strided_slice %173 {offsets = [0, 256], sizes = [8, 128], strides = [1, 1]} : vector<8x384xf32> to vector<8x128xf32>
    %191 = vector.extract_strided_slice %172 {offsets = [0, 256], sizes = [8, 128], strides = [1, 1]} : vector<8x384xf32> to vector<8x128xf32>
    %192 = arith.mulf %181, %191 : vector<8x128xf32>
    %193 = arith.addf %190, %192 : vector<8x128xf32>
    %194 = math.tanh %193 : vector<8x128xf32>
    %cst_72 = arith.constant 1.000000e+00 : f32
    %195 = vector.broadcast %cst_72 : f32 to vector<8x128xf32>
    %196 = arith.subf %195, %189 : vector<8x128xf32>
    %197 = arith.mulf %196, %194 : vector<8x128xf32>
    %198 = arith.mulf %189, %169 : vector<8x128xf32>
    %199 = arith.addf %197, %198 : vector<8x128xf32>
    %200 = vector.broadcast %165 : i32 to vector<8x1xi32>
    %201 = arith.cmpi sgt, %0, %200 : vector<8x1xi32>
    %202 = vector.shape_cast %201 : vector<8x1xi1> to vector<8x1xi1>
    %203 = vector.broadcast %202 : vector<8x1xi1> to vector<8x128xi1>
    %204 = arith.select %203, %199, %169 : vector<8x128xi1>, vector<8x128xf32>
    %c0_73 = arith.constant 0 : index
    %c0_74 = arith.constant 0 : index
    %205 = vector.load %arg21[%c0_73, %c0_74] : memref<8x128xf32, #tpu.memory_space<vmem>>, vector<8x128xf32>
    tpu.vector_store %arg21[%c0_73, %c0_74], %204 {strides = array<i32>} : memref<8x128xf32, #tpu.memory_space<vmem>>, vector<8x128xf32>,
    %cst_75 = arith.constant 0.000000e+00 : f32
    %206 = vector.shape_cast %201 : vector<8x1xi1> to vector<8x1xi1>
    %207 = vector.broadcast %206 : vector<8x1xi1> to vector<8x128xi1>
    %208 = vector.broadcast %cst_75 : f32 to vector<8x128xf32>
    %209 = arith.select %207, %199, %208 : vector<8x128xi1>, vector<8x128xf32>
    %210 = arith.index_cast %165 : i32 to index
    %c0_76 = arith.constant 0 : index
    %c0_77 = arith.constant 0 : index
    %211 = vector.load %arg19[%210, %c0_76, %c0_77] : memref<3x8x128xf32, #tpu.memory_space<vmem>>, vector<1x8x128xf32>
    %212 = vector.shape_cast %211 : vector<1x8x128xf32> to vector<8x128xf32>
    %213 = vector.shape_cast %209 : vector<8x128xf32> to vector<1x8x128xf32>
    tpu.vector_store %arg19[%210, %c0_76, %c0_77], %213 {strides = array<i32>} : memref<3x8x128xf32, #tpu.memory_space<vmem>>, vector<1x8x128xf32>,
    %c2_i32_78 = arith.constant 2 : i32
    %214 = arith.index_cast %c2_i32_78 : i32 to index
    %c0_79 = arith.constant 0 : index
    %c0_80 = arith.constant 0 : index
    %215 = vector.load %arg17[%214, %c0_79, %c0_80] : memref<3x8x768xf32, #tpu.memory_space<vmem>>, vector<1x8x768xf32>
    %216 = vector.shape_cast %215 : vector<1x8x768xf32> to vector<8x768xf32>
    %c0_81 = arith.constant 0 : index
    %c0_82 = arith.constant 0 : index
    %217 = vector.load %arg20[%c0_81, %c0_82] : memref<8x128xf32, #tpu.memory_space<vmem>>, vector<8x128xf32>
    %cst_83 = arith.constant dense<0.000000e+00> : vector<8x384xf32>
    %218 = tpu.matmul %217, %12, %cst_83 {dimension_numbers = #tpu.dot_dimension_numbers<[1], [0], [0], [1], [0, 0, 1, 1], [], []>} : vector<8x128xf32>, vector<128x384xf32>, vector<8x384xf32> -> vector<8x384xf32>
    %219 = vector.broadcast %14 : vector<1x384xf32> to vector<8x384xf32>
    %220 = arith.addf %218, %219 : vector<8x384xf32>
    %221 = vector.extract_strided_slice %216 {offsets = [0, 0], sizes = [8, 384], strides = [1, 1]} : vector<8x768xf32> to vector<8x384xf32>
    %222 = vector.extract_strided_slice %221 {offsets = [0, 0], sizes = [8, 128], strides = [1, 1]} : vector<8x384xf32> to vector<8x128xf32>
    %223 = vector.extract_strided_slice %220 {offsets = [0, 0], sizes = [8, 128], strides = [1, 1]} : vector<8x384xf32> to vector<8x128xf32>
    %224 = arith.addf %222, %223 : vector<8x128xf32>
    %225 = arith.negf %224 : vector<8x128xf32>
    %226 = math.exp %225 : vector<8x128xf32>
    %cst_84 = arith.constant 1.000000e+00 : f32
    %227 = vector.broadcast %cst_84 : f32 to vector<8x128xf32>
    %228 = arith.addf %227, %226 : vector<8x128xf32>
    %229 = arith.divf %227, %228 : vector<8x128xf32>
    %230 = vector.extract_strided_slice %221 {offsets = [0, 128], sizes = [8, 128], strides = [1, 1]} : vector<8x384xf32> to vector<8x128xf32>
    %231 = vector.extract_strided_slice %220 {offsets = [0, 128], sizes = [8, 128], strides = [1, 1]} : vector<8x384xf32> to vector<8x128xf32>
    %232 = arith.addf %230, %231 : vector<8x128xf32>
    %233 = arith.negf %232 : vector<8x128xf32>
    %234 = math.exp %233 : vector<8x128xf32>
    %cst_85 = arith.constant 1.000000e+00 : f32
    %235 = vector.broadcast %cst_85 : f32 to vector<8x128xf32>
    %236 = arith.addf %235, %234 : vector<8x128xf32>
    %237 = arith.divf %235, %236 : vector<8x128xf32>
    %238 = vector.extract_strided_slice %221 {offsets = [0, 256], sizes = [8, 128], strides = [1, 1]} : vector<8x384xf32> to vector<8x128xf32>
    %239 = vector.extract_strided_slice %220 {offsets = [0, 256], sizes = [8, 128], strides = [1, 1]} : vector<8x384xf32> to vector<8x128xf32>
    %240 = arith.mulf %229, %239 : vector<8x128xf32>
    %241 = arith.addf %238, %240 : vector<8x128xf32>
    %242 = math.tanh %241 : vector<8x128xf32>
    %cst_86 = arith.constant 1.000000e+00 : f32
    %243 = vector.broadcast %cst_86 : f32 to vector<8x128xf32>
    %244 = arith.subf %243, %237 : vector<8x128xf32>
    %245 = arith.mulf %244, %242 : vector<8x128xf32>
    %246 = arith.mulf %237, %217 : vector<8x128xf32>
    %247 = arith.addf %245, %246 : vector<8x128xf32>
    %248 = vector.broadcast %c2_i32_78 : i32 to vector<8x1xi32>
    %249 = arith.cmpi sgt, %0, %248 : vector<8x1xi32>
    %250 = vector.shape_cast %249 : vector<8x1xi1> to vector<8x1xi1>
    %251 = vector.broadcast %250 : vector<8x1xi1> to vector<8x128xi1>
    %252 = arith.select %251, %247, %217 : vector<8x128xi1>, vector<8x128xf32>
    %c0_87 = arith.constant 0 : index
    %c0_88 = arith.constant 0 : index
    %253 = vector.load %arg20[%c0_87, %c0_88] : memref<8x128xf32, #tpu.memory_space<vmem>>, vector<8x128xf32>
    tpu.vector_store %arg20[%c0_87, %c0_88], %252 {strides = array<i32>} : memref<8x128xf32, #tpu.memory_space<vmem>>, vector<8x128xf32>,
    %cst_89 = arith.constant 0.000000e+00 : f32
    %254 = vector.shape_cast %249 : vector<8x1xi1> to vector<8x1xi1>
    %255 = vector.broadcast %254 : vector<8x1xi1> to vector<8x128xi1>
    %256 = vector.broadcast %cst_89 : f32 to vector<8x128xf32>
    %257 = arith.select %255, %247, %256 : vector<8x128xi1>, vector<8x128xf32>
    %258 = arith.index_cast %c2_i32_78 : i32 to index
    %c0_90 = arith.constant 0 : index
    %c0_91 = arith.constant 0 : index
    %259 = vector.load %arg18[%258, %c0_90, %c0_91] : memref<3x8x128xf32, #tpu.memory_space<vmem>>, vector<1x8x128xf32>
    %260 = vector.shape_cast %259 : vector<1x8x128xf32> to vector<8x128xf32>
    %261 = vector.shape_cast %257 : vector<8x128xf32> to vector<1x8x128xf32>
    tpu.vector_store %arg18[%258, %c0_90, %c0_91], %261 {strides = array<i32>} : memref<3x8x128xf32, #tpu.memory_space<vmem>>, vector<1x8x128xf32>,
    %c2_i32_92 = arith.constant 2 : i32
    %262 = arith.subi %c2_i32_92, %c2_i32_78 : i32
    %263 = arith.index_cast %262 : i32 to index
    %c0_93 = arith.constant 0 : index
    %c0_94 = arith.constant 0 : index
    %264 = vector.load %arg17[%263, %c0_93, %c0_94] : memref<3x8x768xf32, #tpu.memory_space<vmem>>, vector<1x8x768xf32>
    %265 = vector.shape_cast %264 : vector<1x8x768xf32> to vector<8x768xf32>
    %c0_95 = arith.constant 0 : index
    %c0_96 = arith.constant 0 : index
    %266 = vector.load %arg21[%c0_95, %c0_96] : memref<8x128xf32, #tpu.memory_space<vmem>>, vector<8x128xf32>
    %cst_97 = arith.constant dense<0.000000e+00> : vector<8x384xf32>
    %267 = tpu.matmul %266, %13, %cst_97 {dimension_numbers = #tpu.dot_dimension_numbers<[1], [0], [0], [1], [0, 0, 1, 1], [], []>} : vector<8x128xf32>, vector<128x384xf32>, vector<8x384xf32> -> vector<8x384xf32>
    %268 = vector.broadcast %15 : vector<1x384xf32> to vector<8x384xf32>
    %269 = arith.addf %267, %268 : vector<8x384xf32>
    %270 = vector.extract_strided_slice %265 {offsets = [0, 384], sizes = [8, 384], strides = [1, 1]} : vector<8x768xf32> to vector<8x384xf32>
    %271 = vector.extract_strided_slice %270 {offsets = [0, 0], sizes = [8, 128], strides = [1, 1]} : vector<8x384xf32> to vector<8x128xf32>
    %272 = vector.extract_strided_slice %269 {offsets = [0, 0], sizes = [8, 128], strides = [1, 1]} : vector<8x384xf32> to vector<8x128xf32>
    %273 = arith.addf %271, %272 : vector<8x128xf32>
    %274 = arith.negf %273 : vector<8x128xf32>
    %275 = math.exp %274 : vector<8x128xf32>
    %cst_98 = arith.constant 1.000000e+00 : f32
    %276 = vector.broadcast %cst_98 : f32 to vector<8x128xf32>
    %277 = arith.addf %276, %275 : vector<8x128xf32>
    %278 = arith.divf %276, %277 : vector<8x128xf32>
    %279 = vector.extract_strided_slice %270 {offsets = [0, 128], sizes = [8, 128], strides = [1, 1]} : vector<8x384xf32> to vector<8x128xf32>
    %280 = vector.extract_strided_slice %269 {offsets = [0, 128], sizes = [8, 128], strides = [1, 1]} : vector<8x384xf32> to vector<8x128xf32>
    %281 = arith.addf %279, %280 : vector<8x128xf32>
    %282 = arith.negf %281 : vector<8x128xf32>
    %283 = math.exp %282 : vector<8x128xf32>
    %cst_99 = arith.constant 1.000000e+00 : f32
    %284 = vector.broadcast %cst_99 : f32 to vector<8x128xf32>
    %285 = arith.addf %284, %283 : vector<8x128xf32>
    %286 = arith.divf %284, %285 : vector<8x128xf32>
    %287 = vector.extract_strided_slice %270 {offsets = [0, 256], sizes = [8, 128], strides = [1, 1]} : vector<8x384xf32> to vector<8x128xf32>
    %288 = vector.extract_strided_slice %269 {offsets = [0, 256], sizes = [8, 128], strides = [1, 1]} : vector<8x384xf32> to vector<8x128xf32>
    %289 = arith.mulf %278, %288 : vector<8x128xf32>
    %290 = arith.addf %287, %289 : vector<8x128xf32>
    %291 = math.tanh %290 : vector<8x128xf32>
    %cst_100 = arith.constant 1.000000e+00 : f32
    %292 = vector.broadcast %cst_100 : f32 to vector<8x128xf32>
    %293 = arith.subf %292, %286 : vector<8x128xf32>
    %294 = arith.mulf %293, %291 : vector<8x128xf32>
    %295 = arith.mulf %286, %266 : vector<8x128xf32>
    %296 = arith.addf %294, %295 : vector<8x128xf32>
    %297 = vector.broadcast %262 : i32 to vector<8x1xi32>
    %298 = arith.cmpi sgt, %0, %297 : vector<8x1xi32>
    %299 = vector.shape_cast %298 : vector<8x1xi1> to vector<8x1xi1>
    %300 = vector.broadcast %299 : vector<8x1xi1> to vector<8x128xi1>
    %301 = arith.select %300, %296, %266 : vector<8x128xi1>, vector<8x128xf32>
    %c0_101 = arith.constant 0 : index
    %c0_102 = arith.constant 0 : index
    %302 = vector.load %arg21[%c0_101, %c0_102] : memref<8x128xf32, #tpu.memory_space<vmem>>, vector<8x128xf32>
    tpu.vector_store %arg21[%c0_101, %c0_102], %301 {strides = array<i32>} : memref<8x128xf32, #tpu.memory_space<vmem>>, vector<8x128xf32>,
    %cst_103 = arith.constant 0.000000e+00 : f32
    %303 = vector.shape_cast %298 : vector<8x1xi1> to vector<8x1xi1>
    %304 = vector.broadcast %303 : vector<8x1xi1> to vector<8x128xi1>
    %305 = vector.broadcast %cst_103 : f32 to vector<8x128xf32>
    %306 = arith.select %304, %296, %305 : vector<8x128xi1>, vector<8x128xf32>
    %307 = arith.index_cast %262 : i32 to index
    %c0_104 = arith.constant 0 : index
    %c0_105 = arith.constant 0 : index
    %308 = vector.load %arg19[%307, %c0_104, %c0_105] : memref<3x8x128xf32, #tpu.memory_space<vmem>>, vector<1x8x128xf32>
    %309 = vector.shape_cast %308 : vector<1x8x128xf32> to vector<8x128xf32>
    %310 = vector.shape_cast %306 : vector<8x128xf32> to vector<1x8x128xf32>
    tpu.vector_store %arg19[%307, %c0_104, %c0_105], %310 {strides = array<i32>} : memref<3x8x128xf32, #tpu.memory_space<vmem>>, vector<1x8x128xf32>,
    %c3_i32 = arith.constant 3 : i32
    %c0_106 = arith.constant 0 : index
    %c0_107 = arith.constant 0 : index
    %c0_108 = arith.constant 0 : index
    %311 = vector.load %arg18[%c0_106, %c0_107, %c0_108] : memref<3x8x128xf32, #tpu.memory_space<vmem>>, vector<3x8x128xf32>
    %c0_109 = arith.constant 0 : index
    %c0_110 = arith.constant 0 : index
    %c0_111 = arith.constant 0 : index
    %312 = vector.load %arg19[%c0_109, %c0_110, %c0_111] : memref<3x8x128xf32, #tpu.memory_space<vmem>>, vector<3x8x128xf32>
    %c0_112 = arith.constant 0 : index
    %c0_113 = arith.constant 0 : index
    %313 = vector.load %arg9[%c0_112, %c0_113] : memref<256x128xf32, #tpu.memory_space<vmem>>, vector<256x128xf32>
    %314 = vector.shape_cast %311 : vector<3x8x128xf32> to vector<24x128xf32>
    %315 = vector.extract_strided_slice %313 {offsets = [0, 0], sizes = [128, 128], strides = [1, 1]} : vector<256x128xf32> to vector<128x128xf32>
    %316 = arith.truncf %314 : vector<24x128xf32> to vector<24x128xbf16>
    %317 = arith.truncf %315 : vector<128x128xf32> to vector<128x128xbf16>
    %cst_114 = arith.constant dense<0.000000e+00> : vector<24x128xf32>
    %318 = tpu.matmul %316, %317, %cst_114 {dimension_numbers = #tpu.dot_dimension_numbers<[1], [0], [0], [1], [0, 0, 1, 1], [], []>} : vector<24x128xbf16>, vector<128x128xbf16>, vector<24x128xf32> -> vector<24x128xf32>
    %319 = vector.shape_cast %312 : vector<3x8x128xf32> to vector<24x128xf32>
    %320 = vector.extract_strided_slice %313 {offsets = [128, 0], sizes = [128, 128], strides = [1, 1]} : vector<256x128xf32> to vector<128x128xf32>
    %321 = arith.truncf %319 : vector<24x128xf32> to vector<24x128xbf16>
    %322 = arith.truncf %320 : vector<128x128xf32> to vector<128x128xbf16>
    %cst_115 = arith.constant dense<0.000000e+00> : vector<24x128xf32>
    %323 = tpu.matmul %321, %322, %cst_115 {dimension_numbers = #tpu.dot_dimension_numbers<[1], [0], [0], [1], [0, 0, 1, 1], [], []>} : vector<24x128xbf16>, vector<128x128xbf16>, vector<24x128xf32> -> vector<24x128xf32>
    %324 = arith.addf %318, %323 : vector<24x128xf32>
    %c0_116 = arith.constant 0 : index
    %c0_117 = arith.constant 0 : index
    %325 = vector.load %arg10[%c0_116, %c0_117] : memref<1x128xf32, #tpu.memory_space<vmem>>, vector<1x128xf32>
    %326 = vector.broadcast %325 : vector<1x128xf32> to vector<24x128xf32>
    %327 = arith.addf %324, %326 : vector<24x128xf32>
    %328 = math.tanh %327 : vector<24x128xf32>
    %c0_118 = arith.constant 0 : index
    %c0_119 = arith.constant 0 : index
    %329 = vector.load %arg11[%c0_118, %c0_119] : memref<1x128xf32, #tpu.memory_space<vmem>>, vector<1x128xf32>
    %330 = vector.broadcast %329 : vector<1x128xf32> to vector<24x128xf32>
    %331 = arith.mulf %328, %330 : vector<24x128xf32>
    %cst_120 = arith.constant dense<0.000000e+00> : vector<24xf32>
    %332 = vector.multi_reduction <add>, %331, %cst_120 [1] : vector<24x128xf32> to vector<24xf32>
    %333 = vector.shape_cast %332 : vector<24xf32> to vector<24x1xf32>
    %334 = vector.shape_cast %333 : vector<24x1xf32> to vector<3x8x1xf32>
    %335 = tpu.iota {dimensions = array<i32: 0>} : vector<3x8x1xi32>
    %336 = vector.shape_cast %0 : vector<8x1xi32> to vector<1x8x1xi32>
    %337 = vector.broadcast %336 : vector<1x8x1xi32> to vector<3x8x1xi32>
    %338 = arith.cmpi slt, %335, %337 : vector<3x8x1xi32>
    %cst_121 = arith.constant -1.000000e+30 : f32
    %339 = vector.broadcast %cst_121 : f32 to vector<3x8x1xf32>
    %340 = arith.select %338, %334, %339 : vector<3x8x1xi1>, vector<3x8x1xf32>
    %cst_122 = arith.constant dense<0xFF800000> : vector<8x1xf32>
    %341 = vector.multi_reduction <maximumf>, %340, %cst_122 [0] : vector<3x8x1xf32> to vector<8x1xf32>
    %342 = vector.shape_cast %341 : vector<8x1xf32> to vector<1x8x1xf32>
    %343 = vector.broadcast %342 : vector<1x8x1xf32> to vector<3x8x1xf32>
    %344 = arith.subf %340, %343 : vector<3x8x1xf32>
    %345 = math.exp %344 : vector<3x8x1xf32>
    %cst_123 = arith.constant 0.000000e+00 : f32
    %346 = vector.broadcast %cst_123 : f32 to vector<3x8x1xf32>
    %347 = arith.select %338, %345, %346 : vector<3x8x1xi1>, vector<3x8x1xf32>
    %cst_124 = arith.constant dense<0.000000e+00> : vector<8x1xf32>
    %348 = vector.multi_reduction <add>, %347, %cst_124 [0] : vector<3x8x1xf32> to vector<8x1xf32>
    %349 = vector.shape_cast %348 : vector<8x1xf32> to vector<1x8x1xf32>
    %cst_125 = arith.constant 9.99999968E-21 : f32
    %350 = vector.broadcast %cst_125 : f32 to vector<1x8x1xf32>
    %351 = arith.maximumf %349, %350 : vector<1x8x1xf32>
    %352 = tpu.reciprocal %351 {approx = true} : vector<1x8x1xf32> -> vector<1x8x1xf32>
    %353 = vector.broadcast %352 : vector<1x8x1xf32> to vector<3x8x1xf32>
    %354 = arith.mulf %347, %353 : vector<3x8x1xf32>
    %c0_126 = arith.constant 0 : index
    %c0_127 = arith.constant 0 : index
    %c0_128 = arith.constant 0 : index
    %355 = vector.load %arg15[%c0_126, %c0_127, %c0_128] : memref<3x8x1xf32, #tpu.memory_space<vmem>>, vector<3x8x1xf32>
    tpu.vector_store %arg15[%c0_126, %c0_127, %c0_128], %354 {strides = array<i32>} : memref<3x8x1xf32, #tpu.memory_space<vmem>>, vector<3x8x1xf32>,
    %356 = vector.broadcast %354 : vector<3x8x1xf32> to vector<3x8x128xf32>
    %357 = arith.mulf %311, %356 : vector<3x8x128xf32>
    %cst_129 = arith.constant dense<0.000000e+00> : vector<8x128xf32>
    %358 = vector.multi_reduction <add>, %357, %cst_129 [0] : vector<3x8x128xf32> to vector<8x128xf32>
    %359 = vector.broadcast %354 : vector<3x8x1xf32> to vector<3x8x128xf32>
    %360 = arith.mulf %312, %359 : vector<3x8x128xf32>
    %cst_130 = arith.constant dense<0.000000e+00> : vector<8x128xf32>
    %361 = vector.multi_reduction <add>, %360, %cst_130 [0] : vector<3x8x128xf32> to vector<8x128xf32>
    %c0_131 = arith.constant 0 : index
    %c0_132 = arith.constant 0 : index
    %362 = vector.load %arg14[%c0_131, %c0_132] : memref<8x256xf32, #tpu.memory_space<vmem>>, vector<8x128xf32>
    tpu.vector_store %arg14[%c0_131, %c0_132], %358 {strides = array<i32>} : memref<8x256xf32, #tpu.memory_space<vmem>>, vector<8x128xf32>,
    %c0_133 = arith.constant 0 : index
    %c128 = arith.constant 128 : index
    %363 = vector.load %arg14[%c0_133, %c128] : memref<8x256xf32, #tpu.memory_space<vmem>>, vector<8x128xf32>
    tpu.vector_store %arg14[%c0_133, %c128], %361 {strides = array<i32>} : memref<8x256xf32, #tpu.memory_space<vmem>>, vector<8x128xf32>,
    %c0_134 = arith.constant 0 : index
    %c0_135 = arith.constant 0 : index
    %364 = vector.load %arg12[%c0_134, %c0_135] : memref<256x128xf32, #tpu.memory_space<vmem>>, vector<256x128xf32>
    %365 = vector.extract_strided_slice %364 {offsets = [0, 0], sizes = [128, 128], strides = [1, 1]} : vector<256x128xf32> to vector<128x128xf32>
    %cst_136 = arith.constant dense<0.000000e+00> : vector<8x128xf32>
    %366 = tpu.matmul %358, %365, %cst_136 {dimension_numbers = #tpu.dot_dimension_numbers<[1], [0], [0], [1], [0, 0, 1, 1], [], []>} : vector<8x128xf32>, vector<128x128xf32>, vector<8x128xf32> -> vector<8x128xf32>
    %367 = vector.extract_strided_slice %364 {offsets = [128, 0], sizes = [128, 128], strides = [1, 1]} : vector<256x128xf32> to vector<128x128xf32>
    %cst_137 = arith.constant dense<0.000000e+00> : vector<8x128xf32>
    %368 = tpu.matmul %361, %367, %cst_137 {dimension_numbers = #tpu.dot_dimension_numbers<[1], [0], [0], [1], [0, 0, 1, 1], [], []>} : vector<8x128xf32>, vector<128x128xf32>, vector<8x128xf32> -> vector<8x128xf32>
    %369 = arith.addf %366, %368 : vector<8x128xf32>
    %c0_138 = arith.constant 0 : index
    %c0_139 = arith.constant 0 : index
    %370 = vector.load %arg13[%c0_138, %c0_139] : memref<1x128xf32, #tpu.memory_space<vmem>>, vector<1x128xf32>
    %371 = vector.broadcast %370 : vector<1x128xf32> to vector<8x128xf32>
    %372 = arith.addf %369, %371 : vector<8x128xf32>
    %c0_140 = arith.constant 0 : index
    %c0_141 = arith.constant 0 : index
    %373 = vector.load %arg16[%c0_140, %c0_141] : memref<8x128xf32, #tpu.memory_space<vmem>>, vector<8x128xf32>
    tpu.vector_store %arg16[%c0_140, %c0_141], %372 {strides = array<i32>} : memref<8x128xf32, #tpu.memory_space<vmem>>, vector<8x128xf32>,
    return
  }
  func.func @transform_0(%arg0: i32) -> (i32, i32, i32) {
    %c0_i32 = arith.constant 0 : i32
    %c0_i32_0 = arith.constant 0 : i32
    %c0_i32_1 = arith.constant 0 : i32
    return %c0_i32, %arg0, %c0_i32_0 : i32, i32, i32
  }
  func.func @transform_1(%arg0: i32) -> (i32, i32) {
    %c0_i32 = arith.constant 0 : i32
    %c0_i32_0 = arith.constant 0 : i32
    return %arg0, %c0_i32 : i32, i32
  }
  func.func @transform_2(%arg0: i32) -> (i32, i32) {
    %c0_i32 = arith.constant 0 : i32
    %c0_i32_0 = arith.constant 0 : i32
    %c0_i32_1 = arith.constant 0 : i32
    return %c0_i32, %c0_i32_0 : i32, i32
  }
  func.func @transform_3(%arg0: i32) -> (i32, i32) {
    %c0_i32 = arith.constant 0 : i32
    %c0_i32_0 = arith.constant 0 : i32
    %c0_i32_1 = arith.constant 0 : i32
    return %c0_i32, %c0_i32_0 : i32, i32
  }
  func.func @transform_4(%arg0: i32) -> (i32, i32) {
    %c0_i32 = arith.constant 0 : i32
    %c0_i32_0 = arith.constant 0 : i32
    %c0_i32_1 = arith.constant 0 : i32
    return %c0_i32, %c0_i32_0 : i32, i32
  }
  func.func @transform_5(%arg0: i32) -> (i32, i32) {
    %c0_i32 = arith.constant 0 : i32
    %c0_i32_0 = arith.constant 0 : i32
    %c0_i32_1 = arith.constant 0 : i32
    return %c0_i32, %c0_i32_0 : i32, i32
  }
  func.func @transform_6(%arg0: i32) -> (i32, i32) {
    %c0_i32 = arith.constant 0 : i32
    %c0_i32_0 = arith.constant 0 : i32
    %c0_i32_1 = arith.constant 0 : i32
    return %c0_i32, %c0_i32_0 : i32, i32
  }
  func.func @transform_7(%arg0: i32) -> (i32, i32) {
    %c0_i32 = arith.constant 0 : i32
    %c0_i32_0 = arith.constant 0 : i32
    %c0_i32_1 = arith.constant 0 : i32
    return %c0_i32, %c0_i32_0 : i32, i32
  }
  func.func @transform_8(%arg0: i32) -> (i32, i32) {
    %c0_i32 = arith.constant 0 : i32
    %c0_i32_0 = arith.constant 0 : i32
    %c0_i32_1 = arith.constant 0 : i32
    return %c0_i32, %c0_i32_0 : i32, i32
  }
  func.func @transform_9(%arg0: i32) -> (i32, i32) {
    %c0_i32 = arith.constant 0 : i32
    %c0_i32_0 = arith.constant 0 : i32
    %c0_i32_1 = arith.constant 0 : i32
    return %c0_i32, %c0_i32_0 : i32, i32
  }
  func.func @transform_10(%arg0: i32) -> (i32, i32) {
    %c0_i32 = arith.constant 0 : i32
    %c0_i32_0 = arith.constant 0 : i32
    %c0_i32_1 = arith.constant 0 : i32
    return %c0_i32, %c0_i32_0 : i32, i32
  }
  func.func @transform_11(%arg0: i32) -> (i32, i32) {
    %c0_i32 = arith.constant 0 : i32
    %c0_i32_0 = arith.constant 0 : i32
    %c0_i32_1 = arith.constant 0 : i32
    return %c0_i32, %c0_i32_0 : i32, i32
  }
  func.func @transform_12(%arg0: i32) -> (i32, i32) {
    %c0_i32 = arith.constant 0 : i32
    %c0_i32_0 = arith.constant 0 : i32
    %c0_i32_1 = arith.constant 0 : i32
    return %c0_i32, %c0_i32_0 : i32, i32
  }
  func.func @transform_13(%arg0: i32) -> (i32, i32) {
    %c0_i32 = arith.constant 0 : i32
    %c0_i32_0 = arith.constant 0 : i32
    return %arg0, %c0_i32 : i32, i32
  }
  func.func @transform_14(%arg0: i32) -> (i32, i32, i32) {
    %c0_i32 = arith.constant 0 : i32
    %c0_i32_0 = arith.constant 0 : i32
    %c0_i32_1 = arith.constant 0 : i32
    return %c0_i32, %arg0, %c0_i32_0 : i32, i32, i32
  }
  func.func @transform_15(%arg0: i32) -> (i32, i32) {
    %c0_i32 = arith.constant 0 : i32
    %c0_i32_0 = arith.constant 0 : i32
    return %arg0, %c0_i32 : i32, i32
  }
}

</mosaic_0001>

<llo_original>
// kernel: han_forward.3
$region0: #{han_forward.3}
  #allocation0 [shape = 'u32[]', space=smem, size = 0x4, offset = 0x4, fixed_abs, tag = 'smem constant byte address 0x4 - core index']
  #allocation1 [shape = 'u32[144,128]{1,0:T(1,128)}', space=vmem, size = 0x12000, scoped, tag = 'internal scratch']
  #allocation2 [shape = 'f32[3,8,768]{2,1,0:T(8,128)}', space=vmem, size = 0x12000, scoped, tag = 'scratch operand']
  #allocation3 [shape = 'f32[3,8,128]{2,1,0:T(8,128)}', space=vmem, size = 0x3000, scoped, tag = 'scratch operand']
  #allocation4 [shape = 'f32[3,8,128]{2,1,0:T(8,128)}', space=vmem, size = 0x3000, scoped, tag = 'scratch operand']
  #allocation5 [shape = 'f32[8,128]{1,0:T(8,128)}', space=vmem, size = 0x1000, scoped, tag = 'scratch operand']
  #allocation6 [shape = 'f32[8,128]{1,0:T(8,128)}', space=vmem, size = 0x1000, scoped, tag = 'scratch operand']
  %s0 = inlined_call_operand.vmem [shape: f32[3,8,256], index: 0, kind: input, shape index: {}]
  %s1 = inlined_call_operand.vmem [shape: s32[8,1], index: 1, kind: input, shape index: {}]
  %s2 = inlined_call_operand.vmem [shape: f32[256,768], index: 2, kind: input, shape index: {}]
  %s3 = inlined_call_operand.vmem [shape: f32[1,768], index: 3, kind: input, shape index: {}]
  %s4 = inlined_call_operand.vmem [shape: f32[128,384], index: 4, kind: input, shape index: {}]
  %s5 = inlined_call_operand.vmem [shape: f32[128,384], index: 5, kind: input, shape index: {}]
  %s6 = inlined_call_operand.vmem [shape: f32[1,384], index: 6, kind: input, shape index: {}, may-alias: {6,7}]
  %s7 = inlined_call_operand.vmem [shape: f32[1,384], index: 7, kind: input, shape index: {}, may-alias: {6,7}]
  %s8 = inlined_call_operand.hbm [shape: f32[256,128], index: 8, kind: input, shape index: {}]
  %s9 = inlined_call_operand.vmem [shape: f32[1,128], index: 9, kind: input, shape index: {}, may-alias: {9,12}]
  %s10 = inlined_call_operand.vmem [shape: f32[1,128], index: 10, kind: input, shape index: {}]
  %s11 = inlined_call_operand.hbm [shape: f32[256,128], index: 11, kind: input, shape index: {}]
  %s12 = inlined_call_operand.vmem [shape: f32[1,128], index: 12, kind: input, shape index: {}, may-alias: {9,12}]
  %s13 = inlined_call_operand.hbm [shape: f32[8,256], index: 13, kind: output, shape index: {0}]
  %s14 = inlined_call_operand.vmem [shape: f32[3,8,1], index: 14, kind: output, shape index: {1}]
  %s15 = inlined_call_operand.vmem [shape: f32[8,128], index: 15, kind: output, shape index: {2}]
  %16 = xla_tuple %s13, %s14, %s15
  %s17 = sld [smem:[#allocation0]]
  $region86: #{han_forward.3} parent=0
    _
  %s19 = ssub.s32 1, %s17
  %s20 = scalar_select 0, %s19, %s17
  $region1: #{han_forward.3} parent=0
    #allocation7 [shape = 'u8[131072]{0}', space=vmem, size = 0x20000, scoped, tag = 'input window, operand 8, single buffered']
    #allocation8 [shape = 's32[1]{0}', space=sflag, size = 0x4, scoped, tag = 'scoped memory for han_forward.3']
    #allocation9 [shape = 's32[1]{0}', space=sflag, size = 0x4, scoped, tag = 'scoped memory for han_forward.3']
    #allocation10 [shape = 'u8[131072]{0}', space=vmem, size = 0x20000, scoped, tag = 'input window, operand 11, single buffered']
    #allocation11 [shape = 's32[1]{0}', space=sflag, size = 0x4, scoped, tag = 'scoped memory for han_forward.3']
    #allocation12 [shape = 'u8[8192]{0}', space=vmem, size = 0x2000, scoped, tag = 'output window, operand 0, single buffered']
    %21 = vsyncpa [#allocation8], 0
    %22 = vsyncpa [#allocation11], 0
    %23 = vsyncpa [#allocation9], 0
    // Predicated region
    $region2: #{han_forward.3} parent=1 // pred_check
      _
    $region3: #{han_forward.3} parent=1 // pred_check_branch
      %25 = sbr.rel (0) target = $region5
    $region4: #{han_forward.3} parent=1 // pred_region
      _
    $region5: #{han_forward.3} parent=1 // pred_fallthru
      _
    // Predicated region
    $region6: #{han_forward.3} parent=1 // pred_check
      _
    $region7: #{han_forward.3} parent=1 // pred_check_branch
      %27 = sbr.rel (0) target = $region9
    $region8: #{han_forward.3} parent=1 // pred_region
      _
    $region9: #{han_forward.3} parent=1 // pred_fallthru
      _
    // Predicated region
    $region10: #{han_forward.3} parent=1 // pred_check
      _
    $region11: #{han_forward.3} parent=1 // pred_check_branch
      %29 = sbr.rel (0) target = $region13
    $region12: #{han_forward.3} parent=1 // pred_region
      _
    $region13: #{han_forward.3} parent=1 // pred_fallthru
      _
    // Predicated region
    $region14: #{han_forward.3} parent=1 // pred_check
      _
    $region15: #{han_forward.3} parent=1 // pred_check_branch
      %31 = sbr.rel (0) target = $region17
    $region16: #{han_forward.3} parent=1 // pred_region
      _
    $region17: #{han_forward.3} parent=1 // pred_fallthru
      _
    // Predicated region
    $region18: #{han_forward.3} parent=1 // pred_check
      _
    $region19: #{han_forward.3} parent=1 // pred_check_branch
      %33 = sbr.rel (0) target = $region21
    $region20: #{han_forward.3} parent=1 // pred_region
      _
    $region21: #{han_forward.3} parent=1 // pred_fallthru
      _
    // Predicated region
    $region22: #{han_forward.3} parent=1 // pred_check
      _
    $region23: #{han_forward.3} parent=1 // pred_check_branch
      %35 = sbr.rel (0) target = $region25
    $region24: #{han_forward.3} parent=1 // pred_region
      _
    $region25: #{han_forward.3} parent=1 // pred_fallthru
      _
    // Predicated region
    $region26: #{han_forward.3} parent=1 // pred_check
      _
    $region27: #{han_forward.3} parent=1 // pred_check_branch
      %37 = sbr.rel (0) target = $region29
    $region28: #{han_forward.3} parent=1 // pred_region
      _
    $region29: #{han_forward.3} parent=1 // pred_fallthru
      _
    // Predicated region
    $region30: #{han_forward.3} parent=1 // pred_check
      _
    $region31: #{han_forward.3} parent=1 // pred_check_branch
      %39 = sbr.rel (0) target = $region33
    $region32: #{han_forward.3} parent=1 // pred_region
      _
    $region33: #{han_forward.3} parent=1 // pred_fallthru
      _
    // Predicated region
    $region34: #{han_forward.3} parent=1 // pred_check
      _
    $region35: #{han_forward.3} parent=1 // pred_check_branch
      %41 = sbr.rel (0) target = $region37
    $region36: #{han_forward.3} parent=1 // pred_region
      %s43 = ssub.s32 4096, 4096
      %44 = vsyncadd [#allocation8], %s43
      %s45 = sshll.u32 [#allocation7], 4
      %s46 = int_to_ptr.vmem [resolvable:$true] %s45
      %51 = dma.hbm_to_vmem [thread:$0]  %s8, 4096, %s46, [#allocation8], 128, 128, 8
    $region37: #{han_forward.3} parent=1 // pred_fallthru
      _
    // Predicated region
    $region38: #{han_forward.3} parent=1 // pred_check
      _
    $region39: #{han_forward.3} parent=1 // pred_check_branch
      %53 = sbr.rel (0) target = $region41
    $region40: #{han_forward.3} parent=1 // pred_region
      _
    $region41: #{han_forward.3} parent=1 // pred_fallthru
      _
    // Predicated region
    $region42: #{han_forward.3} parent=1 // pred_check
      _
    $region43: #{han_forward.3} parent=1 // pred_check_branch
      %55 = sbr.rel (0) target = $region45
    $region44: #{han_forward.3} parent=1 // pred_region
      _
    $region45: #{han_forward.3} parent=1 // pred_fallthru
      _
    // Predicated region
    $region46: #{han_forward.3} parent=1 // pred_check
      _
    $region47: #{han_forward.3} parent=1 // pred_check_branch
      %57 = sbr.rel (0) target = $region49
    $region48: #{han_forward.3} parent=1 // pred_region
      %s59 = ssub.s32 4096, 4096
      %60 = vsyncadd [#allocation11], %s59
      %s61 = sshll.u32 [#allocation10], 4
      %s62 = int_to_ptr.vmem [resolvable:$true] %s61
      %67 = dma.hbm_to_vmem [thread:$0]  %s11, 4096, %s62, [#allocation11], 128, 128, 8
    $region49: #{han_forward.3} parent=1 // pred_fallthru
      _
    // Predicated region
    $region50: #{han_forward.3} parent=1 // pred_check
      _
    $region51: #{han_forward.3} parent=1 // pred_check_branch
      %69 = sbr.rel (0) target = $region53
    $region52: #{han_forward.3} parent=1 // pred_region
      _
    $region53: #{han_forward.3} parent=1 // pred_fallthru
      _
    // Predicated region
    $region54: #{han_forward.3} parent=1 // pred_check
      _
    $region55: #{han_forward.3} parent=1 // pred_check_branch
      %71 = sbr.rel (0) target = $region57
    $region56: #{han_forward.3} parent=1 // pred_region
      %72 = dma.done [#allocation8], 4096
    $region57: #{han_forward.3} parent=1 // pred_fallthru
      _
    // Predicated region
    $region58: #{han_forward.3} parent=1 // pred_check
      _
    $region59: #{han_forward.3} parent=1 // pred_check_branch
      %74 = sbr.rel (0) target = $region61
    $region60: #{han_forward.3} parent=1 // pred_region
      %75 = dma.done [#allocation11], 4096
    $region61: #{han_forward.3} parent=1 // pred_fallthru
      _
    %v77 = vld [vmem:[%s1] sm:$0xff]
    %v78 = vld [vmem:[%s2] sm:$0xff]
    %v79 = vld [vmem:[%s2 + $0x8] sm:$0xff]
    %v80 = vld [vmem:[%s2 + $0x10] sm:$0xff]
    %v81 = vld [vmem:[%s2 + $0x18] sm:$0xff]
    %v82 = vld [vmem:[%s2 + $0x20] sm:$0xff]
    %v83 = vld [vmem:[%s2 + $0x28] sm:$0xff]
    %v84 = vld [vmem:[%s2 + $0x30] sm:$0xff]
    %v85 = vld [vmem:[%s2 + $0x38] sm:$0xff]
    %v86 = vld [vmem:[%s2 + $0x40] sm:$0xff]
    %v87 = vld [vmem:[%s2 + $0x48] sm:$0xff]
    %v88 = vld [vmem:[%s2 + $0x50] sm:$0xff]
    %v89 = vld [vmem:[%s2 + $0x58] sm:$0xff]
    %v90 = vld [vmem:[%s2 + $0x60] sm:$0xff]
    %v91 = vld [vmem:[%s2 + $0x68] sm:$0xff]
    %v92 = vld [vmem:[%s2 + $0x70] sm:$0xff]
    %v93 = vld [vmem:[%s2 + $0x78] sm:$0xff]
    %v94 = vld [vmem:[%s2 + $0x80] sm:$0xff]
    %v95 = vld [vmem:[%s2 + $0x88] sm:$0xff]
    %v96 = vld [vmem:[%s2 + $0x90] sm:$0xff]
    %v97 = vld [vmem:[%s2 + $0x98] sm:$0xff]
    %v98 = vld [vmem:[%s2 + $0xa0] sm:$0xff]
    %v99 = vld [vmem:[%s2 + $0xa8] sm:$0xff]
    %v100 = vld [vmem:[%s2 + $0xb0] sm:$0xff]
    %v101 = vld [vmem:[%s2 + $0xb8] sm:$0xff]
    %v102 = vld [vmem:[%s2 + $0xc0] sm:$0xff]
    %v103 = vld [vmem:[%s2 + $0xc8] sm:$0xff]
    %v104 = vld [vmem:[%s2 + $0xd0] sm:$0xff]
    %v105 = vld [vmem:[%s2 + $0xd8] sm:$0xff]
    %v106 = vld [vmem:[%s2 + $0xe0] sm:$0xff]
    %v107 = vld [vmem:[%s2 + $0xe8] sm:$0xff]
    %v108 = vld [vmem:[%s2 + $0xf0] sm:$0xff]
    %v109 = vld [vmem:[%s2 + $0xf8] sm:$0xff]
    %v110 = vld [vmem:[%s2 + $0x100] sm:$0xff]
    %v111 = vld [vmem:[%s2 + $0x108] sm:$0xff]
    %v112 = vld [vmem:[%s2 + $0x110] sm:$0xff]
    %v113 = vld [vmem:[%s2 + $0x118] sm:$0xff]
    %v114 = vld [vmem:[%s2 + $0x120] sm:$0xff]
    %v115 = vld [vmem:[%s2 + $0x128] sm:$0xff]
    %v116 = vld [vmem:[%s2 + $0x130] sm:$0xff]
    %v117 = vld [vmem:[%s2 + $0x138] sm:$0xff]
    %v118 = vld [vmem:[%s2 + $0x140] sm:$0xff]
    %v119 = vld [vmem:[%s2 + $0x148] sm:$0xff]
    %v120 = vld [vmem:[%s2 + $0x150] sm:$0xff]
    %v121 = vld [vmem:[%s2 + $0x158] sm:$0xff]
    %v122 = vld [vmem:[%s2 + $0x160] sm:$0xff]
    %v123 = vld [vmem:[%s2 + $0x168] sm:$0xff]
    %v124 = vld [vmem:[%s2 + $0x170] sm:$0xff]
    %v125 = vld [vmem:[%s2 + $0x178] sm:$0xff]
    %v126 = vld [vmem:[%s2 + $0x180] sm:$0xff]
    %v127 = vld [vmem:[%s2 + $0x188] sm:$0xff]
    %v128 = vld [vmem:[%s2 + $0x190] sm:$0xff]
    %v129 = vld [vmem:[%s2 + $0x198] sm:$0xff]
    %v130 = vld [vmem:[%s2 + $0x1a0] sm:$0xff]
    %v131 = vld [vmem:[%s2 + $0x1a8] sm:$0xff]
    %v132 = vld [vmem:[%s2 + $0x1b0] sm:$0xff]
    %v133 = vld [vmem:[%s2 + $0x1b8] sm:$0xff]
    %v134 = vld [vmem:[%s2 + $0x1c0] sm:$0xff]
    %v135 = vld [vmem:[%s2 + $0x1c8] sm:$0xff]
    %v136 = vld [vmem:[%s2 + $0x1d0] sm:$0xff]
    %v137 = vld [vmem:[%s2 + $0x1d8] sm:$0xff]
    %v138 = vld [vmem:[%s2 + $0x1e0] sm:$0xff]
    %v139 = vld [vmem:[%s2 + $0x1e8] sm:$0xff]
    %v140 = vld [vmem:[%s2 + $0x1f0] sm:$0xff]
    %v141 = vld [vmem:[%s2 + $0x1f8] sm:$0xff]
    %v142 = vld [vmem:[%s2 + $0x200] sm:$0xff]
    %v143 = vld [vmem:[%s2 + $0x208] sm:$0xff]
    %v144 = vld [vmem:[%s2 + $0x210] sm:$0xff]
    %v145 = vld [vmem:[%s2 + $0x218] sm:$0xff]
    %v146 = vld [vmem:[%s2 + $0x220] sm:$0xff]
    %v147 = vld [vmem:[%s2 + $0x228] sm:$0xff]
    %v148 = vld [vmem:[%s2 + $0x230] sm:$0xff]
    %v149 = vld [vmem:[%s2 + $0x238] sm:$0xff]
    %v150 = vld [vmem:[%s2 + $0x240] sm:$0xff]
    %v151 = vld [vmem:[%s2 + $0x248] sm:$0xff]
    %v152 = vld [vmem:[%s2 + $0x250] sm:$0xff]
    %v153 = vld [vmem:[%s2 + $0x258] sm:$0xff]
    %v154 = vld [vmem:[%s2 + $0x260] sm:$0xff]
    %v155 = vld [vmem:[%s2 + $0x268] sm:$0xff]
    %v156 = vld [vmem:[%s2 + $0x270] sm:$0xff]
    %v157 = vld [vmem:[%s2 + $0x278] sm:$0xff]
    %v158 = vld [vmem:[%s2 + $0x280] sm:$0xff]
    %v159 = vld [vmem:[%s2 + $0x288] sm:$0xff]
    %v160 = vld [vmem:[%s2 + $0x290] sm:$0xff]
    %v161 = vld [vmem:[%s2 + $0x298] sm:$0xff]
    %v162 = vld [vmem:[%s2 + $0x2a0] sm:$0xff]
    %v163 = vld [vmem:[%s2 + $0x2a8] sm:$0xff]
    %v164 = vld [vmem:[%s2 + $0x2b0] sm:$0xff]
    %v165 = vld [vmem:[%s2 + $0x2b8] sm:$0xff]
    %v166 = vld [vmem:[%s2 + $0x2c0] sm:$0xff]
    %v167 = vld [vmem:[%s2 + $0x2c8] sm:$0xff]
    %v168 = vld [vmem:[%s2 + $0x2d0] sm:$0xff]
    %v169 = vld [vmem:[%s2 + $0x2d8] sm:$0xff]
    %v170 = vld [vmem:[%s2 + $0x2e0] sm:$0xff]
    %v171 = vld [vmem:[%s2 + $0x2e8] sm:$0xff]
    %v172 = vld [vmem:[%s2 + $0x2f0] sm:$0xff]
    %v173 = vld [vmem:[%s2 + $0x2f8] sm:$0xff]
    %v174 = vld [vmem:[%s2 + $0x300] sm:$0xff]
    %v175 = vld [vmem:[%s2 + $0x308] sm:$0xff]
    %v176 = vld [vmem:[%s2 + $0x310] sm:$0xff]
    %v177 = vld [vmem:[%s2 + $0x318] sm:$0xff]
    %v178 = vld [vmem:[%s2 + $0x320] sm:$0xff]
    %v179 = vld [vmem:[%s2 + $0x328] sm:$0xff]
    %v180 = vld [vmem:[%s2 + $0x330] sm:$0xff]
    %v181 = vld [vmem:[%s2 + $0x338] sm:$0xff]
    %v182 = vld [vmem:[%s2 + $0x340] sm:$0xff]
    %v183 = vld [vmem:[%s2 + $0x348] sm:$0xff]
    %v184 = vld [vmem:[%s2 + $0x350] sm:$0xff]
    %v185 = vld [vmem:[%s2 + $0x358] sm:$0xff]
    %v186 = vld [vmem:[%s2 + $0x360] sm:$0xff]
    %v187 = vld [vmem:[%s2 + $0x368] sm:$0xff]
    %v188 = vld [vmem:[%s2 + $0x370] sm:$0xff]
    %v189 = vld [vmem:[%s2 + $0x378] sm:$0xff]
    %v190 = vld [vmem:[%s2 + $0x380] sm:$0xff]
    %v191 = vld [vmem:[%s2 + $0x388] sm:$0xff]
    %v192 = vld [vmem:[%s2 + $0x390] sm:$0xff]
    %v193 = vld [vmem:[%s2 + $0x398] sm:$0xff]
    %v194 = vld [vmem:[%s2 + $0x3a0] sm:$0xff]
    %v195 = vld [vmem:[%s2 + $0x3a8] sm:$0xff]
    %v196 = vld [vmem:[%s2 + $0x3b0] sm:$0xff]
    %v197 = vld [vmem:[%s2 + $0x3b8] sm:$0xff]
    %v198 = vld [vmem:[%s2 + $0x3c0] sm:$0xff]
    %v199 = vld [vmem:[%s2 + $0x3c8] sm:$0xff]
    %v200 = vld [vmem:[%s2 + $0x3d0] sm:$0xff]
    %v201 = vld [vmem:[%s2 + $0x3d8] sm:$0xff]
    %v202 = vld [vmem:[%s2 + $0x3e0] sm:$0xff]
    %v203 = vld [vmem:[%s2 + $0x3e8] sm:$0xff]
    %v204 = vld [vmem:[%s2 + $0x3f0] sm:$0xff]
    %v205 = vld [vmem:[%s2 + $0x3f8] sm:$0xff]
    %v206 = vld [vmem:[%s2 + $0x400] sm:$0xff]
    %v207 = vld [vmem:[%s2 + $0x408] sm:$0xff]
    %v208 = vld [vmem:[%s2 + $0x410] sm:$0xff]
    %v209 = vld [vmem:[%s2 + $0x418] sm:$0xff]
    %v210 = vld [vmem:[%s2 + $0x420] sm:$0xff]
    %v211 = vld [vmem:[%s2 + $0x428] sm:$0xff]
    %v212 = vld [vmem:[%s2 + $0x430] sm:$0xff]
    %v213 = vld [vmem:[%s2 + $0x438] sm:$0xff]
    %v214 = vld [vmem:[%s2 + $0x440] sm:$0xff]
    %v215 = vld [vmem:[%s2 + $0x448] sm:$0xff]
    %v216 = vld [vmem:[%s2 + $0x450] sm:$0xff]
    %v217 = vld [vmem:[%s2 + $0x458] sm:$0xff]
    %v218 = vld [vmem:[%s2 + $0x460] sm:$0xff]
    %v219 = vld [vmem:[%s2 + $0x468] sm:$0xff]
    %v220 = vld [vmem:[%s2 + $0x470] sm:$0xff]
    %v221 = vld [vmem:[%s2 + $0x478] sm:$0xff]
    %v222 = vld [vmem:[%s2 + $0x480] sm:$0xff]
    %v223 = vld [vmem:[%s2 + $0x488] sm:$0xff]
    %v224 = vld [vmem:[%s2 + $0x490] sm:$0xff]
    %v225 = vld [vmem:[%s2 + $0x498] sm:$0xff]
    %v226 = vld [vmem:[%s2 + $0x4a0] sm:$0xff]
    %v227 = vld [vmem:[%s2 + $0x4a8] sm:$0xff]
    %v228 = vld [vmem:[%s2 + $0x4b0] sm:$0xff]
    %v229 = vld [vmem:[%s2 + $0x4b8] sm:$0xff]
    %v230 = vld [vmem:[%s2 + $0x4c0] sm:$0xff]
    %v231 = vld [vmem:[%s2 + $0x4c8] sm:$0xff]
    %v232 = vld [vmem:[%s2 + $0x4d0] sm:$0xff]
    %v233 = vld [vmem:[%s2 + $0x4d8] sm:$0xff]
    %v234 = vld [vmem:[%s2 + $0x4e0] sm:$0xff]
    %v235 = vld [vmem:[%s2 + $0x4e8] sm:$0xff]
    %v236 = vld [vmem:[%s2 + $0x4f0] sm:$0xff]
    %v237 = vld [vmem:[%s2 + $0x4f8] sm:$0xff]
    %v238 = vld [vmem:[%s2 + $0x500] sm:$0xff]
    %v239 = vld [vmem:[%s2 + $0x508] sm:$0xff]
    %v240 = vld [vmem:[%s2 + $0x510] sm:$0xff]
    %v241 = vld [vmem:[%s2 + $0x518] sm:$0xff]
    %v242 = vld [vmem:[%s2 + $0x520] sm:$0xff]
    %v243 = vld [vmem:[%s2 + $0x528] sm:$0xff]
    %v244 = vld [vmem:[%s2 + $0x530] sm:$0xff]
    %v245 = vld [vmem:[%s2 + $0x538] sm:$0xff]
    %v246 = vld [vmem:[%s2 + $0x540] sm:$0xff]
    %v247 = vld [vmem:[%s2 + $0x548] sm:$0xff]
    %v248 = vld [vmem:[%s2 + $0x550] sm:$0xff]
    %v249 = vld [vmem:[%s2 + $0x558] sm:$0xff]
    %v250 = vld [vmem:[%s2 + $0x560] sm:$0xff]
    %v251 = vld [vmem:[%s2 + $0x568] sm:$0xff]
    %v252 = vld [vmem:[%s2 + $0x570] sm:$0xff]
    %v253 = vld [vmem:[%s2 + $0x578] sm:$0xff]
    %v254 = vld [vmem:[%s2 + $0x580] sm:$0xff]
    %v255 = vld [vmem:[%s2 + $0x588] sm:$0xff]
    %v256 = vld [vmem:[%s2 + $0x590] sm:$0xff]
    %v257 = vld [vmem:[%s2 + $0x598] sm:$0xff]
    %v258 = vld [vmem:[%s2 + $0x5a0] sm:$0xff]
    %v259 = vld [vmem:[%s2 + $0x5a8] sm:$0xff]
    %v260 = vld [vmem:[%s2 + $0x5b0] sm:$0xff]
    %v261 = vld [vmem:[%s2 + $0x5b8] sm:$0xff]
    %v262 = vld [vmem:[%s2 + $0x5c0] sm:$0xff]
    %v263 = vld [vmem:[%s2 + $0x5c8] sm:$0xff]
    %v264 = vld [vmem:[%s2 + $0x5d0] sm:$0xff]
    %v265 = vld [vmem:[%s2 + $0x5d8] sm:$0xff]
    %v266 = vld [vmem:[%s2 + $0x5e0] sm:$0xff]
    %v267 = vld [vmem:[%s2 + $0x5e8] sm:$0xff]
    %v268 = vld [vmem:[%s2 + $0x5f0] sm:$0xff]
    %v269 = vld [vmem:[%s2 + $0x5f8] sm:$0xff]
    %v270 = vld [vmem:[%s0] sm:$0xff]
    %v271 = vld [vmem:[%s0 + $0x8] sm:$0xff]
    %v272 = vld [vmem:[%s0 + $0x10] sm:$0xff]
    %v273 = vld [vmem:[%s0 + $0x18] sm:$0xff]
    %v274 = vld [vmem:[%s0 + $0x20] sm:$0xff]
    %v275 = vld [vmem:[%s0 + $0x28] sm:$0xff]
    %v276 = vpack.c.bf16 %v272, %v270
    %v277 = vpack.c.bf16 %v273, %v271
    %v278 = vpack.c.bf16 %v274, %v274
    %v279 = vpack.c.bf16 %v275, %v275
    %v280 = vpack.c.bf16 %v84, %v78
    %v281 = vpack.c.bf16 %v85, %v79
    %v282 = vpack.c.bf16 %v86, %v80
    %v283 = vpack.c.bf16 %v87, %v81
    %v284 = vpack.c.bf16 %v88, %v82
    %v285 = vpack.c.bf16 %v89, %v83
    %v286 = vpack.c.bf16 %v96, %v90
    %v287 = vpack.c.bf16 %v97, %v91
    %v288 = vpack.c.bf16 %v98, %v92
    %v289 = vpack.c.bf16 %v99, %v93
    %v290 = vpack.c.bf16 %v100, %v94
    %v291 = vpack.c.bf16 %v101, %v95
    %v292 = vpack.c.bf16 %v108, %v102
    %v293 = vpack.c.bf16 %v109, %v103
    %v294 = vpack.c.bf16 %v110, %v104
    %v295 = vpack.c.bf16 %v111, %v105
    %v296 = vpack.c.bf16 %v112, %v106
    %v297 = vpack.c.bf16 %v113, %v107
    %v298 = vpack.c.bf16 %v120, %v114
    %v299 = vpack.c.bf16 %v121, %v115
    %v300 = vpack.c.bf16 %v122, %v116
    %v301 = vpack.c.bf16 %v123, %v117
    %v302 = vpack.c.bf16 %v124, %v118
    %v303 = vpack.c.bf16 %v125, %v119
    %v304 = vpack.c.bf16 %v132, %v126
    %v305 = vpack.c.bf16 %v133, %v127
    %v306 = vpack.c.bf16 %v134, %v128
    %v307 = vpack.c.bf16 %v135, %v129
    %v308 = vpack.c.bf16 %v136, %v130
    %v309 = vpack.c.bf16 %v137, %v131
    %v310 = vpack.c.bf16 %v144, %v138
    %v311 = vpack.c.bf16 %v145, %v139
    %v312 = vpack.c.bf16 %v146, %v140
    %v313 = vpack.c.bf16 %v147, %v141
    %v314 = vpack.c.bf16 %v148, %v142
    %v315 = vpack.c.bf16 %v149, %v143
    %v316 = vpack.c.bf16 %v156, %v150
    %v317 = vpack.c.bf16 %v157, %v151
    %v318 = vpack.c.bf16 %v158, %v152
    %v319 = vpack.c.bf16 %v159, %v153
    %v320 = vpack.c.bf16 %v160, %v154
    %v321 = vpack.c.bf16 %v161, %v155
    %v322 = vpack.c.bf16 %v168, %v162
    %v323 = vpack.c.bf16 %v169, %v163
    %v324 = vpack.c.bf16 %v170, %v164
    %v325 = vpack.c.bf16 %v171, %v165
    %v326 = vpack.c.bf16 %v172, %v166
    %v327 = vpack.c.bf16 %v173, %v167
    %v328 = vpack.c.bf16 %v180, %v174
    %v329 = vpack.c.bf16 %v181, %v175
    %v330 = vpack.c.bf16 %v182, %v176
    %v331 = vpack.c.bf16 %v183, %v177
    %v332 = vpack.c.bf16 %v184, %v178
    %v333 = vpack.c.bf16 %v185, %v179
    %v334 = vpack.c.bf16 %v192, %v186
    %v335 = vpack.c.bf16 %v193, %v187
    %v336 = vpack.c.bf16 %v194, %v188
    %v337 = vpack.c.bf16 %v195, %v189
    %v338 = vpack.c.bf16 %v196, %v190
    %v339 = vpack.c.bf16 %v197, %v191
    %v340 = vpack.c.bf16 %v204, %v198
    %v341 = vpack.c.bf16 %v205, %v199
    %v342 = vpack.c.bf16 %v206, %v200
    %v343 = vpack.c.bf16 %v207, %v201
    %v344 = vpack.c.bf16 %v208, %v202
    %v345 = vpack.c.bf16 %v209, %v203
    %v346 = vpack.c.bf16 %v216, %v210
    %v347 = vpack.c.bf16 %v217, %v211
    %v348 = vpack.c.bf16 %v218, %v212
    %v349 = vpack.c.bf16 %v219, %v213
    %v350 = vpack.c.bf16 %v220, %v214
    %v351 = vpack.c.bf16 %v221, %v215
    %v352 = vpack.c.bf16 %v228, %v222
    %v353 = vpack.c.bf16 %v229, %v223
    %v354 = vpack.c.bf16 %v230, %v224
    %v355 = vpack.c.bf16 %v231, %v225
    %v356 = vpack.c.bf16 %v232, %v226
    %v357 = vpack.c.bf16 %v233, %v227
    %v358 = vpack.c.bf16 %v240, %v234
    %v359 = vpack.c.bf16 %v241, %v235
    %v360 = vpack.c.bf16 %v242, %v236
    %v361 = vpack.c.bf16 %v243, %v237
    %v362 = vpack.c.bf16 %v244, %v238
    %v363 = vpack.c.bf16 %v245, %v239
    %v364 = vpack.c.bf16 %v252, %v246
    %v365 = vpack.c.bf16 %v253, %v247
    %v366 = vpack.c.bf16 %v254, %v248
    %v367 = vpack.c.bf16 %v255, %v249
    %v368 = vpack.c.bf16 %v256, %v250
    %v369 = vpack.c.bf16 %v257, %v251
    %v370 = vpack.c.bf16 %v264, %v258
    %v371 = vpack.c.bf16 %v265, %v259
    %v372 = vpack.c.bf16 %v266, %v260
    %v373 = vpack.c.bf16 %v267, %v261
    %v374 = vpack.c.bf16 %v268, %v262
    %v375 = vpack.c.bf16 %v269, %v263
    %v376 = vld [vmem:[%s3] sm:$0x3f]
    %v378 = vlaneseq
    %v379 = vshrl.u32 %v378, 7
    %v380 = vsub.s32 0, %v379
    %v381 = vrot.slane %v376, %v380
    %v382 = vlaneseq
    %v383 = vshrl.u32 %v382, 7
    %v384 = vsub.s32 1, %v383
    %v385 = vrot.slane %v376, %v384
    %v386 = vlaneseq
    %v387 = vshrl.u32 %v386, 7
    %v388 = vsub.s32 2, %v387
    %v389 = vrot.slane %v376, %v388
    %v390 = vlaneseq
    %v391 = vshrl.u32 %v390, 7
    %v392 = vsub.s32 3, %v391
    %v393 = vrot.slane %v376, %v392
    %v394 = vlaneseq
    %v395 = vshrl.u32 %v394, 7
    %v396 = vsub.s32 4, %v395
    %v397 = vrot.slane %v376, %v396
    %v398 = vlaneseq
    %v399 = vshrl.u32 %v398, 7
    %v400 = vsub.s32 5, %v399
    %v401 = vrot.slane %v376, %v400
    %408 = vmatprep.subr.bf16.mxu0 %v281
    %409 = vmatpush1.bf16.msra.mxu0 %v280
    %410 = vmatprep.subr.bf16.mxu0 %v287
    %411 = vmatpush1.bf16.msra.mxu0 %v286
    %412 = vmatprep.subr.bf16.mxu0 %v293
    %413 = vmatpush1.bf16.msra.mxu0 %v292
    %414 = vmatprep.subr.bf16.mxu0 %v299
    %415 = vmatpush1.bf16.msra.mxu0 %v298
    %416 = vmatprep.subr.bf16.mxu0 %v305
    %417 = vmatpush1.bf16.msra.mxu0 %v304
    %418 = vmatprep.subr.bf16.mxu0 %v311
    %419 = vmatpush1.bf16.msra.mxu0 %v310
    %420 = vmatprep.subr.bf16.mxu0 %v317
    %421 = vmatpush1.bf16.msra.mxu0 %v316
    %422 = vmatprep.subr.bf16.mxu0 %v323
    %423 = vmatpush1.bf16.msra.mxu0 %v322
    %424 = vmatprep.subr.bf16.mxu0 %v329
    %425 = vmatpush1.bf16.msra.mxu0 %v328
    %426 = vmatprep.subr.bf16.mxu0 %v335
    %427 = vmatpush1.bf16.msra.mxu0 %v334
    %428 = vmatprep.subr.bf16.mxu0 %v341
    %429 = vmatpush1.bf16.msra.mxu0 %v340
    %430 = vmatprep.subr.bf16.mxu0 %v347
    %431 = vmatpush1.bf16.msra.mxu0 %v346
    %432 = vmatprep.subr.bf16.mxu0 %v353
    %433 = vmatpush1.bf16.msra.mxu0 %v352
    %434 = vmatprep.subr.bf16.mxu0 %v359
    %435 = vmatpush1.bf16.msra.mxu0 %v358
    %436 = vmatprep.subr.bf16.mxu0 %v365
    %437 = vmatpush1.bf16.msra.mxu0 %v364
    %438 = vmatprep.subr.bf16.mxu0 %v371
    %439 = vmatpush1.bf16.msra.mxu0 %v370
    %440 = vmatprep.mubr.bf16.mxu0 %v277
    %441 = vmatmul.mubr.bf16.gmra.mrb[0].mxu0 %v276
    %v442 = vpop.f32.mrb[0].mxu0
    %v443 = vadd.f32 %v381, %v442
    %v444 = vpop.f32.mrb[0].mxu0
    %v445 = vadd.f32 %v385, %v444
    %v446 = vpop.f32.mrb[0].mxu0
    %v447 = vadd.f32 %v381, %v446
    %v448 = vpop.f32.mrb[0].mxu0
    %v449 = vadd.f32 %v385, %v448
    %450 = vmatprep.mubr.bf16.mxu0 %v279
    %451 = vmatmul.mubr.bf16.gmra.mrb[0].mxu0 %v278
    %v452 = vpop.f32.mrb[0].mxu0
    %v453 = vadd.f32 %v381, %v452
    %v454 = vpop.f32.mrb[0].mxu0
    %v455 = vadd.f32 %v385, %v454
    %v456 = vpop.f32.mrb[0].mxu0
    %v457 = vpop.f32.mrb[0].mxu0
    %458 = vdwg.mxu0
    %459 = vmatprep.subr.bf16.mxu0 %v283
    %460 = vmatpush1.bf16.msra.mxu0 %v282
    %461 = vmatprep.subr.bf16.mxu0 %v289
    %462 = vmatpush1.bf16.msra.mxu0 %v288
    %463 = vmatprep.subr.bf16.mxu0 %v295
    %464 = vmatpush1.bf16.msra.mxu0 %v294
    %465 = vmatprep.subr.bf16.mxu0 %v301
    %466 = vmatpush1.bf16.msra.mxu0 %v300
    %467 = vmatprep.subr.bf16.mxu0 %v307
    %468 = vmatpush1.bf16.msra.mxu0 %v306
    %469 = vmatprep.subr.bf16.mxu0 %v313
    %470 = vmatpush1.bf16.msra.mxu0 %v312
    %471 = vmatprep.subr.bf16.mxu0 %v319
    %472 = vmatpush1.bf16.msra.mxu0 %v318
    %473 = vmatprep.subr.bf16.mxu0 %v325
    %474 = vmatpush1.bf16.msra.mxu0 %v324
    %475 = vmatprep.subr.bf16.mxu0 %v331
    %476 = vmatpush1.bf16.msra.mxu0 %v330
    %477 = vmatprep.subr.bf16.mxu0 %v337
    %478 = vmatpush1.bf16.msra.mxu0 %v336
    %479 = vmatprep.subr.bf16.mxu0 %v343
    %480 = vmatpush1.bf16.msra.mxu0 %v342
    %481 = vmatprep.subr.bf16.mxu0 %v349
    %482 = vmatpush1.bf16.msra.mxu0 %v348
    %483 = vmatprep.subr.bf16.mxu0 %v355
    %484 = vmatpush1.bf16.msra.mxu0 %v354
    %485 = vmatprep.subr.bf16.mxu0 %v361
    %486 = vmatpush1.bf16.msra.mxu0 %v360
    %487 = vmatprep.subr.bf16.mxu0 %v367
    %488 = vmatpush1.bf16.msra.mxu0 %v366
    %489 = vmatprep.subr.bf16.mxu0 %v373
    %490 = vmatpush1.bf16.msra.mxu0 %v372
    %491 = vmatprep.mubr.bf16.mxu0 %v277
    %492 = vmatmul.mubr.bf16.gmra.mrb[0].mxu0 %v276
    %v493 = vpop.f32.mrb[0].mxu0
    %v494 = vadd.f32 %v389, %v493
    %v495 = vpop.f32.mrb[0].mxu0
    %v496 = vadd.f32 %v393, %v495
    %v497 = vpop.f32.mrb[0].mxu0
    %v498 = vadd.f32 %v389, %v497
    %v499 = vpop.f32.mrb[0].mxu0
    %v500 = vadd.f32 %v393, %v499
    %501 = vmatprep.mubr.bf16.mxu0 %v279
    %502 = vmatmul.mubr.bf16.gmra.mrb[0].mxu0 %v278
    %v503 = vpop.f32.mrb[0].mxu0
    %v504 = vadd.f32 %v389, %v503
    %v505 = vpop.f32.mrb[0].mxu0
    %v506 = vadd.f32 %v393, %v505
    %v507 = vpop.f32.mrb[0].mxu0
    %v508 = vpop.f32.mrb[0].mxu0
    %509 = vdwg.mxu0
    %510 = vmatprep.subr.bf16.mxu0 %v285
    %511 = vmatpush1.bf16.msra.mxu0 %v284
    %512 = vmatprep.subr.bf16.mxu0 %v291
    %513 = vmatpush1.bf16.msra.mxu0 %v290
    %514 = vmatprep.subr.bf16.mxu0 %v297
    %515 = vmatpush1.bf16.msra.mxu0 %v296
    %516 = vmatprep.subr.bf16.mxu0 %v303
    %517 = vmatpush1.bf16.msra.mxu0 %v302
    %518 = vmatprep.subr.bf16.mxu0 %v309
    %519 = vmatpush1.bf16.msra.mxu0 %v308
    %520 = vmatprep.subr.bf16.mxu0 %v315
    %521 = vmatpush1.bf16.msra.mxu0 %v314
    %522 = vmatprep.subr.bf16.mxu0 %v321
    %523 = vmatpush1.bf16.msra.mxu0 %v320
    %524 = vmatprep.subr.bf16.mxu0 %v327
    %525 = vmatpush1.bf16.msra.mxu0 %v326
    %526 = vmatprep.subr.bf16.mxu0 %v333
    %527 = vmatpush1.bf16.msra.mxu0 %v332
    %528 = vmatprep.subr.bf16.mxu0 %v339
    %529 = vmatpush1.bf16.msra.mxu0 %v338
    %530 = vmatprep.subr.bf16.mxu0 %v345
    %531 = vmatpush1.bf16.msra.mxu0 %v344
    %532 = vmatprep.subr.bf16.mxu0 %v351
    %533 = vmatpush1.bf16.msra.mxu0 %v350
    %534 = vmatprep.subr.bf16.mxu0 %v357
    %535 = vmatpush1.bf16.msra.mxu0 %v356
    %536 = vmatprep.subr.bf16.mxu0 %v363
    %537 = vmatpush1.bf16.msra.mxu0 %v362
    %538 = vmatprep.subr.bf16.mxu0 %v369
    %539 = vmatpush1.bf16.msra.mxu0 %v368
    %540 = vmatprep.subr.bf16.mxu0 %v375
    %541 = vmatpush1.bf16.msra.mxu0 %v374
    %542 = vmatprep.mubr.bf16.mxu0 %v277
    %543 = vmatmul.mubr.bf16.gmra.mrb[0].mxu0 %v276
    %v544 = vpop.f32.mrb[0].mxu0
    %v545 = vadd.f32 %v397, %v544
    %v546 = vpop.f32.mrb[0].mxu0
    %v547 = vadd.f32 %v401, %v546
    %v548 = vpop.f32.mrb[0].mxu0
    %v549 = vadd.f32 %v397, %v548
    %v550 = vpop.f32.mrb[0].mxu0
    %v551 = vadd.f32 %v401, %v550
    %552 = vmatprep.mubr.bf16.mxu0 %v279
    %553 = vmatmul.mubr.bf16.gmra.mrb[0].mxu0 %v278
    %v554 = vpop.f32.mrb[0].mxu0
    %v555 = vadd.f32 %v397, %v554
    %v556 = vpop.f32.mrb[0].mxu0
    %v557 = vadd.f32 %v401, %v556
    %v558 = vpop.f32.mrb[0].mxu0
    %v559 = vpop.f32.mrb[0].mxu0
    %560 = vdwg.mxu0
    %561 = vst [vmem:[#allocation2] sm:$0xff] %v443
    %562 = vst [vmem:[#allocation2 + $0x8] sm:$0xff] %v445
    %563 = vst [vmem:[#allocation2 + $0x10] sm:$0xff] %v494
    %564 = vst [vmem:[#allocation2 + $0x18] sm:$0xff] %v496
    %565 = vst [vmem:[#allocation2 + $0x20] sm:$0xff] %v545
    %566 = vst [vmem:[#allocation2 + $0x28] sm:$0xff] %v547
    %567 = vst [vmem:[#allocation2 + $0x30] sm:$0xff] %v447
    %568 = vst [vmem:[#allocation2 + $0x38] sm:$0xff] %v449
    %569 = vst [vmem:[#allocation2 + $0x40] sm:$0xff] %v498
    %570 = vst [vmem:[#allocation2 + $0x48] sm:$0xff] %v500
    %571 = vst [vmem:[#allocation2 + $0x50] sm:$0xff] %v549
    %572 = vst [vmem:[#allocation2 + $0x58] sm:$0xff] %v551
    %573 = vst [vmem:[#allocation2 + $0x60] sm:$0xff] %v453
    %574 = vst [vmem:[#allocation2 + $0x68] sm:$0xff] %v455
    %575 = vst [vmem:[#allocation2 + $0x70] sm:$0xff] %v504
    %576 = vst [vmem:[#allocation2 + $0x78] sm:$0xff] %v506
    %577 = vst [vmem:[#allocation2 + $0x80] sm:$0xff] %v555
    %578 = vst [vmem:[#allocation2 + $0x88] sm:$0xff] %v557
    %v579 = vld [vmem:[%s4] sm:$0xff]
    %v580 = vld [vmem:[%s4 + $0x8] sm:$0xff]
    %v581 = vld [vmem:[%s4 + $0x10] sm:$0xff]
    %v582 = vld [vmem:[%s4 + $0x18] sm:$0xff]
    %v583 = vld [vmem:[%s4 + $0x20] sm:$0xff]
    %v584 = vld [vmem:[%s4 + $0x28] sm:$0xff]
    %v585 = vld [vmem:[%s4 + $0x30] sm:$0xff]
    %v586 = vld [vmem:[%s4 + $0x38] sm:$0xff]
    %v587 = vld [vmem:[%s4 + $0x40] sm:$0xff]
    %v588 = vld [vmem:[%s4 + $0x48] sm:$0xff]
    %v589 = vld [vmem:[%s4 + $0x50] sm:$0xff]
    %v590 = vld [vmem:[%s4 + $0x58] sm:$0xff]
    %v591 = vld [vmem:[%s4 + $0x60] sm:$0xff]
    %v592 = vld [vmem:[%s4 + $0x68] sm:$0xff]
    %v593 = vld [vmem:[%s4 + $0x70] sm:$0xff]
    %v594 = vld [vmem:[%s4 + $0x78] sm:$0xff]
    %v595 = vld [vmem:[%s4 + $0x80] sm:$0xff]
    %v596 = vld [vmem:[%s4 + $0x88] sm:$0xff]
    %v597 = vld [vmem:[%s4 + $0x90] sm:$0xff]
    %v598 = vld [vmem:[%s4 + $0x98] sm:$0xff]
    %v599 = vld [vmem:[%s4 + $0xa0] sm:$0xff]
    %v600 = vld [vmem:[%s4 + $0xa8] sm:$0xff]
    %v601 = vld [vmem:[%s4 + $0xb0] sm:$0xff]
    %v602 = vld [vmem:[%s4 + $0xb8] sm:$0xff]
    %v603 = vld [vmem:[%s4 + $0xc0] sm:$0xff]
    %v604 = vld [vmem:[%s4 + $0xc8] sm:$0xff]
    %v605 = vld [vmem:[%s4 + $0xd0] sm:$0xff]
    %v606 = vld [vmem:[%s4 + $0xd8] sm:$0xff]
    %v607 = vld [vmem:[%s4 + $0xe0] sm:$0xff]
    %v608 = vld [vmem:[%s4 + $0xe8] sm:$0xff]
    %v609 = vld [vmem:[%s4 + $0xf0] sm:$0xff]
    %v610 = vld [vmem:[%s4 + $0xf8] sm:$0xff]
    %v611 = vld [vmem:[%s4 + $0x100] sm:$0xff]
    %v612 = vld [vmem:[%s4 + $0x108] sm:$0xff]
    %v613 = vld [vmem:[%s4 + $0x110] sm:$0xff]
    %v614 = vld [vmem:[%s4 + $0x118] sm:$0xff]
    %v615 = vld [vmem:[%s4 + $0x120] sm:$0xff]
    %v616 = vld [vmem:[%s4 + $0x128] sm:$0xff]
    %v617 = vld [vmem:[%s4 + $0x130] sm:$0xff]
    %v618 = vld [vmem:[%s4 + $0x138] sm:$0xff]
    %v619 = vld [vmem:[%s4 + $0x140] sm:$0xff]
    %v620 = vld [vmem:[%s4 + $0x148] sm:$0xff]
    %v621 = vld [vmem:[%s4 + $0x150] sm:$0xff]
    %v622 = vld [vmem:[%s4 + $0x158] sm:$0xff]
    %v623 = vld [vmem:[%s4 + $0x160] sm:$0xff]
    %v624 = vld [vmem:[%s4 + $0x168] sm:$0xff]
    %v625 = vld [vmem:[%s4 + $0x170] sm:$0xff]
    %v626 = vld [vmem:[%s4 + $0x178] sm:$0xff]
    %v627 = vld [vmem:[%s5] sm:$0xff]
    %v628 = vld [vmem:[%s5 + $0x8] sm:$0xff]
    %v629 = vld [vmem:[%s5 + $0x10] sm:$0xff]
    %v630 = vld [vmem:[%s5 + $0x18] sm:$0xff]
    %v631 = vld [vmem:[%s5 + $0x20] sm:$0xff]
    %v632 = vld [vmem:[%s5 + $0x28] sm:$0xff]
    %v633 = vld [vmem:[%s5 + $0x30] sm:$0xff]
    %v634 = vld [vmem:[%s5 + $0x38] sm:$0xff]
    %v635 = vld [vmem:[%s5 + $0x40] sm:$0xff]
    %v636 = vld [vmem:[%s5 + $0x48] sm:$0xff]
    %v637 = vld [vmem:[%s5 + $0x50] sm:$0xff]
    %v638 = vld [vmem:[%s5 + $0x58] sm:$0xff]
    %v639 = vld [vmem:[%s5 + $0x60] sm:$0xff]
    %v640 = vld [vmem:[%s5 + $0x68] sm:$0xff]
    %v641 = vld [vmem:[%s5 + $0x70] sm:$0xff]
    %v642 = vld [vmem:[%s5 + $0x78] sm:$0xff]
    %v643 = vld [vmem:[%s5 + $0x80] sm:$0xff]
    %v644 = vld [vmem:[%s5 + $0x88] sm:$0xff]
    %v645 = vld [vmem:[%s5 + $0x90] sm:$0xff]
    %v646 = vld [vmem:[%s5 + $0x98] sm:$0xff]
    %v647 = vld [vmem:[%s5 + $0xa0] sm:$0xff]
    %v648 = vld [vmem:[%s5 + $0xa8] sm:$0xff]
    %v649 = vld [vmem:[%s5 + $0xb0] sm:$0xff]
    %v650 = vld [vmem:[%s5 + $0xb8] sm:$0xff]
    %v651 = vld [vmem:[%s5 + $0xc0] sm:$0xff]
    %v652 = vld [vmem:[%s5 + $0xc8] sm:$0xff]
    %v653 = vld [vmem:[%s5 + $0xd0] sm:$0xff]
    %v654 = vld [vmem:[%s5 + $0xd8] sm:$0xff]
    %v655 = vld [vmem:[%s5 + $0xe0] sm:$0xff]
    %v656 = vld [vmem:[%s5 + $0xe8] sm:$0xff]
    %v657 = vld [vmem:[%s5 + $0xf0] sm:$0xff]
    %v658 = vld [vmem:[%s5 + $0xf8] sm:$0xff]
    %v659 = vld [vmem:[%s5 + $0x100] sm:$0xff]
    %v660 = vld [vmem:[%s5 + $0x108] sm:$0xff]
    %v661 = vld [vmem:[%s5 + $0x110] sm:$0xff]
    %v662 = vld [vmem:[%s5 + $0x118] sm:$0xff]
    %v663 = vld [vmem:[%s5 + $0x120] sm:$0xff]
    %v664 = vld [vmem:[%s5 + $0x128] sm:$0xff]
    %v665 = vld [vmem:[%s5 + $0x130] sm:$0xff]
    %v666 = vld [vmem:[%s5 + $0x138] sm:$0xff]
    %v667 = vld [vmem:[%s5 + $0x140] sm:$0xff]
    %v668 = vld [vmem:[%s5 + $0x148] sm:$0xff]
    %v669 = vld [vmem:[%s5 + $0x150] sm:$0xff]
    %v670 = vld [vmem:[%s5 + $0x158] sm:$0xff]
    %v671 = vld [vmem:[%s5 + $0x160] sm:$0xff]
    %v672 = vld [vmem:[%s5 + $0x168] sm:$0xff]
    %v673 = vld [vmem:[%s5 + $0x170] sm:$0xff]
    %v674 = vld [vmem:[%s5 + $0x178] sm:$0xff]
    %v675 = vld [vmem:[%s6] sm:$0x7]
    %v676 = vld [vmem:[%s7] sm:$0x7]
    %677 = vst [vmem:[#allocation5] sm:$0xff] 0.0
    %678 = vst [vmem:[#allocation6] sm:$0xff] 0.0
    %v679 = vld [vmem:[#allocation2] sm:$0xff]
    %v680 = vld [vmem:[#allocation2 + $0x8] sm:$0xff]
    %v681 = vld [vmem:[#allocation2 + $0x10] sm:$0xff]
    %v682 = vld [vmem:[#allocation5] sm:$0xff]
    %v684 = vlaneseq
    %v685 = vshrl.u32 %v684, 7
    %v686 = vsub.s32 0, %v685
    %v687 = vrot.slane %v675, %v686
    %v688 = vlaneseq
    %v689 = vshrl.u32 %v688, 7
    %v690 = vsub.s32 1, %v689
    %v691 = vrot.slane %v675, %v690
    %v692 = vlaneseq
    %v693 = vshrl.u32 %v692, 7
    %v694 = vsub.s32 2, %v693
    %v695 = vrot.slane %v675, %v694
    %699 = vmatprep.subr.mxu0 %v580
    %700 = vmatpush1.msra.mxu0 %v579
    %701 = vmatprep.subr.mxu0 %v583
    %702 = vmatpush1.msra.mxu0 %v582
    %703 = vmatprep.subr.mxu0 %v586
    %704 = vmatpush1.msra.mxu0 %v585
    %705 = vmatprep.subr.mxu0 %v589
    %706 = vmatpush1.msra.mxu0 %v588
    %707 = vmatprep.subr.mxu0 %v592
    %708 = vmatpush1.msra.mxu0 %v591
    %709 = vmatprep.subr.mxu0 %v595
    %710 = vmatpush1.msra.mxu0 %v594
    %711 = vmatprep.subr.mxu0 %v598
    %712 = vmatpush1.msra.mxu0 %v597
    %713 = vmatprep.subr.mxu0 %v601
    %714 = vmatpush1.msra.mxu0 %v600
    %715 = vmatprep.subr.mxu0 %v604
    %716 = vmatpush1.msra.mxu0 %v603
    %717 = vmatprep.subr.mxu0 %v607
    %718 = vmatpush1.msra.mxu0 %v606
    %719 = vmatprep.subr.mxu0 %v610
    %720 = vmatpush1.msra.mxu0 %v609
    %721 = vmatprep.subr.mxu0 %v613
    %722 = vmatpush1.msra.mxu0 %v612
    %723 = vmatprep.subr.mxu0 %v616
    %724 = vmatpush1.msra.mxu0 %v615
    %725 = vmatprep.subr.mxu0 %v619
    %726 = vmatpush1.msra.mxu0 %v618
    %727 = vmatprep.subr.mxu0 %v622
    %728 = vmatpush1.msra.mxu0 %v621
    %729 = vmatprep.subr.mxu0 %v625
    %730 = vmatpush1.msra.mxu0 %v624
    %731 = vmatprep.subr.mxu0 0.0
    %732 = vmatpush1.msra.mxu0 0.0
    %733 = vmatprep.subr.mxu0 0.0
    %734 = vmatpush1.msra.mxu0 0.0
    %735 = vmatprep.subr.mxu0 0.0
    %736 = vmatpush1.msra.mxu0 0.0
    %737 = vmatprep.subr.mxu0 0.0
    %738 = vmatpush1.msra.mxu0 0.0
    %739 = vmatprep.subr.mxu0 0.0
    %740 = vmatpush1.msra.mxu0 0.0
    %741 = vmatprep.subr.mxu0 0.0
    %742 = vmatpush1.msra.mxu0 0.0
    %743 = vmatprep.subr.mxu0 0.0
    %744 = vmatpush1.msra.mxu0 0.0
    %745 = vmatprep.subr.mxu0 0.0
    %746 = vmatpush1.msra.mxu0 0.0
    %747 = vmatprep.subr.mxu0 0.0
    %748 = vmatpush1.msra.mxu0 0.0
    %749 = vmatprep.subr.mxu0 0.0
    %750 = vmatpush1.msra.mxu0 0.0
    %751 = vmatprep.subr.mxu0 0.0
    %752 = vmatpush1.msra.mxu0 0.0
    %753 = vmatprep.subr.mxu0 0.0
    %754 = vmatpush1.msra.mxu0 0.0
    %755 = vmatprep.subr.mxu0 0.0
    %756 = vmatpush1.msra.mxu0 0.0
    %757 = vmatprep.subr.mxu0 0.0
    %758 = vmatpush1.msra.mxu0 0.0
    %759 = vmatprep.subr.mxu0 0.0
    %760 = vmatpush1.msra.mxu0 0.0
    %761 = vmatprep.subr.mxu0 0.0
    %762 = vmatpush1.msra.mxu0 0.0
    %763 = vmatprep.mubr.f32.mxu0 0.0
    %764 = vmatmul.mubr.f32.gmra.mrb[0].mxu0 %v682
    %v765 = vpop.f32.mrb[0].mxu0
    %v766 = vadd.f32 %v687, %v765
    %v767 = vpop.f32.mrb[0].mxu0
    %v768 = vadd.f32 %v691, %v767
    %769 = vdwg.mxu0
    %770 = vmatprep.subr.mxu0 0.0
    %771 = vmatpush1.msra.mxu0 %v581
    %772 = vmatprep.subr.mxu0 0.0
    %773 = vmatpush1.msra.mxu0 %v584
    %774 = vmatprep.subr.mxu0 0.0
    %775 = vmatpush1.msra.mxu0 %v587
    %776 = vmatprep.subr.mxu0 0.0
    %777 = vmatpush1.msra.mxu0 %v590
    %778 = vmatprep.subr.mxu0 0.0
    %779 = vmatpush1.msra.mxu0 %v593
    %780 = vmatprep.subr.mxu0 0.0
    %781 = vmatpush1.msra.mxu0 %v596
    %782 = vmatprep.subr.mxu0 0.0
    %783 = vmatpush1.msra.mxu0 %v599
    %784 = vmatprep.subr.mxu0 0.0
    %785 = vmatpush1.msra.mxu0 %v602
    %786 = vmatprep.subr.mxu0 0.0
    %787 = vmatpush1.msra.mxu0 %v605
    %788 = vmatprep.subr.mxu0 0.0
    %789 = vmatpush1.msra.mxu0 %v608
    %790 = vmatprep.subr.mxu0 0.0
    %791 = vmatpush1.msra.mxu0 %v611
    %792 = vmatprep.subr.mxu0 0.0
    %793 = vmatpush1.msra.mxu0 %v614
    %794 = vmatprep.subr.mxu0 0.0
    %795 = vmatpush1.msra.mxu0 %v617
    %796 = vmatprep.subr.mxu0 0.0
    %797 = vmatpush1.msra.mxu0 %v620
    %798 = vmatprep.subr.mxu0 0.0
    %799 = vmatpush1.msra.mxu0 %v623
    %800 = vmatprep.subr.mxu0 0.0
    %801 = vmatpush1.msra.mxu0 %v626
    %802 = vmatprep.subr.mxu0 0.0
    %803 = vmatpush1.msra.mxu0 0.0
    %804 = vmatprep.subr.mxu0 0.0
    %805 = vmatpush1.msra.mxu0 0.0
    %806 = vmatprep.subr.mxu0 0.0
    %807 = vmatpush1.msra.mxu0 0.0
    %808 = vmatprep.subr.mxu0 0.0
    %809 = vmatpush1.msra.mxu0 0.0
    %810 = vmatprep.subr.mxu0 0.0
    %811 = vmatpush1.msra.mxu0 0.0
    %812 = vmatprep.subr.mxu0 0.0
    %813 = vmatpush1.msra.mxu0 0.0
    %814 = vmatprep.subr.mxu0 0.0
    %815 = vmatpush1.msra.mxu0 0.0
    %816 = vmatprep.subr.mxu0 0.0
    %817 = vmatpush1.msra.mxu0 0.0
    %818 = vmatprep.subr.mxu0 0.0
    %819 = vmatpush1.msra.mxu0 0.0
    %820 = vmatprep.subr.mxu0 0.0
    %821 = vmatpush1.msra.mxu0 0.0
    %822 = vmatprep.subr.mxu0 0.0
    %823 = vmatpush1.msra.mxu0 0.0
    %824 = vmatprep.subr.mxu0 0.0
    %825 = vmatpush1.msra.mxu0 0.0
    %826 = vmatprep.subr.mxu0 0.0
    %827 = vmatpush1.msra.mxu0 0.0
    %828 = vmatprep.subr.mxu0 0.0
    %829 = vmatpush1.msra.mxu0 0.0
    %830 = vmatprep.subr.mxu0 0.0
    %831 = vmatpush1.msra.mxu0 0.0
    %832 = vmatprep.subr.mxu0 0.0
    %833 = vmatpush1.msra.mxu0 0.0
    %834 = vmatprep.mubr.f32.mxu0 0.0
    %835 = vmatmul.mubr.f32.gmra.mrb[0].mxu0 %v682
    %v836 = vpop.f32.mrb[0].mxu0
    %v837 = vadd.f32 %v695, %v836
    %v838 = vpop.f32.mrb[0].mxu0
    %839 = vdwg.mxu0
    %v840 = vadd.f32 %v679, %v766
    %v841 = vxor.u32 %v840, 2147483648
    %v842 = vmul.f32 %v841, 1.442695
    %v843 = vpow.pop %v842
    %v844 = vadd.f32 %v843, 1.0
    %v845 = vrcp.pop %v844
    %v846 = vmul.f32 1.0, %v845
    %v847 = vadd.f32 %v680, %v768
    %v848 = vxor.u32 %v847, 2147483648
    %v849 = vmul.f32 %v848, 1.442695
    %v850 = vpow.pop %v849
    %v851 = vadd.f32 %v850, 1.0
    %v852 = vrcp.pop %v851
    %v853 = vmul.f32 1.0, %v852
    %v854 = vmul.f32 %v846, %v837
    %v855 = vadd.f32 %v681, %v854
    %v856 = vtanh.pop %v855
    %v857 = vsub.f32 1.0, %v853
    %v858 = vmul.f32 %v857, %v856
    %v859 = vmul.f32 %v853, %v682
    %v860 = vadd.f32 %v858, %v859
    %vm861 = vcmp.gt.s32.totalorder %v77, 0
    %v862 = vsel %vm861, 1, 0
    %863 = vset.pattern.permute.xlu0 0
    %864 = vperm.xlu0 %863, %v862
    %v865 = vpop.permute.xlu0 %864
    %vm866 = vcmp.eq.s32.totalorder %v865, 1
    %v867 = vsel %vm866, %v860, %v682
    %868 = vst [vmem:[#allocation5] sm:$0xff] %v867
    %v869 = vsel %vm866, %v860, 0.0
    %870 = vst [vmem:[#allocation3] sm:$0xff] %v869
    %s871 = scalar_lea.vmem [#allocation2], 96
    %v872 = vld [vmem:[%s871 + $0x18] sm:$0xff]
    %v873 = vld [vmem:[%s871 + $0x20] sm:$0xff]
    %v874 = vld [vmem:[%s871 + $0x28] sm:$0xff]
    %v875 = vld [vmem:[#allocation6] sm:$0xff]
    %v877 = vlaneseq
    %v878 = vshrl.u32 %v877, 7
    %v879 = vsub.s32 0, %v878
    %v880 = vrot.slane %v676, %v879
    %v881 = vlaneseq
    %v882 = vshrl.u32 %v881, 7
    %v883 = vsub.s32 1, %v882
    %v884 = vrot.slane %v676, %v883
    %v885 = vlaneseq
    %v886 = vshrl.u32 %v885, 7
    %v887 = vsub.s32 2, %v886
    %v888 = vrot.slane %v676, %v887
    %892 = vmatprep.subr.mxu0 %v628
    %893 = vmatpush1.msra.mxu0 %v627
    %894 = vmatprep.subr.mxu0 %v631
    %895 = vmatpush1.msra.mxu0 %v630
    %896 = vmatprep.subr.mxu0 %v634
    %897 = vmatpush1.msra.mxu0 %v633
    %898 = vmatprep.subr.mxu0 %v637
    %899 = vmatpush1.msra.mxu0 %v636
    %900 = vmatprep.subr.mxu0 %v640
    %901 = vmatpush1.msra.mxu0 %v639
    %902 = vmatprep.subr.mxu0 %v643
    %903 = vmatpush1.msra.mxu0 %v642
    %904 = vmatprep.subr.mxu0 %v646
    %905 = vmatpush1.msra.mxu0 %v645
    %906 = vmatprep.subr.mxu0 %v649
    %907 = vmatpush1.msra.mxu0 %v648
    %908 = vmatprep.subr.mxu0 %v652
    %909 = vmatpush1.msra.mxu0 %v651
    %910 = vmatprep.subr.mxu0 %v655
    %911 = vmatpush1.msra.mxu0 %v654
    %912 = vmatprep.subr.mxu0 %v658
    %913 = vmatpush1.msra.mxu0 %v657
    %914 = vmatprep.subr.mxu0 %v661
    %915 = vmatpush1.msra.mxu0 %v660
    %916 = vmatprep.subr.mxu0 %v664
    %917 = vmatpush1.msra.mxu0 %v663
    %918 = vmatprep.subr.mxu0 %v667
    %919 = vmatpush1.msra.mxu0 %v666
    %920 = vmatprep.subr.mxu0 %v670
    %921 = vmatpush1.msra.mxu0 %v669
    %922 = vmatprep.subr.mxu0 %v673
    %923 = vmatpush1.msra.mxu0 %v672
    %924 = vmatprep.subr.mxu0 0.0
    %925 = vmatpush1.msra.mxu0 0.0
    %926 = vmatprep.subr.mxu0 0.0
    %927 = vmatpush1.msra.mxu0 0.0
    %928 = vmatprep.subr.mxu0 0.0
    %929 = vmatpush1.msra.mxu0 0.0
    %930 = vmatprep.subr.mxu0 0.0
    %931 = vmatpush1.msra.mxu0 0.0
    %932 = vmatprep.subr.mxu0 0.0
    %933 = vmatpush1.msra.mxu0 0.0
    %934 = vmatprep.subr.mxu0 0.0
    %935 = vmatpush1.msra.mxu0 0.0
    %936 = vmatprep.subr.mxu0 0.0
    %937 = vmatpush1.msra.mxu0 0.0
    %938 = vmatprep.subr.mxu0 0.0
    %939 = vmatpush1.msra.mxu0 0.0
    %940 = vmatprep.subr.mxu0 0.0
    %941 = vmatpush1.msra.mxu0 0.0
    %942 = vmatprep.subr.mxu0 0.0
    %943 = vmatpush1.msra.mxu0 0.0
    %944 = vmatprep.subr.mxu0 0.0
    %945 = vmatpush1.msra.mxu0 0.0
    %946 = vmatprep.subr.mxu0 0.0
    %947 = vmatpush1.msra.mxu0 0.0
    %948 = vmatprep.subr.mxu0 0.0
    %949 = vmatpush1.msra.mxu0 0.0
    %950 = vmatprep.subr.mxu0 0.0
    %951 = vmatpush1.msra.mxu0 0.0
    %952 = vmatprep.subr.mxu0 0.0
    %953 = vmatpush1.msra.mxu0 0.0
    %954 = vmatprep.subr.mxu0 0.0
    %955 = vmatpush1.msra.mxu0 0.0
    %956 = vmatprep.mubr.f32.mxu0 0.0
    %957 = vmatmul.mubr.f32.gmra.mrb[0].mxu0 %v875
    %v958 = vpop.f32.mrb[0].mxu0
    %v959 = vadd.f32 %v880, %v958
    %v960 = vpop.f32.mrb[0].mxu0
    %v961 = vadd.f32 %v884, %v960
    %962 = vdwg.mxu0
    %963 = vmatprep.subr.mxu0 0.0
    %964 = vmatpush1.msra.mxu0 %v629
    %965 = vmatprep.subr.mxu0 0.0
    %966 = vmatpush1.msra.mxu0 %v632
    %967 = vmatprep.subr.mxu0 0.0
    %968 = vmatpush1.msra.mxu0 %v635
    %969 = vmatprep.subr.mxu0 0.0
    %970 = vmatpush1.msra.mxu0 %v638
    %971 = vmatprep.subr.mxu0 0.0
    %972 = vmatpush1.msra.mxu0 %v641
    %973 = vmatprep.subr.mxu0 0.0
    %974 = vmatpush1.msra.mxu0 %v644
    %975 = vmatprep.subr.mxu0 0.0
    %976 = vmatpush1.msra.mxu0 %v647
    %977 = vmatprep.subr.mxu0 0.0
    %978 = vmatpush1.msra.mxu0 %v650
    %979 = vmatprep.subr.mxu0 0.0
    %980 = vmatpush1.msra.mxu0 %v653
    %981 = vmatprep.subr.mxu0 0.0
    %982 = vmatpush1.msra.mxu0 %v656
    %983 = vmatprep.subr.mxu0 0.0
    %984 = vmatpush1.msra.mxu0 %v659
    %985 = vmatprep.subr.mxu0 0.0
    %986 = vmatpush1.msra.mxu0 %v662
    %987 = vmatprep.subr.mxu0 0.0
    %988 = vmatpush1.msra.mxu0 %v665
    %989 = vmatprep.subr.mxu0 0.0
    %990 = vmatpush1.msra.mxu0 %v668
    %991 = vmatprep.subr.mxu0 0.0
    %992 = vmatpush1.msra.mxu0 %v671
    %993 = vmatprep.subr.mxu0 0.0
    %994 = vmatpush1.msra.mxu0 %v674
    %995 = vmatprep.subr.mxu0 0.0
    %996 = vmatpush1.msra.mxu0 0.0
    %997 = vmatprep.subr.mxu0 0.0
    %998 = vmatpush1.msra.mxu0 0.0
    %999 = vmatprep.subr.mxu0 0.0
    %1000 = vmatpush1.msra.mxu0 0.0
    %1001 = vmatprep.subr.mxu0 0.0
    %1002 = vmatpush1.msra.mxu0 0.0
    %1003 = vmatprep.subr.mxu0 0.0
    %1004 = vmatpush1.msra.mxu0 0.0
    %1005 = vmatprep.subr.mxu0 0.0
    %1006 = vmatpush1.msra.mxu0 0.0
    %1007 = vmatprep.subr.mxu0 0.0
    %1008 = vmatpush1.msra.mxu0 0.0
    %1009 = vmatprep.subr.mxu0 0.0
    %1010 = vmatpush1.msra.mxu0 0.0
    %1011 = vmatprep.subr.mxu0 0.0
    %1012 = vmatpush1.msra.mxu0 0.0
    %1013 = vmatprep.subr.mxu0 0.0
    %1014 = vmatpush1.msra.mxu0 0.0
    %1015 = vmatprep.subr.mxu0 0.0
    %1016 = vmatpush1.msra.mxu0 0.0
    %1017 = vmatprep.subr.mxu0 0.0
    %1018 = vmatpush1.msra.mxu0 0.0
    %1019 = vmatprep.subr.mxu0 0.0
    %1020 = vmatpush1.msra.mxu0 0.0
    %1021 = vmatprep.subr.mxu0 0.0
    %1022 = vmatpush1.msra.mxu0 0.0
    %1023 = vmatprep.subr.mxu0 0.0
    %1024 = vmatpush1.msra.mxu0 0.0
    %1025 = vmatprep.subr.mxu0 0.0
    %1026 = vmatpush1.msra.mxu0 0.0
    %1027 = vmatprep.mubr.f32.mxu0 0.0
    %1028 = vmatmul.mubr.f32.gmra.mrb[0].mxu0 %v875
    %v1029 = vpop.f32.mrb[0].mxu0
    %v1030 = vadd.f32 %v888, %v1029
    %v1031 = vpop.f32.mrb[0].mxu0
    %1032 = vdwg.mxu0
    %v1033 = vadd.f32 %v872, %v959
    %v1034 = vxor.u32 %v1033, 2147483648
    %v1035 = vmul.f32 %v1034, 1.442695
    %v1036 = vpow.pop %v1035
    %v1037 = vadd.f32 %v1036, 1.0
    %v1038 = vrcp.pop %v1037
    %v1039 = vmul.f32 1.0, %v1038
    %v1040 = vadd.f32 %v873, %v961
    %v1041 = vxor.u32 %v1040, 2147483648
    %v1042 = vmul.f32 %v1041, 1.442695
    %v1043 = vpow.pop %v1042
    %v1044 = vadd.f32 %v1043, 1.0
    %v1045 = vrcp.pop %v1044
    %v1046 = vmul.f32 1.0, %v1045
    %v1047 = vmul.f32 %v1039, %v1030
    %v1048 = vadd.f32 %v874, %v1047
    %v1049 = vtanh.pop %v1048
    %v1050 = vsub.f32 1.0, %v1046
    %v1051 = vmul.f32 %v1050, %v1049
    %v1052 = vmul.f32 %v1046, %v875
    %v1053 = vadd.f32 %v1051, %v1052
    %vm1054 = vcmp.gt.s32.totalorder %v77, 2
    %v1055 = vsel %vm1054, 1, 0
    %1056 = vset.pattern.permute.xlu0 0
    %1057 = vperm.xlu0 %1056, %v1055
    %v1058 = vpop.permute.xlu0 %1057
    %vm1059 = vcmp.eq.s32.totalorder %v1058, 1
    %v1060 = vsel %vm1059, %v1053, %v875
    %1061 = vst [vmem:[#allocation6] sm:$0xff] %v1060
    %v1062 = vsel %vm1059, %v1053, 0.0
    %s1063 = scalar_lea.vmem [#allocation4], 16
    %1064 = vst [vmem:[%s1063] sm:$0xff] %v1062
    %s1065 = scalar_lea.vmem [#allocation2], 48
    %v1066 = vld [vmem:[%s1065] sm:$0xff]
    %v1067 = vld [vmem:[%s1065 + $0x8] sm:$0xff]
    %v1068 = vld [vmem:[%s1065 + $0x10] sm:$0xff]
    %v1069 = vld [vmem:[#allocation5] sm:$0xff]
    %1070 = vmatprep.subr.mxu0 %v580
    %1071 = vmatpush1.msra.mxu0 %v579
    %1072 = vmatprep.subr.mxu0 %v583
    %1073 = vmatpush1.msra.mxu0 %v582
    %1074 = vmatprep.subr.mxu0 %v586
    %1075 = vmatpush1.msra.mxu0 %v585
    %1076 = vmatprep.subr.mxu0 %v589
    %1077 = vmatpush1.msra.mxu0 %v588
    %1078 = vmatprep.subr.mxu0 %v592
    %1079 = vmatpush1.msra.mxu0 %v591
    %1080 = vmatprep.subr.mxu0 %v595
    %1081 = vmatpush1.msra.mxu0 %v594
    %1082 = vmatprep.subr.mxu0 %v598
    %1083 = vmatpush1.msra.mxu0 %v597
    %1084 = vmatprep.subr.mxu0 %v601
    %1085 = vmatpush1.msra.mxu0 %v600
    %1086 = vmatprep.subr.mxu0 %v604
    %1087 = vmatpush1.msra.mxu0 %v603
    %1088 = vmatprep.subr.mxu0 %v607
    %1089 = vmatpush1.msra.mxu0 %v606
    %1090 = vmatprep.subr.mxu0 %v610
    %1091 = vmatpush1.msra.mxu0 %v609
    %1092 = vmatprep.subr.mxu0 %v613
    %1093 = vmatpush1.msra.mxu0 %v612
    %1094 = vmatprep.subr.mxu0 %v616
    %1095 = vmatpush1.msra.mxu0 %v615
    %1096 = vmatprep.subr.mxu0 %v619
    %1097 = vmatpush1.msra.mxu0 %v618
    %1098 = vmatprep.subr.mxu0 %v622
    %1099 = vmatpush1.msra.mxu0 %v621
    %1100 = vmatprep.subr.mxu0 %v625
    %1101 = vmatpush1.msra.mxu0 %v624
    %1102 = vmatprep.subr.mxu0 0.0
    %1103 = vmatpush1.msra.mxu0 0.0
    %1104 = vmatprep.subr.mxu0 0.0
    %1105 = vmatpush1.msra.mxu0 0.0
    %1106 = vmatprep.subr.mxu0 0.0
    %1107 = vmatpush1.msra.mxu0 0.0
    %1108 = vmatprep.subr.mxu0 0.0
    %1109 = vmatpush1.msra.mxu0 0.0
    %1110 = vmatprep.subr.mxu0 0.0
    %1111 = vmatpush1.msra.mxu0 0.0
    %1112 = vmatprep.subr.mxu0 0.0
    %1113 = vmatpush1.msra.mxu0 0.0
    %1114 = vmatprep.subr.mxu0 0.0
    %1115 = vmatpush1.msra.mxu0 0.0
    %1116 = vmatprep.subr.mxu0 0.0
    %1117 = vmatpush1.msra.mxu0 0.0
    %1118 = vmatprep.subr.mxu0 0.0
    %1119 = vmatpush1.msra.mxu0 0.0
    %1120 = vmatprep.subr.mxu0 0.0
    %1121 = vmatpush1.msra.mxu0 0.0
    %1122 = vmatprep.subr.mxu0 0.0
    %1123 = vmatpush1.msra.mxu0 0.0
    %1124 = vmatprep.subr.mxu0 0.0
    %1125 = vmatpush1.msra.mxu0 0.0
    %1126 = vmatprep.subr.mxu0 0.0
    %1127 = vmatpush1.msra.mxu0 0.0
    %1128 = vmatprep.subr.mxu0 0.0
    %1129 = vmatpush1.msra.mxu0 0.0
    %1130 = vmatprep.subr.mxu0 0.0
    %1131 = vmatpush1.msra.mxu0 0.0
    %1132 = vmatprep.subr.mxu0 0.0
    %1133 = vmatpush1.msra.mxu0 0.0
    %1134 = vmatprep.mubr.f32.mxu0 0.0
    %1135 = vmatmul.mubr.f32.gmra.mrb[0].mxu0 %v1069
    %v1136 = vpop.f32.mrb[0].mxu0
    %v1137 = vadd.f32 %v687, %v1136
    %v1138 = vpop.f32.mrb[0].mxu0
    %v1139 = vadd.f32 %v691, %v1138
    %1140 = vdwg.mxu0
    %1141 = vmatprep.subr.mxu0 0.0
    %1142 = vmatpush1.msra.mxu0 %v581
    %1143 = vmatprep.subr.mxu0 0.0
    %1144 = vmatpush1.msra.mxu0 %v584
    %1145 = vmatprep.subr.mxu0 0.0
    %1146 = vmatpush1.msra.mxu0 %v587
    %1147 = vmatprep.subr.mxu0 0.0
    %1148 = vmatpush1.msra.mxu0 %v590
    %1149 = vmatprep.subr.mxu0 0.0
    %1150 = vmatpush1.msra.mxu0 %v593
    %1151 = vmatprep.subr.mxu0 0.0
    %1152 = vmatpush1.msra.mxu0 %v596
    %1153 = vmatprep.subr.mxu0 0.0
    %1154 = vmatpush1.msra.mxu0 %v599
    %1155 = vmatprep.subr.mxu0 0.0
    %1156 = vmatpush1.msra.mxu0 %v602
    %1157 = vmatprep.subr.mxu0 0.0
    %1158 = vmatpush1.msra.mxu0 %v605
    %1159 = vmatprep.subr.mxu0 0.0
    %1160 = vmatpush1.msra.mxu0 %v608
    %1161 = vmatprep.subr.mxu0 0.0
    %1162 = vmatpush1.msra.mxu0 %v611
    %1163 = vmatprep.subr.mxu0 0.0
    %1164 = vmatpush1.msra.mxu0 %v614
    %1165 = vmatprep.subr.mxu0 0.0
    %1166 = vmatpush1.msra.mxu0 %v617
    %1167 = vmatprep.subr.mxu0 0.0
    %1168 = vmatpush1.msra.mxu0 %v620
    %1169 = vmatprep.subr.mxu0 0.0
    %1170 = vmatpush1.msra.mxu0 %v623
    %1171 = vmatprep.subr.mxu0 0.0
    %1172 = vmatpush1.msra.mxu0 %v626
    %1173 = vmatprep.subr.mxu0 0.0
    %1174 = vmatpush1.msra.mxu0 0.0
    %1175 = vmatprep.subr.mxu0 0.0
    %1176 = vmatpush1.msra.mxu0 0.0
    %1177 = vmatprep.subr.mxu0 0.0
    %1178 = vmatpush1.msra.mxu0 0.0
    %1179 = vmatprep.subr.mxu0 0.0
    %1180 = vmatpush1.msra.mxu0 0.0
    %1181 = vmatprep.subr.mxu0 0.0
    %1182 = vmatpush1.msra.mxu0 0.0
    %1183 = vmatprep.subr.mxu0 0.0
    %1184 = vmatpush1.msra.mxu0 0.0
    %1185 = vmatprep.subr.mxu0 0.0
    %1186 = vmatpush1.msra.mxu0 0.0
    %1187 = vmatprep.subr.mxu0 0.0
    %1188 = vmatpush1.msra.mxu0 0.0
    %1189 = vmatprep.subr.mxu0 0.0
    %1190 = vmatpush1.msra.mxu0 0.0
    %1191 = vmatprep.subr.mxu0 0.0
    %1192 = vmatpush1.msra.mxu0 0.0
    %1193 = vmatprep.subr.mxu0 0.0
    %1194 = vmatpush1.msra.mxu0 0.0
    %1195 = vmatprep.subr.mxu0 0.0
    %1196 = vmatpush1.msra.mxu0 0.0
    %1197 = vmatprep.subr.mxu0 0.0
    %1198 = vmatpush1.msra.mxu0 0.0
    %1199 = vmatprep.subr.mxu0 0.0
    %1200 = vmatpush1.msra.mxu0 0.0
    %1201 = vmatprep.subr.mxu0 0.0
    %1202 = vmatpush1.msra.mxu0 0.0
    %1203 = vmatprep.subr.mxu0 0.0
    %1204 = vmatpush1.msra.mxu0 0.0
    %1205 = vmatprep.mubr.f32.mxu0 0.0
    %1206 = vmatmul.mubr.f32.gmra.mrb[0].mxu0 %v1069
    %v1207 = vpop.f32.mrb[0].mxu0
    %v1208 = vadd.f32 %v695, %v1207
    %v1209 = vpop.f32.mrb[0].mxu0
    %1210 = vdwg.mxu0
    %v1211 = vadd.f32 %v1066, %v1137
    %v1212 = vxor.u32 %v1211, 2147483648
    %v1213 = vmul.f32 %v1212, 1.442695
    %v1214 = vpow.pop %v1213
    %v1215 = vadd.f32 %v1214, 1.0
    %v1216 = vrcp.pop %v1215
    %v1217 = vmul.f32 1.0, %v1216
    %v1218 = vadd.f32 %v1067, %v1139
    %v1219 = vxor.u32 %v1218, 2147483648
    %v1220 = vmul.f32 %v1219, 1.442695
    %v1221 = vpow.pop %v1220
    %v1222 = vadd.f32 %v1221, 1.0
    %v1223 = vrcp.pop %v1222
    %v1224 = vmul.f32 1.0, %v1223
    %v1225 = vmul.f32 %v1217, %v1208
    %v1226 = vadd.f32 %v1068, %v1225
    %v1227 = vtanh.pop %v1226
    %v1228 = vsub.f32 1.0, %v1224
    %v1229 = vmul.f32 %v1228, %v1227
    %v1230 = vmul.f32 %v1224, %v1069
    %v1231 = vadd.f32 %v1229, %v1230
    %vm1232 = vcmp.gt.s32.totalorder %v77, 1
    %v1233 = vsel %vm1232, 1, 0
    %1234 = vset.pattern.permute.xlu0 0
    %1235 = vperm.xlu0 %1234, %v1233
    %v1236 = vpop.permute.xlu0 %1235
    %vm1237 = vcmp.eq.s32.totalorder %v1236, 1
    %v1238 = vsel %vm1237, %v1231, %v1069
    %1239 = vst [vmem:[#allocation5] sm:$0xff] %v1238
    %v1240 = vsel %vm1237, %v1231, 0.0
    %s1241 = scalar_lea.vmem [#allocation3], 8
    %1242 = vst [vmem:[%s1241] sm:$0xff] %v1240
    %v1243 = vld [vmem:[%s1065 + $0x18] sm:$0xff]
    %v1244 = vld [vmem:[%s1065 + $0x20] sm:$0xff]
    %v1245 = vld [vmem:[%s1065 + $0x28] sm:$0xff]
    %v1246 = vld [vmem:[#allocation6] sm:$0xff]
    %1247 = vmatprep.subr.mxu0 %v628
    %1248 = vmatpush1.msra.mxu0 %v627
    %1249 = vmatprep.subr.mxu0 %v631
    %1250 = vmatpush1.msra.mxu0 %v630
    %1251 = vmatprep.subr.mxu0 %v634
    %1252 = vmatpush1.msra.mxu0 %v633
    %1253 = vmatprep.subr.mxu0 %v637
    %1254 = vmatpush1.msra.mxu0 %v636
    %1255 = vmatprep.subr.mxu0 %v640
    %1256 = vmatpush1.msra.mxu0 %v639
    %1257 = vmatprep.subr.mxu0 %v643
    %1258 = vmatpush1.msra.mxu0 %v642
    %1259 = vmatprep.subr.mxu0 %v646
    %1260 = vmatpush1.msra.mxu0 %v645
    %1261 = vmatprep.subr.mxu0 %v649
    %1262 = vmatpush1.msra.mxu0 %v648
    %1263 = vmatprep.subr.mxu0 %v652
    %1264 = vmatpush1.msra.mxu0 %v651
    %1265 = vmatprep.subr.mxu0 %v655
    %1266 = vmatpush1.msra.mxu0 %v654
    %1267 = vmatprep.subr.mxu0 %v658
    %1268 = vmatpush1.msra.mxu0 %v657
    %1269 = vmatprep.subr.mxu0 %v661
    %1270 = vmatpush1.msra.mxu0 %v660
    %1271 = vmatprep.subr.mxu0 %v664
    %1272 = vmatpush1.msra.mxu0 %v663
    %1273 = vmatprep.subr.mxu0 %v667
    %1274 = vmatpush1.msra.mxu0 %v666
    %1275 = vmatprep.subr.mxu0 %v670
    %1276 = vmatpush1.msra.mxu0 %v669
    %1277 = vmatprep.subr.mxu0 %v673
    %1278 = vmatpush1.msra.mxu0 %v672
    %1279 = vmatprep.subr.mxu0 0.0
    %1280 = vmatpush1.msra.mxu0 0.0
    %1281 = vmatprep.subr.mxu0 0.0
    %1282 = vmatpush1.msra.mxu0 0.0
    %1283 = vmatprep.subr.mxu0 0.0
    %1284 = vmatpush1.msra.mxu0 0.0
    %1285 = vmatprep.subr.mxu0 0.0
    %1286 = vmatpush1.msra.mxu0 0.0
    %1287 = vmatprep.subr.mxu0 0.0
    %1288 = vmatpush1.msra.mxu0 0.0
    %1289 = vmatprep.subr.mxu0 0.0
    %1290 = vmatpush1.msra.mxu0 0.0
    %1291 = vmatprep.subr.mxu0 0.0
    %1292 = vmatpush1.msra.mxu0 0.0
    %1293 = vmatprep.subr.mxu0 0.0
    %1294 = vmatpush1.msra.mxu0 0.0
    %1295 = vmatprep.subr.mxu0 0.0
    %1296 = vmatpush1.msra.mxu0 0.0
    %1297 = vmatprep.subr.mxu0 0.0
    %1298 = vmatpush1.msra.mxu0 0.0
    %1299 = vmatprep.subr.mxu0 0.0
    %1300 = vmatpush1.msra.mxu0 0.0
    %1301 = vmatprep.subr.mxu0 0.0
    %1302 = vmatpush1.msra.mxu0 0.0
    %1303 = vmatprep.subr.mxu0 0.0
    %1304 = vmatpush1.msra.mxu0 0.0
    %1305 = vmatprep.subr.mxu0 0.0
    %1306 = vmatpush1.msra.mxu0 0.0
    %1307 = vmatprep.subr.mxu0 0.0
    %1308 = vmatpush1.msra.mxu0 0.0
    %1309 = vmatprep.subr.mxu0 0.0
    %1310 = vmatpush1.msra.mxu0 0.0
    %1311 = vmatprep.mubr.f32.mxu0 0.0
    %1312 = vmatmul.mubr.f32.gmra.mrb[0].mxu0 %v1246
    %v1313 = vpop.f32.mrb[0].mxu0
    %v1314 = vadd.f32 %v880, %v1313
    %v1315 = vpop.f32.mrb[0].mxu0
    %v1316 = vadd.f32 %v884, %v1315
    %1317 = vdwg.mxu0
    %1318 = vmatprep.subr.mxu0 0.0
    %1319 = vmatpush1.msra.mxu0 %v629
    %1320 = vmatprep.subr.mxu0 0.0
    %1321 = vmatpush1.msra.mxu0 %v632
    %1322 = vmatprep.subr.mxu0 0.0
    %1323 = vmatpush1.msra.mxu0 %v635
    %1324 = vmatprep.subr.mxu0 0.0
    %1325 = vmatpush1.msra.mxu0 %v638
    %1326 = vmatprep.subr.mxu0 0.0
    %1327 = vmatpush1.msra.mxu0 %v641
    %1328 = vmatprep.subr.mxu0 0.0
    %1329 = vmatpush1.msra.mxu0 %v644
    %1330 = vmatprep.subr.mxu0 0.0
    %1331 = vmatpush1.msra.mxu0 %v647
    %1332 = vmatprep.subr.mxu0 0.0
    %1333 = vmatpush1.msra.mxu0 %v650
    %1334 = vmatprep.subr.mxu0 0.0
    %1335 = vmatpush1.msra.mxu0 %v653
    %1336 = vmatprep.subr.mxu0 0.0
    %1337 = vmatpush1.msra.mxu0 %v656
    %1338 = vmatprep.subr.mxu0 0.0
    %1339 = vmatpush1.msra.mxu0 %v659
    %1340 = vmatprep.subr.mxu0 0.0
    %1341 = vmatpush1.msra.mxu0 %v662
    %1342 = vmatprep.subr.mxu0 0.0
    %1343 = vmatpush1.msra.mxu0 %v665
    %1344 = vmatprep.subr.mxu0 0.0
    %1345 = vmatpush1.msra.mxu0 %v668
    %1346 = vmatprep.subr.mxu0 0.0
    %1347 = vmatpush1.msra.mxu0 %v671
    %1348 = vmatprep.subr.mxu0 0.0
    %1349 = vmatpush1.msra.mxu0 %v674
    %1350 = vmatprep.subr.mxu0 0.0
    %1351 = vmatpush1.msra.mxu0 0.0
    %1352 = vmatprep.subr.mxu0 0.0
    %1353 = vmatpush1.msra.mxu0 0.0
    %1354 = vmatprep.subr.mxu0 0.0
    %1355 = vmatpush1.msra.mxu0 0.0
    %1356 = vmatprep.subr.mxu0 0.0
    %1357 = vmatpush1.msra.mxu0 0.0
    %1358 = vmatprep.subr.mxu0 0.0
    %1359 = vmatpush1.msra.mxu0 0.0
    %1360 = vmatprep.subr.mxu0 0.0
    %1361 = vmatpush1.msra.mxu0 0.0
    %1362 = vmatprep.subr.mxu0 0.0
    %1363 = vmatpush1.msra.mxu0 0.0
    %1364 = vmatprep.subr.mxu0 0.0
    %1365 = vmatpush1.msra.mxu0 0.0
    %1366 = vmatprep.subr.mxu0 0.0
    %1367 = vmatpush1.msra.mxu0 0.0
    %1368 = vmatprep.subr.mxu0 0.0
    %1369 = vmatpush1.msra.mxu0 0.0
    %1370 = vmatprep.subr.mxu0 0.0
    %1371 = vmatpush1.msra.mxu0 0.0
    %1372 = vmatprep.subr.mxu0 0.0
    %1373 = vmatpush1.msra.mxu0 0.0
    %1374 = vmatprep.subr.mxu0 0.0
    %1375 = vmatpush1.msra.mxu0 0.0
    %1376 = vmatprep.subr.mxu0 0.0
    %1377 = vmatpush1.msra.mxu0 0.0
    %1378 = vmatprep.subr.mxu0 0.0
    %1379 = vmatpush1.msra.mxu0 0.0
    %1380 = vmatprep.subr.mxu0 0.0
    %1381 = vmatpush1.msra.mxu0 0.0
    %1382 = vmatprep.mubr.f32.mxu0 0.0
    %1383 = vmatmul.mubr.f32.gmra.mrb[0].mxu0 %v1246
    %v1384 = vpop.f32.mrb[0].mxu0
    %v1385 = vadd.f32 %v888, %v1384
    %v1386 = vpop.f32.mrb[0].mxu0
    %1387 = vdwg.mxu0
    %v1388 = vadd.f32 %v1243, %v1314
    %v1389 = vxor.u32 %v1388, 2147483648
    %v1390 = vmul.f32 %v1389, 1.442695
    %v1391 = vpow.pop %v1390
    %v1392 = vadd.f32 %v1391, 1.0
    %v1393 = vrcp.pop %v1392
    %v1394 = vmul.f32 1.0, %v1393
    %v1395 = vadd.f32 %v1244, %v1316
    %v1396 = vxor.u32 %v1395, 2147483648
    %v1397 = vmul.f32 %v1396, 1.442695
    %v1398 = vpow.pop %v1397
    %v1399 = vadd.f32 %v1398, 1.0
    %v1400 = vrcp.pop %v1399
    %v1401 = vmul.f32 1.0, %v1400
    %v1402 = vmul.f32 %v1394, %v1385
    %v1403 = vadd.f32 %v1245, %v1402
    %v1404 = vtanh.pop %v1403
    %v1405 = vsub.f32 1.0, %v1401
    %v1406 = vmul.f32 %v1405, %v1404
    %v1407 = vmul.f32 %v1401, %v1246
    %v1408 = vadd.f32 %v1406, %v1407
    %v1409 = vsel %vm1237, %v1408, %v1246
    %1410 = vst [vmem:[#allocation6] sm:$0xff] %v1409
    %v1411 = vsel %vm1237, %v1408, 0.0
    %s1412 = scalar_lea.vmem [#allocation4], 8
    %1413 = vst [vmem:[%s1412] sm:$0xff] %v1411
    %v1414 = vld [vmem:[%s871] sm:$0xff]
    %v1415 = vld [vmem:[%s871 + $0x8] sm:$0xff]
    %v1416 = vld [vmem:[%s871 + $0x10] sm:$0xff]
    %v1417 = vld [vmem:[#allocation5] sm:$0xff]
    %1418 = vmatprep.subr.mxu0 %v580
    %1419 = vmatpush1.msra.mxu0 %v579
    %1420 = vmatprep.subr.mxu0 %v583
    %1421 = vmatpush1.msra.mxu0 %v582
    %1422 = vmatprep.subr.mxu0 %v586
    %1423 = vmatpush1.msra.mxu0 %v585
    %1424 = vmatprep.subr.mxu0 %v589
    %1425 = vmatpush1.msra.mxu0 %v588
    %1426 = vmatprep.subr.mxu0 %v592
    %1427 = vmatpush1.msra.mxu0 %v591
    %1428 = vmatprep.subr.mxu0 %v595
    %1429 = vmatpush1.msra.mxu0 %v594
    %1430 = vmatprep.subr.mxu0 %v598
    %1431 = vmatpush1.msra.mxu0 %v597
    %1432 = vmatprep.subr.mxu0 %v601
    %1433 = vmatpush1.msra.mxu0 %v600
    %1434 = vmatprep.subr.mxu0 %v604
    %1435 = vmatpush1.msra.mxu0 %v603
    %1436 = vmatprep.subr.mxu0 %v607
    %1437 = vmatpush1.msra.mxu0 %v606
    %1438 = vmatprep.subr.mxu0 %v610
    %1439 = vmatpush1.msra.mxu0 %v609
    %1440 = vmatprep.subr.mxu0 %v613
    %1441 = vmatpush1.msra.mxu0 %v612
    %1442 = vmatprep.subr.mxu0 %v616
    %1443 = vmatpush1.msra.mxu0 %v615
    %1444 = vmatprep.subr.mxu0 %v619
    %1445 = vmatpush1.msra.mxu0 %v618
    %1446 = vmatprep.subr.mxu0 %v622
    %1447 = vmatpush1.msra.mxu0 %v621
    %1448 = vmatprep.subr.mxu0 %v625
    %1449 = vmatpush1.msra.mxu0 %v624
    %1450 = vmatprep.subr.mxu0 0.0
    %1451 = vmatpush1.msra.mxu0 0.0
    %1452 = vmatprep.subr.mxu0 0.0
    %1453 = vmatpush1.msra.mxu0 0.0
    %1454 = vmatprep.subr.mxu0 0.0
    %1455 = vmatpush1.msra.mxu0 0.0
    %1456 = vmatprep.subr.mxu0 0.0
    %1457 = vmatpush1.msra.mxu0 0.0
    %1458 = vmatprep.subr.mxu0 0.0
    %1459 = vmatpush1.msra.mxu0 0.0
    %1460 = vmatprep.subr.mxu0 0.0
    %1461 = vmatpush1.msra.mxu0 0.0
    %1462 = vmatprep.subr.mxu0 0.0
    %1463 = vmatpush1.msra.mxu0 0.0
    %1464 = vmatprep.subr.mxu0 0.0
    %1465 = vmatpush1.msra.mxu0 0.0
    %1466 = vmatprep.subr.mxu0 0.0
    %1467 = vmatpush1.msra.mxu0 0.0
    %1468 = vmatprep.subr.mxu0 0.0
    %1469 = vmatpush1.msra.mxu0 0.0
    %1470 = vmatprep.subr.mxu0 0.0
    %1471 = vmatpush1.msra.mxu0 0.0
    %1472 = vmatprep.subr.mxu0 0.0
    %1473 = vmatpush1.msra.mxu0 0.0
    %1474 = vmatprep.subr.mxu0 0.0
    %1475 = vmatpush1.msra.mxu0 0.0
    %1476 = vmatprep.subr.mxu0 0.0
    %1477 = vmatpush1.msra.mxu0 0.0
    %1478 = vmatprep.subr.mxu0 0.0
    %1479 = vmatpush1.msra.mxu0 0.0
    %1480 = vmatprep.subr.mxu0 0.0
    %1481 = vmatpush1.msra.mxu0 0.0
    %1482 = vmatprep.mubr.f32.mxu0 0.0
    %1483 = vmatmul.mubr.f32.gmra.mrb[0].mxu0 %v1417
    %v1484 = vpop.f32.mrb[0].mxu0
    %v1485 = vadd.f32 %v687, %v1484
    %v1486 = vpop.f32.mrb[0].mxu0
    %v1487 = vadd.f32 %v691, %v1486
    %1488 = vdwg.mxu0
    %1489 = vmatprep.subr.mxu0 0.0
    %1490 = vmatpush1.msra.mxu0 %v581
    %1491 = vmatprep.subr.mxu0 0.0
    %1492 = vmatpush1.msra.mxu0 %v584
    %1493 = vmatprep.subr.mxu0 0.0
    %1494 = vmatpush1.msra.mxu0 %v587
    %1495 = vmatprep.subr.mxu0 0.0
    %1496 = vmatpush1.msra.mxu0 %v590
    %1497 = vmatprep.subr.mxu0 0.0
    %1498 = vmatpush1.msra.mxu0 %v593
    %1499 = vmatprep.subr.mxu0 0.0
    %1500 = vmatpush1.msra.mxu0 %v596
    %1501 = vmatprep.subr.mxu0 0.0
    %1502 = vmatpush1.msra.mxu0 %v599
    %1503 = vmatprep.subr.mxu0 0.0
    %1504 = vmatpush1.msra.mxu0 %v602
    %1505 = vmatprep.subr.mxu0 0.0
    %1506 = vmatpush1.msra.mxu0 %v605
    %1507 = vmatprep.subr.mxu0 0.0
    %1508 = vmatpush1.msra.mxu0 %v608
    %1509 = vmatprep.subr.mxu0 0.0
    %1510 = vmatpush1.msra.mxu0 %v611
    %1511 = vmatprep.subr.mxu0 0.0
    %1512 = vmatpush1.msra.mxu0 %v614
    %1513 = vmatprep.subr.mxu0 0.0
    %1514 = vmatpush1.msra.mxu0 %v617
    %1515 = vmatprep.subr.mxu0 0.0
    %1516 = vmatpush1.msra.mxu0 %v620
    %1517 = vmatprep.subr.mxu0 0.0
    %1518 = vmatpush1.msra.mxu0 %v623
    %1519 = vmatprep.subr.mxu0 0.0
    %1520 = vmatpush1.msra.mxu0 %v626
    %1521 = vmatprep.subr.mxu0 0.0
    %1522 = vmatpush1.msra.mxu0 0.0
    %1523 = vmatprep.subr.mxu0 0.0
    %1524 = vmatpush1.msra.mxu0 0.0
    %1525 = vmatprep.subr.mxu0 0.0
    %1526 = vmatpush1.msra.mxu0 0.0
    %1527 = vmatprep.subr.mxu0 0.0
    %1528 = vmatpush1.msra.mxu0 0.0
    %1529 = vmatprep.subr.mxu0 0.0
    %1530 = vmatpush1.msra.mxu0 0.0
    %1531 = vmatprep.subr.mxu0 0.0
    %1532 = vmatpush1.msra.mxu0 0.0
    %1533 = vmatprep.subr.mxu0 0.0
    %1534 = vmatpush1.msra.mxu0 0.0
    %1535 = vmatprep.subr.mxu0 0.0
    %1536 = vmatpush1.msra.mxu0 0.0
    %1537 = vmatprep.subr.mxu0 0.0
    %1538 = vmatpush1.msra.mxu0 0.0
    %1539 = vmatprep.subr.mxu0 0.0
    %1540 = vmatpush1.msra.mxu0 0.0
    %1541 = vmatprep.subr.mxu0 0.0
    %1542 = vmatpush1.msra.mxu0 0.0
    %1543 = vmatprep.subr.mxu0 0.0
    %1544 = vmatpush1.msra.mxu0 0.0
    %1545 = vmatprep.subr.mxu0 0.0
    %1546 = vmatpush1.msra.mxu0 0.0
    %1547 = vmatprep.subr.mxu0 0.0
    %1548 = vmatpush1.msra.mxu0 0.0
    %1549 = vmatprep.subr.mxu0 0.0
    %1550 = vmatpush1.msra.mxu0 0.0
    %1551 = vmatprep.subr.mxu0 0.0
    %1552 = vmatpush1.msra.mxu0 0.0
    %1553 = vmatprep.mubr.f32.mxu0 0.0
    %1554 = vmatmul.mubr.f32.gmra.mrb[0].mxu0 %v1417
    %v1555 = vpop.f32.mrb[0].mxu0
    %v1556 = vadd.f32 %v695, %v1555
    %v1557 = vpop.f32.mrb[0].mxu0
    %1558 = vdwg.mxu0
    %v1559 = vadd.f32 %v1414, %v1485
    %v1560 = vxor.u32 %v1559, 2147483648
    %v1561 = vmul.f32 %v1560, 1.442695
    %v1562 = vpow.pop %v1561
    %v1563 = vadd.f32 %v1562, 1.0
    %v1564 = vrcp.pop %v1563
    %v1565 = vmul.f32 1.0, %v1564
    %v1566 = vadd.f32 %v1415, %v1487
    %v1567 = vxor.u32 %v1566, 2147483648
    %v1568 = vmul.f32 %v1567, 1.442695
    %v1569 = vpow.pop %v1568
    %v1570 = vadd.f32 %v1569, 1.0
    %v1571 = vrcp.pop %v1570
    %v1572 = vmul.f32 1.0, %v1571
    %v1573 = vmul.f32 %v1565, %v1556
    %v1574 = vadd.f32 %v1416, %v1573
    %v1575 = vtanh.pop %v1574
    %v1576 = vsub.f32 1.0, %v1572
    %v1577 = vmul.f32 %v1576, %v1575
    %v1578 = vmul.f32 %v1572, %v1417
    %v1579 = vadd.f32 %v1577, %v1578
    %v1580 = vsel %vm1059, %v1579, %v1417
    %1581 = vst [vmem:[#allocation5] sm:$0xff] %v1580
    %v1582 = vsel %vm1059, %v1579, 0.0
    %s1583 = scalar_lea.vmem [#allocation3], 16
    %1584 = vst [vmem:[%s1583] sm:$0xff] %v1582
    %v1585 = vld [vmem:[#allocation2 + $0x18] sm:$0xff]
    %v1586 = vld [vmem:[#allocation2 + $0x20] sm:$0xff]
    %v1587 = vld [vmem:[#allocation2 + $0x28] sm:$0xff]
    %v1588 = vld [vmem:[#allocation6] sm:$0xff]
    %1589 = vmatprep.subr.mxu0 %v628
    %1590 = vmatpush1.msra.mxu0 %v627
    %1591 = vmatprep.subr.mxu0 %v631
    %1592 = vmatpush1.msra.mxu0 %v630
    %1593 = vmatprep.subr.mxu0 %v634
    %1594 = vmatpush1.msra.mxu0 %v633
    %1595 = vmatprep.subr.mxu0 %v637
    %1596 = vmatpush1.msra.mxu0 %v636
    %1597 = vmatprep.subr.mxu0 %v640
    %1598 = vmatpush1.msra.mxu0 %v639
    %1599 = vmatprep.subr.mxu0 %v643
    %1600 = vmatpush1.msra.mxu0 %v642
    %1601 = vmatprep.subr.mxu0 %v646
    %1602 = vmatpush1.msra.mxu0 %v645
    %1603 = vmatprep.subr.mxu0 %v649
    %1604 = vmatpush1.msra.mxu0 %v648
    %1605 = vmatprep.subr.mxu0 %v652
    %1606 = vmatpush1.msra.mxu0 %v651
    %1607 = vmatprep.subr.mxu0 %v655
    %1608 = vmatpush1.msra.mxu0 %v654
    %1609 = vmatprep.subr.mxu0 %v658
    %1610 = vmatpush1.msra.mxu0 %v657
    %1611 = vmatprep.subr.mxu0 %v661
    %1612 = vmatpush1.msra.mxu0 %v660
    %1613 = vmatprep.subr.mxu0 %v664
    %1614 = vmatpush1.msra.mxu0 %v663
    %1615 = vmatprep.subr.mxu0 %v667
    %1616 = vmatpush1.msra.mxu0 %v666
    %1617 = vmatprep.subr.mxu0 %v670
    %1618 = vmatpush1.msra.mxu0 %v669
    %1619 = vmatprep.subr.mxu0 %v673
    %1620 = vmatpush1.msra.mxu0 %v672
    %1621 = vmatprep.subr.mxu0 0.0
    %1622 = vmatpush1.msra.mxu0 0.0
    %1623 = vmatprep.subr.mxu0 0.0
    %1624 = vmatpush1.msra.mxu0 0.0
    %1625 = vmatprep.subr.mxu0 0.0
    %1626 = vmatpush1.msra.mxu0 0.0
    %1627 = vmatprep.subr.mxu0 0.0
    %1628 = vmatpush1.msra.mxu0 0.0
    %1629 = vmatprep.subr.mxu0 0.0
    %1630 = vmatpush1.msra.mxu0 0.0
    %1631 = vmatprep.subr.mxu0 0.0
    %1632 = vmatpush1.msra.mxu0 0.0
    %1633 = vmatprep.subr.mxu0 0.0
    %1634 = vmatpush1.msra.mxu0 0.0
    %1635 = vmatprep.subr.mxu0 0.0
    %1636 = vmatpush1.msra.mxu0 0.0
    %1637 = vmatprep.subr.mxu0 0.0
    %1638 = vmatpush1.msra.mxu0 0.0
    %1639 = vmatprep.subr.mxu0 0.0
    %1640 = vmatpush1.msra.mxu0 0.0
    %1641 = vmatprep.subr.mxu0 0.0
    %1642 = vmatpush1.msra.mxu0 0.0
    %1643 = vmatprep.subr.mxu0 0.0
    %1644 = vmatpush1.msra.mxu0 0.0
    %1645 = vmatprep.subr.mxu0 0.0
    %1646 = vmatpush1.msra.mxu0 0.0
    %1647 = vmatprep.subr.mxu0 0.0
    %1648 = vmatpush1.msra.mxu0 0.0
    %1649 = vmatprep.subr.mxu0 0.0
    %1650 = vmatpush1.msra.mxu0 0.0
    %1651 = vmatprep.subr.mxu0 0.0
    %1652 = vmatpush1.msra.mxu0 0.0
    %1653 = vmatprep.mubr.f32.mxu0 0.0
    %1654 = vmatmul.mubr.f32.gmra.mrb[0].mxu0 %v1588
    %v1655 = vpop.f32.mrb[0].mxu0
    %v1656 = vadd.f32 %v880, %v1655
    %v1657 = vpop.f32.mrb[0].mxu0
    %v1658 = vadd.f32 %v884, %v1657
    %1659 = vdwg.mxu0
    %1660 = vmatprep.subr.mxu0 0.0
    %1661 = vmatpush1.msra.mxu0 %v629
    %1662 = vmatprep.subr.mxu0 0.0
    %1663 = vmatpush1.msra.mxu0 %v632
    %1664 = vmatprep.subr.mxu0 0.0
    %1665 = vmatpush1.msra.mxu0 %v635
    %1666 = vmatprep.subr.mxu0 0.0
    %1667 = vmatpush1.msra.mxu0 %v638
    %1668 = vmatprep.subr.mxu0 0.0
    %1669 = vmatpush1.msra.mxu0 %v641
    %1670 = vmatprep.subr.mxu0 0.0
    %1671 = vmatpush1.msra.mxu0 %v644
    %1672 = vmatprep.subr.mxu0 0.0
    %1673 = vmatpush1.msra.mxu0 %v647
    %1674 = vmatprep.subr.mxu0 0.0
    %1675 = vmatpush1.msra.mxu0 %v650
    %1676 = vmatprep.subr.mxu0 0.0
    %1677 = vmatpush1.msra.mxu0 %v653
    %1678 = vmatprep.subr.mxu0 0.0
    %1679 = vmatpush1.msra.mxu0 %v656
    %1680 = vmatprep.subr.mxu0 0.0
    %1681 = vmatpush1.msra.mxu0 %v659
    %1682 = vmatprep.subr.mxu0 0.0
    %1683 = vmatpush1.msra.mxu0 %v662
    %1684 = vmatprep.subr.mxu0 0.0
    %1685 = vmatpush1.msra.mxu0 %v665
    %1686 = vmatprep.subr.mxu0 0.0
    %1687 = vmatpush1.msra.mxu0 %v668
    %1688 = vmatprep.subr.mxu0 0.0
    %1689 = vmatpush1.msra.mxu0 %v671
    %1690 = vmatprep.subr.mxu0 0.0
    %1691 = vmatpush1.msra.mxu0 %v674
    %1692 = vmatprep.subr.mxu0 0.0
    %1693 = vmatpush1.msra.mxu0 0.0
    %1694 = vmatprep.subr.mxu0 0.0
    %1695 = vmatpush1.msra.mxu0 0.0
    %1696 = vmatprep.subr.mxu0 0.0
    %1697 = vmatpush1.msra.mxu0 0.0
    %1698 = vmatprep.subr.mxu0 0.0
    %1699 = vmatpush1.msra.mxu0 0.0
    %1700 = vmatprep.subr.mxu0 0.0
    %1701 = vmatpush1.msra.mxu0 0.0
    %1702 = vmatprep.subr.mxu0 0.0
    %1703 = vmatpush1.msra.mxu0 0.0
    %1704 = vmatprep.subr.mxu0 0.0
    %1705 = vmatpush1.msra.mxu0 0.0
    %1706 = vmatprep.subr.mxu0 0.0
    %1707 = vmatpush1.msra.mxu0 0.0
    %1708 = vmatprep.subr.mxu0 0.0
    %1709 = vmatpush1.msra.mxu0 0.0
    %1710 = vmatprep.subr.mxu0 0.0
    %1711 = vmatpush1.msra.mxu0 0.0
    %1712 = vmatprep.subr.mxu0 0.0
    %1713 = vmatpush1.msra.mxu0 0.0
    %1714 = vmatprep.subr.mxu0 0.0
    %1715 = vmatpush1.msra.mxu0 0.0
    %1716 = vmatprep.subr.mxu0 0.0
    %1717 = vmatpush1.msra.mxu0 0.0
    %1718 = vmatprep.subr.mxu0 0.0
    %1719 = vmatpush1.msra.mxu0 0.0
    %1720 = vmatprep.subr.mxu0 0.0
    %1721 = vmatpush1.msra.mxu0 0.0
    %1722 = vmatprep.subr.mxu0 0.0
    %1723 = vmatpush1.msra.mxu0 0.0
    %1724 = vmatprep.mubr.f32.mxu0 0.0
    %1725 = vmatmul.mubr.f32.gmra.mrb[0].mxu0 %v1588
    %v1726 = vpop.f32.mrb[0].mxu0
    %v1727 = vadd.f32 %v888, %v1726
    %v1728 = vpop.f32.mrb[0].mxu0
    %1729 = vdwg.mxu0
    %v1730 = vadd.f32 %v1585, %v1656
    %v1731 = vxor.u32 %v1730, 2147483648
    %v1732 = vmul.f32 %v1731, 1.442695
    %v1733 = vpow.pop %v1732
    %v1734 = vadd.f32 %v1733, 1.0
    %v1735 = vrcp.pop %v1734
    %v1736 = vmul.f32 1.0, %v1735
    %v1737 = vadd.f32 %v1586, %v1658
    %v1738 = vxor.u32 %v1737, 2147483648
    %v1739 = vmul.f32 %v1738, 1.442695
    %v1740 = vpow.pop %v1739
    %v1741 = vadd.f32 %v1740, 1.0
    %v1742 = vrcp.pop %v1741
    %v1743 = vmul.f32 1.0, %v1742
    %v1744 = vmul.f32 %v1736, %v1727
    %v1745 = vadd.f32 %v1587, %v1744
    %v1746 = vtanh.pop %v1745
    %v1747 = vsub.f32 1.0, %v1743
    %v1748 = vmul.f32 %v1747, %v1746
    %v1749 = vmul.f32 %v1743, %v1588
    %v1750 = vadd.f32 %v1748, %v1749
    %v1751 = vsel %vm866, %v1750, %v1588
    %1752 = vst [vmem:[#allocation6] sm:$0xff] %v1751
    %v1753 = vsel %vm866, %v1750, 0.0
    %1754 = vst [vmem:[#allocation4] sm:$0xff] %v1753
    %v1755 = vld [vmem:[#allocation3] sm:$0xff]
    %v1756 = vld [vmem:[#allocation3 + $0x8] sm:$0xff]
    %v1757 = vld [vmem:[#allocation3 + $0x10] sm:$0xff]
    %v1758 = vld [vmem:[#allocation4] sm:$0xff]
    %v1759 = vld [vmem:[#allocation4 + $0x8] sm:$0xff]
    %v1760 = vld [vmem:[#allocation4 + $0x10] sm:$0xff]
    %v1761 = vld [vmem:[#allocation7] sm:$0xff]
    %v1762 = vld [vmem:[#allocation7 + $0x8] sm:$0xff]
    %v1763 = vld [vmem:[#allocation7 + $0x10] sm:$0xff]
    %v1764 = vld [vmem:[#allocation7 + $0x18] sm:$0xff]
    %v1765 = vld [vmem:[#allocation7 + $0x20] sm:$0xff]
    %v1766 = vld [vmem:[#allocation7 + $0x28] sm:$0xff]
    %v1767 = vld [vmem:[#allocation7 + $0x30] sm:$0xff]
    %v1768 = vld [vmem:[#allocation7 + $0x38] sm:$0xff]
    %v1769 = vld [vmem:[#allocation7 + $0x40] sm:$0xff]
    %v1770 = vld [vmem:[#allocation7 + $0x48] sm:$0xff]
    %v1771 = vld [vmem:[#allocation7 + $0x50] sm:$0xff]
    %v1772 = vld [vmem:[#allocation7 + $0x58] sm:$0xff]
    %v1773 = vld [vmem:[#allocation7 + $0x60] sm:$0xff]
    %v1774 = vld [vmem:[#allocation7 + $0x68] sm:$0xff]
    %v1775 = vld [vmem:[#allocation7 + $0x70] sm:$0xff]
    %v1776 = vld [vmem:[#allocation7 + $0x78] sm:$0xff]
    %v1777 = vld [vmem:[#allocation7 + $0x80] sm:$0xff]
    %v1778 = vld [vmem:[#allocation7 + $0x88] sm:$0xff]
    %v1779 = vld [vmem:[#allocation7 + $0x90] sm:$0xff]
    %v1780 = vld [vmem:[#allocation7 + $0x98] sm:$0xff]
    %v1781 = vld [vmem:[#allocation7 + $0xa0] sm:$0xff]
    %v1782 = vld [vmem:[#allocation7 + $0xa8] sm:$0xff]
    %v1783 = vld [vmem:[#allocation7 + $0xb0] sm:$0xff]
    %v1784 = vld [vmem:[#allocation7 + $0xb8] sm:$0xff]
    %v1785 = vld [vmem:[#allocation7 + $0xc0] sm:$0xff]
    %v1786 = vld [vmem:[#allocation7 + $0xc8] sm:$0xff]
    %v1787 = vld [vmem:[#allocation7 + $0xd0] sm:$0xff]
    %v1788 = vld [vmem:[#allocation7 + $0xd8] sm:$0xff]
    %v1789 = vld [vmem:[#allocation7 + $0xe0] sm:$0xff]
    %v1790 = vld [vmem:[#allocation7 + $0xe8] sm:$0xff]
    %v1791 = vld [vmem:[#allocation7 + $0xf0] sm:$0xff]
    %v1792 = vld [vmem:[#allocation7 + $0xf8] sm:$0xff]
    %v1793 = vpack.c.bf16 %v1756, %v1755
    %v1794 = vpack.c.bf16 %v1757, %v1757
    %v1795 = vpack.c.bf16 %v1762, %v1761
    %v1796 = vpack.c.bf16 %v1764, %v1763
    %v1797 = vpack.c.bf16 %v1766, %v1765
    %v1798 = vpack.c.bf16 %v1768, %v1767
    %v1799 = vpack.c.bf16 %v1770, %v1769
    %v1800 = vpack.c.bf16 %v1772, %v1771
    %v1801 = vpack.c.bf16 %v1774, %v1773
    %v1802 = vpack.c.bf16 %v1776, %v1775
    %v1803 = vpack.c.bf16 %v1759, %v1758
    %v1804 = vpack.c.bf16 %v1760, %v1760
    %v1805 = vpack.c.bf16 %v1778, %v1777
    %v1806 = vpack.c.bf16 %v1780, %v1779
    %v1807 = vpack.c.bf16 %v1782, %v1781
    %v1808 = vpack.c.bf16 %v1784, %v1783
    %v1809 = vpack.c.bf16 %v1786, %v1785
    %v1810 = vpack.c.bf16 %v1788, %v1787
    %v1811 = vpack.c.bf16 %v1790, %v1789
    %v1812 = vpack.c.bf16 %v1792, %v1791
    %1813 = vmatprep.subr.bf16.mxu0 0
    %1814 = vmatpush1.bf16.msra.mxu0 %v1805
    %1815 = vmatprep.subr.bf16.mxu0 0
    %1816 = vmatpush1.bf16.msra.mxu0 %v1806
    %1817 = vmatprep.subr.bf16.mxu0 0
    %1818 = vmatpush1.bf16.msra.mxu0 %v1807
    %1819 = vmatprep.subr.bf16.mxu0 0
    %1820 = vmatpush1.bf16.msra.mxu0 %v1808
    %1821 = vmatprep.subr.bf16.mxu0 0
    %1822 = vmatpush1.bf16.msra.mxu0 %v1809
    %1823 = vmatprep.subr.bf16.mxu0 0
    %1824 = vmatpush1.bf16.msra.mxu0 %v1810
    %1825 = vmatprep.subr.bf16.mxu0 0
    %1826 = vmatpush1.bf16.msra.mxu0 %v1811
    %1827 = vmatprep.subr.bf16.mxu0 0
    %1828 = vmatpush1.bf16.msra.mxu0 %v1812
    %1829 = vmatprep.subr.bf16.mxu0 0
    %1830 = vmatpush1.bf16.msra.mxu0 0
    %1831 = vmatprep.subr.bf16.mxu0 0
    %1832 = vmatpush1.bf16.msra.mxu0 0
    %1833 = vmatprep.subr.bf16.mxu0 0
    %1834 = vmatpush1.bf16.msra.mxu0 0
    %1835 = vmatprep.subr.bf16.mxu0 0
    %1836 = vmatpush1.bf16.msra.mxu0 0
    %1837 = vmatprep.subr.bf16.mxu0 0
    %1838 = vmatpush1.bf16.msra.mxu0 0
    %1839 = vmatprep.subr.bf16.mxu0 0
    %1840 = vmatpush1.bf16.msra.mxu0 0
    %1841 = vmatprep.subr.bf16.mxu0 0
    %1842 = vmatpush1.bf16.msra.mxu0 0
    %1843 = vmatprep.subr.bf16.mxu0 0
    %1844 = vmatpush1.bf16.msra.mxu0 0
    %1845 = vmatprep.mubr.bf16.mxu0 0
    %1846 = vmatmul.mubr.bf16.gmra.mrb[0].mxu0 %v1803
    %v1847 = vpop.f32.mrb[0].mxu0
    %v1848 = vadd.f32 0.0, %v1847
    %v1849 = vpop.f32.mrb[0].mxu0
    %v1850 = vpop.f32.mrb[0].mxu0
    %v1851 = vadd.f32 0.0, %v1850
    %v1852 = vpop.f32.mrb[0].mxu0
    %1853 = vmatprep.mubr.bf16.mxu0 0
    %1854 = vmatmul.mubr.bf16.gmra.mrb[0].mxu0 %v1804
    %v1855 = vpop.f32.mrb[0].mxu0
    %v1856 = vadd.f32 0.0, %v1855
    %v1857 = vpop.f32.mrb[0].mxu0
    %v1858 = vpop.f32.mrb[0].mxu0
    %v1859 = vpop.f32.mrb[0].mxu0
    %1860 = vdwg.mxu0
    %1861 = vmatprep.subr.bf16.mxu0 0
    %1862 = vmatpush1.bf16.msra.mxu0 %v1795
    %1863 = vmatprep.subr.bf16.mxu0 0
    %1864 = vmatpush1.bf16.msra.mxu0 %v1796
    %1865 = vmatprep.subr.bf16.mxu0 0
    %1866 = vmatpush1.bf16.msra.mxu0 %v1797
    %1867 = vmatprep.subr.bf16.mxu0 0
    %1868 = vmatpush1.bf16.msra.mxu0 %v1798
    %1869 = vmatprep.subr.bf16.mxu0 0
    %1870 = vmatpush1.bf16.msra.mxu0 %v1799
    %1871 = vmatprep.subr.bf16.mxu0 0
    %1872 = vmatpush1.bf16.msra.mxu0 %v1800
    %1873 = vmatprep.subr.bf16.mxu0 0
    %1874 = vmatpush1.bf16.msra.mxu0 %v1801
    %1875 = vmatprep.subr.bf16.mxu0 0
    %1876 = vmatpush1.bf16.msra.mxu0 %v1802
    %1877 = vmatprep.subr.bf16.mxu0 0
    %1878 = vmatpush1.bf16.msra.mxu0 0
    %1879 = vmatprep.subr.bf16.mxu0 0
    %1880 = vmatpush1.bf16.msra.mxu0 0
    %1881 = vmatprep.subr.bf16.mxu0 0
    %1882 = vmatpush1.bf16.msra.mxu0 0
    %1883 = vmatprep.subr.bf16.mxu0 0
    %1884 = vmatpush1.bf16.msra.mxu0 0
    %1885 = vmatprep.subr.bf16.mxu0 0
    %1886 = vmatpush1.bf16.msra.mxu0 0
    %1887 = vmatprep.subr.bf16.mxu0 0
    %1888 = vmatpush1.bf16.msra.mxu0 0
    %1889 = vmatprep.subr.bf16.mxu0 0
    %1890 = vmatpush1.bf16.msra.mxu0 0
    %1891 = vmatprep.subr.bf16.mxu0 0
    %1892 = vmatpush1.bf16.msra.mxu0 0
    %1893 = vmatprep.mubr.bf16.mxu0 0
    %1894 = vmatmul.mubr.bf16.gmra.mrb[0].mxu0 %v1793
    %v1895 = vpop.f32.mrb[0].mxu0
    %v1896 = vadd.f32 %v1848, %v1895
    %v1897 = vpop.f32.mrb[0].mxu0
    %v1898 = vpop.f32.mrb[0].mxu0
    %v1899 = vadd.f32 %v1851, %v1898
    %v1900 = vpop.f32.mrb[0].mxu0
    %1901 = vmatprep.mubr.bf16.mxu0 0
    %1902 = vmatmul.mubr.bf16.gmra.mrb[0].mxu0 %v1794
    %v1903 = vpop.f32.mrb[0].mxu0
    %v1904 = vadd.f32 %v1856, %v1903
    %v1905 = vpop.f32.mrb[0].mxu0
    %v1906 = vpop.f32.mrb[0].mxu0
    %v1907 = vpop.f32.mrb[0].mxu0
    %1908 = vdwg.mxu0
    %v1909 = vld [vmem:[%s9] sm:$0x1]
    %v1911 = vlaneseq
    %v1912 = vshrl.u32 %v1911, 7
    %v1913 = vsub.s32 0, %v1912
    %v1914 = vrot.slane %v1909, %v1913
    %v1916 = vadd.f32 %v1896, %v1914
    %v1917 = vadd.f32 %v1899, %v1914
    %v1918 = vadd.f32 %v1904, %v1914
    %v1919 = vtanh.pop %v1916
    %v1920 = vtanh.pop %v1917
    %v1921 = vtanh.pop %v1918
    %v1922 = vld [vmem:[%s10] sm:$0x1]
    %v1924 = vlaneseq
    %v1925 = vshrl.u32 %v1924, 7
    %v1926 = vsub.s32 0, %v1925
    %v1927 = vrot.slane %v1922, %v1926
    %v1929 = vmul.f32 %v1919, %v1927
    %v1930 = vmul.f32 %v1920, %v1927
    %v1931 = vmul.f32 %v1921, %v1927
    %1932 = vadd.xlane.f32.xlu0 %v1929
    %v1933 = vpop.xlane.xlu0 %1932
    %1934 = vadd.xlane.f32.xlu0 %v1930
    %v1935 = vpop.xlane.xlu0 %1934
    %1936 = vadd.xlane.f32.xlu0 %v1931
    %v1937 = vpop.xlane.xlu0 %1936
    %v1938 = vsel %vm861, %v1933, -1e+30
    %v1939 = vsel %vm1232, %v1935, -1e+30
    %v1940 = vsel %vm1054, %v1937, -1e+30
    %vm1941 = vcmask 7168
    %v1942 = vsel %vm1941, %v1938, -inf
    %v1943 = vsel %vm1941, %v1939, -inf
    %v1944 = vsel %vm1941, %v1940, -inf
    %v1945 = vmax.f32 %v1942, %v1943
    %v1946 = vmax.f32 %v1945, %v1944
    %v1947 = vsub.f32 %v1938, %v1946
    %v1948 = vsub.f32 %v1939, %v1946
    %v1949 = vsub.f32 %v1940, %v1946
    %v1950 = vmul.f32 %v1947, 1.442695
    %v1951 = vpow.pop %v1950
    %v1952 = vmul.f32 %v1948, 1.442695
    %v1953 = vpow.pop %v1952
    %v1954 = vmul.f32 %v1949, 1.442695
    %v1955 = vpow.pop %v1954
    %v1956 = vsel %vm861, %v1951, 0.0
    %v1957 = vsel %vm1232, %v1953, 0.0
    %v1958 = vsel %vm1054, %v1955, 0.0
    %v1959 = vsel %vm1941, %v1956, 0.0
    %v1960 = vsel %vm1941, %v1957, 0.0
    %v1961 = vadd.f32 %v1959, %v1960
    %v1962 = vsel %vm1941, %v1958, 0.0
    %v1963 = vadd.f32 %v1961, %v1962
    %v1964 = vmax.f32 %v1963, 1e-20
    %v1965 = vrcp.pop %v1964
    %v1966 = vmul.f32 %v1956, %v1965
    %v1967 = vmul.f32 %v1957, %v1965
    %v1968 = vmul.f32 %v1958, %v1965
    %1969 = vst.msk [vmem:[%s14] sm:$0xff] %vm1941, %v1966
    %1970 = vst.msk [vmem:[%s14 + $0x8] sm:$0xff] %vm1941, %v1967
    %1971 = vst.msk [vmem:[%s14 + $0x10] sm:$0xff] %vm1941, %v1968
    %1973 = vset.pattern.permute.xlu0 0
    %1974 = vperm.xlu0 %1973, %v1966
    %v1975 = vpop.permute.xlu0 %1974
    %1978 = vset.pattern.permute.xlu0 0
    %1979 = vperm.xlu0 %1978, %v1967
    %v1980 = vpop.permute.xlu0 %1979
    %1983 = vset.pattern.permute.xlu0 0
    %1984 = vperm.xlu0 %1983, %v1968
    %v1985 = vpop.permute.xlu0 %1984
    %v1987 = vmul.f32 %v1755, %v1975
    %v1988 = vmul.f32 %v1756, %v1980
    %v1989 = vmul.f32 %v1757, %v1985
    %v1990 = vadd.f32 %v1987, %v1988
    %v1991 = vadd.f32 %v1990, %v1989
    %v1992 = vmul.f32 %v1758, %v1975
    %v1993 = vmul.f32 %v1759, %v1980
    %v1994 = vmul.f32 %v1760, %v1985
    %v1995 = vadd.f32 %v1992, %v1993
    %v1996 = vadd.f32 %v1995, %v1994
    %1997 = vst [vmem:[#allocation12] sm:$0xff] %v1991
    %1998 = vst [vmem:[#allocation12 + $0x8] sm:$0xff] %v1996
    %v1999 = vld [vmem:[#allocation10] sm:$0xff]
    %v2000 = vld [vmem:[#allocation10 + $0x8] sm:$0xff]
    %v2001 = vld [vmem:[#allocation10 + $0x10] sm:$0xff]
    %v2002 = vld [vmem:[#allocation10 + $0x18] sm:$0xff]
    %v2003 = vld [vmem:[#allocation10 + $0x20] sm:$0xff]
    %v2004 = vld [vmem:[#allocation10 + $0x28] sm:$0xff]
    %v2005 = vld [vmem:[#allocation10 + $0x30] sm:$0xff]
    %v2006 = vld [vmem:[#allocation10 + $0x38] sm:$0xff]
    %v2007 = vld [vmem:[#allocation10 + $0x40] sm:$0xff]
    %v2008 = vld [vmem:[#allocation10 + $0x48] sm:$0xff]
    %v2009 = vld [vmem:[#allocation10 + $0x50] sm:$0xff]
    %v2010 = vld [vmem:[#allocation10 + $0x58] sm:$0xff]
    %v2011 = vld [vmem:[#allocation10 + $0x60] sm:$0xff]
    %v2012 = vld [vmem:[#allocation10 + $0x68] sm:$0xff]
    %v2013 = vld [vmem:[#allocation10 + $0x70] sm:$0xff]
    %v2014 = vld [vmem:[#allocation10 + $0x78] sm:$0xff]
    %v2015 = vld [vmem:[#allocation10 + $0x80] sm:$0xff]
    %v2016 = vld [vmem:[#allocation10 + $0x88] sm:$0xff]
    %v2017 = vld [vmem:[#allocation10 + $0x90] sm:$0xff]
    %v2018 = vld [vmem:[#allocation10 + $0x98] sm:$0xff]
    %v2019 = vld [vmem:[#allocation10 + $0xa0] sm:$0xff]
    %v2020 = vld [vmem:[#allocation10 + $0xa8] sm:$0xff]
    %v2021 = vld [vmem:[#allocation10 + $0xb0] sm:$0xff]
    %v2022 = vld [vmem:[#allocation10 + $0xb8] sm:$0xff]
    %v2023 = vld [vmem:[#allocation10 + $0xc0] sm:$0xff]
    %v2024 = vld [vmem:[#allocation10 + $0xc8] sm:$0xff]
    %v2025 = vld [vmem:[#allocation10 + $0xd0] sm:$0xff]
    %v2026 = vld [vmem:[#allocation10 + $0xd8] sm:$0xff]
    %v2027 = vld [vmem:[#allocation10 + $0xe0] sm:$0xff]
    %v2028 = vld [vmem:[#allocation10 + $0xe8] sm:$0xff]
    %v2029 = vld [vmem:[#allocation10 + $0xf0] sm:$0xff]
    %v2030 = vld [vmem:[#allocation10 + $0xf8] sm:$0xff]
    %2031 = vmatprep.subr.mxu0 0.0
    %2032 = vmatpush1.msra.mxu0 %v2015
    %2033 = vmatprep.subr.mxu0 0.0
    %2034 = vmatpush1.msra.mxu0 %v2016
    %2035 = vmatprep.subr.mxu0 0.0
    %2036 = vmatpush1.msra.mxu0 %v2017
    %2037 = vmatprep.subr.mxu0 0.0
    %2038 = vmatpush1.msra.mxu0 %v2018
    %2039 = vmatprep.subr.mxu0 0.0
    %2040 = vmatpush1.msra.mxu0 %v2019
    %2041 = vmatprep.subr.mxu0 0.0
    %2042 = vmatpush1.msra.mxu0 %v2020
    %2043 = vmatprep.subr.mxu0 0.0
    %2044 = vmatpush1.msra.mxu0 %v2021
    %2045 = vmatprep.subr.mxu0 0.0
    %2046 = vmatpush1.msra.mxu0 %v2022
    %2047 = vmatprep.subr.mxu0 0.0
    %2048 = vmatpush1.msra.mxu0 %v2023
    %2049 = vmatprep.subr.mxu0 0.0
    %2050 = vmatpush1.msra.mxu0 %v2024
    %2051 = vmatprep.subr.mxu0 0.0
    %2052 = vmatpush1.msra.mxu0 %v2025
    %2053 = vmatprep.subr.mxu0 0.0
    %2054 = vmatpush1.msra.mxu0 %v2026
    %2055 = vmatprep.subr.mxu0 0.0
    %2056 = vmatpush1.msra.mxu0 %v2027
    %2057 = vmatprep.subr.mxu0 0.0
    %2058 = vmatpush1.msra.mxu0 %v2028
    %2059 = vmatprep.subr.mxu0 0.0
    %2060 = vmatpush1.msra.mxu0 %v2029
    %2061 = vmatprep.subr.mxu0 0.0
    %2062 = vmatpush1.msra.mxu0 %v2030
    %2063 = vmatprep.subr.mxu0 0.0
    %2064 = vmatpush1.msra.mxu0 0.0
    %2065 = vmatprep.subr.mxu0 0.0
    %2066 = vmatpush1.msra.mxu0 0.0
    %2067 = vmatprep.subr.mxu0 0.0
    %2068 = vmatpush1.msra.mxu0 0.0
    %2069 = vmatprep.subr.mxu0 0.0
    %2070 = vmatpush1.msra.mxu0 0.0
    %2071 = vmatprep.subr.mxu0 0.0
    %2072 = vmatpush1.msra.mxu0 0.0
    %2073 = vmatprep.subr.mxu0 0.0
    %2074 = vmatpush1.msra.mxu0 0.0
    %2075 = vmatprep.subr.mxu0 0.0
    %2076 = vmatpush1.msra.mxu0 0.0
    %2077 = vmatprep.subr.mxu0 0.0
    %2078 = vmatpush1.msra.mxu0 0.0
    %2079 = vmatprep.subr.mxu0 0.0
    %2080 = vmatpush1.msra.mxu0 0.0
    %2081 = vmatprep.subr.mxu0 0.0
    %2082 = vmatpush1.msra.mxu0 0.0
    %2083 = vmatprep.subr.mxu0 0.0
    %2084 = vmatpush1.msra.mxu0 0.0
    %2085 = vmatprep.subr.mxu0 0.0
    %2086 = vmatpush1.msra.mxu0 0.0
    %2087 = vmatprep.subr.mxu0 0.0
    %2088 = vmatpush1.msra.mxu0 0.0
    %2089 = vmatprep.subr.mxu0 0.0
    %2090 = vmatpush1.msra.mxu0 0.0
    %2091 = vmatprep.subr.mxu0 0.0
    %2092 = vmatpush1.msra.mxu0 0.0
    %2093 = vmatprep.subr.mxu0 0.0
    %2094 = vmatpush1.msra.mxu0 0.0
    %2095 = vmatprep.mubr.f32.mxu0 0.0
    %2096 = vmatmul.mubr.f32.gmra.mrb[0].mxu0 %v1996
    %v2097 = vpop.f32.mrb[0].mxu0
    %v2098 = vadd.f32 0.0, %v2097
    %v2099 = vpop.f32.mrb[0].mxu0
    %2100 = vdwg.mxu0
    %2101 = vmatprep.subr.mxu0 0.0
    %2102 = vmatpush1.msra.mxu0 %v1999
    %2103 = vmatprep.subr.mxu0 0.0
    %2104 = vmatpush1.msra.mxu0 %v2000
    %2105 = vmatprep.subr.mxu0 0.0
    %2106 = vmatpush1.msra.mxu0 %v2001
    %2107 = vmatprep.subr.mxu0 0.0
    %2108 = vmatpush1.msra.mxu0 %v2002
    %2109 = vmatprep.subr.mxu0 0.0
    %2110 = vmatpush1.msra.mxu0 %v2003
    %2111 = vmatprep.subr.mxu0 0.0
    %2112 = vmatpush1.msra.mxu0 %v2004
    %2113 = vmatprep.subr.mxu0 0.0
    %2114 = vmatpush1.msra.mxu0 %v2005
    %2115 = vmatprep.subr.mxu0 0.0
    %2116 = vmatpush1.msra.mxu0 %v2006
    %2117 = vmatprep.subr.mxu0 0.0
    %2118 = vmatpush1.msra.mxu0 %v2007
    %2119 = vmatprep.subr.mxu0 0.0
    %2120 = vmatpush1.msra.mxu0 %v2008
    %2121 = vmatprep.subr.mxu0 0.0
    %2122 = vmatpush1.msra.mxu0 %v2009
    %2123 = vmatprep.subr.mxu0 0.0
    %2124 = vmatpush1.msra.mxu0 %v2010
    %2125 = vmatprep.subr.mxu0 0.0
    %2126 = vmatpush1.msra.mxu0 %v2011
    %2127 = vmatprep.subr.mxu0 0.0
    %2128 = vmatpush1.msra.mxu0 %v2012
    %2129 = vmatprep.subr.mxu0 0.0
    %2130 = vmatpush1.msra.mxu0 %v2013
    %2131 = vmatprep.subr.mxu0 0.0
    %2132 = vmatpush1.msra.mxu0 %v2014
    %2133 = vmatprep.subr.mxu0 0.0
    %2134 = vmatpush1.msra.mxu0 0.0
    %2135 = vmatprep.subr.mxu0 0.0
    %2136 = vmatpush1.msra.mxu0 0.0
    %2137 = vmatprep.subr.mxu0 0.0
    %2138 = vmatpush1.msra.mxu0 0.0
    %2139 = vmatprep.subr.mxu0 0.0
    %2140 = vmatpush1.msra.mxu0 0.0
    %2141 = vmatprep.subr.mxu0 0.0
    %2142 = vmatpush1.msra.mxu0 0.0
    %2143 = vmatprep.subr.mxu0 0.0
    %2144 = vmatpush1.msra.mxu0 0.0
    %2145 = vmatprep.subr.mxu0 0.0
    %2146 = vmatpush1.msra.mxu0 0.0
    %2147 = vmatprep.subr.mxu0 0.0
    %2148 = vmatpush1.msra.mxu0 0.0
    %2149 = vmatprep.subr.mxu0 0.0
    %2150 = vmatpush1.msra.mxu0 0.0
    %2151 = vmatprep.subr.mxu0 0.0
    %2152 = vmatpush1.msra.mxu0 0.0
    %2153 = vmatprep.subr.mxu0 0.0
    %2154 = vmatpush1.msra.mxu0 0.0
    %2155 = vmatprep.subr.mxu0 0.0
    %2156 = vmatpush1.msra.mxu0 0.0
    %2157 = vmatprep.subr.mxu0 0.0
    %2158 = vmatpush1.msra.mxu0 0.0
    %2159 = vmatprep.subr.mxu0 0.0
    %2160 = vmatpush1.msra.mxu0 0.0
    %2161 = vmatprep.subr.mxu0 0.0
    %2162 = vmatpush1.msra.mxu0 0.0
    %2163 = vmatprep.subr.mxu0 0.0
    %2164 = vmatpush1.msra.mxu0 0.0
    %2165 = vmatprep.mubr.f32.mxu0 0.0
    %2166 = vmatmul.mubr.f32.gmra.mrb[0].mxu0 %v1991
    %v2167 = vpop.f32.mrb[0].mxu0
    %v2168 = vadd.f32 %v2098, %v2167
    %v2169 = vpop.f32.mrb[0].mxu0
    %2170 = vdwg.mxu0
    %v2171 = vld [vmem:[%s12] sm:$0x1]
    %v2173 = vlaneseq
    %v2174 = vshrl.u32 %v2173, 7
    %v2175 = vsub.s32 0, %v2174
    %v2176 = vrot.slane %v2171, %v2175
    %v2178 = vadd.f32 %v2168, %v2176
    %2179 = vst [vmem:[%s15] sm:$0xff] %v2178
    // Predicated region
    $region62: #{han_forward.3} parent=1 // pred_check
      _
    $region63: #{han_forward.3} parent=1 // pred_check_branch
      %2181 = sbr.rel (0) target = $region65
    $region64: #{han_forward.3} parent=1 // pred_region
      %s2183 = ssub.s32 256, 256
      %2184 = vsyncadd [#allocation9], %s2183
      %s2186 = sshll.u32 [#allocation12], 4
      %s2187 = int_to_ptr.vmem [resolvable:$true] %s2186
      %2189 = dma.vmem_to_hbm [thread:$0]  %s2187, 256, %s13, [#allocation9]
    $region65: #{han_forward.3} parent=1 // pred_fallthru
      _
    // Predicated region
    $region66: #{han_forward.3} parent=1 // pred_check
      _
    $region67: #{han_forward.3} parent=1 // pred_check_branch
      %2191 = sbr.rel (0) target = $region69
    $region68: #{han_forward.3} parent=1 // pred_region
      _
    $region69: #{han_forward.3} parent=1 // pred_fallthru
      _
    // Predicated region
    $region70: #{han_forward.3} parent=1 // pred_check
      _
    $region71: #{han_forward.3} parent=1 // pred_check_branch
      %2193 = sbr.rel (0) target = $region73
    $region72: #{han_forward.3} parent=1 // pred_region
      _
    $region73: #{han_forward.3} parent=1 // pred_fallthru
      _
    // Predicated region
    $region74: #{han_forward.3} parent=1 // pred_check
      _
    $region75: #{han_forward.3} parent=1 // pred_check_branch
      %2195 = sbr.rel (0) target = $region77
    $region76: #{han_forward.3} parent=1 // pred_region
      %2196 = dma.done [#allocation9], 256
    $region77: #{han_forward.3} parent=1 // pred_fallthru
      _
    // Predicated region
    $region78: #{han_forward.3} parent=1 // pred_check
      _
    $region79: #{han_forward.3} parent=1 // pred_check_branch
      %2198 = sbr.rel (0) target = $region81
    $region80: #{han_forward.3} parent=1 // pred_region
      _
    $region81: #{han_forward.3} parent=1 // pred_fallthru
      _
    // Predicated region
    $region82: #{han_forward.3} parent=1 // pred_check
      _
    $region83: #{han_forward.3} parent=1 // pred_check_branch
      %2200 = sbr.rel (0) target = $region85
    $region84: #{han_forward.3} parent=1 // pred_region
      _
    $region85: #{han_forward.3} parent=1 // pred_fallthru
      _
    %2201 = vsyncpa [#allocation8], 1
    %2202 = vsyncpa [#allocation11], 1
    %2203 = vsyncpa [#allocation9], 1

// kernel: han_forward.2
$region0: #{han_forward.2}
  #allocation0 [shape = 'u32[]', space=smem, size = 0x4, offset = 0x4, fixed_abs, tag = 'smem constant byte address 0x4 - core index']
  #allocation1 [shape = 'u32[144,128]{1,0:T(1,128)}', space=vmem, size = 0x12000, scoped, tag = 'internal scratch']
  #allocation2 [shape = 'f32[8,8,768]{2,1,0:T(8,128)}', space=vmem, size = 0x30000, scoped, tag = 'scratch operand']
  #allocation3 [shape = 'f32[8,8,128]{2,1,0:T(8,128)}', space=vmem, size = 0x8000, scoped, tag = 'scratch operand']
  #allocation4 [shape = 'f32[8,8,128]{2,1,0:T(8,128)}', space=vmem, size = 0x8000, scoped, tag = 'scratch operand']
  #allocation5 [shape = 'f32[8,128]{1,0:T(8,128)}', space=vmem, size = 0x1000, scoped, tag = 'scratch operand']
  #allocation6 [shape = 'f32[8,128]{1,0:T(8,128)}', space=vmem, size = 0x1000, scoped, tag = 'scratch operand']
  %s0 = inlined_call_operand.vmem [shape: f32[8,8,128], index: 0, kind: input, shape index: {}]
  %s1 = inlined_call_operand.vmem [shape: s32[8,1], index: 1, kind: input, shape index: {}]
  %s2 = inlined_call_operand.vmem [shape: f32[128,768], index: 2, kind: input, shape index: {}]
  %s3 = inlined_call_operand.vmem [shape: f32[1,768], index: 3, kind: input, shape index: {}]
  %s4 = inlined_call_operand.hbm [shape: f32[128,384], index: 4, kind: input, shape index: {}]
  %s5 = inlined_call_operand.hbm [shape: f32[128,384], index: 5, kind: input, shape index: {}]
  %s6 = inlined_call_operand.vmem [shape: f32[1,384], index: 6, kind: input, shape index: {}, may-alias: {6,7}]
  %s7 = inlined_call_operand.vmem [shape: f32[1,384], index: 7, kind: input, shape index: {}, may-alias: {6,7}]
  %s8 = inlined_call_operand.hbm [shape: f32[256,128], index: 8, kind: input, shape index: {}]
  %s9 = inlined_call_operand.vmem [shape: f32[1,128], index: 9, kind: input, shape index: {}]
  %s10 = inlined_call_operand.vmem [shape: f32[1,128], index: 10, kind: input, shape index: {}]
  %s11 = inlined_call_operand.vmem [shape: f32[8,256], index: 11, kind: output, shape index: {0}]
  %s12 = inlined_call_operand.vmem [shape: f32[8,8,1], index: 12, kind: output, shape index: {1}]
  %13 = xla_tuple %s11, %s12
  %s14 = sld [smem:[#allocation0]]
  $region74: #{han_forward.2} parent=0
    _
  %s16 = ssub.s32 1, %s14
  %s17 = scalar_select 0, %s16, %s14
  $region1: #{han_forward.2} parent=0
    #allocation7 [shape = 'u8[196608]{0}', space=vmem, size = 0x30000, scoped, tag = 'input window, operand 4, single buffered']
    #allocation8 [shape = 's32[1]{0}', space=sflag, size = 0x4, scoped, tag = 'scoped memory for han_forward.2']
    #allocation9 [shape = 'u8[196608]{0}', space=vmem, size = 0x30000, scoped, tag = 'input window, operand 5, single buffered']
    #allocation10 [shape = 's32[1]{0}', space=sflag, size = 0x4, scoped, tag = 'scoped memory for han_forward.2']
    #allocation11 [shape = 'u8[131072]{0}', space=vmem, size = 0x20000, scoped, tag = 'input window, operand 8, single buffered']
    %18 = vsyncpa [#allocation8], 0
    %19 = vsyncpa [#allocation10], 0
    // Predicated region
    $region2: #{han_forward.2} parent=1 // pred_check
      _
    $region3: #{han_forward.2} parent=1 // pred_check_branch
      %21 = sbr.rel (0) target = $region5
    $region4: #{han_forward.2} parent=1 // pred_region
      _
    $region5: #{han_forward.2} parent=1 // pred_fallthru
      _
    // Predicated region
    $region6: #{han_forward.2} parent=1 // pred_check
      _
    $region7: #{han_forward.2} parent=1 // pred_check_branch
      %23 = sbr.rel (0) target = $region9
    $region8: #{han_forward.2} parent=1 // pred_region
      _
    $region9: #{han_forward.2} parent=1 // pred_fallthru
      _
    // Predicated region
    $region10: #{han_forward.2} parent=1 // pred_check
      _
    $region11: #{han_forward.2} parent=1 // pred_check_branch
      %25 = sbr.rel (0) target = $region13
    $region12: #{han_forward.2} parent=1 // pred_region
      _
    $region13: #{han_forward.2} parent=1 // pred_fallthru
      _
    // Predicated region
    $region14: #{han_forward.2} parent=1 // pred_check
      _
    $region15: #{han_forward.2} parent=1 // pred_check_branch
      %27 = sbr.rel (0) target = $region17
    $region16: #{han_forward.2} parent=1 // pred_region
      _
    $region17: #{han_forward.2} parent=1 // pred_fallthru
      _
    // Predicated region
    $region18: #{han_forward.2} parent=1 // pred_check
      _
    $region19: #{han_forward.2} parent=1 // pred_check_branch
      %29 = sbr.rel (0) target = $region21
    $region20: #{han_forward.2} parent=1 // pred_region
      %s31 = ssub.s32 6144, 6144
      %32 = vsyncadd [#allocation8], %s31
      %s33 = sshll.u32 [#allocation7], 4
      %s34 = int_to_ptr.vmem [resolvable:$true] %s33
      %39 = dma.hbm_to_vmem [thread:$0]  %s4, 6144, %s34, [#allocation8], 384, 384, 24
    $region21: #{han_forward.2} parent=1 // pred_fallthru
      _
    // Predicated region
    $region22: #{han_forward.2} parent=1 // pred_check
      _
    $region23: #{han_forward.2} parent=1 // pred_check_branch
      %41 = sbr.rel (0) target = $region25
    $region24: #{han_forward.2} parent=1 // pred_region
      %s43 = ssub.s32 6144, 6144
      %44 = vsyncadd [#allocation10], %s43
      %s45 = sshll.u32 [#allocation9], 4
      %s46 = int_to_ptr.vmem [resolvable:$true] %s45
      %51 = dma.hbm_to_vmem [thread:$0]  %s5, 6144, %s46, [#allocation10], 384, 384, 24
    $region25: #{han_forward.2} parent=1 // pred_fallthru
      _
    // Predicated region
    $region26: #{han_forward.2} parent=1 // pred_check
      _
    $region27: #{han_forward.2} parent=1 // pred_check_branch
      %53 = sbr.rel (0) target = $region29
    $region28: #{han_forward.2} parent=1 // pred_region
      _
    $region29: #{han_forward.2} parent=1 // pred_fallthru
      _
    // Predicated region
    $region30: #{han_forward.2} parent=1 // pred_check
      _
    $region31: #{han_forward.2} parent=1 // pred_check_branch
      %55 = sbr.rel (0) target = $region33
    $region32: #{han_forward.2} parent=1 // pred_region
      _
    $region33: #{han_forward.2} parent=1 // pred_fallthru
      _
    // Predicated region
    $region34: #{han_forward.2} parent=1 // pred_check
      _
    $region35: #{han_forward.2} parent=1 // pred_check_branch
      %57 = sbr.rel (0) target = $region37
    $region36: #{han_forward.2} parent=1 // pred_region
      %s59 = ssub.s32 4096, 4096
      %60 = vsyncadd [#allocation10], %s59
      %s61 = sshll.u32 [#allocation11], 4
      %s62 = int_to_ptr.vmem [resolvable:$true] %s61
      %67 = dma.hbm_to_vmem [thread:$0]  %s8, 4096, %s62, [#allocation10], 128, 128, 8
    $region37: #{han_forward.2} parent=1 // pred_fallthru
      _
    // Predicated region
    $region38: #{han_forward.2} parent=1 // pred_check
      _
    $region39: #{han_forward.2} parent=1 // pred_check_branch
      %69 = sbr.rel (0) target = $region41
    $region40: #{han_forward.2} parent=1 // pred_region
      _
    $region41: #{han_forward.2} parent=1 // pred_fallthru
      _
    // Predicated region
    $region42: #{han_forward.2} parent=1 // pred_check
      _
    $region43: #{han_forward.2} parent=1 // pred_check_branch
      %71 = sbr.rel (0) target = $region45
    $region44: #{han_forward.2} parent=1 // pred_region
      _
    $region45: #{han_forward.2} parent=1 // pred_fallthru
      _
    // Predicated region
    $region46: #{han_forward.2} parent=1 // pred_check
      _
    $region47: #{han_forward.2} parent=1 // pred_check_branch
      %73 = sbr.rel (0) target = $region49
    $region48: #{han_forward.2} parent=1 // pred_region
      %74 = dma.done [#allocation8], 6144
    $region49: #{han_forward.2} parent=1 // pred_fallthru
      _
    // Predicated region
    $region50: #{han_forward.2} parent=1 // pred_check
      _
    $region51: #{han_forward.2} parent=1 // pred_check_branch
      %76 = sbr.rel (0) target = $region53
    $region52: #{han_forward.2} parent=1 // pred_region
      %77 = dma.done [#allocation10], 6144
    $region53: #{han_forward.2} parent=1 // pred_fallthru
      _
    // Predicated region
    $region54: #{han_forward.2} parent=1 // pred_check
      _
    $region55: #{han_forward.2} parent=1 // pred_check_branch
      %79 = sbr.rel (0) target = $region57
    $region56: #{han_forward.2} parent=1 // pred_region
      %80 = dma.done [#allocation10], 4096
    $region57: #{han_forward.2} parent=1 // pred_fallthru
      _
    %v82 = vld [vmem:[%s1] sm:$0xff]
    %v83 = vld [vmem:[%s2] sm:$0xff]
    %v84 = vld [vmem:[%s2 + $0x8] sm:$0xff]
    %v85 = vld [vmem:[%s2 + $0x10] sm:$0xff]
    %v86 = vld [vmem:[%s2 + $0x18] sm:$0xff]
    %v87 = vld [vmem:[%s2 + $0x20] sm:$0xff]
    %v88 = vld [vmem:[%s2 + $0x28] sm:$0xff]
    %v89 = vld [vmem:[%s2 + $0x30] sm:$0xff]
    %v90 = vld [vmem:[%s2 + $0x38] sm:$0xff]
    %v91 = vld [vmem:[%s2 + $0x40] sm:$0xff]
    %v92 = vld [vmem:[%s2 + $0x48] sm:$0xff]
    %v93 = vld [vmem:[%s2 + $0x50] sm:$0xff]
    %v94 = vld [vmem:[%s2 + $0x58] sm:$0xff]
    %v95 = vld [vmem:[%s2 + $0x60] sm:$0xff]
    %v96 = vld [vmem:[%s2 + $0x68] sm:$0xff]
    %v97 = vld [vmem:[%s2 + $0x70] sm:$0xff]
    %v98 = vld [vmem:[%s2 + $0x78] sm:$0xff]
    %v99 = vld [vmem:[%s2 + $0x80] sm:$0xff]
    %v100 = vld [vmem:[%s2 + $0x88] sm:$0xff]
    %v101 = vld [vmem:[%s2 + $0x90] sm:$0xff]
    %v102 = vld [vmem:[%s2 + $0x98] sm:$0xff]
    %v103 = vld [vmem:[%s2 + $0xa0] sm:$0xff]
    %v104 = vld [vmem:[%s2 + $0xa8] sm:$0xff]
    %v105 = vld [vmem:[%s2 + $0xb0] sm:$0xff]
    %v106 = vld [vmem:[%s2 + $0xb8] sm:$0xff]
    %v107 = vld [vmem:[%s2 + $0xc0] sm:$0xff]
    %v108 = vld [vmem:[%s2 + $0xc8] sm:$0xff]
    %v109 = vld [vmem:[%s2 + $0xd0] sm:$0xff]
    %v110 = vld [vmem:[%s2 + $0xd8] sm:$0xff]
    %v111 = vld [vmem:[%s2 + $0xe0] sm:$0xff]
    %v112 = vld [vmem:[%s2 + $0xe8] sm:$0xff]
    %v113 = vld [vmem:[%s2 + $0xf0] sm:$0xff]
    %v114 = vld [vmem:[%s2 + $0xf8] sm:$0xff]
    %v115 = vld [vmem:[%s2 + $0x100] sm:$0xff]
    %v116 = vld [vmem:[%s2 + $0x108] sm:$0xff]
    %v117 = vld [vmem:[%s2 + $0x110] sm:$0xff]
    %v118 = vld [vmem:[%s2 + $0x118] sm:$0xff]
    %v119 = vld [vmem:[%s2 + $0x120] sm:$0xff]
    %v120 = vld [vmem:[%s2 + $0x128] sm:$0xff]
    %v121 = vld [vmem:[%s2 + $0x130] sm:$0xff]
    %v122 = vld [vmem:[%s2 + $0x138] sm:$0xff]
    %v123 = vld [vmem:[%s2 + $0x140] sm:$0xff]
    %v124 = vld [vmem:[%s2 + $0x148] sm:$0xff]
    %v125 = vld [vmem:[%s2 + $0x150] sm:$0xff]
    %v126 = vld [vmem:[%s2 + $0x158] sm:$0xff]
    %v127 = vld [vmem:[%s2 + $0x160] sm:$0xff]
    %v128 = vld [vmem:[%s2 + $0x168] sm:$0xff]
    %v129 = vld [vmem:[%s2 + $0x170] sm:$0xff]
    %v130 = vld [vmem:[%s2 + $0x178] sm:$0xff]
    %v131 = vld [vmem:[%s2 + $0x180] sm:$0xff]
    %v132 = vld [vmem:[%s2 + $0x188] sm:$0xff]
    %v133 = vld [vmem:[%s2 + $0x190] sm:$0xff]
    %v134 = vld [vmem:[%s2 + $0x198] sm:$0xff]
    %v135 = vld [vmem:[%s2 + $0x1a0] sm:$0xff]
    %v136 = vld [vmem:[%s2 + $0x1a8] sm:$0xff]
    %v137 = vld [vmem:[%s2 + $0x1b0] sm:$0xff]
    %v138 = vld [vmem:[%s2 + $0x1b8] sm:$0xff]
    %v139 = vld [vmem:[%s2 + $0x1c0] sm:$0xff]
    %v140 = vld [vmem:[%s2 + $0x1c8] sm:$0xff]
    %v141 = vld [vmem:[%s2 + $0x1d0] sm:$0xff]
    %v142 = vld [vmem:[%s2 + $0x1d8] sm:$0xff]
    %v143 = vld [vmem:[%s2 + $0x1e0] sm:$0xff]
    %v144 = vld [vmem:[%s2 + $0x1e8] sm:$0xff]
    %v145 = vld [vmem:[%s2 + $0x1f0] sm:$0xff]
    %v146 = vld [vmem:[%s2 + $0x1f8] sm:$0xff]
    %v147 = vld [vmem:[%s2 + $0x200] sm:$0xff]
    %v148 = vld [vmem:[%s2 + $0x208] sm:$0xff]
    %v149 = vld [vmem:[%s2 + $0x210] sm:$0xff]
    %v150 = vld [vmem:[%s2 + $0x218] sm:$0xff]
    %v151 = vld [vmem:[%s2 + $0x220] sm:$0xff]
    %v152 = vld [vmem:[%s2 + $0x228] sm:$0xff]
    %v153 = vld [vmem:[%s2 + $0x230] sm:$0xff]
    %v154 = vld [vmem:[%s2 + $0x238] sm:$0xff]
    %v155 = vld [vmem:[%s2 + $0x240] sm:$0xff]
    %v156 = vld [vmem:[%s2 + $0x248] sm:$0xff]
    %v157 = vld [vmem:[%s2 + $0x250] sm:$0xff]
    %v158 = vld [vmem:[%s2 + $0x258] sm:$0xff]
    %v159 = vld [vmem:[%s2 + $0x260] sm:$0xff]
    %v160 = vld [vmem:[%s2 + $0x268] sm:$0xff]
    %v161 = vld [vmem:[%s2 + $0x270] sm:$0xff]
    %v162 = vld [vmem:[%s2 + $0x278] sm:$0xff]
    %v163 = vld [vmem:[%s2 + $0x280] sm:$0xff]
    %v164 = vld [vmem:[%s2 + $0x288] sm:$0xff]
    %v165 = vld [vmem:[%s2 + $0x290] sm:$0xff]
    %v166 = vld [vmem:[%s2 + $0x298] sm:$0xff]
    %v167 = vld [vmem:[%s2 + $0x2a0] sm:$0xff]
    %v168 = vld [vmem:[%s2 + $0x2a8] sm:$0xff]
    %v169 = vld [vmem:[%s2 + $0x2b0] sm:$0xff]
    %v170 = vld [vmem:[%s2 + $0x2b8] sm:$0xff]
    %v171 = vld [vmem:[%s2 + $0x2c0] sm:$0xff]
    %v172 = vld [vmem:[%s2 + $0x2c8] sm:$0xff]
    %v173 = vld [vmem:[%s2 + $0x2d0] sm:$0xff]
    %v174 = vld [vmem:[%s2 + $0x2d8] sm:$0xff]
    %v175 = vld [vmem:[%s2 + $0x2e0] sm:$0xff]
    %v176 = vld [vmem:[%s2 + $0x2e8] sm:$0xff]
    %v177 = vld [vmem:[%s2 + $0x2f0] sm:$0xff]
    %v178 = vld [vmem:[%s2 + $0x2f8] sm:$0xff]
    %v179 = vld [vmem:[%s0] sm:$0xff]
    %v180 = vld [vmem:[%s0 + $0x8] sm:$0xff]
    %v181 = vld [vmem:[%s0 + $0x10] sm:$0xff]
    %v182 = vld [vmem:[%s0 + $0x18] sm:$0xff]
    %v183 = vld [vmem:[%s0 + $0x20] sm:$0xff]
    %v184 = vld [vmem:[%s0 + $0x28] sm:$0xff]
    %v185 = vld [vmem:[%s0 + $0x30] sm:$0xff]
    %v186 = vld [vmem:[%s0 + $0x38] sm:$0xff]
    %v187 = vpack.c.bf16 %v180, %v179
    %v188 = vpack.c.bf16 %v182, %v181
    %v189 = vpack.c.bf16 %v184, %v183
    %v190 = vpack.c.bf16 %v186, %v185
    %v191 = vpack.c.bf16 %v89, %v83
    %v192 = vpack.c.bf16 %v90, %v84
    %v193 = vpack.c.bf16 %v91, %v85
    %v194 = vpack.c.bf16 %v92, %v86
    %v195 = vpack.c.bf16 %v93, %v87
    %v196 = vpack.c.bf16 %v94, %v88
    %v197 = vpack.c.bf16 %v101, %v95
    %v198 = vpack.c.bf16 %v102, %v96
    %v199 = vpack.c.bf16 %v103, %v97
    %v200 = vpack.c.bf16 %v104, %v98
    %v201 = vpack.c.bf16 %v105, %v99
    %v202 = vpack.c.bf16 %v106, %v100
    %v203 = vpack.c.bf16 %v113, %v107
    %v204 = vpack.c.bf16 %v114, %v108
    %v205 = vpack.c.bf16 %v115, %v109
    %v206 = vpack.c.bf16 %v116, %v110
    %v207 = vpack.c.bf16 %v117, %v111
    %v208 = vpack.c.bf16 %v118, %v112
    %v209 = vpack.c.bf16 %v125, %v119
    %v210 = vpack.c.bf16 %v126, %v120
    %v211 = vpack.c.bf16 %v127, %v121
    %v212 = vpack.c.bf16 %v128, %v122
    %v213 = vpack.c.bf16 %v129, %v123
    %v214 = vpack.c.bf16 %v130, %v124
    %v215 = vpack.c.bf16 %v137, %v131
    %v216 = vpack.c.bf16 %v138, %v132
    %v217 = vpack.c.bf16 %v139, %v133
    %v218 = vpack.c.bf16 %v140, %v134
    %v219 = vpack.c.bf16 %v141, %v135
    %v220 = vpack.c.bf16 %v142, %v136
    %v221 = vpack.c.bf16 %v149, %v143
    %v222 = vpack.c.bf16 %v150, %v144
    %v223 = vpack.c.bf16 %v151, %v145
    %v224 = vpack.c.bf16 %v152, %v146
    %v225 = vpack.c.bf16 %v153, %v147
    %v226 = vpack.c.bf16 %v154, %v148
    %v227 = vpack.c.bf16 %v161, %v155
    %v228 = vpack.c.bf16 %v162, %v156
    %v229 = vpack.c.bf16 %v163, %v157
    %v230 = vpack.c.bf16 %v164, %v158
    %v231 = vpack.c.bf16 %v165, %v159
    %v232 = vpack.c.bf16 %v166, %v160
    %v233 = vpack.c.bf16 %v173, %v167
    %v234 = vpack.c.bf16 %v174, %v168
    %v235 = vpack.c.bf16 %v175, %v169
    %v236 = vpack.c.bf16 %v176, %v170
    %v237 = vpack.c.bf16 %v177, %v171
    %v238 = vpack.c.bf16 %v178, %v172
    %v239 = vld [vmem:[%s3] sm:$0x3f]
    %v241 = vlaneseq
    %v242 = vshrl.u32 %v241, 7
    %v243 = vsub.s32 0, %v242
    %v244 = vrot.slane %v239, %v243
    %v245 = vlaneseq
    %v246 = vshrl.u32 %v245, 7
    %v247 = vsub.s32 1, %v246
    %v248 = vrot.slane %v239, %v247
    %v249 = vlaneseq
    %v250 = vshrl.u32 %v249, 7
    %v251 = vsub.s32 2, %v250
    %v252 = vrot.slane %v239, %v251
    %v253 = vlaneseq
    %v254 = vshrl.u32 %v253, 7
    %v255 = vsub.s32 3, %v254
    %v256 = vrot.slane %v239, %v255
    %v257 = vlaneseq
    %v258 = vshrl.u32 %v257, 7
    %v259 = vsub.s32 4, %v258
    %v260 = vrot.slane %v239, %v259
    %v261 = vlaneseq
    %v262 = vshrl.u32 %v261, 7
    %v263 = vsub.s32 5, %v262
    %v264 = vrot.slane %v239, %v263
    %271 = vmatprep.subr.bf16.mxu0 %v192
    %272 = vmatpush1.bf16.msra.mxu0 %v191
    %273 = vmatprep.subr.bf16.mxu0 %v198
    %274 = vmatpush1.bf16.msra.mxu0 %v197
    %275 = vmatprep.subr.bf16.mxu0 %v204
    %276 = vmatpush1.bf16.msra.mxu0 %v203
    %277 = vmatprep.subr.bf16.mxu0 %v210
    %278 = vmatpush1.bf16.msra.mxu0 %v209
    %279 = vmatprep.subr.bf16.mxu0 %v216
    %280 = vmatpush1.bf16.msra.mxu0 %v215
    %281 = vmatprep.subr.bf16.mxu0 %v222
    %282 = vmatpush1.bf16.msra.mxu0 %v221
    %283 = vmatprep.subr.bf16.mxu0 %v228
    %284 = vmatpush1.bf16.msra.mxu0 %v227
    %285 = vmatprep.subr.bf16.mxu0 %v234
    %286 = vmatpush1.bf16.msra.mxu0 %v233
    %287 = vmatprep.subr.bf16.mxu0 0
    %288 = vmatpush1.bf16.msra.mxu0 0
    %289 = vmatprep.subr.bf16.mxu0 0
    %290 = vmatpush1.bf16.msra.mxu0 0
    %291 = vmatprep.subr.bf16.mxu0 0
    %292 = vmatpush1.bf16.msra.mxu0 0
    %293 = vmatprep.subr.bf16.mxu0 0
    %294 = vmatpush1.bf16.msra.mxu0 0
    %295 = vmatprep.subr.bf16.mxu0 0
    %296 = vmatpush1.bf16.msra.mxu0 0
    %297 = vmatprep.subr.bf16.mxu0 0
    %298 = vmatpush1.bf16.msra.mxu0 0
    %299 = vmatprep.subr.bf16.mxu0 0
    %300 = vmatpush1.bf16.msra.mxu0 0
    %301 = vmatprep.subr.bf16.mxu0 0
    %302 = vmatpush1.bf16.msra.mxu0 0
    %303 = vmatprep.mubr.bf16.mxu0 0
    %304 = vmatmul.mubr.bf16.gmra.mrb[0].mxu0 %v187
    %v305 = vpop.f32.mrb[0].mxu0
    %v306 = vadd.f32 %v244, %v305
    %v307 = vpop.f32.mrb[0].mxu0
    %v308 = vadd.f32 %v248, %v307
    %v309 = vpop.f32.mrb[0].mxu0
    %v310 = vadd.f32 %v244, %v309
    %v311 = vpop.f32.mrb[0].mxu0
    %v312 = vadd.f32 %v248, %v311
    %313 = vmatprep.mubr.bf16.mxu0 0
    %314 = vmatmul.mubr.bf16.gmra.mrb[0].mxu0 %v188
    %v315 = vpop.f32.mrb[0].mxu0
    %v316 = vadd.f32 %v244, %v315
    %v317 = vpop.f32.mrb[0].mxu0
    %v318 = vadd.f32 %v248, %v317
    %v319 = vpop.f32.mrb[0].mxu0
    %v320 = vadd.f32 %v244, %v319
    %v321 = vpop.f32.mrb[0].mxu0
    %v322 = vadd.f32 %v248, %v321
    %323 = vmatprep.mubr.bf16.mxu0 0
    %324 = vmatmul.mubr.bf16.gmra.mrb[0].mxu0 %v189
    %v325 = vpop.f32.mrb[0].mxu0
    %v326 = vadd.f32 %v244, %v325
    %v327 = vpop.f32.mrb[0].mxu0
    %v328 = vadd.f32 %v248, %v327
    %v329 = vpop.f32.mrb[0].mxu0
    %v330 = vadd.f32 %v244, %v329
    %v331 = vpop.f32.mrb[0].mxu0
    %v332 = vadd.f32 %v248, %v331
    %333 = vmatprep.mubr.bf16.mxu0 0
    %334 = vmatmul.mubr.bf16.gmra.mrb[0].mxu0 %v190
    %v335 = vpop.f32.mrb[0].mxu0
    %v336 = vadd.f32 %v244, %v335
    %v337 = vpop.f32.mrb[0].mxu0
    %v338 = vadd.f32 %v248, %v337
    %v339 = vpop.f32.mrb[0].mxu0
    %v340 = vadd.f32 %v244, %v339
    %v341 = vpop.f32.mrb[0].mxu0
    %v342 = vadd.f32 %v248, %v341
    %343 = vdwg.mxu0
    %344 = vmatprep.subr.bf16.mxu0 %v194
    %345 = vmatpush1.bf16.msra.mxu0 %v193
    %346 = vmatprep.subr.bf16.mxu0 %v200
    %347 = vmatpush1.bf16.msra.mxu0 %v199
    %348 = vmatprep.subr.bf16.mxu0 %v206
    %349 = vmatpush1.bf16.msra.mxu0 %v205
    %350 = vmatprep.subr.bf16.mxu0 %v212
    %351 = vmatpush1.bf16.msra.mxu0 %v211
    %352 = vmatprep.subr.bf16.mxu0 %v218
    %353 = vmatpush1.bf16.msra.mxu0 %v217
    %354 = vmatprep.subr.bf16.mxu0 %v224
    %355 = vmatpush1.bf16.msra.mxu0 %v223
    %356 = vmatprep.subr.bf16.mxu0 %v230
    %357 = vmatpush1.bf16.msra.mxu0 %v229
    %358 = vmatprep.subr.bf16.mxu0 %v236
    %359 = vmatpush1.bf16.msra.mxu0 %v235
    %360 = vmatprep.subr.bf16.mxu0 0
    %361 = vmatpush1.bf16.msra.mxu0 0
    %362 = vmatprep.subr.bf16.mxu0 0
    %363 = vmatpush1.bf16.msra.mxu0 0
    %364 = vmatprep.subr.bf16.mxu0 0
    %365 = vmatpush1.bf16.msra.mxu0 0
    %366 = vmatprep.subr.bf16.mxu0 0
    %367 = vmatpush1.bf16.msra.mxu0 0
    %368 = vmatprep.subr.bf16.mxu0 0
    %369 = vmatpush1.bf16.msra.mxu0 0
    %370 = vmatprep.subr.bf16.mxu0 0
    %371 = vmatpush1.bf16.msra.mxu0 0
    %372 = vmatprep.subr.bf16.mxu0 0
    %373 = vmatpush1.bf16.msra.mxu0 0
    %374 = vmatprep.subr.bf16.mxu0 0
    %375 = vmatpush1.bf16.msra.mxu0 0
    %376 = vmatprep.mubr.bf16.mxu0 0
    %377 = vmatmul.mubr.bf16.gmra.mrb[0].mxu0 %v187
    %v378 = vpop.f32.mrb[0].mxu0
    %v379 = vadd.f32 %v252, %v378
    %v380 = vpop.f32.mrb[0].mxu0
    %v381 = vadd.f32 %v256, %v380
    %v382 = vpop.f32.mrb[0].mxu0
    %v383 = vadd.f32 %v252, %v382
    %v384 = vpop.f32.mrb[0].mxu0
    %v385 = vadd.f32 %v256, %v384
    %386 = vmatprep.mubr.bf16.mxu0 0
    %387 = vmatmul.mubr.bf16.gmra.mrb[0].mxu0 %v188
    %v388 = vpop.f32.mrb[0].mxu0
    %v389 = vadd.f32 %v252, %v388
    %v390 = vpop.f32.mrb[0].mxu0
    %v391 = vadd.f32 %v256, %v390
    %v392 = vpop.f32.mrb[0].mxu0
    %v393 = vadd.f32 %v252, %v392
    %v394 = vpop.f32.mrb[0].mxu0
    %v395 = vadd.f32 %v256, %v394
    %396 = vmatprep.mubr.bf16.mxu0 0
    %397 = vmatmul.mubr.bf16.gmra.mrb[0].mxu0 %v189
    %v398 = vpop.f32.mrb[0].mxu0
    %v399 = vadd.f32 %v252, %v398
    %v400 = vpop.f32.mrb[0].mxu0
    %v401 = vadd.f32 %v256, %v400
    %v402 = vpop.f32.mrb[0].mxu0
    %v403 = vadd.f32 %v252, %v402
    %v404 = vpop.f32.mrb[0].mxu0
    %v405 = vadd.f32 %v256, %v404
    %406 = vmatprep.mubr.bf16.mxu0 0
    %407 = vmatmul.mubr.bf16.gmra.mrb[0].mxu0 %v190
    %v408 = vpop.f32.mrb[0].mxu0
    %v409 = vadd.f32 %v252, %v408
    %v410 = vpop.f32.mrb[0].mxu0
    %v411 = vadd.f32 %v256, %v410
    %v412 = vpop.f32.mrb[0].mxu0
    %v413 = vadd.f32 %v252, %v412
    %v414 = vpop.f32.mrb[0].mxu0
    %v415 = vadd.f32 %v256, %v414
    %416 = vdwg.mxu0
    %417 = vmatprep.subr.bf16.mxu0 %v196
    %418 = vmatpush1.bf16.msra.mxu0 %v195
    %419 = vmatprep.subr.bf16.mxu0 %v202
    %420 = vmatpush1.bf16.msra.mxu0 %v201
    %421 = vmatprep.subr.bf16.mxu0 %v208
    %422 = vmatpush1.bf16.msra.mxu0 %v207
    %423 = vmatprep.subr.bf16.mxu0 %v214
    %424 = vmatpush1.bf16.msra.mxu0 %v213
    %425 = vmatprep.subr.bf16.mxu0 %v220
    %426 = vmatpush1.bf16.msra.mxu0 %v219
    %427 = vmatprep.subr.bf16.mxu0 %v226
    %428 = vmatpush1.bf16.msra.mxu0 %v225
    %429 = vmatprep.subr.bf16.mxu0 %v232
    %430 = vmatpush1.bf16.msra.mxu0 %v231
    %431 = vmatprep.subr.bf16.mxu0 %v238
    %432 = vmatpush1.bf16.msra.mxu0 %v237
    %433 = vmatprep.subr.bf16.mxu0 0
    %434 = vmatpush1.bf16.msra.mxu0 0
    %435 = vmatprep.subr.bf16.mxu0 0
    %436 = vmatpush1.bf16.msra.mxu0 0
    %437 = vmatprep.subr.bf16.mxu0 0
    %438 = vmatpush1.bf16.msra.mxu0 0
    %439 = vmatprep.subr.bf16.mxu0 0
    %440 = vmatpush1.bf16.msra.mxu0 0
    %441 = vmatprep.subr.bf16.mxu0 0
    %442 = vmatpush1.bf16.msra.mxu0 0
    %443 = vmatprep.subr.bf16.mxu0 0
    %444 = vmatpush1.bf16.msra.mxu0 0
    %445 = vmatprep.subr.bf16.mxu0 0
    %446 = vmatpush1.bf16.msra.mxu0 0
    %447 = vmatprep.subr.bf16.mxu0 0
    %448 = vmatpush1.bf16.msra.mxu0 0
    %449 = vmatprep.mubr.bf16.mxu0 0
    %450 = vmatmul.mubr.bf16.gmra.mrb[0].mxu0 %v187
    %v451 = vpop.f32.mrb[0].mxu0
    %v452 = vadd.f32 %v260, %v451
    %v453 = vpop.f32.mrb[0].mxu0
    %v454 = vadd.f32 %v264, %v453
    %v455 = vpop.f32.mrb[0].mxu0
    %v456 = vadd.f32 %v260, %v455
    %v457 = vpop.f32.mrb[0].mxu0
    %v458 = vadd.f32 %v264, %v457
    %459 = vmatprep.mubr.bf16.mxu0 0
    %460 = vmatmul.mubr.bf16.gmra.mrb[0].mxu0 %v188
    %v461 = vpop.f32.mrb[0].mxu0
    %v462 = vadd.f32 %v260, %v461
    %v463 = vpop.f32.mrb[0].mxu0
    %v464 = vadd.f32 %v264, %v463
    %v465 = vpop.f32.mrb[0].mxu0
    %v466 = vadd.f32 %v260, %v465
    %v467 = vpop.f32.mrb[0].mxu0
    %v468 = vadd.f32 %v264, %v467
    %469 = vmatprep.mubr.bf16.mxu0 0
    %470 = vmatmul.mubr.bf16.gmra.mrb[0].mxu0 %v189
    %v471 = vpop.f32.mrb[0].mxu0
    %v472 = vadd.f32 %v260, %v471
    %v473 = vpop.f32.mrb[0].mxu0
    %v474 = vadd.f32 %v264, %v473
    %v475 = vpop.f32.mrb[0].mxu0
    %v476 = vadd.f32 %v260, %v475
    %v477 = vpop.f32.mrb[0].mxu0
    %v478 = vadd.f32 %v264, %v477
    %479 = vmatprep.mubr.bf16.mxu0 0
    %480 = vmatmul.mubr.bf16.gmra.mrb[0].mxu0 %v190
    %v481 = vpop.f32.mrb[0].mxu0
    %v482 = vadd.f32 %v260, %v481
    %v483 = vpop.f32.mrb[0].mxu0
    %v484 = vadd.f32 %v264, %v483
    %v485 = vpop.f32.mrb[0].mxu0
    %v486 = vadd.f32 %v260, %v485
    %v487 = vpop.f32.mrb[0].mxu0
    %v488 = vadd.f32 %v264, %v487
    %489 = vdwg.mxu0
    %490 = vst [vmem:[#allocation2] sm:$0xff] %v306
    %491 = vst [vmem:[#allocation2 + $0x8] sm:$0xff] %v308
    %492 = vst [vmem:[#allocation2 + $0x10] sm:$0xff] %v379
    %493 = vst [vmem:[#allocation2 + $0x18] sm:$0xff] %v381
    %494 = vst [vmem:[#allocation2 + $0x20] sm:$0xff] %v452
    %495 = vst [vmem:[#allocation2 + $0x28] sm:$0xff] %v454
    %496 = vst [vmem:[#allocation2 + $0x30] sm:$0xff] %v310
    %497 = vst [vmem:[#allocation2 + $0x38] sm:$0xff] %v312
    %498 = vst [vmem:[#allocation2 + $0x40] sm:$0xff] %v383
    %499 = vst [vmem:[#allocation2 + $0x48] sm:$0xff] %v385
    %500 = vst [vmem:[#allocation2 + $0x50] sm:$0xff] %v456
    %501 = vst [vmem:[#allocation2 + $0x58] sm:$0xff] %v458
    %502 = vst [vmem:[#allocation2 + $0x60] sm:$0xff] %v316
    %503 = vst [vmem:[#allocation2 + $0x68] sm:$0xff] %v318
    %504 = vst [vmem:[#allocation2 + $0x70] sm:$0xff] %v389
    %505 = vst [vmem:[#allocation2 + $0x78] sm:$0xff] %v391
    %506 = vst [vmem:[#allocation2 + $0x80] sm:$0xff] %v462
    %507 = vst [vmem:[#allocation2 + $0x88] sm:$0xff] %v464
    %508 = vst [vmem:[#allocation2 + $0x90] sm:$0xff] %v320
    %509 = vst [vmem:[#allocation2 + $0x98] sm:$0xff] %v322
    %510 = vst [vmem:[#allocation2 + $0xa0] sm:$0xff] %v393
    %511 = vst [vmem:[#allocation2 + $0xa8] sm:$0xff] %v395
    %512 = vst [vmem:[#allocation2 + $0xb0] sm:$0xff] %v466
    %513 = vst [vmem:[#allocation2 + $0xb8] sm:$0xff] %v468
    %514 = vst [vmem:[#allocation2 + $0xc0] sm:$0xff] %v326
    %515 = vst [vmem:[#allocation2 + $0xc8] sm:$0xff] %v328
    %516 = vst [vmem:[#allocation2 + $0xd0] sm:$0xff] %v399
    %517 = vst [vmem:[#allocation2 + $0xd8] sm:$0xff] %v401
    %518 = vst [vmem:[#allocation2 + $0xe0] sm:$0xff] %v472
    %519 = vst [vmem:[#allocation2 + $0xe8] sm:$0xff] %v474
    %520 = vst [vmem:[#allocation2 + $0xf0] sm:$0xff] %v330
    %521 = vst [vmem:[#allocation2 + $0xf8] sm:$0xff] %v332
    %522 = vst [vmem:[#allocation2 + $0x100] sm:$0xff] %v403
    %523 = vst [vmem:[#allocation2 + $0x108] sm:$0xff] %v405
    %524 = vst [vmem:[#allocation2 + $0x110] sm:$0xff] %v476
    %525 = vst [vmem:[#allocation2 + $0x118] sm:$0xff] %v478
    %526 = vst [vmem:[#allocation2 + $0x120] sm:$0xff] %v336
    %527 = vst [vmem:[#allocation2 + $0x128] sm:$0xff] %v338
    %528 = vst [vmem:[#allocation2 + $0x130] sm:$0xff] %v409
    %529 = vst [vmem:[#allocation2 + $0x138] sm:$0xff] %v411
    %530 = vst [vmem:[#allocation2 + $0x140] sm:$0xff] %v482
    %531 = vst [vmem:[#allocation2 + $0x148] sm:$0xff] %v484
    %532 = vst [vmem:[#allocation2 + $0x150] sm:$0xff] %v340
    %533 = vst [vmem:[#allocation2 + $0x158] sm:$0xff] %v342
    %534 = vst [vmem:[#allocation2 + $0x160] sm:$0xff] %v413
    %535 = vst [vmem:[#allocation2 + $0x168] sm:$0xff] %v415
    %536 = vst [vmem:[#allocation2 + $0x170] sm:$0xff] %v486
    %537 = vst [vmem:[#allocation2 + $0x178] sm:$0xff] %v488
    %v538 = vld [vmem:[#allocation7] sm:$0xff]
    %v539 = vld [vmem:[#allocation7 + $0x8] sm:$0xff]
    %v540 = vld [vmem:[#allocation7 + $0x10] sm:$0xff]
    %v541 = vld [vmem:[#allocation7 + $0x18] sm:$0xff]
    %v542 = vld [vmem:[#allocation7 + $0x20] sm:$0xff]
    %v543 = vld [vmem:[#allocation7 + $0x28] sm:$0xff]
    %v544 = vld [vmem:[#allocation7 + $0x30] sm:$0xff]
    %v545 = vld [vmem:[#allocation7 + $0x38] sm:$0xff]
    %v546 = vld [vmem:[#allocation7 + $0x40] sm:$0xff]
    %v547 = vld [vmem:[#allocation7 + $0x48] sm:$0xff]
    %v548 = vld [vmem:[#allocation7 + $0x50] sm:$0xff]
    %v549 = vld [vmem:[#allocation7 + $0x58] sm:$0xff]
    %v550 = vld [vmem:[#allocation7 + $0x60] sm:$0xff]
    %v551 = vld [vmem:[#allocation7 + $0x68] sm:$0xff]
    %v552 = vld [vmem:[#allocation7 + $0x70] sm:$0xff]
    %v553 = vld [vmem:[#allocation7 + $0x78] sm:$0xff]
    %v554 = vld [vmem:[#allocation7 + $0x80] sm:$0xff]
    %v555 = vld [vmem:[#allocation7 + $0x88] sm:$0xff]
    %v556 = vld [vmem:[#allocation7 + $0x90] sm:$0xff]
    %v557 = vld [vmem:[#allocation7 + $0x98] sm:$0xff]
    %v558 = vld [vmem:[#allocation7 + $0xa0] sm:$0xff]
    %v559 = vld [vmem:[#allocation7 + $0xa8] sm:$0xff]
    %v560 = vld [vmem:[#allocation7 + $0xb0] sm:$0xff]
    %v561 = vld [vmem:[#allocation7 + $0xb8] sm:$0xff]
    %v562 = vld [vmem:[#allocation7 + $0xc0] sm:$0xff]
    %v563 = vld [vmem:[#allocation7 + $0xc8] sm:$0xff]
    %v564 = vld [vmem:[#allocation7 + $0xd0] sm:$0xff]
    %v565 = vld [vmem:[#allocation7 + $0xd8] sm:$0xff]
    %v566 = vld [vmem:[#allocation7 + $0xe0] sm:$0xff]
    %v567 = vld [vmem:[#allocation7 + $0xe8] sm:$0xff]
    %v568 = vld [vmem:[#allocation7 + $0xf0] sm:$0xff]
    %v569 = vld [vmem:[#allocation7 + $0xf8] sm:$0xff]
    %v570 = vld [vmem:[#allocation7 + $0x100] sm:$0xff]
    %v571 = vld [vmem:[#allocation7 + $0x108] sm:$0xff]
    %v572 = vld [vmem:[#allocation7 + $0x110] sm:$0xff]
    %v573 = vld [vmem:[#allocation7 + $0x118] sm:$0xff]
    %v574 = vld [vmem:[#allocation7 + $0x120] sm:$0xff]
    %v575 = vld [vmem:[#allocation7 + $0x128] sm:$0xff]
    %v576 = vld [vmem:[#allocation7 + $0x130] sm:$0xff]
    %v577 = vld [vmem:[#allocation7 + $0x138] sm:$0xff]
    %v578 = vld [vmem:[#allocation7 + $0x140] sm:$0xff]
    %v579 = vld [vmem:[#allocation7 + $0x148] sm:$0xff]
    %v580 = vld [vmem:[#allocation7 + $0x150] sm:$0xff]
    %v581 = vld [vmem:[#allocation7 + $0x158] sm:$0xff]
    %v582 = vld [vmem:[#allocation7 + $0x160] sm:$0xff]
    %v583 = vld [vmem:[#allocation7 + $0x168] sm:$0xff]
    %v584 = vld [vmem:[#allocation7 + $0x170] sm:$0xff]
    %v585 = vld [vmem:[#allocation7 + $0x178] sm:$0xff]
    %v586 = vld [vmem:[#allocation9] sm:$0xff]
    %v587 = vld [vmem:[#allocation9 + $0x8] sm:$0xff]
    %v588 = vld [vmem:[#allocation9 + $0x10] sm:$0xff]
    %v589 = vld [vmem:[#allocation9 + $0x18] sm:$0xff]
    %v590 = vld [vmem:[#allocation9 + $0x20] sm:$0xff]
    %v591 = vld [vmem:[#allocation9 + $0x28] sm:$0xff]
    %v592 = vld [vmem:[#allocation9 + $0x30] sm:$0xff]
    %v593 = vld [vmem:[#allocation9 + $0x38] sm:$0xff]
    %v594 = vld [vmem:[#allocation9 + $0x40] sm:$0xff]
    %v595 = vld [vmem:[#allocation9 + $0x48] sm:$0xff]
    %v596 = vld [vmem:[#allocation9 + $0x50] sm:$0xff]
    %v597 = vld [vmem:[#allocation9 + $0x58] sm:$0xff]
    %v598 = vld [vmem:[#allocation9 + $0x60] sm:$0xff]
    %v599 = vld [vmem:[#allocation9 + $0x68] sm:$0xff]
    %v600 = vld [vmem:[#allocation9 + $0x70] sm:$0xff]
    %v601 = vld [vmem:[#allocation9 + $0x78] sm:$0xff]
    %v602 = vld [vmem:[#allocation9 + $0x80] sm:$0xff]
    %v603 = vld [vmem:[#allocation9 + $0x88] sm:$0xff]
    %v604 = vld [vmem:[#allocation9 + $0x90] sm:$0xff]
    %v605 = vld [vmem:[#allocation9 + $0x98] sm:$0xff]
    %v606 = vld [vmem:[#allocation9 + $0xa0] sm:$0xff]
    %v607 = vld [vmem:[#allocation9 + $0xa8] sm:$0xff]
    %v608 = vld [vmem:[#allocation9 + $0xb0] sm:$0xff]
    %v609 = vld [vmem:[#allocation9 + $0xb8] sm:$0xff]
    %v610 = vld [vmem:[#allocation9 + $0xc0] sm:$0xff]
    %v611 = vld [vmem:[#allocation9 + $0xc8] sm:$0xff]
    %v612 = vld [vmem:[#allocation9 + $0xd0] sm:$0xff]
    %v613 = vld [vmem:[#allocation9 + $0xd8] sm:$0xff]
    %v614 = vld [vmem:[#allocation9 + $0xe0] sm:$0xff]
    %v615 = vld [vmem:[#allocation9 + $0xe8] sm:$0xff]
    %v616 = vld [vmem:[#allocation9 + $0xf0] sm:$0xff]
    %v617 = vld [vmem:[#allocation9 + $0xf8] sm:$0xff]
    %v618 = vld [vmem:[#allocation9 + $0x100] sm:$0xff]
    %v619 = vld [vmem:[#allocation9 + $0x108] sm:$0xff]
    %v620 = vld [vmem:[#allocation9 + $0x110] sm:$0xff]
    %v621 = vld [vmem:[#allocation9 + $0x118] sm:$0xff]
    %v622 = vld [vmem:[#allocation9 + $0x120] sm:$0xff]
    %v623 = vld [vmem:[#allocation9 + $0x128] sm:$0xff]
    %v624 = vld [vmem:[#allocation9 + $0x130] sm:$0xff]
    %v625 = vld [vmem:[#allocation9 + $0x138] sm:$0xff]
    %v626 = vld [vmem:[#allocation9 + $0x140] sm:$0xff]
    %v627 = vld [vmem:[#allocation9 + $0x148] sm:$0xff]
    %v628 = vld [vmem:[#allocation9 + $0x150] sm:$0xff]
    %v629 = vld [vmem:[#allocation9 + $0x158] sm:$0xff]
    %v630 = vld [vmem:[#allocation9 + $0x160] sm:$0xff]
    %v631 = vld [vmem:[#allocation9 + $0x168] sm:$0xff]
    %v632 = vld [vmem:[#allocation9 + $0x170] sm:$0xff]
    %v633 = vld [vmem:[#allocation9 + $0x178] sm:$0xff]
    %v634 = vld [vmem:[%s6] sm:$0x7]
    %v635 = vld [vmem:[%s7] sm:$0x7]
    %636 = vst [vmem:[#allocation5] sm:$0xff] 0.0
    %637 = vst [vmem:[#allocation6] sm:$0xff] 0.0
    %v638 = vld [vmem:[#allocation2] sm:$0xff]
    %v639 = vld [vmem:[#allocation2 + $0x8] sm:$0xff]
    %v640 = vld [vmem:[#allocation2 + $0x10] sm:$0xff]
    %v641 = vld [vmem:[#allocation5] sm:$0xff]
    %v643 = vlaneseq
    %v644 = vshrl.u32 %v643, 7
    %v645 = vsub.s32 0, %v644
    %v646 = vrot.slane %v634, %v645
    %v647 = vlaneseq
    %v648 = vshrl.u32 %v647, 7
    %v649 = vsub.s32 1, %v648
    %v650 = vrot.slane %v634, %v649
    %v651 = vlaneseq
    %v652 = vshrl.u32 %v651, 7
    %v653 = vsub.s32 2, %v652
    %v654 = vrot.slane %v634, %v653
    %658 = vmatprep.subr.mxu0 %v539
    %659 = vmatpush1.msra.mxu0 %v538
    %660 = vmatprep.subr.mxu0 %v542
    %661 = vmatpush1.msra.mxu0 %v541
    %662 = vmatprep.subr.mxu0 %v545
    %663 = vmatpush1.msra.mxu0 %v544
    %664 = vmatprep.subr.mxu0 %v548
    %665 = vmatpush1.msra.mxu0 %v547
    %666 = vmatprep.subr.mxu0 %v551
    %667 = vmatpush1.msra.mxu0 %v550
    %668 = vmatprep.subr.mxu0 %v554
    %669 = vmatpush1.msra.mxu0 %v553
    %670 = vmatprep.subr.mxu0 %v557
    %671 = vmatpush1.msra.mxu0 %v556
    %672 = vmatprep.subr.mxu0 %v560
    %673 = vmatpush1.msra.mxu0 %v559
    %674 = vmatprep.subr.mxu0 %v563
    %675 = vmatpush1.msra.mxu0 %v562
    %676 = vmatprep.subr.mxu0 %v566
    %677 = vmatpush1.msra.mxu0 %v565
    %678 = vmatprep.subr.mxu0 %v569
    %679 = vmatpush1.msra.mxu0 %v568
    %680 = vmatprep.subr.mxu0 %v572
    %681 = vmatpush1.msra.mxu0 %v571
    %682 = vmatprep.subr.mxu0 %v575
    %683 = vmatpush1.msra.mxu0 %v574
    %684 = vmatprep.subr.mxu0 %v578
    %685 = vmatpush1.msra.mxu0 %v577
    %686 = vmatprep.subr.mxu0 %v581
    %687 = vmatpush1.msra.mxu0 %v580
    %688 = vmatprep.subr.mxu0 %v584
    %689 = vmatpush1.msra.mxu0 %v583
    %690 = vmatprep.subr.mxu0 0.0
    %691 = vmatpush1.msra.mxu0 0.0
    %692 = vmatprep.subr.mxu0 0.0
    %693 = vmatpush1.msra.mxu0 0.0
    %694 = vmatprep.subr.mxu0 0.0
    %695 = vmatpush1.msra.mxu0 0.0
    %696 = vmatprep.subr.mxu0 0.0
    %697 = vmatpush1.msra.mxu0 0.0
    %698 = vmatprep.subr.mxu0 0.0
    %699 = vmatpush1.msra.mxu0 0.0
    %700 = vmatprep.subr.mxu0 0.0
    %701 = vmatpush1.msra.mxu0 0.0
    %702 = vmatprep.subr.mxu0 0.0
    %703 = vmatpush1.msra.mxu0 0.0
    %704 = vmatprep.subr.mxu0 0.0
    %705 = vmatpush1.msra.mxu0 0.0
    %706 = vmatprep.subr.mxu0 0.0
    %707 = vmatpush1.msra.mxu0 0.0
    %708 = vmatprep.subr.mxu0 0.0
    %709 = vmatpush1.msra.mxu0 0.0
    %710 = vmatprep.subr.mxu0 0.0
    %711 = vmatpush1.msra.mxu0 0.0
    %712 = vmatprep.subr.mxu0 0.0
    %713 = vmatpush1.msra.mxu0 0.0
    %714 = vmatprep.subr.mxu0 0.0
    %715 = vmatpush1.msra.mxu0 0.0
    %716 = vmatprep.subr.mxu0 0.0
    %717 = vmatpush1.msra.mxu0 0.0
    %718 = vmatprep.subr.mxu0 0.0
    %719 = vmatpush1.msra.mxu0 0.0
    %720 = vmatprep.subr.mxu0 0.0
    %721 = vmatpush1.msra.mxu0 0.0
    %722 = vmatprep.mubr.f32.mxu0 0.0
    %723 = vmatmul.mubr.f32.gmra.mrb[0].mxu0 %v641
    %v724 = vpop.f32.mrb[0].mxu0
    %v725 = vadd.f32 %v646, %v724
    %v726 = vpop.f32.mrb[0].mxu0
    %v727 = vadd.f32 %v650, %v726
    %728 = vdwg.mxu0
    %729 = vmatprep.subr.mxu0 0.0
    %730 = vmatpush1.msra.mxu0 %v540
    %731 = vmatprep.subr.mxu0 0.0
    %732 = vmatpush1.msra.mxu0 %v543
    %733 = vmatprep.subr.mxu0 0.0
    %734 = vmatpush1.msra.mxu0 %v546
    %735 = vmatprep.subr.mxu0 0.0
    %736 = vmatpush1.msra.mxu0 %v549
    %737 = vmatprep.subr.mxu0 0.0
    %738 = vmatpush1.msra.mxu0 %v552
    %739 = vmatprep.subr.mxu0 0.0
    %740 = vmatpush1.msra.mxu0 %v555
    %741 = vmatprep.subr.mxu0 0.0
    %742 = vmatpush1.msra.mxu0 %v558
    %743 = vmatprep.subr.mxu0 0.0
    %744 = vmatpush1.msra.mxu0 %v561
    %745 = vmatprep.subr.mxu0 0.0
    %746 = vmatpush1.msra.mxu0 %v564
    %747 = vmatprep.subr.mxu0 0.0
    %748 = vmatpush1.msra.mxu0 %v567
    %749 = vmatprep.subr.mxu0 0.0
    %750 = vmatpush1.msra.mxu0 %v570
    %751 = vmatprep.subr.mxu0 0.0
    %752 = vmatpush1.msra.mxu0 %v573
    %753 = vmatprep.subr.mxu0 0.0
    %754 = vmatpush1.msra.mxu0 %v576
    %755 = vmatprep.subr.mxu0 0.0
    %756 = vmatpush1.msra.mxu0 %v579
    %757 = vmatprep.subr.mxu0 0.0
    %758 = vmatpush1.msra.mxu0 %v582
    %759 = vmatprep.subr.mxu0 0.0
    %760 = vmatpush1.msra.mxu0 %v585
    %761 = vmatprep.subr.mxu0 0.0
    %762 = vmatpush1.msra.mxu0 0.0
    %763 = vmatprep.subr.mxu0 0.0
    %764 = vmatpush1.msra.mxu0 0.0
    %765 = vmatprep.subr.mxu0 0.0
    %766 = vmatpush1.msra.mxu0 0.0
    %767 = vmatprep.subr.mxu0 0.0
    %768 = vmatpush1.msra.mxu0 0.0
    %769 = vmatprep.subr.mxu0 0.0
    %770 = vmatpush1.msra.mxu0 0.0
    %771 = vmatprep.subr.mxu0 0.0
    %772 = vmatpush1.msra.mxu0 0.0
    %773 = vmatprep.subr.mxu0 0.0
    %774 = vmatpush1.msra.mxu0 0.0
    %775 = vmatprep.subr.mxu0 0.0
    %776 = vmatpush1.msra.mxu0 0.0
    %777 = vmatprep.subr.mxu0 0.0
    %778 = vmatpush1.msra.mxu0 0.0
    %779 = vmatprep.subr.mxu0 0.0
    %780 = vmatpush1.msra.mxu0 0.0
    %781 = vmatprep.subr.mxu0 0.0
    %782 = vmatpush1.msra.mxu0 0.0
    %783 = vmatprep.subr.mxu0 0.0
    %784 = vmatpush1.msra.mxu0 0.0
    %785 = vmatprep.subr.mxu0 0.0
    %786 = vmatpush1.msra.mxu0 0.0
    %787 = vmatprep.subr.mxu0 0.0
    %788 = vmatpush1.msra.mxu0 0.0
    %789 = vmatprep.subr.mxu0 0.0
    %790 = vmatpush1.msra.mxu0 0.0
    %791 = vmatprep.subr.mxu0 0.0
    %792 = vmatpush1.msra.mxu0 0.0
    %793 = vmatprep.mubr.f32.mxu0 0.0
    %794 = vmatmul.mubr.f32.gmra.mrb[0].mxu0 %v641
    %v795 = vpop.f32.mrb[0].mxu0
    %v796 = vadd.f32 %v654, %v795
    %v797 = vpop.f32.mrb[0].mxu0
    %798 = vdwg.mxu0
    %v799 = vadd.f32 %v638, %v725
    %v800 = vxor.u32 %v799, 2147483648
    %v801 = vmul.f32 %v800, 1.442695
    %v802 = vpow.pop %v801
    %v803 = vadd.f32 %v802, 1.0
    %v804 = vrcp.pop %v803
    %v805 = vmul.f32 1.0, %v804
    %v806 = vadd.f32 %v639, %v727
    %v807 = vxor.u32 %v806, 2147483648
    %v808 = vmul.f32 %v807, 1.442695
    %v809 = vpow.pop %v808
    %v810 = vadd.f32 %v809, 1.0
    %v811 = vrcp.pop %v810
    %v812 = vmul.f32 1.0, %v811
    %v813 = vmul.f32 %v805, %v796
    %v814 = vadd.f32 %v640, %v813
    %v815 = vtanh.pop %v814
    %v816 = vsub.f32 1.0, %v812
    %v817 = vmul.f32 %v816, %v815
    %v818 = vmul.f32 %v812, %v641
    %v819 = vadd.f32 %v817, %v818
    %vm820 = vcmp.gt.s32.totalorder %v82, 0
    %v821 = vsel %vm820, 1, 0
    %822 = vset.pattern.permute.xlu0 0
    %823 = vperm.xlu0 %822, %v821
    %v824 = vpop.permute.xlu0 %823
    %vm825 = vcmp.eq.s32.totalorder %v824, 1
    %v826 = vsel %vm825, %v819, %v641
    %827 = vst [vmem:[#allocation5] sm:$0xff] %v826
    %v828 = vsel %vm825, %v819, 0.0
    %829 = vst [vmem:[#allocation3] sm:$0xff] %v828
    %s830 = scalar_lea.vmem [#allocation2], 336
    %v831 = vld [vmem:[%s830 + $0x18] sm:$0xff]
    %v832 = vld [vmem:[%s830 + $0x20] sm:$0xff]
    %v833 = vld [vmem:[%s830 + $0x28] sm:$0xff]
    %v834 = vld [vmem:[#allocation6] sm:$0xff]
    %v836 = vlaneseq
    %v837 = vshrl.u32 %v836, 7
    %v838 = vsub.s32 0, %v837
    %v839 = vrot.slane %v635, %v838
    %v840 = vlaneseq
    %v841 = vshrl.u32 %v840, 7
    %v842 = vsub.s32 1, %v841
    %v843 = vrot.slane %v635, %v842
    %v844 = vlaneseq
    %v845 = vshrl.u32 %v844, 7
    %v846 = vsub.s32 2, %v845
    %v847 = vrot.slane %v635, %v846
    %851 = vmatprep.subr.mxu0 %v587
    %852 = vmatpush1.msra.mxu0 %v586
    %853 = vmatprep.subr.mxu0 %v590
    %854 = vmatpush1.msra.mxu0 %v589
    %855 = vmatprep.subr.mxu0 %v593
    %856 = vmatpush1.msra.mxu0 %v592
    %857 = vmatprep.subr.mxu0 %v596
    %858 = vmatpush1.msra.mxu0 %v595
    %859 = vmatprep.subr.mxu0 %v599
    %860 = vmatpush1.msra.mxu0 %v598
    %861 = vmatprep.subr.mxu0 %v602
    %862 = vmatpush1.msra.mxu0 %v601
    %863 = vmatprep.subr.mxu0 %v605
    %864 = vmatpush1.msra.mxu0 %v604
    %865 = vmatprep.subr.mxu0 %v608
    %866 = vmatpush1.msra.mxu0 %v607
    %867 = vmatprep.subr.mxu0 %v611
    %868 = vmatpush1.msra.mxu0 %v610
    %869 = vmatprep.subr.mxu0 %v614
    %870 = vmatpush1.msra.mxu0 %v613
    %871 = vmatprep.subr.mxu0 %v617
    %872 = vmatpush1.msra.mxu0 %v616
    %873 = vmatprep.subr.mxu0 %v620
    %874 = vmatpush1.msra.mxu0 %v619
    %875 = vmatprep.subr.mxu0 %v623
    %876 = vmatpush1.msra.mxu0 %v622
    %877 = vmatprep.subr.mxu0 %v626
    %878 = vmatpush1.msra.mxu0 %v625
    %879 = vmatprep.subr.mxu0 %v629
    %880 = vmatpush1.msra.mxu0 %v628
    %881 = vmatprep.subr.mxu0 %v632
    %882 = vmatpush1.msra.mxu0 %v631
    %883 = vmatprep.subr.mxu0 0.0
    %884 = vmatpush1.msra.mxu0 0.0
    %885 = vmatprep.subr.mxu0 0.0
    %886 = vmatpush1.msra.mxu0 0.0
    %887 = vmatprep.subr.mxu0 0.0
    %888 = vmatpush1.msra.mxu0 0.0
    %889 = vmatprep.subr.mxu0 0.0
    %890 = vmatpush1.msra.mxu0 0.0
    %891 = vmatprep.subr.mxu0 0.0
    %892 = vmatpush1.msra.mxu0 0.0
    %893 = vmatprep.subr.mxu0 0.0
    %894 = vmatpush1.msra.mxu0 0.0
    %895 = vmatprep.subr.mxu0 0.0
    %896 = vmatpush1.msra.mxu0 0.0
    %897 = vmatprep.subr.mxu0 0.0
    %898 = vmatpush1.msra.mxu0 0.0
    %899 = vmatprep.subr.mxu0 0.0
    %900 = vmatpush1.msra.mxu0 0.0
    %901 = vmatprep.subr.mxu0 0.0
    %902 = vmatpush1.msra.mxu0 0.0
    %903 = vmatprep.subr.mxu0 0.0
    %904 = vmatpush1.msra.mxu0 0.0
    %905 = vmatprep.subr.mxu0 0.0
    %906 = vmatpush1.msra.mxu0 0.0
    %907 = vmatprep.subr.mxu0 0.0
    %908 = vmatpush1.msra.mxu0 0.0
    %909 = vmatprep.subr.mxu0 0.0
    %910 = vmatpush1.msra.mxu0 0.0
    %911 = vmatprep.subr.mxu0 0.0
    %912 = vmatpush1.msra.mxu0 0.0
    %913 = vmatprep.subr.mxu0 0.0
    %914 = vmatpush1.msra.mxu0 0.0
    %915 = vmatprep.mubr.f32.mxu0 0.0
    %916 = vmatmul.mubr.f32.gmra.mrb[0].mxu0 %v834
    %v917 = vpop.f32.mrb[0].mxu0
    %v918 = vadd.f32 %v839, %v917
    %v919 = vpop.f32.mrb[0].mxu0
    %v920 = vadd.f32 %v843, %v919
    %921 = vdwg.mxu0
    %922 = vmatprep.subr.mxu0 0.0
    %923 = vmatpush1.msra.mxu0 %v588
    %924 = vmatprep.subr.mxu0 0.0
    %925 = vmatpush1.msra.mxu0 %v591
    %926 = vmatprep.subr.mxu0 0.0
    %927 = vmatpush1.msra.mxu0 %v594
    %928 = vmatprep.subr.mxu0 0.0
    %929 = vmatpush1.msra.mxu0 %v597
    %930 = vmatprep.subr.mxu0 0.0
    %931 = vmatpush1.msra.mxu0 %v600
    %932 = vmatprep.subr.mxu0 0.0
    %933 = vmatpush1.msra.mxu0 %v603
    %934 = vmatprep.subr.mxu0 0.0
    %935 = vmatpush1.msra.mxu0 %v606
    %936 = vmatprep.subr.mxu0 0.0
    %937 = vmatpush1.msra.mxu0 %v609
    %938 = vmatprep.subr.mxu0 0.0
    %939 = vmatpush1.msra.mxu0 %v612
    %940 = vmatprep.subr.mxu0 0.0
    %941 = vmatpush1.msra.mxu0 %v615
    %942 = vmatprep.subr.mxu0 0.0
    %943 = vmatpush1.msra.mxu0 %v618
    %944 = vmatprep.subr.mxu0 0.0
    %945 = vmatpush1.msra.mxu0 %v621
    %946 = vmatprep.subr.mxu0 0.0
    %947 = vmatpush1.msra.mxu0 %v624
    %948 = vmatprep.subr.mxu0 0.0
    %949 = vmatpush1.msra.mxu0 %v627
    %950 = vmatprep.subr.mxu0 0.0
    %951 = vmatpush1.msra.mxu0 %v630
    %952 = vmatprep.subr.mxu0 0.0
    %953 = vmatpush1.msra.mxu0 %v633
    %954 = vmatprep.subr.mxu0 0.0
    %955 = vmatpush1.msra.mxu0 0.0
    %956 = vmatprep.subr.mxu0 0.0
    %957 = vmatpush1.msra.mxu0 0.0
    %958 = vmatprep.subr.mxu0 0.0
    %959 = vmatpush1.msra.mxu0 0.0
    %960 = vmatprep.subr.mxu0 0.0
    %961 = vmatpush1.msra.mxu0 0.0
    %962 = vmatprep.subr.mxu0 0.0
    %963 = vmatpush1.msra.mxu0 0.0
    %964 = vmatprep.subr.mxu0 0.0
    %965 = vmatpush1.msra.mxu0 0.0
    %966 = vmatprep.subr.mxu0 0.0
    %967 = vmatpush1.msra.mxu0 0.0
    %968 = vmatprep.subr.mxu0 0.0
    %969 = vmatpush1.msra.mxu0 0.0
    %970 = vmatprep.subr.mxu0 0.0
    %971 = vmatpush1.msra.mxu0 0.0
    %972 = vmatprep.subr.mxu0 0.0
    %973 = vmatpush1.msra.mxu0 0.0
    %974 = vmatprep.subr.mxu0 0.0
    %975 = vmatpush1.msra.mxu0 0.0
    %976 = vmatprep.subr.mxu0 0.0
    %977 = vmatpush1.msra.mxu0 0.0
    %978 = vmatprep.subr.mxu0 0.0
    %979 = vmatpush1.msra.mxu0 0.0
    %980 = vmatprep.subr.mxu0 0.0
    %981 = vmatpush1.msra.mxu0 0.0
    %982 = vmatprep.subr.mxu0 0.0
    %983 = vmatpush1.msra.mxu0 0.0
    %984 = vmatprep.subr.mxu0 0.0
    %985 = vmatpush1.msra.mxu0 0.0
    %986 = vmatprep.mubr.f32.mxu0 0.0
    %987 = vmatmul.mubr.f32.gmra.mrb[0].mxu0 %v834
    %v988 = vpop.f32.mrb[0].mxu0
    %v989 = vadd.f32 %v847, %v988
    %v990 = vpop.f32.mrb[0].mxu0
    %991 = vdwg.mxu0
    %v992 = vadd.f32 %v831, %v918
    %v993 = vxor.u32 %v992, 2147483648
    %v994 = vmul.f32 %v993, 1.442695
    %v995 = vpow.pop %v994
    %v996 = vadd.f32 %v995, 1.0
    %v997 = vrcp.pop %v996
    %v998 = vmul.f32 1.0, %v997
    %v999 = vadd.f32 %v832, %v920
    %v1000 = vxor.u32 %v999, 2147483648
    %v1001 = vmul.f32 %v1000, 1.442695
    %v1002 = vpow.pop %v1001
    %v1003 = vadd.f32 %v1002, 1.0
    %v1004 = vrcp.pop %v1003
    %v1005 = vmul.f32 1.0, %v1004
    %v1006 = vmul.f32 %v998, %v989
    %v1007 = vadd.f32 %v833, %v1006
    %v1008 = vtanh.pop %v1007
    %v1009 = vsub.f32 1.0, %v1005
    %v1010 = vmul.f32 %v1009, %v1008
    %v1011 = vmul.f32 %v1005, %v834
    %v1012 = vadd.f32 %v1010, %v1011
    %vm1013 = vcmp.gt.s32.totalorder %v82, 7
    %v1014 = vsel %vm1013, 1, 0
    %1015 = vset.pattern.permute.xlu0 0
    %1016 = vperm.xlu0 %1015, %v1014
    %v1017 = vpop.permute.xlu0 %1016
    %vm1018 = vcmp.eq.s32.totalorder %v1017, 1
    %v1019 = vsel %vm1018, %v1012, %v834
    %1020 = vst [vmem:[#allocation6] sm:$0xff] %v1019
    %v1021 = vsel %vm1018, %v1012, 0.0
    %s1022 = scalar_lea.vmem [#allocation4], 56
    %1023 = vst [vmem:[%s1022] sm:$0xff] %v1021
    %s1024 = scalar_lea.vmem [#allocation2], 48
    %v1025 = vld [vmem:[%s1024] sm:$0xff]
    %v1026 = vld [vmem:[%s1024 + $0x8] sm:$0xff]
    %v1027 = vld [vmem:[%s1024 + $0x10] sm:$0xff]
    %v1028 = vld [vmem:[#allocation5] sm:$0xff]
    %1029 = vmatprep.subr.mxu0 %v539
    %1030 = vmatpush1.msra.mxu0 %v538
    %1031 = vmatprep.subr.mxu0 %v542
    %1032 = vmatpush1.msra.mxu0 %v541
    %1033 = vmatprep.subr.mxu0 %v545
    %1034 = vmatpush1.msra.mxu0 %v544
    %1035 = vmatprep.subr.mxu0 %v548
    %1036 = vmatpush1.msra.mxu0 %v547
    %1037 = vmatprep.subr.mxu0 %v551
    %1038 = vmatpush1.msra.mxu0 %v550
    %1039 = vmatprep.subr.mxu0 %v554
    %1040 = vmatpush1.msra.mxu0 %v553
    %1041 = vmatprep.subr.mxu0 %v557
    %1042 = vmatpush1.msra.mxu0 %v556
    %1043 = vmatprep.subr.mxu0 %v560
    %1044 = vmatpush1.msra.mxu0 %v559
    %1045 = vmatprep.subr.mxu0 %v563
    %1046 = vmatpush1.msra.mxu0 %v562
    %1047 = vmatprep.subr.mxu0 %v566
    %1048 = vmatpush1.msra.mxu0 %v565
    %1049 = vmatprep.subr.mxu0 %v569
    %1050 = vmatpush1.msra.mxu0 %v568
    %1051 = vmatprep.subr.mxu0 %v572
    %1052 = vmatpush1.msra.mxu0 %v571
    %1053 = vmatprep.subr.mxu0 %v575
    %1054 = vmatpush1.msra.mxu0 %v574
    %1055 = vmatprep.subr.mxu0 %v578
    %1056 = vmatpush1.msra.mxu0 %v577
    %1057 = vmatprep.subr.mxu0 %v581
    %1058 = vmatpush1.msra.mxu0 %v580
    %1059 = vmatprep.subr.mxu0 %v584
    %1060 = vmatpush1.msra.mxu0 %v583
    %1061 = vmatprep.subr.mxu0 0.0
    %1062 = vmatpush1.msra.mxu0 0.0
    %1063 = vmatprep.subr.mxu0 0.0
    %1064 = vmatpush1.msra.mxu0 0.0
    %1065 = vmatprep.subr.mxu0 0.0
    %1066 = vmatpush1.msra.mxu0 0.0
    %1067 = vmatprep.subr.mxu0 0.0
    %1068 = vmatpush1.msra.mxu0 0.0
    %1069 = vmatprep.subr.mxu0 0.0
    %1070 = vmatpush1.msra.mxu0 0.0
    %1071 = vmatprep.subr.mxu0 0.0
    %1072 = vmatpush1.msra.mxu0 0.0
    %1073 = vmatprep.subr.mxu0 0.0
    %1074 = vmatpush1.msra.mxu0 0.0
    %1075 = vmatprep.subr.mxu0 0.0
    %1076 = vmatpush1.msra.mxu0 0.0
    %1077 = vmatprep.subr.mxu0 0.0
    %1078 = vmatpush1.msra.mxu0 0.0
    %1079 = vmatprep.subr.mxu0 0.0
    %1080 = vmatpush1.msra.mxu0 0.0
    %1081 = vmatprep.subr.mxu0 0.0
    %1082 = vmatpush1.msra.mxu0 0.0
    %1083 = vmatprep.subr.mxu0 0.0
    %1084 = vmatpush1.msra.mxu0 0.0
    %1085 = vmatprep.subr.mxu0 0.0
    %1086 = vmatpush1.msra.mxu0 0.0
    %1087 = vmatprep.subr.mxu0 0.0
    %1088 = vmatpush1.msra.mxu0 0.0
    %1089 = vmatprep.subr.mxu0 0.0
    %1090 = vmatpush1.msra.mxu0 0.0
    %1091 = vmatprep.subr.mxu0 0.0
    %1092 = vmatpush1.msra.mxu0 0.0
    %1093 = vmatprep.mubr.f32.mxu0 0.0
    %1094 = vmatmul.mubr.f32.gmra.mrb[0].mxu0 %v1028
    %v1095 = vpop.f32.mrb[0].mxu0
    %v1096 = vadd.f32 %v646, %v1095
    %v1097 = vpop.f32.mrb[0].mxu0
    %v1098 = vadd.f32 %v650, %v1097
    %1099 = vdwg.mxu0
    %1100 = vmatprep.subr.mxu0 0.0
    %1101 = vmatpush1.msra.mxu0 %v540
    %1102 = vmatprep.subr.mxu0 0.0
    %1103 = vmatpush1.msra.mxu0 %v543
    %1104 = vmatprep.subr.mxu0 0.0
    %1105 = vmatpush1.msra.mxu0 %v546
    %1106 = vmatprep.subr.mxu0 0.0
    %1107 = vmatpush1.msra.mxu0 %v549
    %1108 = vmatprep.subr.mxu0 0.0
    %1109 = vmatpush1.msra.mxu0 %v552
    %1110 = vmatprep.subr.mxu0 0.0
    %1111 = vmatpush1.msra.mxu0 %v555
    %1112 = vmatprep.subr.mxu0 0.0
    %1113 = vmatpush1.msra.mxu0 %v558
    %1114 = vmatprep.subr.mxu0 0.0
    %1115 = vmatpush1.msra.mxu0 %v561
    %1116 = vmatprep.subr.mxu0 0.0
    %1117 = vmatpush1.msra.mxu0 %v564
    %1118 = vmatprep.subr.mxu0 0.0
    %1119 = vmatpush1.msra.mxu0 %v567
    %1120 = vmatprep.subr.mxu0 0.0
    %1121 = vmatpush1.msra.mxu0 %v570
    %1122 = vmatprep.subr.mxu0 0.0
    %1123 = vmatpush1.msra.mxu0 %v573
    %1124 = vmatprep.subr.mxu0 0.0
    %1125 = vmatpush1.msra.mxu0 %v576
    %1126 = vmatprep.subr.mxu0 0.0
    %1127 = vmatpush1.msra.mxu0 %v579
    %1128 = vmatprep.subr.mxu0 0.0
    %1129 = vmatpush1.msra.mxu0 %v582
    %1130 = vmatprep.subr.mxu0 0.0
    %1131 = vmatpush1.msra.mxu0 %v585
    %1132 = vmatprep.subr.mxu0 0.0
    %1133 = vmatpush1.msra.mxu0 0.0
    %1134 = vmatprep.subr.mxu0 0.0
    %1135 = vmatpush1.msra.mxu0 0.0
    %1136 = vmatprep.subr.mxu0 0.0
    %1137 = vmatpush1.msra.mxu0 0.0
    %1138 = vmatprep.subr.mxu0 0.0
    %1139 = vmatpush1.msra.mxu0 0.0
    %1140 = vmatprep.subr.mxu0 0.0
    %1141 = vmatpush1.msra.mxu0 0.0
    %1142 = vmatprep.subr.mxu0 0.0
    %1143 = vmatpush1.msra.mxu0 0.0
    %1144 = vmatprep.subr.mxu0 0.0
    %1145 = vmatpush1.msra.mxu0 0.0
    %1146 = vmatprep.subr.mxu0 0.0
    %1147 = vmatpush1.msra.mxu0 0.0
    %1148 = vmatprep.subr.mxu0 0.0
    %1149 = vmatpush1.msra.mxu0 0.0
    %1150 = vmatprep.subr.mxu0 0.0
    %1151 = vmatpush1.msra.mxu0 0.0
    %1152 = vmatprep.subr.mxu0 0.0
    %1153 = vmatpush1.msra.mxu0 0.0
    %1154 = vmatprep.subr.mxu0 0.0
    %1155 = vmatpush1.msra.mxu0 0.0
    %1156 = vmatprep.subr.mxu0 0.0
    %1157 = vmatpush1.msra.mxu0 0.0
    %1158 = vmatprep.subr.mxu0 0.0
    %1159 = vmatpush1.msra.mxu0 0.0
    %1160 = vmatprep.subr.mxu0 0.0
    %1161 = vmatpush1.msra.mxu0 0.0
    %1162 = vmatprep.subr.mxu0 0.0
    %1163 = vmatpush1.msra.mxu0 0.0
    %1164 = vmatprep.mubr.f32.mxu0 0.0
    %1165 = vmatmul.mubr.f32.gmra.mrb[0].mxu0 %v1028
    %v1166 = vpop.f32.mrb[0].mxu0
    %v1167 = vadd.f32 %v654, %v1166
    %v1168 = vpop.f32.mrb[0].mxu0
    %1169 = vdwg.mxu0
    %v1170 = vadd.f32 %v1025, %v1096
    %v1171 = vxor.u32 %v1170, 2147483648
    %v1172 = vmul.f32 %v1171, 1.442695
    %v1173 = vpow.pop %v1172
    %v1174 = vadd.f32 %v1173, 1.0
    %v1175 = vrcp.pop %v1174
    %v1176 = vmul.f32 1.0, %v1175
    %v1177 = vadd.f32 %v1026, %v1098
    %v1178 = vxor.u32 %v1177, 2147483648
    %v1179 = vmul.f32 %v1178, 1.442695
    %v1180 = vpow.pop %v1179
    %v1181 = vadd.f32 %v1180, 1.0
    %v1182 = vrcp.pop %v1181
    %v1183 = vmul.f32 1.0, %v1182
    %v1184 = vmul.f32 %v1176, %v1167
    %v1185 = vadd.f32 %v1027, %v1184
    %v1186 = vtanh.pop %v1185
    %v1187 = vsub.f32 1.0, %v1183
    %v1188 = vmul.f32 %v1187, %v1186
    %v1189 = vmul.f32 %v1183, %v1028
    %v1190 = vadd.f32 %v1188, %v1189
    %vm1191 = vcmp.gt.s32.totalorder %v82, 1
    %v1192 = vsel %vm1191, 1, 0
    %1193 = vset.pattern.permute.xlu0 0
    %1194 = vperm.xlu0 %1193, %v1192
    %v1195 = vpop.permute.xlu0 %1194
    %vm1196 = vcmp.eq.s32.totalorder %v1195, 1
    %v1197 = vsel %vm1196, %v1190, %v1028
    %1198 = vst [vmem:[#allocation5] sm:$0xff] %v1197
    %v1199 = vsel %vm1196, %v1190, 0.0
    %s1200 = scalar_lea.vmem [#allocation3], 8
    %1201 = vst [vmem:[%s1200] sm:$0xff] %v1199
    %s1202 = scalar_lea.vmem [#allocation2], 288
    %v1203 = vld [vmem:[%s1202 + $0x18] sm:$0xff]
    %v1204 = vld [vmem:[%s1202 + $0x20] sm:$0xff]
    %v1205 = vld [vmem:[%s1202 + $0x28] sm:$0xff]
    %v1206 = vld [vmem:[#allocation6] sm:$0xff]
    %1207 = vmatprep.subr.mxu0 %v587
    %1208 = vmatpush1.msra.mxu0 %v586
    %1209 = vmatprep.subr.mxu0 %v590
    %1210 = vmatpush1.msra.mxu0 %v589
    %1211 = vmatprep.subr.mxu0 %v593
    %1212 = vmatpush1.msra.mxu0 %v592
    %1213 = vmatprep.subr.mxu0 %v596
    %1214 = vmatpush1.msra.mxu0 %v595
    %1215 = vmatprep.subr.mxu0 %v599
    %1216 = vmatpush1.msra.mxu0 %v598
    %1217 = vmatprep.subr.mxu0 %v602
    %1218 = vmatpush1.msra.mxu0 %v601
    %1219 = vmatprep.subr.mxu0 %v605
    %1220 = vmatpush1.msra.mxu0 %v604
    %1221 = vmatprep.subr.mxu0 %v608
    %1222 = vmatpush1.msra.mxu0 %v607
    %1223 = vmatprep.subr.mxu0 %v611
    %1224 = vmatpush1.msra.mxu0 %v610
    %1225 = vmatprep.subr.mxu0 %v614
    %1226 = vmatpush1.msra.mxu0 %v613
    %1227 = vmatprep.subr.mxu0 %v617
    %1228 = vmatpush1.msra.mxu0 %v616
    %1229 = vmatprep.subr.mxu0 %v620
    %1230 = vmatpush1.msra.mxu0 %v619
    %1231 = vmatprep.subr.mxu0 %v623
    %1232 = vmatpush1.msra.mxu0 %v622
    %1233 = vmatprep.subr.mxu0 %v626
    %1234 = vmatpush1.msra.mxu0 %v625
    %1235 = vmatprep.subr.mxu0 %v629
    %1236 = vmatpush1.msra.mxu0 %v628
    %1237 = vmatprep.subr.mxu0 %v632
    %1238 = vmatpush1.msra.mxu0 %v631
    %1239 = vmatprep.subr.mxu0 0.0
    %1240 = vmatpush1.msra.mxu0 0.0
    %1241 = vmatprep.subr.mxu0 0.0
    %1242 = vmatpush1.msra.mxu0 0.0
    %1243 = vmatprep.subr.mxu0 0.0
    %1244 = vmatpush1.msra.mxu0 0.0
    %1245 = vmatprep.subr.mxu0 0.0
    %1246 = vmatpush1.msra.mxu0 0.0
    %1247 = vmatprep.subr.mxu0 0.0
    %1248 = vmatpush1.msra.mxu0 0.0
    %1249 = vmatprep.subr.mxu0 0.0
    %1250 = vmatpush1.msra.mxu0 0.0
    %1251 = vmatprep.subr.mxu0 0.0
    %1252 = vmatpush1.msra.mxu0 0.0
    %1253 = vmatprep.subr.mxu0 0.0
    %1254 = vmatpush1.msra.mxu0 0.0
    %1255 = vmatprep.subr.mxu0 0.0
    %1256 = vmatpush1.msra.mxu0 0.0
    %1257 = vmatprep.subr.mxu0 0.0
    %1258 = vmatpush1.msra.mxu0 0.0
    %1259 = vmatprep.subr.mxu0 0.0
    %1260 = vmatpush1.msra.mxu0 0.0
    %1261 = vmatprep.subr.mxu0 0.0
    %1262 = vmatpush1.msra.mxu0 0.0
    %1263 = vmatprep.subr.mxu0 0.0
    %1264 = vmatpush1.msra.mxu0 0.0
    %1265 = vmatprep.subr.mxu0 0.0
    %1266 = vmatpush1.msra.mxu0 0.0
    %1267 = vmatprep.subr.mxu0 0.0
    %1268 = vmatpush1.msra.mxu0 0.0
    %1269 = vmatprep.subr.mxu0 0.0
    %1270 = vmatpush1.msra.mxu0 0.0
    %1271 = vmatprep.mubr.f32.mxu0 0.0
    %1272 = vmatmul.mubr.f32.gmra.mrb[0].mxu0 %v1206
    %v1273 = vpop.f32.mrb[0].mxu0
    %v1274 = vadd.f32 %v839, %v1273
    %v1275 = vpop.f32.mrb[0].mxu0
    %v1276 = vadd.f32 %v843, %v1275
    %1277 = vdwg.mxu0
    %1278 = vmatprep.subr.mxu0 0.0
    %1279 = vmatpush1.msra.mxu0 %v588
    %1280 = vmatprep.subr.mxu0 0.0
    %1281 = vmatpush1.msra.mxu0 %v591
    %1282 = vmatprep.subr.mxu0 0.0
    %1283 = vmatpush1.msra.mxu0 %v594
    %1284 = vmatprep.subr.mxu0 0.0
    %1285 = vmatpush1.msra.mxu0 %v597
    %1286 = vmatprep.subr.mxu0 0.0
    %1287 = vmatpush1.msra.mxu0 %v600
    %1288 = vmatprep.subr.mxu0 0.0
    %1289 = vmatpush1.msra.mxu0 %v603
    %1290 = vmatprep.subr.mxu0 0.0
    %1291 = vmatpush1.msra.mxu0 %v606
    %1292 = vmatprep.subr.mxu0 0.0
    %1293 = vmatpush1.msra.mxu0 %v609
    %1294 = vmatprep.subr.mxu0 0.0
    %1295 = vmatpush1.msra.mxu0 %v612
    %1296 = vmatprep.subr.mxu0 0.0
    %1297 = vmatpush1.msra.mxu0 %v615
    %1298 = vmatprep.subr.mxu0 0.0
    %1299 = vmatpush1.msra.mxu0 %v618
    %1300 = vmatprep.subr.mxu0 0.0
    %1301 = vmatpush1.msra.mxu0 %v621
    %1302 = vmatprep.subr.mxu0 0.0
    %1303 = vmatpush1.msra.mxu0 %v624
    %1304 = vmatprep.subr.mxu0 0.0
    %1305 = vmatpush1.msra.mxu0 %v627
    %1306 = vmatprep.subr.mxu0 0.0
    %1307 = vmatpush1.msra.mxu0 %v630
    %1308 = vmatprep.subr.mxu0 0.0
    %1309 = vmatpush1.msra.mxu0 %v633
    %1310 = vmatprep.subr.mxu0 0.0
    %1311 = vmatpush1.msra.mxu0 0.0
    %1312 = vmatprep.subr.mxu0 0.0
    %1313 = vmatpush1.msra.mxu0 0.0
    %1314 = vmatprep.subr.mxu0 0.0
    %1315 = vmatpush1.msra.mxu0 0.0
    %1316 = vmatprep.subr.mxu0 0.0
    %1317 = vmatpush1.msra.mxu0 0.0
    %1318 = vmatprep.subr.mxu0 0.0
    %1319 = vmatpush1.msra.mxu0 0.0
    %1320 = vmatprep.subr.mxu0 0.0
    %1321 = vmatpush1.msra.mxu0 0.0
    %1322 = vmatprep.subr.mxu0 0.0
    %1323 = vmatpush1.msra.mxu0 0.0
    %1324 = vmatprep.subr.mxu0 0.0
    %1325 = vmatpush1.msra.mxu0 0.0
    %1326 = vmatprep.subr.mxu0 0.0
    %1327 = vmatpush1.msra.mxu0 0.0
    %1328 = vmatprep.subr.mxu0 0.0
    %1329 = vmatpush1.msra.mxu0 0.0
    %1330 = vmatprep.subr.mxu0 0.0
    %1331 = vmatpush1.msra.mxu0 0.0
    %1332 = vmatprep.subr.mxu0 0.0
    %1333 = vmatpush1.msra.mxu0 0.0
    %1334 = vmatprep.subr.mxu0 0.0
    %1335 = vmatpush1.msra.mxu0 0.0
    %1336 = vmatprep.subr.mxu0 0.0
    %1337 = vmatpush1.msra.mxu0 0.0
    %1338 = vmatprep.subr.mxu0 0.0
    %1339 = vmatpush1.msra.mxu0 0.0
    %1340 = vmatprep.subr.mxu0 0.0
    %1341 = vmatpush1.msra.mxu0 0.0
    %1342 = vmatprep.mubr.f32.mxu0 0.0
    %1343 = vmatmul.mubr.f32.gmra.mrb[0].mxu0 %v1206
    %v1344 = vpop.f32.mrb[0].mxu0
    %v1345 = vadd.f32 %v847, %v1344
    %v1346 = vpop.f32.mrb[0].mxu0
    %1347 = vdwg.mxu0
    %v1348 = vadd.f32 %v1203, %v1274
    %v1349 = vxor.u32 %v1348, 2147483648
    %v1350 = vmul.f32 %v1349, 1.442695
    %v1351 = vpow.pop %v1350
    %v1352 = vadd.f32 %v1351, 1.0
    %v1353 = vrcp.pop %v1352
    %v1354 = vmul.f32 1.0, %v1353
    %v1355 = vadd.f32 %v1204, %v1276
    %v1356 = vxor.u32 %v1355, 2147483648
    %v1357 = vmul.f32 %v1356, 1.442695
    %v1358 = vpow.pop %v1357
    %v1359 = vadd.f32 %v1358, 1.0
    %v1360 = vrcp.pop %v1359
    %v1361 = vmul.f32 1.0, %v1360
    %v1362 = vmul.f32 %v1354, %v1345
    %v1363 = vadd.f32 %v1205, %v1362
    %v1364 = vtanh.pop %v1363
    %v1365 = vsub.f32 1.0, %v1361
    %v1366 = vmul.f32 %v1365, %v1364
    %v1367 = vmul.f32 %v1361, %v1206
    %v1368 = vadd.f32 %v1366, %v1367
    %vm1369 = vcmp.gt.s32.totalorder %v82, 6
    %v1370 = vsel %vm1369, 1, 0
    %1371 = vset.pattern.permute.xlu0 0
    %1372 = vperm.xlu0 %1371, %v1370
    %v1373 = vpop.permute.xlu0 %1372
    %vm1374 = vcmp.eq.s32.totalorder %v1373, 1
    %v1375 = vsel %vm1374, %v1368, %v1206
    %1376 = vst [vmem:[#allocation6] sm:$0xff] %v1375
    %v1377 = vsel %vm1374, %v1368, 0.0
    %s1378 = scalar_lea.vmem [#allocation4], 48
    %1379 = vst [vmem:[%s1378] sm:$0xff] %v1377
    %s1380 = scalar_lea.vmem [#allocation2], 96
    %v1381 = vld [vmem:[%s1380] sm:$0xff]
    %v1382 = vld [vmem:[%s1380 + $0x8] sm:$0xff]
    %v1383 = vld [vmem:[%s1380 + $0x10] sm:$0xff]
    %v1384 = vld [vmem:[#allocation5] sm:$0xff]
    %1385 = vmatprep.subr.mxu0 %v539
    %1386 = vmatpush1.msra.mxu0 %v538
    %1387 = vmatprep.subr.mxu0 %v542
    %1388 = vmatpush1.msra.mxu0 %v541
    %1389 = vmatprep.subr.mxu0 %v545
    %1390 = vmatpush1.msra.mxu0 %v544
    %1391 = vmatprep.subr.mxu0 %v548
    %1392 = vmatpush1.msra.mxu0 %v547
    %1393 = vmatprep.subr.mxu0 %v551
    %1394 = vmatpush1.msra.mxu0 %v550
    %1395 = vmatprep.subr.mxu0 %v554
    %1396 = vmatpush1.msra.mxu0 %v553
    %1397 = vmatprep.subr.mxu0 %v557
    %1398 = vmatpush1.msra.mxu0 %v556
    %1399 = vmatprep.subr.mxu0 %v560
    %1400 = vmatpush1.msra.mxu0 %v559
    %1401 = vmatprep.subr.mxu0 %v563
    %1402 = vmatpush1.msra.mxu0 %v562
    %1403 = vmatprep.subr.mxu0 %v566
    %1404 = vmatpush1.msra.mxu0 %v565
    %1405 = vmatprep.subr.mxu0 %v569
    %1406 = vmatpush1.msra.mxu0 %v568
    %1407 = vmatprep.subr.mxu0 %v572
    %1408 = vmatpush1.msra.mxu0 %v571
    %1409 = vmatprep.subr.mxu0 %v575
    %1410 = vmatpush1.msra.mxu0 %v574
    %1411 = vmatprep.subr.mxu0 %v578
    %1412 = vmatpush1.msra.mxu0 %v577
    %1413 = vmatprep.subr.mxu0 %v581
    %1414 = vmatpush1.msra.mxu0 %v580
    %1415 = vmatprep.subr.mxu0 %v584
    %1416 = vmatpush1.msra.mxu0 %v583
    %1417 = vmatprep.subr.mxu0 0.0
    %1418 = vmatpush1.msra.mxu0 0.0
    %1419 = vmatprep.subr.mxu0 0.0
    %1420 = vmatpush1.msra.mxu0 0.0
    %1421 = vmatprep.subr.mxu0 0.0
    %1422 = vmatpush1.msra.mxu0 0.0
    %1423 = vmatprep.subr.mxu0 0.0
    %1424 = vmatpush1.msra.mxu0 0.0
    %1425 = vmatprep.subr.mxu0 0.0
    %1426 = vmatpush1.msra.mxu0 0.0
    %1427 = vmatprep.subr.mxu0 0.0
    %1428 = vmatpush1.msra.mxu0 0.0
    %1429 = vmatprep.subr.mxu0 0.0
    %1430 = vmatpush1.msra.mxu0 0.0
    %1431 = vmatprep.subr.mxu0 0.0
    %1432 = vmatpush1.msra.mxu0 0.0
    %1433 = vmatprep.subr.mxu0 0.0
    %1434 = vmatpush1.msra.mxu0 0.0
    %1435 = vmatprep.subr.mxu0 0.0
    %1436 = vmatpush1.msra.mxu0 0.0
    %1437 = vmatprep.subr.mxu0 0.0
    %1438 = vmatpush1.msra.mxu0 0.0
    %1439 = vmatprep.subr.mxu0 0.0
    %1440 = vmatpush1.msra.mxu0 0.0
    %1441 = vmatprep.subr.mxu0 0.0
    %1442 = vmatpush1.msra.mxu0 0.0
    %1443 = vmatprep.subr.mxu0 0.0
    %1444 = vmatpush1.msra.mxu0 0.0
    %1445 = vmatprep.subr.mxu0 0.0
    %1446 = vmatpush1.msra.mxu0 0.0
    %1447 = vmatprep.subr.mxu0 0.0
    %1448 = vmatpush1.msra.mxu0 0.0
    %1449 = vmatprep.mubr.f32.mxu0 0.0
    %1450 = vmatmul.mubr.f32.gmra.mrb[0].mxu0 %v1384
    %v1451 = vpop.f32.mrb[0].mxu0
    %v1452 = vadd.f32 %v646, %v1451
    %v1453 = vpop.f32.mrb[0].mxu0
    %v1454 = vadd.f32 %v650, %v1453
    %1455 = vdwg.mxu0
    %1456 = vmatprep.subr.mxu0 0.0
    %1457 = vmatpush1.msra.mxu0 %v540
    %1458 = vmatprep.subr.mxu0 0.0
    %1459 = vmatpush1.msra.mxu0 %v543
    %1460 = vmatprep.subr.mxu0 0.0
    %1461 = vmatpush1.msra.mxu0 %v546
    %1462 = vmatprep.subr.mxu0 0.0
    %1463 = vmatpush1.msra.mxu0 %v549
    %1464 = vmatprep.subr.mxu0 0.0
    %1465 = vmatpush1.msra.mxu0 %v552
    %1466 = vmatprep.subr.mxu0 0.0
    %1467 = vmatpush1.msra.mxu0 %v555
    %1468 = vmatprep.subr.mxu0 0.0
    %1469 = vmatpush1.msra.mxu0 %v558
    %1470 = vmatprep.subr.mxu0 0.0
    %1471 = vmatpush1.msra.mxu0 %v561
    %1472 = vmatprep.subr.mxu0 0.0
    %1473 = vmatpush1.msra.mxu0 %v564
    %1474 = vmatprep.subr.mxu0 0.0
    %1475 = vmatpush1.msra.mxu0 %v567
    %1476 = vmatprep.subr.mxu0 0.0
    %1477 = vmatpush1.msra.mxu0 %v570
    %1478 = vmatprep.subr.mxu0 0.0
    %1479 = vmatpush1.msra.mxu0 %v573
    %1480 = vmatprep.subr.mxu0 0.0
    %1481 = vmatpush1.msra.mxu0 %v576
    %1482 = vmatprep.subr.mxu0 0.0
    %1483 = vmatpush1.msra.mxu0 %v579
    %1484 = vmatprep.subr.mxu0 0.0
    %1485 = vmatpush1.msra.mxu0 %v582
    %1486 = vmatprep.subr.mxu0 0.0
    %1487 = vmatpush1.msra.mxu0 %v585
    %1488 = vmatprep.subr.mxu0 0.0
    %1489 = vmatpush1.msra.mxu0 0.0
    %1490 = vmatprep.subr.mxu0 0.0
    %1491 = vmatpush1.msra.mxu0 0.0
    %1492 = vmatprep.subr.mxu0 0.0
    %1493 = vmatpush1.msra.mxu0 0.0
    %1494 = vmatprep.subr.mxu0 0.0
    %1495 = vmatpush1.msra.mxu0 0.0
    %1496 = vmatprep.subr.mxu0 0.0
    %1497 = vmatpush1.msra.mxu0 0.0
    %1498 = vmatprep.subr.mxu0 0.0
    %1499 = vmatpush1.msra.mxu0 0.0
    %1500 = vmatprep.subr.mxu0 0.0
    %1501 = vmatpush1.msra.mxu0 0.0
    %1502 = vmatprep.subr.mxu0 0.0
    %1503 = vmatpush1.msra.mxu0 0.0
    %1504 = vmatprep.subr.mxu0 0.0
    %1505 = vmatpush1.msra.mxu0 0.0
    %1506 = vmatprep.subr.mxu0 0.0
    %1507 = vmatpush1.msra.mxu0 0.0
    %1508 = vmatprep.subr.mxu0 0.0
    %1509 = vmatpush1.msra.mxu0 0.0
    %1510 = vmatprep.subr.mxu0 0.0
    %1511 = vmatpush1.msra.mxu0 0.0
    %1512 = vmatprep.subr.mxu0 0.0
    %1513 = vmatpush1.msra.mxu0 0.0
    %1514 = vmatprep.subr.mxu0 0.0
    %1515 = vmatpush1.msra.mxu0 0.0
    %1516 = vmatprep.subr.mxu0 0.0
    %1517 = vmatpush1.msra.mxu0 0.0
    %1518 = vmatprep.subr.mxu0 0.0
    %1519 = vmatpush1.msra.mxu0 0.0
    %1520 = vmatprep.mubr.f32.mxu0 0.0
    %1521 = vmatmul.mubr.f32.gmra.mrb[0].mxu0 %v1384
    %v1522 = vpop.f32.mrb[0].mxu0
    %v1523 = vadd.f32 %v654, %v1522
    %v1524 = vpop.f32.mrb[0].mxu0
    %1525 = vdwg.mxu0
    %v1526 = vadd.f32 %v1381, %v1452
    %v1527 = vxor.u32 %v1526, 2147483648
    %v1528 = vmul.f32 %v1527, 1.442695
    %v1529 = vpow.pop %v1528
    %v1530 = vadd.f32 %v1529, 1.0
    %v1531 = vrcp.pop %v1530
    %v1532 = vmul.f32 1.0, %v1531
    %v1533 = vadd.f32 %v1382, %v1454
    %v1534 = vxor.u32 %v1533, 2147483648
    %v1535 = vmul.f32 %v1534, 1.442695
    %v1536 = vpow.pop %v1535
    %v1537 = vadd.f32 %v1536, 1.0
    %v1538 = vrcp.pop %v1537
    %v1539 = vmul.f32 1.0, %v1538
    %v1540 = vmul.f32 %v1532, %v1523
    %v1541 = vadd.f32 %v1383, %v1540
    %v1542 = vtanh.pop %v1541
    %v1543 = vsub.f32 1.0, %v1539
    %v1544 = vmul.f32 %v1543, %v1542
    %v1545 = vmul.f32 %v1539, %v1384
    %v1546 = vadd.f32 %v1544, %v1545
    %vm1547 = vcmp.gt.s32.totalorder %v82, 2
    %v1548 = vsel %vm1547, 1, 0
    %1549 = vset.pattern.permute.xlu0 0
    %1550 = vperm.xlu0 %1549, %v1548
    %v1551 = vpop.permute.xlu0 %1550
    %vm1552 = vcmp.eq.s32.totalorder %v1551, 1
    %v1553 = vsel %vm1552, %v1546, %v1384
    %1554 = vst [vmem:[#allocation5] sm:$0xff] %v1553
    %v1555 = vsel %vm1552, %v1546, 0.0
    %s1556 = scalar_lea.vmem [#allocation3], 16
    %1557 = vst [vmem:[%s1556] sm:$0xff] %v1555
    %s1558 = scalar_lea.vmem [#allocation2], 240
    %v1559 = vld [vmem:[%s1558 + $0x18] sm:$0xff]
    %v1560 = vld [vmem:[%s1558 + $0x20] sm:$0xff]
    %v1561 = vld [vmem:[%s1558 + $0x28] sm:$0xff]
    %v1562 = vld [vmem:[#allocation6] sm:$0xff]
    %1563 = vmatprep.subr.mxu0 %v587
    %1564 = vmatpush1.msra.mxu0 %v586
    %1565 = vmatprep.subr.mxu0 %v590
    %1566 = vmatpush1.msra.mxu0 %v589
    %1567 = vmatprep.subr.mxu0 %v593
    %1568 = vmatpush1.msra.mxu0 %v592
    %1569 = vmatprep.subr.mxu0 %v596
    %1570 = vmatpush1.msra.mxu0 %v595
    %1571 = vmatprep.subr.mxu0 %v599
    %1572 = vmatpush1.msra.mxu0 %v598
    %1573 = vmatprep.subr.mxu0 %v602
    %1574 = vmatpush1.msra.mxu0 %v601
    %1575 = vmatprep.subr.mxu0 %v605
    %1576 = vmatpush1.msra.mxu0 %v604
    %1577 = vmatprep.subr.mxu0 %v608
    %1578 = vmatpush1.msra.mxu0 %v607
    %1579 = vmatprep.subr.mxu0 %v611
    %1580 = vmatpush1.msra.mxu0 %v610
    %1581 = vmatprep.subr.mxu0 %v614
    %1582 = vmatpush1.msra.mxu0 %v613
    %1583 = vmatprep.subr.mxu0 %v617
    %1584 = vmatpush1.msra.mxu0 %v616
    %1585 = vmatprep.subr.mxu0 %v620
    %1586 = vmatpush1.msra.mxu0 %v619
    %1587 = vmatprep.subr.mxu0 %v623
    %1588 = vmatpush1.msra.mxu0 %v622
    %1589 = vmatprep.subr.mxu0 %v626
    %1590 = vmatpush1.msra.mxu0 %v625
    %1591 = vmatprep.subr.mxu0 %v629
    %1592 = vmatpush1.msra.mxu0 %v628
    %1593 = vmatprep.subr.mxu0 %v632
    %1594 = vmatpush1.msra.mxu0 %v631
    %1595 = vmatprep.subr.mxu0 0.0
    %1596 = vmatpush1.msra.mxu0 0.0
    %1597 = vmatprep.subr.mxu0 0.0
    %1598 = vmatpush1.msra.mxu0 0.0
    %1599 = vmatprep.subr.mxu0 0.0
    %1600 = vmatpush1.msra.mxu0 0.0
    %1601 = vmatprep.subr.mxu0 0.0
    %1602 = vmatpush1.msra.mxu0 0.0
    %1603 = vmatprep.subr.mxu0 0.0
    %1604 = vmatpush1.msra.mxu0 0.0
    %1605 = vmatprep.subr.mxu0 0.0
    %1606 = vmatpush1.msra.mxu0 0.0
    %1607 = vmatprep.subr.mxu0 0.0
    %1608 = vmatpush1.msra.mxu0 0.0
    %1609 = vmatprep.subr.mxu0 0.0
    %1610 = vmatpush1.msra.mxu0 0.0
    %1611 = vmatprep.subr.mxu0 0.0
    %1612 = vmatpush1.msra.mxu0 0.0
    %1613 = vmatprep.subr.mxu0 0.0
    %1614 = vmatpush1.msra.mxu0 0.0
    %1615 = vmatprep.subr.mxu0 0.0
    %1616 = vmatpush1.msra.mxu0 0.0
    %1617 = vmatprep.subr.mxu0 0.0
    %1618 = vmatpush1.msra.mxu0 0.0
    %1619 = vmatprep.subr.mxu0 0.0
    %1620 = vmatpush1.msra.mxu0 0.0
    %1621 = vmatprep.subr.mxu0 0.0
    %1622 = vmatpush1.msra.mxu0 0.0
    %1623 = vmatprep.subr.mxu0 0.0
    %1624 = vmatpush1.msra.mxu0 0.0
    %1625 = vmatprep.subr.mxu0 0.0
    %1626 = vmatpush1.msra.mxu0 0.0
    %1627 = vmatprep.mubr.f32.mxu0 0.0
    %1628 = vmatmul.mubr.f32.gmra.mrb[0].mxu0 %v1562
    %v1629 = vpop.f32.mrb[0].mxu0
    %v1630 = vadd.f32 %v839, %v1629
    %v1631 = vpop.f32.mrb[0].mxu0
    %v1632 = vadd.f32 %v843, %v1631
    %1633 = vdwg.mxu0
    %1634 = vmatprep.subr.mxu0 0.0
    %1635 = vmatpush1.msra.mxu0 %v588
    %1636 = vmatprep.subr.mxu0 0.0
    %1637 = vmatpush1.msra.mxu0 %v591
    %1638 = vmatprep.subr.mxu0 0.0
    %1639 = vmatpush1.msra.mxu0 %v594
    %1640 = vmatprep.subr.mxu0 0.0
    %1641 = vmatpush1.msra.mxu0 %v597
    %1642 = vmatprep.subr.mxu0 0.0
    %1643 = vmatpush1.msra.mxu0 %v600
    %1644 = vmatprep.subr.mxu0 0.0
    %1645 = vmatpush1.msra.mxu0 %v603
    %1646 = vmatprep.subr.mxu0 0.0
    %1647 = vmatpush1.msra.mxu0 %v606
    %1648 = vmatprep.subr.mxu0 0.0
    %1649 = vmatpush1.msra.mxu0 %v609
    %1650 = vmatprep.subr.mxu0 0.0
    %1651 = vmatpush1.msra.mxu0 %v612
    %1652 = vmatprep.subr.mxu0 0.0
    %1653 = vmatpush1.msra.mxu0 %v615
    %1654 = vmatprep.subr.mxu0 0.0
    %1655 = vmatpush1.msra.mxu0 %v618
    %1656 = vmatprep.subr.mxu0 0.0
    %1657 = vmatpush1.msra.mxu0 %v621
    %1658 = vmatprep.subr.mxu0 0.0
    %1659 = vmatpush1.msra.mxu0 %v624
    %1660 = vmatprep.subr.mxu0 0.0
    %1661 = vmatpush1.msra.mxu0 %v627
    %1662 = vmatprep.subr.mxu0 0.0
    %1663 = vmatpush1.msra.mxu0 %v630
    %1664 = vmatprep.subr.mxu0 0.0
    %1665 = vmatpush1.msra.mxu0 %v633
    %1666 = vmatprep.subr.mxu0 0.0
    %1667 = vmatpush1.msra.mxu0 0.0
    %1668 = vmatprep.subr.mxu0 0.0
    %1669 = vmatpush1.msra.mxu0 0.0
    %1670 = vmatprep.subr.mxu0 0.0
    %1671 = vmatpush1.msra.mxu0 0.0
    %1672 = vmatprep.subr.mxu0 0.0
    %1673 = vmatpush1.msra.mxu0 0.0
    %1674 = vmatprep.subr.mxu0 0.0
    %1675 = vmatpush1.msra.mxu0 0.0
    %1676 = vmatprep.subr.mxu0 0.0
    %1677 = vmatpush1.msra.mxu0 0.0
    %1678 = vmatprep.subr.mxu0 0.0
    %1679 = vmatpush1.msra.mxu0 0.0
    %1680 = vmatprep.subr.mxu0 0.0
    %1681 = vmatpush1.msra.mxu0 0.0
    %1682 = vmatprep.subr.mxu0 0.0
    %1683 = vmatpush1.msra.mxu0 0.0
    %1684 = vmatprep.subr.mxu0 0.0
    %1685 = vmatpush1.msra.mxu0 0.0
    %1686 = vmatprep.subr.mxu0 0.0
    %1687 = vmatpush1.msra.mxu0 0.0
    %1688 = vmatprep.subr.mxu0 0.0
    %1689 = vmatpush1.msra.mxu0 0.0
    %1690 = vmatprep.subr.mxu0 0.0
    %1691 = vmatpush1.msra.mxu0 0.0
    %1692 = vmatprep.subr.mxu0 0.0
    %1693 = vmatpush1.msra.mxu0 0.0
    %1694 = vmatprep.subr.mxu0 0.0
    %1695 = vmatpush1.msra.mxu0 0.0
    %1696 = vmatprep.subr.mxu0 0.0
    %1697 = vmatpush1.msra.mxu0 0.0
    %1698 = vmatprep.mubr.f32.mxu0 0.0
    %1699 = vmatmul.mubr.f32.gmra.mrb[0].mxu0 %v1562
    %v1700 = vpop.f32.mrb[0].mxu0
    %v1701 = vadd.f32 %v847, %v1700
    %v1702 = vpop.f32.mrb[0].mxu0
    %1703 = vdwg.mxu0
    %v1704 = vadd.f32 %v1559, %v1630
    %v1705 = vxor.u32 %v1704, 2147483648
    %v1706 = vmul.f32 %v1705, 1.442695
    %v1707 = vpow.pop %v1706
    %v1708 = vadd.f32 %v1707, 1.0
    %v1709 = vrcp.pop %v1708
    %v1710 = vmul.f32 1.0, %v1709
    %v1711 = vadd.f32 %v1560, %v1632
    %v1712 = vxor.u32 %v1711, 2147483648
    %v1713 = vmul.f32 %v1712, 1.442695
    %v1714 = vpow.pop %v1713
    %v1715 = vadd.f32 %v1714, 1.0
    %v1716 = vrcp.pop %v1715
    %v1717 = vmul.f32 1.0, %v1716
    %v1718 = vmul.f32 %v1710, %v1701
    %v1719 = vadd.f32 %v1561, %v1718
    %v1720 = vtanh.pop %v1719
    %v1721 = vsub.f32 1.0, %v1717
    %v1722 = vmul.f32 %v1721, %v1720
    %v1723 = vmul.f32 %v1717, %v1562
    %v1724 = vadd.f32 %v1722, %v1723
    %vm1725 = vcmp.gt.s32.totalorder %v82, 5
    %v1726 = vsel %vm1725, 1, 0
    %1727 = vset.pattern.permute.xlu0 0
    %1728 = vperm.xlu0 %1727, %v1726
    %v1729 = vpop.permute.xlu0 %1728
    %vm1730 = vcmp.eq.s32.totalorder %v1729, 1
    %v1731 = vsel %vm1730, %v1724, %v1562
    %1732 = vst [vmem:[#allocation6] sm:$0xff] %v1731
    %v1733 = vsel %vm1730, %v1724, 0.0
    %s1734 = scalar_lea.vmem [#allocation4], 40
    %1735 = vst [vmem:[%s1734] sm:$0xff] %v1733
    %s1736 = scalar_lea.vmem [#allocation2], 144
    %v1737 = vld [vmem:[%s1736] sm:$0xff]
    %v1738 = vld [vmem:[%s1736 + $0x8] sm:$0xff]
    %v1739 = vld [vmem:[%s1736 + $0x10] sm:$0xff]
    %v1740 = vld [vmem:[#allocation5] sm:$0xff]
    %1741 = vmatprep.subr.mxu0 %v539
    %1742 = vmatpush1.msra.mxu0 %v538
    %1743 = vmatprep.subr.mxu0 %v542
    %1744 = vmatpush1.msra.mxu0 %v541
    %1745 = vmatprep.subr.mxu0 %v545
    %1746 = vmatpush1.msra.mxu0 %v544
    %1747 = vmatprep.subr.mxu0 %v548
    %1748 = vmatpush1.msra.mxu0 %v547
    %1749 = vmatprep.subr.mxu0 %v551
    %1750 = vmatpush1.msra.mxu0 %v550
    %1751 = vmatprep.subr.mxu0 %v554
    %1752 = vmatpush1.msra.mxu0 %v553
    %1753 = vmatprep.subr.mxu0 %v557
    %1754 = vmatpush1.msra.mxu0 %v556
    %1755 = vmatprep.subr.mxu0 %v560
    %1756 = vmatpush1.msra.mxu0 %v559
    %1757 = vmatprep.subr.mxu0 %v563
    %1758 = vmatpush1.msra.mxu0 %v562
    %1759 = vmatprep.subr.mxu0 %v566
    %1760 = vmatpush1.msra.mxu0 %v565
    %1761 = vmatprep.subr.mxu0 %v569
    %1762 = vmatpush1.msra.mxu0 %v568
    %1763 = vmatprep.subr.mxu0 %v572
    %1764 = vmatpush1.msra.mxu0 %v571
    %1765 = vmatprep.subr.mxu0 %v575
    %1766 = vmatpush1.msra.mxu0 %v574
    %1767 = vmatprep.subr.mxu0 %v578
    %1768 = vmatpush1.msra.mxu0 %v577
    %1769 = vmatprep.subr.mxu0 %v581
    %1770 = vmatpush1.msra.mxu0 %v580
    %1771 = vmatprep.subr.mxu0 %v584
    %1772 = vmatpush1.msra.mxu0 %v583
    %1773 = vmatprep.subr.mxu0 0.0
    %1774 = vmatpush1.msra.mxu0 0.0
    %1775 = vmatprep.subr.mxu0 0.0
    %1776 = vmatpush1.msra.mxu0 0.0
    %1777 = vmatprep.subr.mxu0 0.0
    %1778 = vmatpush1.msra.mxu0 0.0
    %1779 = vmatprep.subr.mxu0 0.0
    %1780 = vmatpush1.msra.mxu0 0.0
    %1781 = vmatprep.subr.mxu0 0.0
    %1782 = vmatpush1.msra.mxu0 0.0
    %1783 = vmatprep.subr.mxu0 0.0
    %1784 = vmatpush1.msra.mxu0 0.0
    %1785 = vmatprep.subr.mxu0 0.0
    %1786 = vmatpush1.msra.mxu0 0.0
    %1787 = vmatprep.subr.mxu0 0.0
    %1788 = vmatpush1.msra.mxu0 0.0
    %1789 = vmatprep.subr.mxu0 0.0
    %1790 = vmatpush1.msra.mxu0 0.0
    %1791 = vmatprep.subr.mxu0 0.0
    %1792 = vmatpush1.msra.mxu0 0.0
    %1793 = vmatprep.subr.mxu0 0.0
    %1794 = vmatpush1.msra.mxu0 0.0
    %1795 = vmatprep.subr.mxu0 0.0
    %1796 = vmatpush1.msra.mxu0 0.0
    %1797 = vmatprep.subr.mxu0 0.0
    %1798 = vmatpush1.msra.mxu0 0.0
    %1799 = vmatprep.subr.mxu0 0.0
    %1800 = vmatpush1.msra.mxu0 0.0
    %1801 = vmatprep.subr.mxu0 0.0
    %1802 = vmatpush1.msra.mxu0 0.0
    %1803 = vmatprep.subr.mxu0 0.0
    %1804 = vmatpush1.msra.mxu0 0.0
    %1805 = vmatprep.mubr.f32.mxu0 0.0
    %1806 = vmatmul.mubr.f32.gmra.mrb[0].mxu0 %v1740
    %v1807 = vpop.f32.mrb[0].mxu0
    %v1808 = vadd.f32 %v646, %v1807
    %v1809 = vpop.f32.mrb[0].mxu0
    %v1810 = vadd.f32 %v650, %v1809
    %1811 = vdwg.mxu0
    %1812 = vmatprep.subr.mxu0 0.0
    %1813 = vmatpush1.msra.mxu0 %v540
    %1814 = vmatprep.subr.mxu0 0.0
    %1815 = vmatpush1.msra.mxu0 %v543
    %1816 = vmatprep.subr.mxu0 0.0
    %1817 = vmatpush1.msra.mxu0 %v546
    %1818 = vmatprep.subr.mxu0 0.0
    %1819 = vmatpush1.msra.mxu0 %v549
    %1820 = vmatprep.subr.mxu0 0.0
    %1821 = vmatpush1.msra.mxu0 %v552
    %1822 = vmatprep.subr.mxu0 0.0
    %1823 = vmatpush1.msra.mxu0 %v555
    %1824 = vmatprep.subr.mxu0 0.0
    %1825 = vmatpush1.msra.mxu0 %v558
    %1826 = vmatprep.subr.mxu0 0.0
    %1827 = vmatpush1.msra.mxu0 %v561
    %1828 = vmatprep.subr.mxu0 0.0
    %1829 = vmatpush1.msra.mxu0 %v564
    %1830 = vmatprep.subr.mxu0 0.0
    %1831 = vmatpush1.msra.mxu0 %v567
    %1832 = vmatprep.subr.mxu0 0.0
    %1833 = vmatpush1.msra.mxu0 %v570
    %1834 = vmatprep.subr.mxu0 0.0
    %1835 = vmatpush1.msra.mxu0 %v573
    %1836 = vmatprep.subr.mxu0 0.0
    %1837 = vmatpush1.msra.mxu0 %v576
    %1838 = vmatprep.subr.mxu0 0.0
    %1839 = vmatpush1.msra.mxu0 %v579
    %1840 = vmatprep.subr.mxu0 0.0
    %1841 = vmatpush1.msra.mxu0 %v582
    %1842 = vmatprep.subr.mxu0 0.0
    %1843 = vmatpush1.msra.mxu0 %v585
    %1844 = vmatprep.subr.mxu0 0.0
    %1845 = vmatpush1.msra.mxu0 0.0
    %1846 = vmatprep.subr.mxu0 0.0
    %1847 = vmatpush1.msra.mxu0 0.0
    %1848 = vmatprep.subr.mxu0 0.0
    %1849 = vmatpush1.msra.mxu0 0.0
    %1850 = vmatprep.subr.mxu0 0.0
    %1851 = vmatpush1.msra.mxu0 0.0
    %1852 = vmatprep.subr.mxu0 0.0
    %1853 = vmatpush1.msra.mxu0 0.0
    %1854 = vmatprep.subr.mxu0 0.0
    %1855 = vmatpush1.msra.mxu0 0.0
    %1856 = vmatprep.subr.mxu0 0.0
    %1857 = vmatpush1.msra.mxu0 0.0
    %1858 = vmatprep.subr.mxu0 0.0
    %1859 = vmatpush1.msra.mxu0 0.0
    %1860 = vmatprep.subr.mxu0 0.0
    %1861 = vmatpush1.msra.mxu0 0.0
    %1862 = vmatprep.subr.mxu0 0.0
    %1863 = vmatpush1.msra.mxu0 0.0
    %1864 = vmatprep.subr.mxu0 0.0
    %1865 = vmatpush1.msra.mxu0 0.0
    %1866 = vmatprep.subr.mxu0 0.0
    %1867 = vmatpush1.msra.mxu0 0.0
    %1868 = vmatprep.subr.mxu0 0.0
    %1869 = vmatpush1.msra.mxu0 0.0
    %1870 = vmatprep.subr.mxu0 0.0
    %1871 = vmatpush1.msra.mxu0 0.0
    %1872 = vmatprep.subr.mxu0 0.0
    %1873 = vmatpush1.msra.mxu0 0.0
    %1874 = vmatprep.subr.mxu0 0.0
    %1875 = vmatpush1.msra.mxu0 0.0
    %1876 = vmatprep.mubr.f32.mxu0 0.0
    %1877 = vmatmul.mubr.f32.gmra.mrb[0].mxu0 %v1740
    %v1878 = vpop.f32.mrb[0].mxu0
    %v1879 = vadd.f32 %v654, %v1878
    %v1880 = vpop.f32.mrb[0].mxu0
    %1881 = vdwg.mxu0
    %v1882 = vadd.f32 %v1737, %v1808
    %v1883 = vxor.u32 %v1882, 2147483648
    %v1884 = vmul.f32 %v1883, 1.442695
    %v1885 = vpow.pop %v1884
    %v1886 = vadd.f32 %v1885, 1.0
    %v1887 = vrcp.pop %v1886
    %v1888 = vmul.f32 1.0, %v1887
    %v1889 = vadd.f32 %v1738, %v1810
    %v1890 = vxor.u32 %v1889, 2147483648
    %v1891 = vmul.f32 %v1890, 1.442695
    %v1892 = vpow.pop %v1891
    %v1893 = vadd.f32 %v1892, 1.0
    %v1894 = vrcp.pop %v1893
    %v1895 = vmul.f32 1.0, %v1894
    %v1896 = vmul.f32 %v1888, %v1879
    %v1897 = vadd.f32 %v1739, %v1896
    %v1898 = vtanh.pop %v1897
    %v1899 = vsub.f32 1.0, %v1895
    %v1900 = vmul.f32 %v1899, %v1898
    %v1901 = vmul.f32 %v1895, %v1740
    %v1902 = vadd.f32 %v1900, %v1901
    %vm1903 = vcmp.gt.s32.totalorder %v82, 3
    %v1904 = vsel %vm1903, 1, 0
    %1905 = vset.pattern.permute.xlu0 0
    %1906 = vperm.xlu0 %1905, %v1904
    %v1907 = vpop.permute.xlu0 %1906
    %vm1908 = vcmp.eq.s32.totalorder %v1907, 1
    %v1909 = vsel %vm1908, %v1902, %v1740
    %1910 = vst [vmem:[#allocation5] sm:$0xff] %v1909
    %v1911 = vsel %vm1908, %v1902, 0.0
    %s1912 = scalar_lea.vmem [#allocation3], 24
    %1913 = vst [vmem:[%s1912] sm:$0xff] %v1911
    %s1914 = scalar_lea.vmem [#allocation2], 192
    %v1915 = vld [vmem:[%s1914 + $0x18] sm:$0xff]
    %v1916 = vld [vmem:[%s1914 + $0x20] sm:$0xff]
    %v1917 = vld [vmem:[%s1914 + $0x28] sm:$0xff]
    %v1918 = vld [vmem:[#allocation6] sm:$0xff]
    %1919 = vmatprep.subr.mxu0 %v587
    %1920 = vmatpush1.msra.mxu0 %v586
    %1921 = vmatprep.subr.mxu0 %v590
    %1922 = vmatpush1.msra.mxu0 %v589
    %1923 = vmatprep.subr.mxu0 %v593
    %1924 = vmatpush1.msra.mxu0 %v592
    %1925 = vmatprep.subr.mxu0 %v596
    %1926 = vmatpush1.msra.mxu0 %v595
    %1927 = vmatprep.subr.mxu0 %v599
    %1928 = vmatpush1.msra.mxu0 %v598
    %1929 = vmatprep.subr.mxu0 %v602
    %1930 = vmatpush1.msra.mxu0 %v601
    %1931 = vmatprep.subr.mxu0 %v605
    %1932 = vmatpush1.msra.mxu0 %v604
    %1933 = vmatprep.subr.mxu0 %v608
    %1934 = vmatpush1.msra.mxu0 %v607
    %1935 = vmatprep.subr.mxu0 %v611
    %1936 = vmatpush1.msra.mxu0 %v610
    %1937 = vmatprep.subr.mxu0 %v614
    %1938 = vmatpush1.msra.mxu0 %v613
    %1939 = vmatprep.subr.mxu0 %v617
    %1940 = vmatpush1.msra.mxu0 %v616
    %1941 = vmatprep.subr.mxu0 %v620
    %1942 = vmatpush1.msra.mxu0 %v619
    %1943 = vmatprep.subr.mxu0 %v623
    %1944 = vmatpush1.msra.mxu0 %v622
    %1945 = vmatprep.subr.mxu0 %v626
    %1946 = vmatpush1.msra.mxu0 %v625
    %1947 = vmatprep.subr.mxu0 %v629
    %1948 = vmatpush1.msra.mxu0 %v628
    %1949 = vmatprep.subr.mxu0 %v632
    %1950 = vmatpush1.msra.mxu0 %v631
    %1951 = vmatprep.subr.mxu0 0.0
    %1952 = vmatpush1.msra.mxu0 0.0
    %1953 = vmatprep.subr.mxu0 0.0
    %1954 = vmatpush1.msra.mxu0 0.0
    %1955 = vmatprep.subr.mxu0 0.0
    %1956 = vmatpush1.msra.mxu0 0.0
    %1957 = vmatprep.subr.mxu0 0.0
    %1958 = vmatpush1.msra.mxu0 0.0
    %1959 = vmatprep.subr.mxu0 0.0
    %1960 = vmatpush1.msra.mxu0 0.0
    %1961 = vmatprep.subr.mxu0 0.0
    %1962 = vmatpush1.msra.mxu0 0.0
    %1963 = vmatprep.subr.mxu0 0.0
    %1964 = vmatpush1.msra.mxu0 0.0
    %1965 = vmatprep.subr.mxu0 0.0
    %1966 = vmatpush1.msra.mxu0 0.0
    %1967 = vmatprep.subr.mxu0 0.0
    %1968 = vmatpush1.msra.mxu0 0.0
    %1969 = vmatprep.subr.mxu0 0.0
    %1970 = vmatpush1.msra.mxu0 0.0
    %1971 = vmatprep.subr.mxu0 0.0
    %1972 = vmatpush1.msra.mxu0 0.0
    %1973 = vmatprep.subr.mxu0 0.0
    %1974 = vmatpush1.msra.mxu0 0.0
    %1975 = vmatprep.subr.mxu0 0.0
    %1976 = vmatpush1.msra.mxu0 0.0
    %1977 = vmatprep.subr.mxu0 0.0
    %1978 = vmatpush1.msra.mxu0 0.0
    %1979 = vmatprep.subr.mxu0 0.0
    %1980 = vmatpush1.msra.mxu0 0.0
    %1981 = vmatprep.subr.mxu0 0.0
    %1982 = vmatpush1.msra.mxu0 0.0
    %1983 = vmatprep.mubr.f32.mxu0 0.0
    %1984 = vmatmul.mubr.f32.gmra.mrb[0].mxu0 %v1918
    %v1985 = vpop.f32.mrb[0].mxu0
    %v1986 = vadd.f32 %v839, %v1985
    %v1987 = vpop.f32.mrb[0].mxu0
    %v1988 = vadd.f32 %v843, %v1987
    %1989 = vdwg.mxu0
    %1990 = vmatprep.subr.mxu0 0.0
    %1991 = vmatpush1.msra.mxu0 %v588
    %1992 = vmatprep.subr.mxu0 0.0
    %1993 = vmatpush1.msra.mxu0 %v591
    %1994 = vmatprep.subr.mxu0 0.0
    %1995 = vmatpush1.msra.mxu0 %v594
    %1996 = vmatprep.subr.mxu0 0.0
    %1997 = vmatpush1.msra.mxu0 %v597
    %1998 = vmatprep.subr.mxu0 0.0
    %1999 = vmatpush1.msra.mxu0 %v600
    %2000 = vmatprep.subr.mxu0 0.0
    %2001 = vmatpush1.msra.mxu0 %v603
    %2002 = vmatprep.subr.mxu0 0.0
    %2003 = vmatpush1.msra.mxu0 %v606
    %2004 = vmatprep.subr.mxu0 0.0
    %2005 = vmatpush1.msra.mxu0 %v609
    %2006 = vmatprep.subr.mxu0 0.0
    %2007 = vmatpush1.msra.mxu0 %v612
    %2008 = vmatprep.subr.mxu0 0.0
    %2009 = vmatpush1.msra.mxu0 %v615
    %2010 = vmatprep.subr.mxu0 0.0
    %2011 = vmatpush1.msra.mxu0 %v618
    %2012 = vmatprep.subr.mxu0 0.0
    %2013 = vmatpush1.msra.mxu0 %v621
    %2014 = vmatprep.subr.mxu0 0.0
    %2015 = vmatpush1.msra.mxu0 %v624
    %2016 = vmatprep.subr.mxu0 0.0
    %2017 = vmatpush1.msra.mxu0 %v627
    %2018 = vmatprep.subr.mxu0 0.0
    %2019 = vmatpush1.msra.mxu0 %v630
    %2020 = vmatprep.subr.mxu0 0.0
    %2021 = vmatpush1.msra.mxu0 %v633
    %2022 = vmatprep.subr.mxu0 0.0
    %2023 = vmatpush1.msra.mxu0 0.0
    %2024 = vmatprep.subr.mxu0 0.0
    %2025 = vmatpush1.msra.mxu0 0.0
    %2026 = vmatprep.subr.mxu0 0.0
    %2027 = vmatpush1.msra.mxu0 0.0
    %2028 = vmatprep.subr.mxu0 0.0
    %2029 = vmatpush1.msra.mxu0 0.0
    %2030 = vmatprep.subr.mxu0 0.0
    %2031 = vmatpush1.msra.mxu0 0.0
    %2032 = vmatprep.subr.mxu0 0.0
    %2033 = vmatpush1.msra.mxu0 0.0
    %2034 = vmatprep.subr.mxu0 0.0
    %2035 = vmatpush1.msra.mxu0 0.0
    %2036 = vmatprep.subr.mxu0 0.0
    %2037 = vmatpush1.msra.mxu0 0.0
    %2038 = vmatprep.subr.mxu0 0.0
    %2039 = vmatpush1.msra.mxu0 0.0
    %2040 = vmatprep.subr.mxu0 0.0
    %2041 = vmatpush1.msra.mxu0 0.0
    %2042 = vmatprep.subr.mxu0 0.0
    %2043 = vmatpush1.msra.mxu0 0.0
    %2044 = vmatprep.subr.mxu0 0.0
    %2045 = vmatpush1.msra.mxu0 0.0
    %2046 = vmatprep.subr.mxu0 0.0
    %2047 = vmatpush1.msra.mxu0 0.0
    %2048 = vmatprep.subr.mxu0 0.0
    %2049 = vmatpush1.msra.mxu0 0.0
    %2050 = vmatprep.subr.mxu0 0.0
    %2051 = vmatpush1.msra.mxu0 0.0
    %2052 = vmatprep.subr.mxu0 0.0
    %2053 = vmatpush1.msra.mxu0 0.0
    %2054 = vmatprep.mubr.f32.mxu0 0.0
    %2055 = vmatmul.mubr.f32.gmra.mrb[0].mxu0 %v1918
    %v2056 = vpop.f32.mrb[0].mxu0
    %v2057 = vadd.f32 %v847, %v2056
    %v2058 = vpop.f32.mrb[0].mxu0
    %2059 = vdwg.mxu0
    %v2060 = vadd.f32 %v1915, %v1986
    %v2061 = vxor.u32 %v2060, 2147483648
    %v2062 = vmul.f32 %v2061, 1.442695
    %v2063 = vpow.pop %v2062
    %v2064 = vadd.f32 %v2063, 1.0
    %v2065 = vrcp.pop %v2064
    %v2066 = vmul.f32 1.0, %v2065
    %v2067 = vadd.f32 %v1916, %v1988
    %v2068 = vxor.u32 %v2067, 2147483648
    %v2069 = vmul.f32 %v2068, 1.442695
    %v2070 = vpow.pop %v2069
    %v2071 = vadd.f32 %v2070, 1.0
    %v2072 = vrcp.pop %v2071
    %v2073 = vmul.f32 1.0, %v2072
    %v2074 = vmul.f32 %v2066, %v2057
    %v2075 = vadd.f32 %v1917, %v2074
    %v2076 = vtanh.pop %v2075
    %v2077 = vsub.f32 1.0, %v2073
    %v2078 = vmul.f32 %v2077, %v2076
    %v2079 = vmul.f32 %v2073, %v1918
    %v2080 = vadd.f32 %v2078, %v2079
    %vm2081 = vcmp.gt.s32.totalorder %v82, 4
    %v2082 = vsel %vm2081, 1, 0
    %2083 = vset.pattern.permute.xlu0 0
    %2084 = vperm.xlu0 %2083, %v2082
    %v2085 = vpop.permute.xlu0 %2084
    %vm2086 = vcmp.eq.s32.totalorder %v2085, 1
    %v2087 = vsel %vm2086, %v2080, %v1918
    %2088 = vst [vmem:[#allocation6] sm:$0xff] %v2087
    %v2089 = vsel %vm2086, %v2080, 0.0
    %s2090 = scalar_lea.vmem [#allocation4], 32
    %2091 = vst [vmem:[%s2090] sm:$0xff] %v2089
    %v2092 = vld [vmem:[%s1914] sm:$0xff]
    %v2093 = vld [vmem:[%s1914 + $0x8] sm:$0xff]
    %v2094 = vld [vmem:[%s1914 + $0x10] sm:$0xff]
    %v2095 = vld [vmem:[#allocation5] sm:$0xff]
    %2096 = vmatprep.subr.mxu0 %v539
    %2097 = vmatpush1.msra.mxu0 %v538
    %2098 = vmatprep.subr.mxu0 %v542
    %2099 = vmatpush1.msra.mxu0 %v541
    %2100 = vmatprep.subr.mxu0 %v545
    %2101 = vmatpush1.msra.mxu0 %v544
    %2102 = vmatprep.subr.mxu0 %v548
    %2103 = vmatpush1.msra.mxu0 %v547
    %2104 = vmatprep.subr.mxu0 %v551
    %2105 = vmatpush1.msra.mxu0 %v550
    %2106 = vmatprep.subr.mxu0 %v554
    %2107 = vmatpush1.msra.mxu0 %v553
    %2108 = vmatprep.subr.mxu0 %v557
    %2109 = vmatpush1.msra.mxu0 %v556
    %2110 = vmatprep.subr.mxu0 %v560
    %2111 = vmatpush1.msra.mxu0 %v559
    %2112 = vmatprep.subr.mxu0 %v563
    %2113 = vmatpush1.msra.mxu0 %v562
    %2114 = vmatprep.subr.mxu0 %v566
    %2115 = vmatpush1.msra.mxu0 %v565
    %2116 = vmatprep.subr.mxu0 %v569
    %2117 = vmatpush1.msra.mxu0 %v568
    %2118 = vmatprep.subr.mxu0 %v572
    %2119 = vmatpush1.msra.mxu0 %v571
    %2120 = vmatprep.subr.mxu0 %v575
    %2121 = vmatpush1.msra.mxu0 %v574
    %2122 = vmatprep.subr.mxu0 %v578
    %2123 = vmatpush1.msra.mxu0 %v577
    %2124 = vmatprep.subr.mxu0 %v581
    %2125 = vmatpush1.msra.mxu0 %v580
    %2126 = vmatprep.subr.mxu0 %v584
    %2127 = vmatpush1.msra.mxu0 %v583
    %2128 = vmatprep.subr.mxu0 0.0
    %2129 = vmatpush1.msra.mxu0 0.0
    %2130 = vmatprep.subr.mxu0 0.0
    %2131 = vmatpush1.msra.mxu0 0.0
    %2132 = vmatprep.subr.mxu0 0.0
    %2133 = vmatpush1.msra.mxu0 0.0
    %2134 = vmatprep.subr.mxu0 0.0
    %2135 = vmatpush1.msra.mxu0 0.0
    %2136 = vmatprep.subr.mxu0 0.0
    %2137 = vmatpush1.msra.mxu0 0.0
    %2138 = vmatprep.subr.mxu0 0.0
    %2139 = vmatpush1.msra.mxu0 0.0
    %2140 = vmatprep.subr.mxu0 0.0
    %2141 = vmatpush1.msra.mxu0 0.0
    %2142 = vmatprep.subr.mxu0 0.0
    %2143 = vmatpush1.msra.mxu0 0.0
    %2144 = vmatprep.subr.mxu0 0.0
    %2145 = vmatpush1.msra.mxu0 0.0
    %2146 = vmatprep.subr.mxu0 0.0
    %2147 = vmatpush1.msra.mxu0 0.0
    %2148 = vmatprep.subr.mxu0 0.0
    %2149 = vmatpush1.msra.mxu0 0.0
    %2150 = vmatprep.subr.mxu0 0.0
    %2151 = vmatpush1.msra.mxu0 0.0
    %2152 = vmatprep.subr.mxu0 0.0
    %2153 = vmatpush1.msra.mxu0 0.0
    %2154 = vmatprep.subr.mxu0 0.0
    %2155 = vmatpush1.msra.mxu0 0.0
    %2156 = vmatprep.subr.mxu0 0.0
    %2157 = vmatpush1.msra.mxu0 0.0
    %2158 = vmatprep.subr.mxu0 0.0
    %2159 = vmatpush1.msra.mxu0 0.0
    %2160 = vmatprep.mubr.f32.mxu0 0.0
    %2161 = vmatmul.mubr.f32.gmra.mrb[0].mxu0 %v2095
    %v2162 = vpop.f32.mrb[0].mxu0
    %v2163 = vadd.f32 %v646, %v2162
    %v2164 = vpop.f32.mrb[0].mxu0
    %v2165 = vadd.f32 %v650, %v2164
    %2166 = vdwg.mxu0
    %2167 = vmatprep.subr.mxu0 0.0
    %2168 = vmatpush1.msra.mxu0 %v540
    %2169 = vmatprep.subr.mxu0 0.0
    %2170 = vmatpush1.msra.mxu0 %v543
    %2171 = vmatprep.subr.mxu0 0.0
    %2172 = vmatpush1.msra.mxu0 %v546
    %2173 = vmatprep.subr.mxu0 0.0
    %2174 = vmatpush1.msra.mxu0 %v549
    %2175 = vmatprep.subr.mxu0 0.0
    %2176 = vmatpush1.msra.mxu0 %v552
    %2177 = vmatprep.subr.mxu0 0.0
    %2178 = vmatpush1.msra.mxu0 %v555
    %2179 = vmatprep.subr.mxu0 0.0
    %2180 = vmatpush1.msra.mxu0 %v558
    %2181 = vmatprep.subr.mxu0 0.0
    %2182 = vmatpush1.msra.mxu0 %v561
    %2183 = vmatprep.subr.mxu0 0.0
    %2184 = vmatpush1.msra.mxu0 %v564
    %2185 = vmatprep.subr.mxu0 0.0
    %2186 = vmatpush1.msra.mxu0 %v567
    %2187 = vmatprep.subr.mxu0 0.0
    %2188 = vmatpush1.msra.mxu0 %v570
    %2189 = vmatprep.subr.mxu0 0.0
    %2190 = vmatpush1.msra.mxu0 %v573
    %2191 = vmatprep.subr.mxu0 0.0
    %2192 = vmatpush1.msra.mxu0 %v576
    %2193 = vmatprep.subr.mxu0 0.0
    %2194 = vmatpush1.msra.mxu0 %v579
    %2195 = vmatprep.subr.mxu0 0.0
    %2196 = vmatpush1.msra.mxu0 %v582
    %2197 = vmatprep.subr.mxu0 0.0
    %2198 = vmatpush1.msra.mxu0 %v585
    %2199 = vmatprep.subr.mxu0 0.0
    %2200 = vmatpush1.msra.mxu0 0.0
    %2201 = vmatprep.subr.mxu0 0.0
    %2202 = vmatpush1.msra.mxu0 0.0
    %2203 = vmatprep.subr.mxu0 0.0
    %2204 = vmatpush1.msra.mxu0 0.0
    %2205 = vmatprep.subr.mxu0 0.0
    %2206 = vmatpush1.msra.mxu0 0.0
    %2207 = vmatprep.subr.mxu0 0.0
    %2208 = vmatpush1.msra.mxu0 0.0
    %2209 = vmatprep.subr.mxu0 0.0
    %2210 = vmatpush1.msra.mxu0 0.0
    %2211 = vmatprep.subr.mxu0 0.0
    %2212 = vmatpush1.msra.mxu0 0.0
    %2213 = vmatprep.subr.mxu0 0.0
    %2214 = vmatpush1.msra.mxu0 0.0
    %2215 = vmatprep.subr.mxu0 0.0
    %2216 = vmatpush1.msra.mxu0 0.0
    %2217 = vmatprep.subr.mxu0 0.0
    %2218 = vmatpush1.msra.mxu0 0.0
    %2219 = vmatprep.subr.mxu0 0.0
    %2220 = vmatpush1.msra.mxu0 0.0
    %2221 = vmatprep.subr.mxu0 0.0
    %2222 = vmatpush1.msra.mxu0 0.0
    %2223 = vmatprep.subr.mxu0 0.0
    %2224 = vmatpush1.msra.mxu0 0.0
    %2225 = vmatprep.subr.mxu0 0.0
    %2226 = vmatpush1.msra.mxu0 0.0
    %2227 = vmatprep.subr.mxu0 0.0
    %2228 = vmatpush1.msra.mxu0 0.0
    %2229 = vmatprep.subr.mxu0 0.0
    %2230 = vmatpush1.msra.mxu0 0.0
    %2231 = vmatprep.mubr.f32.mxu0 0.0
    %2232 = vmatmul.mubr.f32.gmra.mrb[0].mxu0 %v2095
    %v2233 = vpop.f32.mrb[0].mxu0
    %v2234 = vadd.f32 %v654, %v2233
    %v2235 = vpop.f32.mrb[0].mxu0
    %2236 = vdwg.mxu0
    %v2237 = vadd.f32 %v2092, %v2163
    %v2238 = vxor.u32 %v2237, 2147483648
    %v2239 = vmul.f32 %v2238, 1.442695
    %v2240 = vpow.pop %v2239
    %v2241 = vadd.f32 %v2240, 1.0
    %v2242 = vrcp.pop %v2241
    %v2243 = vmul.f32 1.0, %v2242
    %v2244 = vadd.f32 %v2093, %v2165
    %v2245 = vxor.u32 %v2244, 2147483648
    %v2246 = vmul.f32 %v2245, 1.442695
    %v2247 = vpow.pop %v2246
    %v2248 = vadd.f32 %v2247, 1.0
    %v2249 = vrcp.pop %v2248
    %v2250 = vmul.f32 1.0, %v2249
    %v2251 = vmul.f32 %v2243, %v2234
    %v2252 = vadd.f32 %v2094, %v2251
    %v2253 = vtanh.pop %v2252
    %v2254 = vsub.f32 1.0, %v2250
    %v2255 = vmul.f32 %v2254, %v2253
    %v2256 = vmul.f32 %v2250, %v2095
    %v2257 = vadd.f32 %v2255, %v2256
    %v2258 = vsel %vm2086, %v2257, %v2095
    %2259 = vst [vmem:[#allocation5] sm:$0xff] %v2258
    %v2260 = vsel %vm2086, %v2257, 0.0
    %s2261 = scalar_lea.vmem [#allocation3], 32
    %2262 = vst [vmem:[%s2261] sm:$0xff] %v2260
    %v2263 = vld [vmem:[%s1736 + $0x18] sm:$0xff]
    %v2264 = vld [vmem:[%s1736 + $0x20] sm:$0xff]
    %v2265 = vld [vmem:[%s1736 + $0x28] sm:$0xff]
    %v2266 = vld [vmem:[#allocation6] sm:$0xff]
    %2267 = vmatprep.subr.mxu0 %v587
    %2268 = vmatpush1.msra.mxu0 %v586
    %2269 = vmatprep.subr.mxu0 %v590
    %2270 = vmatpush1.msra.mxu0 %v589
    %2271 = vmatprep.subr.mxu0 %v593
    %2272 = vmatpush1.msra.mxu0 %v592
    %2273 = vmatprep.subr.mxu0 %v596
    %2274 = vmatpush1.msra.mxu0 %v595
    %2275 = vmatprep.subr.mxu0 %v599
    %2276 = vmatpush1.msra.mxu0 %v598
    %2277 = vmatprep.subr.mxu0 %v602
    %2278 = vmatpush1.msra.mxu0 %v601
    %2279 = vmatprep.subr.mxu0 %v605
    %2280 = vmatpush1.msra.mxu0 %v604
    %2281 = vmatprep.subr.mxu0 %v608
    %2282 = vmatpush1.msra.mxu0 %v607
    %2283 = vmatprep.subr.mxu0 %v611
    %2284 = vmatpush1.msra.mxu0 %v610
    %2285 = vmatprep.subr.mxu0 %v614
    %2286 = vmatpush1.msra.mxu0 %v613
    %2287 = vmatprep.subr.mxu0 %v617
    %2288 = vmatpush1.msra.mxu0 %v616
    %2289 = vmatprep.subr.mxu0 %v620
    %2290 = vmatpush1.msra.mxu0 %v619
    %2291 = vmatprep.subr.mxu0 %v623
    %2292 = vmatpush1.msra.mxu0 %v622
    %2293 = vmatprep.subr.mxu0 %v626
    %2294 = vmatpush1.msra.mxu0 %v625
    %2295 = vmatprep.subr.mxu0 %v629
    %2296 = vmatpush1.msra.mxu0 %v628
    %2297 = vmatprep.subr.mxu0 %v632
    %2298 = vmatpush1.msra.mxu0 %v631
    %2299 = vmatprep.subr.mxu0 0.0
    %2300 = vmatpush1.msra.mxu0 0.0
    %2301 = vmatprep.subr.mxu0 0.0
    %2302 = vmatpush1.msra.mxu0 0.0
    %2303 = vmatprep.subr.mxu0 0.0
    %2304 = vmatpush1.msra.mxu0 0.0
    %2305 = vmatprep.subr.mxu0 0.0
    %2306 = vmatpush1.msra.mxu0 0.0
    %2307 = vmatprep.subr.mxu0 0.0
    %2308 = vmatpush1.msra.mxu0 0.0
    %2309 = vmatprep.subr.mxu0 0.0
    %2310 = vmatpush1.msra.mxu0 0.0
    %2311 = vmatprep.subr.mxu0 0.0
    %2312 = vmatpush1.msra.mxu0 0.0
    %2313 = vmatprep.subr.mxu0 0.0
    %2314 = vmatpush1.msra.mxu0 0.0
    %2315 = vmatprep.subr.mxu0 0.0
    %2316 = vmatpush1.msra.mxu0 0.0
    %2317 = vmatprep.subr.mxu0 0.0
    %2318 = vmatpush1.msra.mxu0 0.0
    %2319 = vmatprep.subr.mxu0 0.0
    %2320 = vmatpush1.msra.mxu0 0.0
    %2321 = vmatprep.subr.mxu0 0.0
    %2322 = vmatpush1.msra.mxu0 0.0
    %2323 = vmatprep.subr.mxu0 0.0
    %2324 = vmatpush1.msra.mxu0 0.0
    %2325 = vmatprep.subr.mxu0 0.0
    %2326 = vmatpush1.msra.mxu0 0.0
    %2327 = vmatprep.subr.mxu0 0.0
    %2328 = vmatpush1.msra.mxu0 0.0
    %2329 = vmatprep.subr.mxu0 0.0
    %2330 = vmatpush1.msra.mxu0 0.0
    %2331 = vmatprep.mubr.f32.mxu0 0.0
    %2332 = vmatmul.mubr.f32.gmra.mrb[0].mxu0 %v2266
    %v2333 = vpop.f32.mrb[0].mxu0
    %v2334 = vadd.f32 %v839, %v2333
    %v2335 = vpop.f32.mrb[0].mxu0
    %v2336 = vadd.f32 %v843, %v2335
    %2337 = vdwg.mxu0
    %2338 = vmatprep.subr.mxu0 0.0
    %2339 = vmatpush1.msra.mxu0 %v588
    %2340 = vmatprep.subr.mxu0 0.0
    %2341 = vmatpush1.msra.mxu0 %v591
    %2342 = vmatprep.subr.mxu0 0.0
    %2343 = vmatpush1.msra.mxu0 %v594
    %2344 = vmatprep.subr.mxu0 0.0
    %2345 = vmatpush1.msra.mxu0 %v597
    %2346 = vmatprep.subr.mxu0 0.0
    %2347 = vmatpush1.msra.mxu0 %v600
    %2348 = vmatprep.subr.mxu0 0.0
    %2349 = vmatpush1.msra.mxu0 %v603
    %2350 = vmatprep.subr.mxu0 0.0
    %2351 = vmatpush1.msra.mxu0 %v606
    %2352 = vmatprep.subr.mxu0 0.0
    %2353 = vmatpush1.msra.mxu0 %v609
    %2354 = vmatprep.subr.mxu0 0.0
    %2355 = vmatpush1.msra.mxu0 %v612
    %2356 = vmatprep.subr.mxu0 0.0
    %2357 = vmatpush1.msra.mxu0 %v615
    %2358 = vmatprep.subr.mxu0 0.0
    %2359 = vmatpush1.msra.mxu0 %v618
    %2360 = vmatprep.subr.mxu0 0.0
    %2361 = vmatpush1.msra.mxu0 %v621
    %2362 = vmatprep.subr.mxu0 0.0
    %2363 = vmatpush1.msra.mxu0 %v624
    %2364 = vmatprep.subr.mxu0 0.0
    %2365 = vmatpush1.msra.mxu0 %v627
    %2366 = vmatprep.subr.mxu0 0.0
    %2367 = vmatpush1.msra.mxu0 %v630
    %2368 = vmatprep.subr.mxu0 0.0
    %2369 = vmatpush1.msra.mxu0 %v633
    %2370 = vmatprep.subr.mxu0 0.0
    %2371 = vmatpush1.msra.mxu0 0.0
    %2372 = vmatprep.subr.mxu0 0.0
    %2373 = vmatpush1.msra.mxu0 0.0
    %2374 = vmatprep.subr.mxu0 0.0
    %2375 = vmatpush1.msra.mxu0 0.0
    %2376 = vmatprep.subr.mxu0 0.0
    %2377 = vmatpush1.msra.mxu0 0.0
    %2378 = vmatprep.subr.mxu0 0.0
    %2379 = vmatpush1.msra.mxu0 0.0
    %2380 = vmatprep.subr.mxu0 0.0
    %2381 = vmatpush1.msra.mxu0 0.0
    %2382 = vmatprep.subr.mxu0 0.0
    %2383 = vmatpush1.msra.mxu0 0.0
    %2384 = vmatprep.subr.mxu0 0.0
    %2385 = vmatpush1.msra.mxu0 0.0
    %2386 = vmatprep.subr.mxu0 0.0
    %2387 = vmatpush1.msra.mxu0 0.0
    %2388 = vmatprep.subr.mxu0 0.0
    %2389 = vmatpush1.msra.mxu0 0.0
    %2390 = vmatprep.subr.mxu0 0.0
    %2391 = vmatpush1.msra.mxu0 0.0
    %2392 = vmatprep.subr.mxu0 0.0
    %2393 = vmatpush1.msra.mxu0 0.0
    %2394 = vmatprep.subr.mxu0 0.0
    %2395 = vmatpush1.msra.mxu0 0.0
    %2396 = vmatprep.subr.mxu0 0.0
    %2397 = vmatpush1.msra.mxu0 0.0
    %2398 = vmatprep.subr.mxu0 0.0
    %2399 = vmatpush1.msra.mxu0 0.0
    %2400 = vmatprep.subr.mxu0 0.0
    %2401 = vmatpush1.msra.mxu0 0.0
    %2402 = vmatprep.mubr.f32.mxu0 0.0
    %2403 = vmatmul.mubr.f32.gmra.mrb[0].mxu0 %v2266
    %v2404 = vpop.f32.mrb[0].mxu0
    %v2405 = vadd.f32 %v847, %v2404
    %v2406 = vpop.f32.mrb[0].mxu0
    %2407 = vdwg.mxu0
    %v2408 = vadd.f32 %v2263, %v2334
    %v2409 = vxor.u32 %v2408, 2147483648
    %v2410 = vmul.f32 %v2409, 1.442695
    %v2411 = vpow.pop %v2410
    %v2412 = vadd.f32 %v2411, 1.0
    %v2413 = vrcp.pop %v2412
    %v2414 = vmul.f32 1.0, %v2413
    %v2415 = vadd.f32 %v2264, %v2336
    %v2416 = vxor.u32 %v2415, 2147483648
    %v2417 = vmul.f32 %v2416, 1.442695
    %v2418 = vpow.pop %v2417
    %v2419 = vadd.f32 %v2418, 1.0
    %v2420 = vrcp.pop %v2419
    %v2421 = vmul.f32 1.0, %v2420
    %v2422 = vmul.f32 %v2414, %v2405
    %v2423 = vadd.f32 %v2265, %v2422
    %v2424 = vtanh.pop %v2423
    %v2425 = vsub.f32 1.0, %v2421
    %v2426 = vmul.f32 %v2425, %v2424
    %v2427 = vmul.f32 %v2421, %v2266
    %v2428 = vadd.f32 %v2426, %v2427
    %v2429 = vsel %vm1908, %v2428, %v2266
    %2430 = vst [vmem:[#allocation6] sm:$0xff] %v2429
    %v2431 = vsel %vm1908, %v2428, 0.0
    %s2432 = scalar_lea.vmem [#allocation4], 24
    %2433 = vst [vmem:[%s2432] sm:$0xff] %v2431
    %v2434 = vld [vmem:[%s1558] sm:$0xff]
    %v2435 = vld [vmem:[%s1558 + $0x8] sm:$0xff]
    %v2436 = vld [vmem:[%s1558 + $0x10] sm:$0xff]
    %v2437 = vld [vmem:[#allocation5] sm:$0xff]
    %2438 = vmatprep.subr.mxu0 %v539
    %2439 = vmatpush1.msra.mxu0 %v538
    %2440 = vmatprep.subr.mxu0 %v542
    %2441 = vmatpush1.msra.mxu0 %v541
    %2442 = vmatprep.subr.mxu0 %v545
    %2443 = vmatpush1.msra.mxu0 %v544
    %2444 = vmatprep.subr.mxu0 %v548
    %2445 = vmatpush1.msra.mxu0 %v547
    %2446 = vmatprep.subr.mxu0 %v551
    %2447 = vmatpush1.msra.mxu0 %v550
    %2448 = vmatprep.subr.mxu0 %v554
    %2449 = vmatpush1.msra.mxu0 %v553
    %2450 = vmatprep.subr.mxu0 %v557
    %2451 = vmatpush1.msra.mxu0 %v556
    %2452 = vmatprep.subr.mxu0 %v560
    %2453 = vmatpush1.msra.mxu0 %v559
    %2454 = vmatprep.subr.mxu0 %v563
    %2455 = vmatpush1.msra.mxu0 %v562
    %2456 = vmatprep.subr.mxu0 %v566
    %2457 = vmatpush1.msra.mxu0 %v565
    %2458 = vmatprep.subr.mxu0 %v569
    %2459 = vmatpush1.msra.mxu0 %v568
    %2460 = vmatprep.subr.mxu0 %v572
    %2461 = vmatpush1.msra.mxu0 %v571
    %2462 = vmatprep.subr.mxu0 %v575
    %2463 = vmatpush1.msra.mxu0 %v574
    %2464 = vmatprep.subr.mxu0 %v578
    %2465 = vmatpush1.msra.mxu0 %v577
    %2466 = vmatprep.subr.mxu0 %v581
    %2467 = vmatpush1.msra.mxu0 %v580
    %2468 = vmatprep.subr.mxu0 %v584
    %2469 = vmatpush1.msra.mxu0 %v583
    %2470 = vmatprep.subr.mxu0 0.0
    %2471 = vmatpush1.msra.mxu0 0.0
    %2472 = vmatprep.subr.mxu0 0.0
    %2473 = vmatpush1.msra.mxu0 0.0
    %2474 = vmatprep.subr.mxu0 0.0
    %2475 = vmatpush1.msra.mxu0 0.0
    %2476 = vmatprep.subr.mxu0 0.0
    %2477 = vmatpush1.msra.mxu0 0.0
    %2478 = vmatprep.subr.mxu0 0.0
    %2479 = vmatpush1.msra.mxu0 0.0
    %2480 = vmatprep.subr.mxu0 0.0
    %2481 = vmatpush1.msra.mxu0 0.0
    %2482 = vmatprep.subr.mxu0 0.0
    %2483 = vmatpush1.msra.mxu0 0.0
    %2484 = vmatprep.subr.mxu0 0.0
    %2485 = vmatpush1.msra.mxu0 0.0
    %2486 = vmatprep.subr.mxu0 0.0
    %2487 = vmatpush1.msra.mxu0 0.0
    %2488 = vmatprep.subr.mxu0 0.0
    %2489 = vmatpush1.msra.mxu0 0.0
    %2490 = vmatprep.subr.mxu0 0.0
    %2491 = vmatpush1.msra.mxu0 0.0
    %2492 = vmatprep.subr.mxu0 0.0
    %2493 = vmatpush1.msra.mxu0 0.0
    %2494 = vmatprep.subr.mxu0 0.0
    %2495 = vmatpush1.msra.mxu0 0.0
    %2496 = vmatprep.subr.mxu0 0.0
    %2497 = vmatpush1.msra.mxu0 0.0
    %2498 = vmatprep.subr.mxu0 0.0
    %2499 = vmatpush1.msra.mxu0 0.0
    %2500 = vmatprep.subr.mxu0 0.0
    %2501 = vmatpush1.msra.mxu0 0.0
    %2502 = vmatprep.mubr.f32.mxu0 0.0
    %2503 = vmatmul.mubr.f32.gmra.mrb[0].mxu0 %v2437
    %v2504 = vpop.f32.mrb[0].mxu0
    %v2505 = vadd.f32 %v646, %v2504
    %v2506 = vpop.f32.mrb[0].mxu0
    %v2507 = vadd.f32 %v650, %v2506
    %2508 = vdwg.mxu0
    %2509 = vmatprep.subr.mxu0 0.0
    %2510 = vmatpush1.msra.mxu0 %v540
    %2511 = vmatprep.subr.mxu0 0.0
    %2512 = vmatpush1.msra.mxu0 %v543
    %2513 = vmatprep.subr.mxu0 0.0
    %2514 = vmatpush1.msra.mxu0 %v546
    %2515 = vmatprep.subr.mxu0 0.0
    %2516 = vmatpush1.msra.mxu0 %v549
    %2517 = vmatprep.subr.mxu0 0.0
    %2518 = vmatpush1.msra.mxu0 %v552
    %2519 = vmatprep.subr.mxu0 0.0
    %2520 = vmatpush1.msra.mxu0 %v555
    %2521 = vmatprep.subr.mxu0 0.0
    %2522 = vmatpush1.msra.mxu0 %v558
    %2523 = vmatprep.subr.mxu0 0.0
    %2524 = vmatpush1.msra.mxu0 %v561
    %2525 = vmatprep.subr.mxu0 0.0
    %2526 = vmatpush1.msra.mxu0 %v564
    %2527 = vmatprep.subr.mxu0 0.0
    %2528 = vmatpush1.msra.mxu0 %v567
    %2529 = vmatprep.subr.mxu0 0.0
    %2530 = vmatpush1.msra.mxu0 %v570
    %2531 = vmatprep.subr.mxu0 0.0
    %2532 = vmatpush1.msra.mxu0 %v573
    %2533 = vmatprep.subr.mxu0 0.0
    %2534 = vmatpush1.msra.mxu0 %v576
    %2535 = vmatprep.subr.mxu0 0.0
    %2536 = vmatpush1.msra.mxu0 %v579
    %2537 = vmatprep.subr.mxu0 0.0
    %2538 = vmatpush1.msra.mxu0 %v582
    %2539 = vmatprep.subr.mxu0 0.0
    %2540 = vmatpush1.msra.mxu0 %v585
    %2541 = vmatprep.subr.mxu0 0.0
    %2542 = vmatpush1.msra.mxu0 0.0
    %2543 = vmatprep.subr.mxu0 0.0
    %2544 = vmatpush1.msra.mxu0 0.0
    %2545 = vmatprep.subr.mxu0 0.0
    %2546 = vmatpush1.msra.mxu0 0.0
    %2547 = vmatprep.subr.mxu0 0.0
    %2548 = vmatpush1.msra.mxu0 0.0
    %2549 = vmatprep.subr.mxu0 0.0
    %2550 = vmatpush1.msra.mxu0 0.0
    %2551 = vmatprep.subr.mxu0 0.0
    %2552 = vmatpush1.msra.mxu0 0.0
    %2553 = vmatprep.subr.mxu0 0.0
    %2554 = vmatpush1.msra.mxu0 0.0
    %2555 = vmatprep.subr.mxu0 0.0
    %2556 = vmatpush1.msra.mxu0 0.0
    %2557 = vmatprep.subr.mxu0 0.0
    %2558 = vmatpush1.msra.mxu0 0.0
    %2559 = vmatprep.subr.mxu0 0.0
    %2560 = vmatpush1.msra.mxu0 0.0
    %2561 = vmatprep.subr.mxu0 0.0
    %2562 = vmatpush1.msra.mxu0 0.0
    %2563 = vmatprep.subr.mxu0 0.0
    %2564 = vmatpush1.msra.mxu0 0.0
    %2565 = vmatprep.subr.mxu0 0.0
    %2566 = vmatpush1.msra.mxu0 0.0
    %2567 = vmatprep.subr.mxu0 0.0
    %2568 = vmatpush1.msra.mxu0 0.0
    %2569 = vmatprep.subr.mxu0 0.0
    %2570 = vmatpush1.msra.mxu0 0.0
    %2571 = vmatprep.subr.mxu0 0.0
    %2572 = vmatpush1.msra.mxu0 0.0
    %2573 = vmatprep.mubr.f32.mxu0 0.0
    %2574 = vmatmul.mubr.f32.gmra.mrb[0].mxu0 %v2437
    %v2575 = vpop.f32.mrb[0].mxu0
    %v2576 = vadd.f32 %v654, %v2575
    %v2577 = vpop.f32.mrb[0].mxu0
    %2578 = vdwg.mxu0
    %v2579 = vadd.f32 %v2434, %v2505
    %v2580 = vxor.u32 %v2579, 2147483648
    %v2581 = vmul.f32 %v2580, 1.442695
    %v2582 = vpow.pop %v2581
    %v2583 = vadd.f32 %v2582, 1.0
    %v2584 = vrcp.pop %v2583
    %v2585 = vmul.f32 1.0, %v2584
    %v2586 = vadd.f32 %v2435, %v2507
    %v2587 = vxor.u32 %v2586, 2147483648
    %v2588 = vmul.f32 %v2587, 1.442695
    %v2589 = vpow.pop %v2588
    %v2590 = vadd.f32 %v2589, 1.0
    %v2591 = vrcp.pop %v2590
    %v2592 = vmul.f32 1.0, %v2591
    %v2593 = vmul.f32 %v2585, %v2576
    %v2594 = vadd.f32 %v2436, %v2593
    %v2595 = vtanh.pop %v2594
    %v2596 = vsub.f32 1.0, %v2592
    %v2597 = vmul.f32 %v2596, %v2595
    %v2598 = vmul.f32 %v2592, %v2437
    %v2599 = vadd.f32 %v2597, %v2598
    %v2600 = vsel %vm1730, %v2599, %v2437
    %2601 = vst [vmem:[#allocation5] sm:$0xff] %v2600
    %v2602 = vsel %vm1730, %v2599, 0.0
    %s2603 = scalar_lea.vmem [#allocation3], 40
    %2604 = vst [vmem:[%s2603] sm:$0xff] %v2602
    %v2605 = vld [vmem:[%s1380 + $0x18] sm:$0xff]
    %v2606 = vld [vmem:[%s1380 + $0x20] sm:$0xff]
    %v2607 = vld [vmem:[%s1380 + $0x28] sm:$0xff]
    %v2608 = vld [vmem:[#allocation6] sm:$0xff]
    %2609 = vmatprep.subr.mxu0 %v587
    %2610 = vmatpush1.msra.mxu0 %v586
    %2611 = vmatprep.subr.mxu0 %v590
    %2612 = vmatpush1.msra.mxu0 %v589
    %2613 = vmatprep.subr.mxu0 %v593
    %2614 = vmatpush1.msra.mxu0 %v592
    %2615 = vmatprep.subr.mxu0 %v596
    %2616 = vmatpush1.msra.mxu0 %v595
    %2617 = vmatprep.subr.mxu0 %v599
    %2618 = vmatpush1.msra.mxu0 %v598
    %2619 = vmatprep.subr.mxu0 %v602
    %2620 = vmatpush1.msra.mxu0 %v601
    %2621 = vmatprep.subr.mxu0 %v605
    %2622 = vmatpush1.msra.mxu0 %v604
    %2623 = vmatprep.subr.mxu0 %v608
    %2624 = vmatpush1.msra.mxu0 %v607
    %2625 = vmatprep.subr.mxu0 %v611
    %2626 = vmatpush1.msra.mxu0 %v610
    %2627 = vmatprep.subr.mxu0 %v614
    %2628 = vmatpush1.msra.mxu0 %v613
    %2629 = vmatprep.subr.mxu0 %v617
    %2630 = vmatpush1.msra.mxu0 %v616
    %2631 = vmatprep.subr.mxu0 %v620
    %2632 = vmatpush1.msra.mxu0 %v619
    %2633 = vmatprep.subr.mxu0 %v623
    %2634 = vmatpush1.msra.mxu0 %v622
    %2635 = vmatprep.subr.mxu0 %v626
    %2636 = vmatpush1.msra.mxu0 %v625
    %2637 = vmatprep.subr.mxu0 %v629
    %2638 = vmatpush1.msra.mxu0 %v628
    %2639 = vmatprep.subr.mxu0 %v632
    %2640 = vmatpush1.msra.mxu0 %v631
    %2641 = vmatprep.subr.mxu0 0.0
    %2642 = vmatpush1.msra.mxu0 0.0
    %2643 = vmatprep.subr.mxu0 0.0
    %2644 = vmatpush1.msra.mxu0 0.0
    %2645 = vmatprep.subr.mxu0 0.0
    %2646 = vmatpush1.msra.mxu0 0.0
    %2647 = vmatprep.subr.mxu0 0.0
    %2648 = vmatpush1.msra.mxu0 0.0
    %2649 = vmatprep.subr.mxu0 0.0
    %2650 = vmatpush1.msra.mxu0 0.0
    %2651 = vmatprep.subr.mxu0 0.0
    %2652 = vmatpush1.msra.mxu0 0.0
    %2653 = vmatprep.subr.mxu0 0.0
    %2654 = vmatpush1.msra.mxu0 0.0
    %2655 = vmatprep.subr.mxu0 0.0
    %2656 = vmatpush1.msra.mxu0 0.0
    %2657 = vmatprep.subr.mxu0 0.0
    %2658 = vmatpush1.msra.mxu0 0.0
    %2659 = vmatprep.subr.mxu0 0.0
    %2660 = vmatpush1.msra.mxu0 0.0
    %2661 = vmatprep.subr.mxu0 0.0
    %2662 = vmatpush1.msra.mxu0 0.0
    %2663 = vmatprep.subr.mxu0 0.0
    %2664 = vmatpush1.msra.mxu0 0.0
    %2665 = vmatprep.subr.mxu0 0.0
    %2666 = vmatpush1.msra.mxu0 0.0
    %2667 = vmatprep.subr.mxu0 0.0
    %2668 = vmatpush1.msra.mxu0 0.0
    %2669 = vmatprep.subr.mxu0 0.0
    %2670 = vmatpush1.msra.mxu0 0.0
    %2671 = vmatprep.subr.mxu0 0.0
    %2672 = vmatpush1.msra.mxu0 0.0
    %2673 = vmatprep.mubr.f32.mxu0 0.0
    %2674 = vmatmul.mubr.f32.gmra.mrb[0].mxu0 %v2608
    %v2675 = vpop.f32.mrb[0].mxu0
    %v2676 = vadd.f32 %v839, %v2675
    %v2677 = vpop.f32.mrb[0].mxu0
    %v2678 = vadd.f32 %v843, %v2677
    %2679 = vdwg.mxu0
    %2680 = vmatprep.subr.mxu0 0.0
    %2681 = vmatpush1.msra.mxu0 %v588
    %2682 = vmatprep.subr.mxu0 0.0
    %2683 = vmatpush1.msra.mxu0 %v591
    %2684 = vmatprep.subr.mxu0 0.0
    %2685 = vmatpush1.msra.mxu0 %v594
    %2686 = vmatprep.subr.mxu0 0.0
    %2687 = vmatpush1.msra.mxu0 %v597
    %2688 = vmatprep.subr.mxu0 0.0
    %2689 = vmatpush1.msra.mxu0 %v600
    %2690 = vmatprep.subr.mxu0 0.0
    %2691 = vmatpush1.msra.mxu0 %v603
    %2692 = vmatprep.subr.mxu0 0.0
    %2693 = vmatpush1.msra.mxu0 %v606
    %2694 = vmatprep.subr.mxu0 0.0
    %2695 = vmatpush1.msra.mxu0 %v609
    %2696 = vmatprep.subr.mxu0 0.0
    %2697 = vmatpush1.msra.mxu0 %v612
    %2698 = vmatprep.subr.mxu0 0.0
    %2699 = vmatpush1.msra.mxu0 %v615
    %2700 = vmatprep.subr.mxu0 0.0
    %2701 = vmatpush1.msra.mxu0 %v618
    %2702 = vmatprep.subr.mxu0 0.0
    %2703 = vmatpush1.msra.mxu0 %v621
    %2704 = vmatprep.subr.mxu0 0.0
    %2705 = vmatpush1.msra.mxu0 %v624
    %2706 = vmatprep.subr.mxu0 0.0
    %2707 = vmatpush1.msra.mxu0 %v627
    %2708 = vmatprep.subr.mxu0 0.0
    %2709 = vmatpush1.msra.mxu0 %v630
    %2710 = vmatprep.subr.mxu0 0.0
    %2711 = vmatpush1.msra.mxu0 %v633
    %2712 = vmatprep.subr.mxu0 0.0
    %2713 = vmatpush1.msra.mxu0 0.0
    %2714 = vmatprep.subr.mxu0 0.0
    %2715 = vmatpush1.msra.mxu0 0.0
    %2716 = vmatprep.subr.mxu0 0.0
    %2717 = vmatpush1.msra.mxu0 0.0
    %2718 = vmatprep.subr.mxu0 0.0
    %2719 = vmatpush1.msra.mxu0 0.0
    %2720 = vmatprep.subr.mxu0 0.0
    %2721 = vmatpush1.msra.mxu0 0.0
    %2722 = vmatprep.subr.mxu0 0.0
    %2723 = vmatpush1.msra.mxu0 0.0
    %2724 = vmatprep.subr.mxu0 0.0
    %2725 = vmatpush1.msra.mxu0 0.0
    %2726 = vmatprep.subr.mxu0 0.0
    %2727 = vmatpush1.msra.mxu0 0.0
    %2728 = vmatprep.subr.mxu0 0.0
    %2729 = vmatpush1.msra.mxu0 0.0
    %2730 = vmatprep.subr.mxu0 0.0
    %2731 = vmatpush1.msra.mxu0 0.0
    %2732 = vmatprep.subr.mxu0 0.0
    %2733 = vmatpush1.msra.mxu0 0.0
    %2734 = vmatprep.subr.mxu0 0.0
    %2735 = vmatpush1.msra.mxu0 0.0
    %2736 = vmatprep.subr.mxu0 0.0
    %2737 = vmatpush1.msra.mxu0 0.0
    %2738 = vmatprep.subr.mxu0 0.0
    %2739 = vmatpush1.msra.mxu0 0.0
    %2740 = vmatprep.subr.mxu0 0.0
    %2741 = vmatpush1.msra.mxu0 0.0
    %2742 = vmatprep.subr.mxu0 0.0
    %2743 = vmatpush1.msra.mxu0 0.0
    %2744 = vmatprep.mubr.f32.mxu0 0.0
    %2745 = vmatmul.mubr.f32.gmra.mrb[0].mxu0 %v2608
    %v2746 = vpop.f32.mrb[0].mxu0
    %v2747 = vadd.f32 %v847, %v2746
    %v2748 = vpop.f32.mrb[0].mxu0
    %2749 = vdwg.mxu0
    %v2750 = vadd.f32 %v2605, %v2676
    %v2751 = vxor.u32 %v2750, 2147483648
    %v2752 = vmul.f32 %v2751, 1.442695
    %v2753 = vpow.pop %v2752
    %v2754 = vadd.f32 %v2753, 1.0
    %v2755 = vrcp.pop %v2754
    %v2756 = vmul.f32 1.0, %v2755
    %v2757 = vadd.f32 %v2606, %v2678
    %v2758 = vxor.u32 %v2757, 2147483648
    %v2759 = vmul.f32 %v2758, 1.442695
    %v2760 = vpow.pop %v2759
    %v2761 = vadd.f32 %v2760, 1.0
    %v2762 = vrcp.pop %v2761
    %v2763 = vmul.f32 1.0, %v2762
    %v2764 = vmul.f32 %v2756, %v2747
    %v2765 = vadd.f32 %v2607, %v2764
    %v2766 = vtanh.pop %v2765
    %v2767 = vsub.f32 1.0, %v2763
    %v2768 = vmul.f32 %v2767, %v2766
    %v2769 = vmul.f32 %v2763, %v2608
    %v2770 = vadd.f32 %v2768, %v2769
    %v2771 = vsel %vm1552, %v2770, %v2608
    %2772 = vst [vmem:[#allocation6] sm:$0xff] %v2771
    %v2773 = vsel %vm1552, %v2770, 0.0
    %s2774 = scalar_lea.vmem [#allocation4], 16
    %2775 = vst [vmem:[%s2774] sm:$0xff] %v2773
    %v2776 = vld [vmem:[%s1202] sm:$0xff]
    %v2777 = vld [vmem:[%s1202 + $0x8] sm:$0xff]
    %v2778 = vld [vmem:[%s1202 + $0x10] sm:$0xff]
    %v2779 = vld [vmem:[#allocation5] sm:$0xff]
    %2780 = vmatprep.subr.mxu0 %v539
    %2781 = vmatpush1.msra.mxu0 %v538
    %2782 = vmatprep.subr.mxu0 %v542
    %2783 = vmatpush1.msra.mxu0 %v541
    %2784 = vmatprep.subr.mxu0 %v545
    %2785 = vmatpush1.msra.mxu0 %v544
    %2786 = vmatprep.subr.mxu0 %v548
    %2787 = vmatpush1.msra.mxu0 %v547
    %2788 = vmatprep.subr.mxu0 %v551
    %2789 = vmatpush1.msra.mxu0 %v550
    %2790 = vmatprep.subr.mxu0 %v554
    %2791 = vmatpush1.msra.mxu0 %v553
    %2792 = vmatprep.subr.mxu0 %v557
    %2793 = vmatpush1.msra.mxu0 %v556
    %2794 = vmatprep.subr.mxu0 %v560
    %2795 = vmatpush1.msra.mxu0 %v559
    %2796 = vmatprep.subr.mxu0 %v563
    %2797 = vmatpush1.msra.mxu0 %v562
    %2798 = vmatprep.subr.mxu0 %v566
    %2799 = vmatpush1.msra.mxu0 %v565
    %2800 = vmatprep.subr.mxu0 %v569
    %2801 = vmatpush1.msra.mxu0 %v568
    %2802 = vmatprep.subr.mxu0 %v572
    %2803 = vmatpush1.msra.mxu0 %v571
    %2804 = vmatprep.subr.mxu0 %v575
    %2805 = vmatpush1.msra.mxu0 %v574
    %2806 = vmatprep.subr.mxu0 %v578
    %2807 = vmatpush1.msra.mxu0 %v577
    %2808 = vmatprep.subr.mxu0 %v581
    %2809 = vmatpush1.msra.mxu0 %v580
    %2810 = vmatprep.subr.mxu0 %v584
    %2811 = vmatpush1.msra.mxu0 %v583
    %2812 = vmatprep.subr.mxu0 0.0
    %2813 = vmatpush1.msra.mxu0 0.0
    %2814 = vmatprep.subr.mxu0 0.0
    %2815 = vmatpush1.msra.mxu0 0.0
    %2816 = vmatprep.subr.mxu0 0.0
    %2817 = vmatpush1.msra.mxu0 0.0
    %2818 = vmatprep.subr.mxu0 0.0
    %2819 = vmatpush1.msra.mxu0 0.0
    %2820 = vmatprep.subr.mxu0 0.0
    %2821 = vmatpush1.msra.mxu0 0.0
    %2822 = vmatprep.subr.mxu0 0.0
    %2823 = vmatpush1.msra.mxu0 0.0
    %2824 = vmatprep.subr.mxu0 0.0
    %2825 = vmatpush1.msra.mxu0 0.0
    %2826 = vmatprep.subr.mxu0 0.0
    %2827 = vmatpush1.msra.mxu0 0.0
    %2828 = vmatprep.subr.mxu0 0.0
    %2829 = vmatpush1.msra.mxu0 0.0
    %2830 = vmatprep.subr.mxu0 0.0
    %2831 = vmatpush1.msra.mxu0 0.0
    %2832 = vmatprep.subr.mxu0 0.0
    %2833 = vmatpush1.msra.mxu0 0.0
    %2834 = vmatprep.subr.mxu0 0.0
    %2835 = vmatpush1.msra.mxu0 0.0
    %2836 = vmatprep.subr.mxu0 0.0
    %2837 = vmatpush1.msra.mxu0 0.0
    %2838 = vmatprep.subr.mxu0 0.0
    %2839 = vmatpush1.msra.mxu0 0.0
    %2840 = vmatprep.subr.mxu0 0.0
    %2841 = vmatpush1.msra.mxu0 0.0
    %2842 = vmatprep.subr.mxu0 0.0
    %2843 = vmatpush1.msra.mxu0 0.0
    %2844 = vmatprep.mubr.f32.mxu0 0.0
    %2845 = vmatmul.mubr.f32.gmra.mrb[0].mxu0 %v2779
    %v2846 = vpop.f32.mrb[0].mxu0
    %v2847 = vadd.f32 %v646, %v2846
    %v2848 = vpop.f32.mrb[0].mxu0
    %v2849 = vadd.f32 %v650, %v2848
    %2850 = vdwg.mxu0
    %2851 = vmatprep.subr.mxu0 0.0
    %2852 = vmatpush1.msra.mxu0 %v540
    %2853 = vmatprep.subr.mxu0 0.0
    %2854 = vmatpush1.msra.mxu0 %v543
    %2855 = vmatprep.subr.mxu0 0.0
    %2856 = vmatpush1.msra.mxu0 %v546
    %2857 = vmatprep.subr.mxu0 0.0
    %2858 = vmatpush1.msra.mxu0 %v549
    %2859 = vmatprep.subr.mxu0 0.0
    %2860 = vmatpush1.msra.mxu0 %v552
    %2861 = vmatprep.subr.mxu0 0.0
    %2862 = vmatpush1.msra.mxu0 %v555
    %2863 = vmatprep.subr.mxu0 0.0
    %2864 = vmatpush1.msra.mxu0 %v558
    %2865 = vmatprep.subr.mxu0 0.0
    %2866 = vmatpush1.msra.mxu0 %v561
    %2867 = vmatprep.subr.mxu0 0.0
    %2868 = vmatpush1.msra.mxu0 %v564
    %2869 = vmatprep.subr.mxu0 0.0
    %2870 = vmatpush1.msra.mxu0 %v567
    %2871 = vmatprep.subr.mxu0 0.0
    %2872 = vmatpush1.msra.mxu0 %v570
    %2873 = vmatprep.subr.mxu0 0.0
    %2874 = vmatpush1.msra.mxu0 %v573
    %2875 = vmatprep.subr.mxu0 0.0
    %2876 = vmatpush1.msra.mxu0 %v576
    %2877 = vmatprep.subr.mxu0 0.0
    %2878 = vmatpush1.msra.mxu0 %v579
    %2879 = vmatprep.subr.mxu0 0.0
    %2880 = vmatpush1.msra.mxu0 %v582
    %2881 = vmatprep.subr.mxu0 0.0
    %2882 = vmatpush1.msra.mxu0 %v585
    %2883 = vmatprep.subr.mxu0 0.0
    %2884 = vmatpush1.msra.mxu0 0.0
    %2885 = vmatprep.subr.mxu0 0.0
    %2886 = vmatpush1.msra.mxu0 0.0
    %2887 = vmatprep.subr.mxu0 0.0
    %2888 = vmatpush1.msra.mxu0 0.0
    %2889 = vmatprep.subr.mxu0 0.0
    %2890 = vmatpush1.msra.mxu0 0.0
    %2891 = vmatprep.subr.mxu0 0.0
    %2892 = vmatpush1.msra.mxu0 0.0
    %2893 = vmatprep.subr.mxu0 0.0
    %2894 = vmatpush1.msra.mxu0 0.0
    %2895 = vmatprep.subr.mxu0 0.0
    %2896 = vmatpush1.msra.mxu0 0.0
    %2897 = vmatprep.subr.mxu0 0.0
    %2898 = vmatpush1.msra.mxu0 0.0
    %2899 = vmatprep.subr.mxu0 0.0
    %2900 = vmatpush1.msra.mxu0 0.0
    %2901 = vmatprep.subr.mxu0 0.0
    %2902 = vmatpush1.msra.mxu0 0.0
    %2903 = vmatprep.subr.mxu0 0.0
    %2904 = vmatpush1.msra.mxu0 0.0
    %2905 = vmatprep.subr.mxu0 0.0
    %2906 = vmatpush1.msra.mxu0 0.0
    %2907 = vmatprep.subr.mxu0 0.0
    %2908 = vmatpush1.msra.mxu0 0.0
    %2909 = vmatprep.subr.mxu0 0.0
    %2910 = vmatpush1.msra.mxu0 0.0
    %2911 = vmatprep.subr.mxu0 0.0
    %2912 = vmatpush1.msra.mxu0 0.0
    %2913 = vmatprep.subr.mxu0 0.0
    %2914 = vmatpush1.msra.mxu0 0.0
    %2915 = vmatprep.mubr.f32.mxu0 0.0
    %2916 = vmatmul.mubr.f32.gmra.mrb[0].mxu0 %v2779
    %v2917 = vpop.f32.mrb[0].mxu0
    %v2918 = vadd.f32 %v654, %v2917
    %v2919 = vpop.f32.mrb[0].mxu0
    %2920 = vdwg.mxu0
    %v2921 = vadd.f32 %v2776, %v2847
    %v2922 = vxor.u32 %v2921, 2147483648
    %v2923 = vmul.f32 %v2922, 1.442695
    %v2924 = vpow.pop %v2923
    %v2925 = vadd.f32 %v2924, 1.0
    %v2926 = vrcp.pop %v2925
    %v2927 = vmul.f32 1.0, %v2926
    %v2928 = vadd.f32 %v2777, %v2849
    %v2929 = vxor.u32 %v2928, 2147483648
    %v2930 = vmul.f32 %v2929, 1.442695
    %v2931 = vpow.pop %v2930
    %v2932 = vadd.f32 %v2931, 1.0
    %v2933 = vrcp.pop %v2932
    %v2934 = vmul.f32 1.0, %v2933
    %v2935 = vmul.f32 %v2927, %v2918
    %v2936 = vadd.f32 %v2778, %v2935
    %v2937 = vtanh.pop %v2936
    %v2938 = vsub.f32 1.0, %v2934
    %v2939 = vmul.f32 %v2938, %v2937
    %v2940 = vmul.f32 %v2934, %v2779
    %v2941 = vadd.f32 %v2939, %v2940
    %v2942 = vsel %vm1374, %v2941, %v2779
    %2943 = vst [vmem:[#allocation5] sm:$0xff] %v2942
    %v2944 = vsel %vm1374, %v2941, 0.0
    %s2945 = scalar_lea.vmem [#allocation3], 48
    %2946 = vst [vmem:[%s2945] sm:$0xff] %v2944
    %v2947 = vld [vmem:[%s1024 + $0x18] sm:$0xff]
    %v2948 = vld [vmem:[%s1024 + $0x20] sm:$0xff]
    %v2949 = vld [vmem:[%s1024 + $0x28] sm:$0xff]
    %v2950 = vld [vmem:[#allocation6] sm:$0xff]
    %2951 = vmatprep.subr.mxu0 %v587
    %2952 = vmatpush1.msra.mxu0 %v586
    %2953 = vmatprep.subr.mxu0 %v590
    %2954 = vmatpush1.msra.mxu0 %v589
    %2955 = vmatprep.subr.mxu0 %v593
    %2956 = vmatpush1.msra.mxu0 %v592
    %2957 = vmatprep.subr.mxu0 %v596
    %2958 = vmatpush1.msra.mxu0 %v595
    %2959 = vmatprep.subr.mxu0 %v599
    %2960 = vmatpush1.msra.mxu0 %v598
    %2961 = vmatprep.subr.mxu0 %v602
    %2962 = vmatpush1.msra.mxu0 %v601
    %2963 = vmatprep.subr.mxu0 %v605
    %2964 = vmatpush1.msra.mxu0 %v604
    %2965 = vmatprep.subr.mxu0 %v608
    %2966 = vmatpush1.msra.mxu0 %v607
    %2967 = vmatprep.subr.mxu0 %v611
    %2968 = vmatpush1.msra.mxu0 %v610
    %2969 = vmatprep.subr.mxu0 %v614
    %2970 = vmatpush1.msra.mxu0 %v613
    %2971 = vmatprep.subr.mxu0 %v617
    %2972 = vmatpush1.msra.mxu0 %v616
    %2973 = vmatprep.subr.mxu0 %v620
    %2974 = vmatpush1.msra.mxu0 %v619
    %2975 = vmatprep.subr.mxu0 %v623
    %2976 = vmatpush1.msra.mxu0 %v622
    %2977 = vmatprep.subr.mxu0 %v626
    %2978 = vmatpush1.msra.mxu0 %v625
    %2979 = vmatprep.subr.mxu0 %v629
    %2980 = vmatpush1.msra.mxu0 %v628
    %2981 = vmatprep.subr.mxu0 %v632
    %2982 = vmatpush1.msra.mxu0 %v631
    %2983 = vmatprep.subr.mxu0 0.0
    %2984 = vmatpush1.msra.mxu0 0.0
    %2985 = vmatprep.subr.mxu0 0.0
    %2986 = vmatpush1.msra.mxu0 0.0
    %2987 = vmatprep.subr.mxu0 0.0
    %2988 = vmatpush1.msra.mxu0 0.0
    %2989 = vmatprep.subr.mxu0 0.0
    %2990 = vmatpush1.msra.mxu0 0.0
    %2991 = vmatprep.subr.mxu0 0.0
    %2992 = vmatpush1.msra.mxu0 0.0
    %2993 = vmatprep.subr.mxu0 0.0
    %2994 = vmatpush1.msra.mxu0 0.0
    %2995 = vmatprep.subr.mxu0 0.0
    %2996 = vmatpush1.msra.mxu0 0.0
    %2997 = vmatprep.subr.mxu0 0.0
    %2998 = vmatpush1.msra.mxu0 0.0
    %2999 = vmatprep.subr.mxu0 0.0
    %3000 = vmatpush1.msra.mxu0 0.0
    %3001 = vmatprep.subr.mxu0 0.0
    %3002 = vmatpush1.msra.mxu0 0.0
    %3003 = vmatprep.subr.mxu0 0.0
    %3004 = vmatpush1.msra.mxu0 0.0
    %3005 = vmatprep.subr.mxu0 0.0
    %3006 = vmatpush1.msra.mxu0 0.0
    %3007 = vmatprep.subr.mxu0 0.0
    %3008 = vmatpush1.msra.mxu0 0.0
    %3009 = vmatprep.subr.mxu0 0.0
    %3010 = vmatpush1.msra.mxu0 0.0
    %3011 = vmatprep.subr.mxu0 0.0
    %3012 = vmatpush1.msra.mxu0 0.0
    %3013 = vmatprep.subr.mxu0 0.0
    %3014 = vmatpush1.msra.mxu0 0.0
    %3015 = vmatprep.mubr.f32.mxu0 0.0
    %3016 = vmatmul.mubr.f32.gmra.mrb[0].mxu0 %v2950
    %v3017 = vpop.f32.mrb[0].mxu0
    %v3018 = vadd.f32 %v839, %v3017
    %v3019 = vpop.f32.mrb[0].mxu0
    %v3020 = vadd.f32 %v843, %v3019
    %3021 = vdwg.mxu0
    %3022 = vmatprep.subr.mxu0 0.0
    %3023 = vmatpush1.msra.mxu0 %v588
    %3024 = vmatprep.subr.mxu0 0.0
    %3025 = vmatpush1.msra.mxu0 %v591
    %3026 = vmatprep.subr.mxu0 0.0
    %3027 = vmatpush1.msra.mxu0 %v594
    %3028 = vmatprep.subr.mxu0 0.0
    %3029 = vmatpush1.msra.mxu0 %v597
    %3030 = vmatprep.subr.mxu0 0.0
    %3031 = vmatpush1.msra.mxu0 %v600
    %3032 = vmatprep.subr.mxu0 0.0
    %3033 = vmatpush1.msra.mxu0 %v603
    %3034 = vmatprep.subr.mxu0 0.0
    %3035 = vmatpush1.msra.mxu0 %v606
    %3036 = vmatprep.subr.mxu0 0.0
    %3037 = vmatpush1.msra.mxu0 %v609
    %3038 = vmatprep.subr.mxu0 0.0
    %3039 = vmatpush1.msra.mxu0 %v612
    %3040 = vmatprep.subr.mxu0 0.0
    %3041 = vmatpush1.msra.mxu0 %v615
    %3042 = vmatprep.subr.mxu0 0.0
    %3043 = vmatpush1.msra.mxu0 %v618
    %3044 = vmatprep.subr.mxu0 0.0
    %3045 = vmatpush1.msra.mxu0 %v621
    %3046 = vmatprep.subr.mxu0 0.0
    %3047 = vmatpush1.msra.mxu0 %v624
    %3048 = vmatprep.subr.mxu0 0.0
    %3049 = vmatpush1.msra.mxu0 %v627
    %3050 = vmatprep.subr.mxu0 0.0
    %3051 = vmatpush1.msra.mxu0 %v630
    %3052 = vmatprep.subr.mxu0 0.0
    %3053 = vmatpush1.msra.mxu0 %v633
    %3054 = vmatprep.subr.mxu0 0.0
    %3055 = vmatpush1.msra.mxu0 0.0
    %3056 = vmatprep.subr.mxu0 0.0
    %3057 = vmatpush1.msra.mxu0 0.0
    %3058 = vmatprep.subr.mxu0 0.0
    %3059 = vmatpush1.msra.mxu0 0.0
    %3060 = vmatprep.subr.mxu0 0.0
    %3061 = vmatpush1.msra.mxu0 0.0
    %3062 = vmatprep.subr.mxu0 0.0
    %3063 = vmatpush1.msra.mxu0 0.0
    %3064 = vmatprep.subr.mxu0 0.0
    %3065 = vmatpush1.msra.mxu0 0.0
    %3066 = vmatprep.subr.mxu0 0.0
    %3067 = vmatpush1.msra.mxu0 0.0
    %3068 = vmatprep.subr.mxu0 0.0
    %3069 = vmatpush1.msra.mxu0 0.0
    %3070 = vmatprep.subr.mxu0 0.0
    %3071 = vmatpush1.msra.mxu0 0.0
    %3072 = vmatprep.subr.mxu0 0.0
    %3073 = vmatpush1.msra.mxu0 0.0
    %3074 = vmatprep.subr.mxu0 0.0
    %3075 = vmatpush1.msra.mxu0 0.0
    %3076 = vmatprep.subr.mxu0 0.0
    %3077 = vmatpush1.msra.mxu0 0.0
    %3078 = vmatprep.subr.mxu0 0.0
    %3079 = vmatpush1.msra.mxu0 0.0
    %3080 = vmatprep.subr.mxu0 0.0
    %3081 = vmatpush1.msra.mxu0 0.0
    %3082 = vmatprep.subr.mxu0 0.0
    %3083 = vmatpush1.msra.mxu0 0.0
    %3084 = vmatprep.subr.mxu0 0.0
    %3085 = vmatpush1.msra.mxu0 0.0
    %3086 = vmatprep.mubr.f32.mxu0 0.0
    %3087 = vmatmul.mubr.f32.gmra.mrb[0].mxu0 %v2950
    %v3088 = vpop.f32.mrb[0].mxu0
    %v3089 = vadd.f32 %v847, %v3088
    %v3090 = vpop.f32.mrb[0].mxu0
    %3091 = vdwg.mxu0
    %v3092 = vadd.f32 %v2947, %v3018
    %v3093 = vxor.u32 %v3092, 2147483648
    %v3094 = vmul.f32 %v3093, 1.442695
    %v3095 = vpow.pop %v3094
    %v3096 = vadd.f32 %v3095, 1.0
    %v3097 = vrcp.pop %v3096
    %v3098 = vmul.f32 1.0, %v3097
    %v3099 = vadd.f32 %v2948, %v3020
    %v3100 = vxor.u32 %v3099, 2147483648
    %v3101 = vmul.f32 %v3100, 1.442695
    %v3102 = vpow.pop %v3101
    %v3103 = vadd.f32 %v3102, 1.0
    %v3104 = vrcp.pop %v3103
    %v3105 = vmul.f32 1.0, %v3104
    %v3106 = vmul.f32 %v3098, %v3089
    %v3107 = vadd.f32 %v2949, %v3106
    %v3108 = vtanh.pop %v3107
    %v3109 = vsub.f32 1.0, %v3105
    %v3110 = vmul.f32 %v3109, %v3108
    %v3111 = vmul.f32 %v3105, %v2950
    %v3112 = vadd.f32 %v3110, %v3111
    %v3113 = vsel %vm1196, %v3112, %v2950
    %3114 = vst [vmem:[#allocation6] sm:$0xff] %v3113
    %v3115 = vsel %vm1196, %v3112, 0.0
    %s3116 = scalar_lea.vmem [#allocation4], 8
    %3117 = vst [vmem:[%s3116] sm:$0xff] %v3115
    %v3118 = vld [vmem:[%s830] sm:$0xff]
    %v3119 = vld [vmem:[%s830 + $0x8] sm:$0xff]
    %v3120 = vld [vmem:[%s830 + $0x10] sm:$0xff]
    %v3121 = vld [vmem:[#allocation5] sm:$0xff]
    %3122 = vmatprep.subr.mxu0 %v539
    %3123 = vmatpush1.msra.mxu0 %v538
    %3124 = vmatprep.subr.mxu0 %v542
    %3125 = vmatpush1.msra.mxu0 %v541
    %3126 = vmatprep.subr.mxu0 %v545
    %3127 = vmatpush1.msra.mxu0 %v544
    %3128 = vmatprep.subr.mxu0 %v548
    %3129 = vmatpush1.msra.mxu0 %v547
    %3130 = vmatprep.subr.mxu0 %v551
    %3131 = vmatpush1.msra.mxu0 %v550
    %3132 = vmatprep.subr.mxu0 %v554
    %3133 = vmatpush1.msra.mxu0 %v553
    %3134 = vmatprep.subr.mxu0 %v557
    %3135 = vmatpush1.msra.mxu0 %v556
    %3136 = vmatprep.subr.mxu0 %v560
    %3137 = vmatpush1.msra.mxu0 %v559
    %3138 = vmatprep.subr.mxu0 %v563
    %3139 = vmatpush1.msra.mxu0 %v562
    %3140 = vmatprep.subr.mxu0 %v566
    %3141 = vmatpush1.msra.mxu0 %v565
    %3142 = vmatprep.subr.mxu0 %v569
    %3143 = vmatpush1.msra.mxu0 %v568
    %3144 = vmatprep.subr.mxu0 %v572
    %3145 = vmatpush1.msra.mxu0 %v571
    %3146 = vmatprep.subr.mxu0 %v575
    %3147 = vmatpush1.msra.mxu0 %v574
    %3148 = vmatprep.subr.mxu0 %v578
    %3149 = vmatpush1.msra.mxu0 %v577
    %3150 = vmatprep.subr.mxu0 %v581
    %3151 = vmatpush1.msra.mxu0 %v580
    %3152 = vmatprep.subr.mxu0 %v584
    %3153 = vmatpush1.msra.mxu0 %v583
    %3154 = vmatprep.subr.mxu0 0.0
    %3155 = vmatpush1.msra.mxu0 0.0
    %3156 = vmatprep.subr.mxu0 0.0
    %3157 = vmatpush1.msra.mxu0 0.0
    %3158 = vmatprep.subr.mxu0 0.0
    %3159 = vmatpush1.msra.mxu0 0.0
    %3160 = vmatprep.subr.mxu0 0.0
    %3161 = vmatpush1.msra.mxu0 0.0
    %3162 = vmatprep.subr.mxu0 0.0
    %3163 = vmatpush1.msra.mxu0 0.0
    %3164 = vmatprep.subr.mxu0 0.0
    %3165 = vmatpush1.msra.mxu0 0.0
    %3166 = vmatprep.subr.mxu0 0.0
    %3167 = vmatpush1.msra.mxu0 0.0
    %3168 = vmatprep.subr.mxu0 0.0
    %3169 = vmatpush1.msra.mxu0 0.0
    %3170 = vmatprep.subr.mxu0 0.0
    %3171 = vmatpush1.msra.mxu0 0.0
    %3172 = vmatprep.subr.mxu0 0.0
    %3173 = vmatpush1.msra.mxu0 0.0
    %3174 = vmatprep.subr.mxu0 0.0
    %3175 = vmatpush1.msra.mxu0 0.0
    %3176 = vmatprep.subr.mxu0 0.0
    %3177 = vmatpush1.msra.mxu0 0.0
    %3178 = vmatprep.subr.mxu0 0.0
    %3179 = vmatpush1.msra.mxu0 0.0
    %3180 = vmatprep.subr.mxu0 0.0
    %3181 = vmatpush1.msra.mxu0 0.0
    %3182 = vmatprep.subr.mxu0 0.0
    %3183 = vmatpush1.msra.mxu0 0.0
    %3184 = vmatprep.subr.mxu0 0.0
    %3185 = vmatpush1.msra.mxu0 0.0
    %3186 = vmatprep.mubr.f32.mxu0 0.0
    %3187 = vmatmul.mubr.f32.gmra.mrb[0].mxu0 %v3121
    %v3188 = vpop.f32.mrb[0].mxu0
    %v3189 = vadd.f32 %v646, %v3188
    %v3190 = vpop.f32.mrb[0].mxu0
    %v3191 = vadd.f32 %v650, %v3190
    %3192 = vdwg.mxu0
    %3193 = vmatprep.subr.mxu0 0.0
    %3194 = vmatpush1.msra.mxu0 %v540
    %3195 = vmatprep.subr.mxu0 0.0
    %3196 = vmatpush1.msra.mxu0 %v543
    %3197 = vmatprep.subr.mxu0 0.0
    %3198 = vmatpush1.msra.mxu0 %v546
    %3199 = vmatprep.subr.mxu0 0.0
    %3200 = vmatpush1.msra.mxu0 %v549
    %3201 = vmatprep.subr.mxu0 0.0
    %3202 = vmatpush1.msra.mxu0 %v552
    %3203 = vmatprep.subr.mxu0 0.0
    %3204 = vmatpush1.msra.mxu0 %v555
    %3205 = vmatprep.subr.mxu0 0.0
    %3206 = vmatpush1.msra.mxu0 %v558
    %3207 = vmatprep.subr.mxu0 0.0
    %3208 = vmatpush1.msra.mxu0 %v561
    %3209 = vmatprep.subr.mxu0 0.0
    %3210 = vmatpush1.msra.mxu0 %v564
    %3211 = vmatprep.subr.mxu0 0.0
    %3212 = vmatpush1.msra.mxu0 %v567
    %3213 = vmatprep.subr.mxu0 0.0
    %3214 = vmatpush1.msra.mxu0 %v570
    %3215 = vmatprep.subr.mxu0 0.0
    %3216 = vmatpush1.msra.mxu0 %v573
    %3217 = vmatprep.subr.mxu0 0.0
    %3218 = vmatpush1.msra.mxu0 %v576
    %3219 = vmatprep.subr.mxu0 0.0
    %3220 = vmatpush1.msra.mxu0 %v579
    %3221 = vmatprep.subr.mxu0 0.0
    %3222 = vmatpush1.msra.mxu0 %v582
    %3223 = vmatprep.subr.mxu0 0.0
    %3224 = vmatpush1.msra.mxu0 %v585
    %3225 = vmatprep.subr.mxu0 0.0
    %3226 = vmatpush1.msra.mxu0 0.0
    %3227 = vmatprep.subr.mxu0 0.0
    %3228 = vmatpush1.msra.mxu0 0.0
    %3229 = vmatprep.subr.mxu0 0.0
    %3230 = vmatpush1.msra.mxu0 0.0
    %3231 = vmatprep.subr.mxu0 0.0
    %3232 = vmatpush1.msra.mxu0 0.0
    %3233 = vmatprep.subr.mxu0 0.0
    %3234 = vmatpush1.msra.mxu0 0.0
    %3235 = vmatprep.subr.mxu0 0.0
    %3236 = vmatpush1.msra.mxu0 0.0
    %3237 = vmatprep.subr.mxu0 0.0
    %3238 = vmatpush1.msra.mxu0 0.0
    %3239 = vmatprep.subr.mxu0 0.0
    %3240 = vmatpush1.msra.mxu0 0.0
    %3241 = vmatprep.subr.mxu0 0.0
    %3242 = vmatpush1.msra.mxu0 0.0
    %3243 = vmatprep.subr.mxu0 0.0
    %3244 = vmatpush1.msra.mxu0 0.0
    %3245 = vmatprep.subr.mxu0 0.0
    %3246 = vmatpush1.msra.mxu0 0.0
    %3247 = vmatprep.subr.mxu0 0.0
    %3248 = vmatpush1.msra.mxu0 0.0
    %3249 = vmatprep.subr.mxu0 0.0
    %3250 = vmatpush1.msra.mxu0 0.0
    %3251 = vmatprep.subr.mxu0 0.0
    %3252 = vmatpush1.msra.mxu0 0.0
    %3253 = vmatprep.subr.mxu0 0.0
    %3254 = vmatpush1.msra.mxu0 0.0
    %3255 = vmatprep.subr.mxu0 0.0
    %3256 = vmatpush1.msra.mxu0 0.0
    %3257 = vmatprep.mubr.f32.mxu0 0.0
    %3258 = vmatmul.mubr.f32.gmra.mrb[0].mxu0 %v3121
    %v3259 = vpop.f32.mrb[0].mxu0
    %v3260 = vadd.f32 %v654, %v3259
    %v3261 = vpop.f32.mrb[0].mxu0
    %3262 = vdwg.mxu0
    %v3263 = vadd.f32 %v3118, %v3189
    %v3264 = vxor.u32 %v3263, 2147483648
    %v3265 = vmul.f32 %v3264, 1.442695
    %v3266 = vpow.pop %v3265
    %v3267 = vadd.f32 %v3266, 1.0
    %v3268 = vrcp.pop %v3267
    %v3269 = vmul.f32 1.0, %v3268
    %v3270 = vadd.f32 %v3119, %v3191
    %v3271 = vxor.u32 %v3270, 2147483648
    %v3272 = vmul.f32 %v3271, 1.442695
    %v3273 = vpow.pop %v3272
    %v3274 = vadd.f32 %v3273, 1.0
    %v3275 = vrcp.pop %v3274
    %v3276 = vmul.f32 1.0, %v3275
    %v3277 = vmul.f32 %v3269, %v3260
    %v3278 = vadd.f32 %v3120, %v3277
    %v3279 = vtanh.pop %v3278
    %v3280 = vsub.f32 1.0, %v3276
    %v3281 = vmul.f32 %v3280, %v3279
    %v3282 = vmul.f32 %v3276, %v3121
    %v3283 = vadd.f32 %v3281, %v3282
    %v3284 = vsel %vm1018, %v3283, %v3121
    %3285 = vst [vmem:[#allocation5] sm:$0xff] %v3284
    %v3286 = vsel %vm1018, %v3283, 0.0
    %s3287 = scalar_lea.vmem [#allocation3], 56
    %3288 = vst [vmem:[%s3287] sm:$0xff] %v3286
    %v3289 = vld [vmem:[#allocation2 + $0x18] sm:$0xff]
    %v3290 = vld [vmem:[#allocation2 + $0x20] sm:$0xff]
    %v3291 = vld [vmem:[#allocation2 + $0x28] sm:$0xff]
    %v3292 = vld [vmem:[#allocation6] sm:$0xff]
    %3293 = vmatprep.subr.mxu0 %v587
    %3294 = vmatpush1.msra.mxu0 %v586
    %3295 = vmatprep.subr.mxu0 %v590
    %3296 = vmatpush1.msra.mxu0 %v589
    %3297 = vmatprep.subr.mxu0 %v593
    %3298 = vmatpush1.msra.mxu0 %v592
    %3299 = vmatprep.subr.mxu0 %v596
    %3300 = vmatpush1.msra.mxu0 %v595
    %3301 = vmatprep.subr.mxu0 %v599
    %3302 = vmatpush1.msra.mxu0 %v598
    %3303 = vmatprep.subr.mxu0 %v602
    %3304 = vmatpush1.msra.mxu0 %v601
    %3305 = vmatprep.subr.mxu0 %v605
    %3306 = vmatpush1.msra.mxu0 %v604
    %3307 = vmatprep.subr.mxu0 %v608
    %3308 = vmatpush1.msra.mxu0 %v607
    %3309 = vmatprep.subr.mxu0 %v611
    %3310 = vmatpush1.msra.mxu0 %v610
    %3311 = vmatprep.subr.mxu0 %v614
    %3312 = vmatpush1.msra.mxu0 %v613
    %3313 = vmatprep.subr.mxu0 %v617
    %3314 = vmatpush1.msra.mxu0 %v616
    %3315 = vmatprep.subr.mxu0 %v620
    %3316 = vmatpush1.msra.mxu0 %v619
    %3317 = vmatprep.subr.mxu0 %v623
    %3318 = vmatpush1.msra.mxu0 %v622
    %3319 = vmatprep.subr.mxu0 %v626
    %3320 = vmatpush1.msra.mxu0 %v625
    %3321 = vmatprep.subr.mxu0 %v629
    %3322 = vmatpush1.msra.mxu0 %v628
    %3323 = vmatprep.subr.mxu0 %v632
    %3324 = vmatpush1.msra.mxu0 %v631
    %3325 = vmatprep.subr.mxu0 0.0
    %3326 = vmatpush1.msra.mxu0 0.0
    %3327 = vmatprep.subr.mxu0 0.0
    %3328 = vmatpush1.msra.mxu0 0.0
    %3329 = vmatprep.subr.mxu0 0.0
    %3330 = vmatpush1.msra.mxu0 0.0
    %3331 = vmatprep.subr.mxu0 0.0
    %3332 = vmatpush1.msra.mxu0 0.0
    %3333 = vmatprep.subr.mxu0 0.0
    %3334 = vmatpush1.msra.mxu0 0.0
    %3335 = vmatprep.subr.mxu0 0.0
    %3336 = vmatpush1.msra.mxu0 0.0
    %3337 = vmatprep.subr.mxu0 0.0
    %3338 = vmatpush1.msra.mxu0 0.0
    %3339 = vmatprep.subr.mxu0 0.0
    %3340 = vmatpush1.msra.mxu0 0.0
    %3341 = vmatprep.subr.mxu0 0.0
    %3342 = vmatpush1.msra.mxu0 0.0
    %3343 = vmatprep.subr.mxu0 0.0
    %3344 = vmatpush1.msra.mxu0 0.0
    %3345 = vmatprep.subr.mxu0 0.0
    %3346 = vmatpush1.msra.mxu0 0.0
    %3347 = vmatprep.subr.mxu0 0.0
    %3348 = vmatpush1.msra.mxu0 0.0
    %3349 = vmatprep.subr.mxu0 0.0
    %3350 = vmatpush1.msra.mxu0 0.0
    %3351 = vmatprep.subr.mxu0 0.0
    %3352 = vmatpush1.msra.mxu0 0.0
    %3353 = vmatprep.subr.mxu0 0.0
    %3354 = vmatpush1.msra.mxu0 0.0
    %3355 = vmatprep.subr.mxu0 0.0
    %3356 = vmatpush1.msra.mxu0 0.0
    %3357 = vmatprep.mubr.f32.mxu0 0.0
    %3358 = vmatmul.mubr.f32.gmra.mrb[0].mxu0 %v3292
    %v3359 = vpop.f32.mrb[0].mxu0
    %v3360 = vadd.f32 %v839, %v3359
    %v3361 = vpop.f32.mrb[0].mxu0
    %v3362 = vadd.f32 %v843, %v3361
    %3363 = vdwg.mxu0
    %3364 = vmatprep.subr.mxu0 0.0
    %3365 = vmatpush1.msra.mxu0 %v588
    %3366 = vmatprep.subr.mxu0 0.0
    %3367 = vmatpush1.msra.mxu0 %v591
    %3368 = vmatprep.subr.mxu0 0.0
    %3369 = vmatpush1.msra.mxu0 %v594
    %3370 = vmatprep.subr.mxu0 0.0
    %3371 = vmatpush1.msra.mxu0 %v597
    %3372 = vmatprep.subr.mxu0 0.0
    %3373 = vmatpush1.msra.mxu0 %v600
    %3374 = vmatprep.subr.mxu0 0.0
    %3375 = vmatpush1.msra.mxu0 %v603
    %3376 = vmatprep.subr.mxu0 0.0
    %3377 = vmatpush1.msra.mxu0 %v606
    %3378 = vmatprep.subr.mxu0 0.0
    %3379 = vmatpush1.msra.mxu0 %v609
    %3380 = vmatprep.subr.mxu0 0.0
    %3381 = vmatpush1.msra.mxu0 %v612
    %3382 = vmatprep.subr.mxu0 0.0
    %3383 = vmatpush1.msra.mxu0 %v615
    %3384 = vmatprep.subr.mxu0 0.0
    %3385 = vmatpush1.msra.mxu0 %v618
    %3386 = vmatprep.subr.mxu0 0.0
    %3387 = vmatpush1.msra.mxu0 %v621
    %3388 = vmatprep.subr.mxu0 0.0
    %3389 = vmatpush1.msra.mxu0 %v624
    %3390 = vmatprep.subr.mxu0 0.0
    %3391 = vmatpush1.msra.mxu0 %v627
    %3392 = vmatprep.subr.mxu0 0.0
    %3393 = vmatpush1.msra.mxu0 %v630
    %3394 = vmatprep.subr.mxu0 0.0
    %3395 = vmatpush1.msra.mxu0 %v633
    %3396 = vmatprep.subr.mxu0 0.0
    %3397 = vmatpush1.msra.mxu0 0.0
    %3398 = vmatprep.subr.mxu0 0.0
    %3399 = vmatpush1.msra.mxu0 0.0
    %3400 = vmatprep.subr.mxu0 0.0
    %3401 = vmatpush1.msra.mxu0 0.0
    %3402 = vmatprep.subr.mxu0 0.0
    %3403 = vmatpush1.msra.mxu0 0.0
    %3404 = vmatprep.subr.mxu0 0.0
    %3405 = vmatpush1.msra.mxu0 0.0
    %3406 = vmatprep.subr.mxu0 0.0
    %3407 = vmatpush1.msra.mxu0 0.0
    %3408 = vmatprep.subr.mxu0 0.0
    %3409 = vmatpush1.msra.mxu0 0.0
    %3410 = vmatprep.subr.mxu0 0.0
    %3411 = vmatpush1.msra.mxu0 0.0
    %3412 = vmatprep.subr.mxu0 0.0
    %3413 = vmatpush1.msra.mxu0 0.0
    %3414 = vmatprep.subr.mxu0 0.0
    %3415 = vmatpush1.msra.mxu0 0.0
    %3416 = vmatprep.subr.mxu0 0.0
    %3417 = vmatpush1.msra.mxu0 0.0
    %3418 = vmatprep.subr.mxu0 0.0
    %3419 = vmatpush1.msra.mxu0 0.0
    %3420 = vmatprep.subr.mxu0 0.0
    %3421 = vmatpush1.msra.mxu0 0.0
    %3422 = vmatprep.subr.mxu0 0.0
    %3423 = vmatpush1.msra.mxu0 0.0
    %3424 = vmatprep.subr.mxu0 0.0
    %3425 = vmatpush1.msra.mxu0 0.0
    %3426 = vmatprep.subr.mxu0 0.0
    %3427 = vmatpush1.msra.mxu0 0.0
    %3428 = vmatprep.mubr.f32.mxu0 0.0
    %3429 = vmatmul.mubr.f32.gmra.mrb[0].mxu0 %v3292
    %v3430 = vpop.f32.mrb[0].mxu0
    %v3431 = vadd.f32 %v847, %v3430
    %v3432 = vpop.f32.mrb[0].mxu0
    %3433 = vdwg.mxu0
    %v3434 = vadd.f32 %v3289, %v3360
    %v3435 = vxor.u32 %v3434, 2147483648
    %v3436 = vmul.f32 %v3435, 1.442695
    %v3437 = vpow.pop %v3436
    %v3438 = vadd.f32 %v3437, 1.0
    %v3439 = vrcp.pop %v3438
    %v3440 = vmul.f32 1.0, %v3439
    %v3441 = vadd.f32 %v3290, %v3362
    %v3442 = vxor.u32 %v3441, 2147483648
    %v3443 = vmul.f32 %v3442, 1.442695
    %v3444 = vpow.pop %v3443
    %v3445 = vadd.f32 %v3444, 1.0
    %v3446 = vrcp.pop %v3445
    %v3447 = vmul.f32 1.0, %v3446
    %v3448 = vmul.f32 %v3440, %v3431
    %v3449 = vadd.f32 %v3291, %v3448
    %v3450 = vtanh.pop %v3449
    %v3451 = vsub.f32 1.0, %v3447
    %v3452 = vmul.f32 %v3451, %v3450
    %v3453 = vmul.f32 %v3447, %v3292
    %v3454 = vadd.f32 %v3452, %v3453
    %v3455 = vsel %vm825, %v3454, %v3292
    %3456 = vst [vmem:[#allocation6] sm:$0xff] %v3455
    %v3457 = vsel %vm825, %v3454, 0.0
    %3458 = vst [vmem:[#allocation4] sm:$0xff] %v3457
    %v3459 = vld [vmem:[#allocation3] sm:$0xff]
    %v3460 = vld [vmem:[#allocation3 + $0x8] sm:$0xff]
    %v3461 = vld [vmem:[#allocation3 + $0x10] sm:$0xff]
    %v3462 = vld [vmem:[#allocation3 + $0x18] sm:$0xff]
    %v3463 = vld [vmem:[#allocation3 + $0x20] sm:$0xff]
    %v3464 = vld [vmem:[#allocation3 + $0x28] sm:$0xff]
    %v3465 = vld [vmem:[#allocation3 + $0x30] sm:$0xff]
    %v3466 = vld [vmem:[#allocation3 + $0x38] sm:$0xff]
    %v3467 = vld [vmem:[#allocation4] sm:$0xff]
    %v3468 = vld [vmem:[#allocation4 + $0x8] sm:$0xff]
    %v3469 = vld [vmem:[#allocation4 + $0x10] sm:$0xff]
    %v3470 = vld [vmem:[#allocation4 + $0x18] sm:$0xff]
    %v3471 = vld [vmem:[#allocation4 + $0x20] sm:$0xff]
    %v3472 = vld [vmem:[#allocation4 + $0x28] sm:$0xff]
    %v3473 = vld [vmem:[#allocation4 + $0x30] sm:$0xff]
    %v3474 = vld [vmem:[#allocation4 + $0x38] sm:$0xff]
    %v3475 = vld [vmem:[#allocation11] sm:$0xff]
    %v3476 = vld [vmem:[#allocation11 + $0x8] sm:$0xff]
    %v3477 = vld [vmem:[#allocation11 + $0x10] sm:$0xff]
    %v3478 = vld [vmem:[#allocation11 + $0x18] sm:$0xff]
    %v3479 = vld [vmem:[#allocation11 + $0x20] sm:$0xff]
    %v3480 = vld [vmem:[#allocation11 + $0x28] sm:$0xff]
    %v3481 = vld [vmem:[#allocation11 + $0x30] sm:$0xff]
    %v3482 = vld [vmem:[#allocation11 + $0x38] sm:$0xff]
    %v3483 = vld [vmem:[#allocation11 + $0x40] sm:$0xff]
    %v3484 = vld [vmem:[#allocation11 + $0x48] sm:$0xff]
    %v3485 = vld [vmem:[#allocation11 + $0x50] sm:$0xff]
    %v3486 = vld [vmem:[#allocation11 + $0x58] sm:$0xff]
    %v3487 = vld [vmem:[#allocation11 + $0x60] sm:$0xff]
    %v3488 = vld [vmem:[#allocation11 + $0x68] sm:$0xff]
    %v3489 = vld [vmem:[#allocation11 + $0x70] sm:$0xff]
    %v3490 = vld [vmem:[#allocation11 + $0x78] sm:$0xff]
    %v3491 = vld [vmem:[#allocation11 + $0x80] sm:$0xff]
    %v3492 = vld [vmem:[#allocation11 + $0x88] sm:$0xff]
    %v3493 = vld [vmem:[#allocation11 + $0x90] sm:$0xff]
    %v3494 = vld [vmem:[#allocation11 + $0x98] sm:$0xff]
    %v3495 = vld [vmem:[#allocation11 + $0xa0] sm:$0xff]
    %v3496 = vld [vmem:[#allocation11 + $0xa8] sm:$0xff]
    %v3497 = vld [vmem:[#allocation11 + $0xb0] sm:$0xff]
    %v3498 = vld [vmem:[#allocation11 + $0xb8] sm:$0xff]
    %v3499 = vld [vmem:[#allocation11 + $0xc0] sm:$0xff]
    %v3500 = vld [vmem:[#allocation11 + $0xc8] sm:$0xff]
    %v3501 = vld [vmem:[#allocation11 + $0xd0] sm:$0xff]
    %v3502 = vld [vmem:[#allocation11 + $0xd8] sm:$0xff]
    %v3503 = vld [vmem:[#allocation11 + $0xe0] sm:$0xff]
    %v3504 = vld [vmem:[#allocation11 + $0xe8] sm:$0xff]
    %v3505 = vld [vmem:[#allocation11 + $0xf0] sm:$0xff]
    %v3506 = vld [vmem:[#allocation11 + $0xf8] sm:$0xff]
    %v3507 = vpack.c.bf16 %v3460, %v3459
    %v3508 = vpack.c.bf16 %v3462, %v3461
    %v3509 = vpack.c.bf16 %v3464, %v3463
    %v3510 = vpack.c.bf16 %v3466, %v3465
    %v3511 = vpack.c.bf16 %v3476, %v3475
    %v3512 = vpack.c.bf16 %v3478, %v3477
    %v3513 = vpack.c.bf16 %v3480, %v3479
    %v3514 = vpack.c.bf16 %v3482, %v3481
    %v3515 = vpack.c.bf16 %v3484, %v3483
    %v3516 = vpack.c.bf16 %v3486, %v3485
    %v3517 = vpack.c.bf16 %v3488, %v3487
    %v3518 = vpack.c.bf16 %v3490, %v3489
    %v3519 = vpack.c.bf16 %v3468, %v3467
    %v3520 = vpack.c.bf16 %v3470, %v3469
    %v3521 = vpack.c.bf16 %v3472, %v3471
    %v3522 = vpack.c.bf16 %v3474, %v3473
    %v3523 = vpack.c.bf16 %v3492, %v3491
    %v3524 = vpack.c.bf16 %v3494, %v3493
    %v3525 = vpack.c.bf16 %v3496, %v3495
    %v3526 = vpack.c.bf16 %v3498, %v3497
    %v3527 = vpack.c.bf16 %v3500, %v3499
    %v3528 = vpack.c.bf16 %v3502, %v3501
    %v3529 = vpack.c.bf16 %v3504, %v3503
    %v3530 = vpack.c.bf16 %v3506, %v3505
    %3531 = vmatprep.subr.bf16.mxu0 0
    %3532 = vmatpush1.bf16.msra.mxu0 %v3523
    %3533 = vmatprep.subr.bf16.mxu0 0
    %3534 = vmatpush1.bf16.msra.mxu0 %v3524
    %3535 = vmatprep.subr.bf16.mxu0 0
    %3536 = vmatpush1.bf16.msra.mxu0 %v3525
    %3537 = vmatprep.subr.bf16.mxu0 0
    %3538 = vmatpush1.bf16.msra.mxu0 %v3526
    %3539 = vmatprep.subr.bf16.mxu0 0
    %3540 = vmatpush1.bf16.msra.mxu0 %v3527
    %3541 = vmatprep.subr.bf16.mxu0 0
    %3542 = vmatpush1.bf16.msra.mxu0 %v3528
    %3543 = vmatprep.subr.bf16.mxu0 0
    %3544 = vmatpush1.bf16.msra.mxu0 %v3529
    %3545 = vmatprep.subr.bf16.mxu0 0
    %3546 = vmatpush1.bf16.msra.mxu0 %v3530
    %3547 = vmatprep.subr.bf16.mxu0 0
    %3548 = vmatpush1.bf16.msra.mxu0 0
    %3549 = vmatprep.subr.bf16.mxu0 0
    %3550 = vmatpush1.bf16.msra.mxu0 0
    %3551 = vmatprep.subr.bf16.mxu0 0
    %3552 = vmatpush1.bf16.msra.mxu0 0
    %3553 = vmatprep.subr.bf16.mxu0 0
    %3554 = vmatpush1.bf16.msra.mxu0 0
    %3555 = vmatprep.subr.bf16.mxu0 0
    %3556 = vmatpush1.bf16.msra.mxu0 0
    %3557 = vmatprep.subr.bf16.mxu0 0
    %3558 = vmatpush1.bf16.msra.mxu0 0
    %3559 = vmatprep.subr.bf16.mxu0 0
    %3560 = vmatpush1.bf16.msra.mxu0 0
    %3561 = vmatprep.subr.bf16.mxu0 0
    %3562 = vmatpush1.bf16.msra.mxu0 0
    %3563 = vmatprep.mubr.bf16.mxu0 0
    %3564 = vmatmul.mubr.bf16.gmra.mrb[0].mxu0 %v3519
    %v3565 = vpop.f32.mrb[0].mxu0
    %v3566 = vadd.f32 0.0, %v3565
    %v3567 = vpop.f32.mrb[0].mxu0
    %v3568 = vpop.f32.mrb[0].mxu0
    %v3569 = vadd.f32 0.0, %v3568
    %v3570 = vpop.f32.mrb[0].mxu0
    %3571 = vmatprep.mubr.bf16.mxu0 0
    %3572 = vmatmul.mubr.bf16.gmra.mrb[0].mxu0 %v3520
    %v3573 = vpop.f32.mrb[0].mxu0
    %v3574 = vadd.f32 0.0, %v3573
    %v3575 = vpop.f32.mrb[0].mxu0
    %v3576 = vpop.f32.mrb[0].mxu0
    %v3577 = vadd.f32 0.0, %v3576
    %v3578 = vpop.f32.mrb[0].mxu0
    %3579 = vmatprep.mubr.bf16.mxu0 0
    %3580 = vmatmul.mubr.bf16.gmra.mrb[0].mxu0 %v3521
    %v3581 = vpop.f32.mrb[0].mxu0
    %v3582 = vadd.f32 0.0, %v3581
    %v3583 = vpop.f32.mrb[0].mxu0
    %v3584 = vpop.f32.mrb[0].mxu0
    %v3585 = vadd.f32 0.0, %v3584
    %v3586 = vpop.f32.mrb[0].mxu0
    %3587 = vmatprep.mubr.bf16.mxu0 0
    %3588 = vmatmul.mubr.bf16.gmra.mrb[0].mxu0 %v3522
    %v3589 = vpop.f32.mrb[0].mxu0
    %v3590 = vadd.f32 0.0, %v3589
    %v3591 = vpop.f32.mrb[0].mxu0
    %v3592 = vpop.f32.mrb[0].mxu0
    %v3593 = vadd.f32 0.0, %v3592
    %v3594 = vpop.f32.mrb[0].mxu0
    %3595 = vdwg.mxu0
    %3596 = vmatprep.subr.bf16.mxu0 0
    %3597 = vmatpush1.bf16.msra.mxu0 %v3511
    %3598 = vmatprep.subr.bf16.mxu0 0
    %3599 = vmatpush1.bf16.msra.mxu0 %v3512
    %3600 = vmatprep.subr.bf16.mxu0 0
    %3601 = vmatpush1.bf16.msra.mxu0 %v3513
    %3602 = vmatprep.subr.bf16.mxu0 0
    %3603 = vmatpush1.bf16.msra.mxu0 %v3514
    %3604 = vmatprep.subr.bf16.mxu0 0
    %3605 = vmatpush1.bf16.msra.mxu0 %v3515
    %3606 = vmatprep.subr.bf16.mxu0 0
    %3607 = vmatpush1.bf16.msra.mxu0 %v3516
    %3608 = vmatprep.subr.bf16.mxu0 0
    %3609 = vmatpush1.bf16.msra.mxu0 %v3517
    %3610 = vmatprep.subr.bf16.mxu0 0
    %3611 = vmatpush1.bf16.msra.mxu0 %v3518
    %3612 = vmatprep.subr.bf16.mxu0 0
    %3613 = vmatpush1.bf16.msra.mxu0 0
    %3614 = vmatprep.subr.bf16.mxu0 0
    %3615 = vmatpush1.bf16.msra.mxu0 0
    %3616 = vmatprep.subr.bf16.mxu0 0
    %3617 = vmatpush1.bf16.msra.mxu0 0
    %3618 = vmatprep.subr.bf16.mxu0 0
    %3619 = vmatpush1.bf16.msra.mxu0 0
    %3620 = vmatprep.subr.bf16.mxu0 0
    %3621 = vmatpush1.bf16.msra.mxu0 0
    %3622 = vmatprep.subr.bf16.mxu0 0
    %3623 = vmatpush1.bf16.msra.mxu0 0
    %3624 = vmatprep.subr.bf16.mxu0 0
    %3625 = vmatpush1.bf16.msra.mxu0 0
    %3626 = vmatprep.subr.bf16.mxu0 0
    %3627 = vmatpush1.bf16.msra.mxu0 0
    %3628 = vmatprep.mubr.bf16.mxu0 0
    %3629 = vmatmul.mubr.bf16.gmra.mrb[0].mxu0 %v3507
    %v3630 = vpop.f32.mrb[0].mxu0
    %v3631 = vadd.f32 %v3566, %v3630
    %v3632 = vpop.f32.mrb[0].mxu0
    %v3633 = vpop.f32.mrb[0].mxu0
    %v3634 = vadd.f32 %v3569, %v3633
    %v3635 = vpop.f32.mrb[0].mxu0
    %3636 = vmatprep.mubr.bf16.mxu0 0
    %3637 = vmatmul.mubr.bf16.gmra.mrb[0].mxu0 %v3508
    %v3638 = vpop.f32.mrb[0].mxu0
    %v3639 = vadd.f32 %v3574, %v3638
    %v3640 = vpop.f32.mrb[0].mxu0
    %v3641 = vpop.f32.mrb[0].mxu0
    %v3642 = vadd.f32 %v3577, %v3641
    %v3643 = vpop.f32.mrb[0].mxu0
    %3644 = vmatprep.mubr.bf16.mxu0 0
    %3645 = vmatmul.mubr.bf16.gmra.mrb[0].mxu0 %v3509
    %v3646 = vpop.f32.mrb[0].mxu0
    %v3647 = vadd.f32 %v3582, %v3646
    %v3648 = vpop.f32.mrb[0].mxu0
    %v3649 = vpop.f32.mrb[0].mxu0
    %v3650 = vadd.f32 %v3585, %v3649
    %v3651 = vpop.f32.mrb[0].mxu0
    %3652 = vmatprep.mubr.bf16.mxu0 0
    %3653 = vmatmul.mubr.bf16.gmra.mrb[0].mxu0 %v3510
    %v3654 = vpop.f32.mrb[0].mxu0
    %v3655 = vadd.f32 %v3590, %v3654
    %v3656 = vpop.f32.mrb[0].mxu0
    %v3657 = vpop.f32.mrb[0].mxu0
    %v3658 = vadd.f32 %v3593, %v3657
    %v3659 = vpop.f32.mrb[0].mxu0
    %3660 = vdwg.mxu0
    %v3661 = vld [vmem:[%s9] sm:$0x1]
    %v3663 = vlaneseq
    %v3664 = vshrl.u32 %v3663, 7
    %v3665 = vsub.s32 0, %v3664
    %v3666 = vrot.slane %v3661, %v3665
    %v3668 = vadd.f32 %v3631, %v3666
    %v3669 = vadd.f32 %v3634, %v3666
    %v3670 = vadd.f32 %v3639, %v3666
    %v3671 = vadd.f32 %v3642, %v3666
    %v3672 = vadd.f32 %v3647, %v3666
    %v3673 = vadd.f32 %v3650, %v3666
    %v3674 = vadd.f32 %v3655, %v3666
    %v3675 = vadd.f32 %v3658, %v3666
    %v3676 = vtanh.pop %v3668
    %v3677 = vtanh.pop %v3669
    %v3678 = vtanh.pop %v3670
    %v3679 = vtanh.pop %v3671
    %v3680 = vtanh.pop %v3672
    %v3681 = vtanh.pop %v3673
    %v3682 = vtanh.pop %v3674
    %v3683 = vtanh.pop %v3675
    %v3684 = vld [vmem:[%s10] sm:$0x1]
    %v3686 = vlaneseq
    %v3687 = vshrl.u32 %v3686, 7
    %v3688 = vsub.s32 0, %v3687
    %v3689 = vrot.slane %v3684, %v3688
    %v3691 = vmul.f32 %v3676, %v3689
    %v3692 = vmul.f32 %v3677, %v3689
    %v3693 = vmul.f32 %v3678, %v3689
    %v3694 = vmul.f32 %v3679, %v3689
    %v3695 = vmul.f32 %v3680, %v3689
    %v3696 = vmul.f32 %v3681, %v3689
    %v3697 = vmul.f32 %v3682, %v3689
    %v3698 = vmul.f32 %v3683, %v3689
    %3699 = vadd.xlane.f32.xlu0 %v3691
    %v3700 = vpop.xlane.xlu0 %3699
    %3701 = vadd.xlane.f32.xlu0 %v3692
    %v3702 = vpop.xlane.xlu0 %3701
    %3703 = vadd.xlane.f32.xlu0 %v3693
    %v3704 = vpop.xlane.xlu0 %3703
    %3705 = vadd.xlane.f32.xlu0 %v3694
    %v3706 = vpop.xlane.xlu0 %3705
    %3707 = vadd.xlane.f32.xlu0 %v3695
    %v3708 = vpop.xlane.xlu0 %3707
    %3709 = vadd.xlane.f32.xlu0 %v3696
    %v3710 = vpop.xlane.xlu0 %3709
    %3711 = vadd.xlane.f32.xlu0 %v3697
    %v3712 = vpop.xlane.xlu0 %3711
    %3713 = vadd.xlane.f32.xlu0 %v3698
    %v3714 = vpop.xlane.xlu0 %3713
    %v3715 = vsel %vm820, %v3700, -1e+30
    %v3716 = vsel %vm1191, %v3702, -1e+30
    %v3717 = vsel %vm1547, %v3704, -1e+30
    %v3718 = vsel %vm1903, %v3706, -1e+30
    %v3719 = vsel %vm2081, %v3708, -1e+30
    %v3720 = vsel %vm1725, %v3710, -1e+30
    %v3721 = vsel %vm1369, %v3712, -1e+30
    %v3722 = vsel %vm1013, %v3714, -1e+30
    %vm3723 = vcmask 7168
    %v3724 = vsel %vm3723, %v3715, -inf
    %v3725 = vsel %vm3723, %v3716, -inf
    %v3726 = vsel %vm3723, %v3717, -inf
    %v3727 = vsel %vm3723, %v3718, -inf
    %v3728 = vsel %vm3723, %v3719, -inf
    %v3729 = vmax.f32 %v3724, %v3728
    %v3730 = vsel %vm3723, %v3720, -inf
    %v3731 = vmax.f32 %v3725, %v3730
    %v3732 = vsel %vm3723, %v3721, -inf
    %v3733 = vmax.f32 %v3726, %v3732
    %v3734 = vsel %vm3723, %v3722, -inf
    %v3735 = vmax.f32 %v3727, %v3734
    %v3736 = vmax.f32 %v3729, %v3731
    %v3737 = vmax.f32 %v3733, %v3735
    %v3738 = vmax.f32 %v3736, %v3737
    %v3739 = vsub.f32 %v3715, %v3738
    %v3740 = vsub.f32 %v3716, %v3738
    %v3741 = vsub.f32 %v3717, %v3738
    %v3742 = vsub.f32 %v3718, %v3738
    %v3743 = vsub.f32 %v3719, %v3738
    %v3744 = vsub.f32 %v3720, %v3738
    %v3745 = vsub.f32 %v3721, %v3738
    %v3746 = vsub.f32 %v3722, %v3738
    %v3747 = vmul.f32 %v3739, 1.442695
    %v3748 = vpow.pop %v3747
    %v3749 = vmul.f32 %v3740, 1.442695
    %v3750 = vpow.pop %v3749
    %v3751 = vmul.f32 %v3741, 1.442695
    %v3752 = vpow.pop %v3751
    %v3753 = vmul.f32 %v3742, 1.442695
    %v3754 = vpow.pop %v3753
    %v3755 = vmul.f32 %v3743, 1.442695
    %v3756 = vpow.pop %v3755
    %v3757 = vmul.f32 %v3744, 1.442695
    %v3758 = vpow.pop %v3757
    %v3759 = vmul.f32 %v3745, 1.442695
    %v3760 = vpow.pop %v3759
    %v3761 = vmul.f32 %v3746, 1.442695
    %v3762 = vpow.pop %v3761
    %v3763 = vsel %vm820, %v3748, 0.0
    %v3764 = vsel %vm1191, %v3750, 0.0
    %v3765 = vsel %vm1547, %v3752, 0.0
    %v3766 = vsel %vm1903, %v3754, 0.0
    %v3767 = vsel %vm2081, %v3756, 0.0
    %v3768 = vsel %vm1725, %v3758, 0.0
    %v3769 = vsel %vm1369, %v3760, 0.0
    %v3770 = vsel %vm1013, %v3762, 0.0
    %v3771 = vsel %vm3723, %v3763, 0.0
    %v3772 = vsel %vm3723, %v3764, 0.0
    %v3773 = vadd.f32 %v3771, %v3772
    %v3774 = vsel %vm3723, %v3765, 0.0
    %v3775 = vadd.f32 %v3773, %v3774
    %v3776 = vsel %vm3723, %v3766, 0.0
    %v3777 = vadd.f32 %v3775, %v3776
    %v3778 = vsel %vm3723, %v3767, 0.0
    %v3779 = vadd.f32 %v3777, %v3778
    %v3780 = vsel %vm3723, %v3768, 0.0
    %v3781 = vadd.f32 %v3779, %v3780
    %v3782 = vsel %vm3723, %v3769, 0.0
    %v3783 = vadd.f32 %v3781, %v3782
    %v3784 = vsel %vm3723, %v3770, 0.0
    %v3785 = vadd.f32 %v3783, %v3784
    %v3786 = vmax.f32 %v3785, 1e-20
    %v3787 = vrcp.pop %v3786
    %v3788 = vmul.f32 %v3763, %v3787
    %v3789 = vmul.f32 %v3764, %v3787
    %v3790 = vmul.f32 %v3765, %v3787
    %v3791 = vmul.f32 %v3766, %v3787
    %v3792 = vmul.f32 %v3767, %v3787
    %v3793 = vmul.f32 %v3768, %v3787
    %v3794 = vmul.f32 %v3769, %v3787
    %v3795 = vmul.f32 %v3770, %v3787
    %3796 = vst.msk [vmem:[%s12] sm:$0xff] %vm3723, %v3788
    %3797 = vst.msk [vmem:[%s12 + $0x8] sm:$0xff] %vm3723, %v3789
    %3798 = vst.msk [vmem:[%s12 + $0x10] sm:$0xff] %vm3723, %v3790
    %3799 = vst.msk [vmem:[%s12 + $0x18] sm:$0xff] %vm3723, %v3791
    %3800 = vst.msk [vmem:[%s12 + $0x20] sm:$0xff] %vm3723, %v3792
    %3801 = vst.msk [vmem:[%s12 + $0x28] sm:$0xff] %vm3723, %v3793
    %3802 = vst.msk [vmem:[%s12 + $0x30] sm:$0xff] %vm3723, %v3794
    %3803 = vst.msk [vmem:[%s12 + $0x38] sm:$0xff] %vm3723, %v3795
    %3805 = vset.pattern.permute.xlu0 0
    %3806 = vperm.xlu0 %3805, %v3788
    %v3807 = vpop.permute.xlu0 %3806
    %3810 = vset.pattern.permute.xlu0 0
    %3811 = vperm.xlu0 %3810, %v3789
    %v3812 = vpop.permute.xlu0 %3811
    %3815 = vset.pattern.permute.xlu0 0
    %3816 = vperm.xlu0 %3815, %v3790
    %v3817 = vpop.permute.xlu0 %3816
    %3820 = vset.pattern.permute.xlu0 0
    %3821 = vperm.xlu0 %3820, %v3791
    %v3822 = vpop.permute.xlu0 %3821
    %3825 = vset.pattern.permute.xlu0 0
    %3826 = vperm.xlu0 %3825, %v3792
    %v3827 = vpop.permute.xlu0 %3826
    %3830 = vset.pattern.permute.xlu0 0
    %3831 = vperm.xlu0 %3830, %v3793
    %v3832 = vpop.permute.xlu0 %3831
    %3835 = vset.pattern.permute.xlu0 0
    %3836 = vperm.xlu0 %3835, %v3794
    %v3837 = vpop.permute.xlu0 %3836
    %3840 = vset.pattern.permute.xlu0 0
    %3841 = vperm.xlu0 %3840, %v3795
    %v3842 = vpop.permute.xlu0 %3841
    %v3844 = vmul.f32 %v3459, %v3807
    %v3845 = vmul.f32 %v3460, %v3812
    %v3846 = vmul.f32 %v3461, %v3817
    %v3847 = vmul.f32 %v3462, %v3822
    %v3848 = vmul.f32 %v3463, %v3827
    %v3849 = vmul.f32 %v3464, %v3832
    %v3850 = vmul.f32 %v3465, %v3837
    %v3851 = vmul.f32 %v3466, %v3842
    %v3852 = vadd.f32 %v3844, %v3845
    %v3853 = vadd.f32 %v3852, %v3846
    %v3854 = vadd.f32 %v3853, %v3847
    %v3855 = vadd.f32 %v3854, %v3848
    %v3856 = vadd.f32 %v3855, %v3849
    %v3857 = vadd.f32 %v3856, %v3850
    %v3858 = vadd.f32 %v3857, %v3851
    %v3859 = vmul.f32 %v3467, %v3807
    %v3860 = vmul.f32 %v3468, %v3812
    %v3861 = vmul.f32 %v3469, %v3817
    %v3862 = vmul.f32 %v3470, %v3822
    %v3863 = vmul.f32 %v3471, %v3827
    %v3864 = vmul.f32 %v3472, %v3832
    %v3865 = vmul.f32 %v3473, %v3837
    %v3866 = vmul.f32 %v3474, %v3842
    %v3867 = vadd.f32 %v3859, %v3860
    %v3868 = vadd.f32 %v3867, %v3861
    %v3869 = vadd.f32 %v3868, %v3862
    %v3870 = vadd.f32 %v3869, %v3863
    %v3871 = vadd.f32 %v3870, %v3864
    %v3872 = vadd.f32 %v3871, %v3865
    %v3873 = vadd.f32 %v3872, %v3866
    %3874 = vst [vmem:[%s11] sm:$0xff] %v3858
    %3875 = vst [vmem:[%s11 + $0x8] sm:$0xff] %v3873
    // Predicated region
    $region58: #{han_forward.2} parent=1 // pred_check
      _
    $region59: #{han_forward.2} parent=1 // pred_check_branch
      %3877 = sbr.rel (0) target = $region61
    $region60: #{han_forward.2} parent=1 // pred_region
      _
    $region61: #{han_forward.2} parent=1 // pred_fallthru
      _
    // Predicated region
    $region62: #{han_forward.2} parent=1 // pred_check
      _
    $region63: #{han_forward.2} parent=1 // pred_check_branch
      %3879 = sbr.rel (0) target = $region65
    $region64: #{han_forward.2} parent=1 // pred_region
      _
    $region65: #{han_forward.2} parent=1 // pred_fallthru
      _
    // Predicated region
    $region66: #{han_forward.2} parent=1 // pred_check
      _
    $region67: #{han_forward.2} parent=1 // pred_check_branch
      %3881 = sbr.rel (0) target = $region69
    $region68: #{han_forward.2} parent=1 // pred_region
      _
    $region69: #{han_forward.2} parent=1 // pred_fallthru
      _
    // Predicated region
    $region70: #{han_forward.2} parent=1 // pred_check
      _
    $region71: #{han_forward.2} parent=1 // pred_check_branch
      %3883 = sbr.rel (0) target = $region73
    $region72: #{han_forward.2} parent=1 // pred_region
      _
    $region73: #{han_forward.2} parent=1 // pred_fallthru
      _
    %3884 = vsyncpa [#allocation8], 1
    %3885 = vsyncpa [#allocation10], 1

</llo_original>
